<compile_context>
chip_gen: v7x
topology: tpu7x:2x2x1
jax: 0.10.0
libtpu: 0.0.40
codegen_flags: <defaults>
</compile_context>

<pallas_src>
import functools

import jax
import jax.numpy as jnp
from jax import lax
from jax.experimental import pallas as pl
from jax.experimental.pallas import tpu as pltpu

EPS = 1e-5       # PyTorch InstanceNorm2d default eps (affine=False, biased var)
_LANE = 128


def _round_up(x, m):
    return (x + m - 1) // m * m


# ------------------------ in-kernel helpers ------------------------

def _instance_norm(acc, inv_n):
    # acc: (H*W, C) f32.  Centered two-pass variance (better conditioned than
    # E[x^2] - mu^2; the centered tensor is needed for normalization anyway).
    mu = jnp.sum(acc, axis=0, keepdims=True) * inv_n
    d = acc - mu
    var = jnp.sum(d * d, axis=0, keepdims=True) * inv_n
    return d * lax.rsqrt(var + EPS)


def _conv3x3_dots(src_ref, w_ref, H, W, C, mm_dtype):
    # 9 back-to-back accumulating MXU dots; taps are sliced straight from the
    # resident padded source ref at their point of use (least VMEM traffic,
    # MRB-friendly on v7x).
    w = w_ref[...]                                    # (9, Cin, Cout) mm_dtype
    acc = jnp.zeros((H * W, C), jnp.float32)
    for dy in range(3):
        for dx in range(3):
            t = dy * 3 + dx
            tap = src_ref[dy:dy + H, dx:dx + W, :].reshape(H * W, C)
            acc = acc + jnp.dot(tap.astype(mm_dtype), w[t],
                                preferred_element_type=jnp.float32)
    return acc


def _conv3x3_im2col(src_ref, slab_ref, w_ref, H, W, C, mm_dtype):
    # Opt-in: (H*W, 9C) im2col slab in VMEM (mm_dtype, per-tap cast) + one
    # big-K MXU matmul (single result drain).  Only worth it if a bundle dump
    # shows the MXU idling on drains on v5e/v6e; never use on v7x.
    for dy in range(3):
        for dx in range(3):
            t = dy * 3 + dx
            slab_ref[:, t * C:(t + 1) * C] = (
                src_ref[dy:dy + H, dx:dx + W, :]
                .reshape(H * W, C).astype(mm_dtype))
    w = w_ref[...].reshape(9 * C, C)
    return jnp.dot(slab_ref[...], w, preferred_element_type=jnp.float32)


# ------------------------ Pallas kernel ------------------------

def residual_block_kernel(xp_ref, w1_ref, w2_ref, o_ref, pad_ref, *maybe_slab,
                          H, W, C, mm_dtype, use_im2col):
    slab_ref = maybe_slab[0] if use_im2col else None
    inv_n = jnp.float32(1.0 / (H * W))

    def conv(src_ref, w_ref):
        if use_im2col:
            return _conv3x3_im2col(src_ref, slab_ref, w_ref, H, W, C, mm_dtype)
        return _conv3x3_dots(src_ref, w_ref, H, W, C, mm_dtype)

    # ---- conv1 (biases elided: cancelled exactly by the non-affine
    #      InstanceNorm that follows) + InstanceNorm + ReLU ----
    z = jnp.maximum(_instance_norm(conv(xp_ref, w1_ref), inv_n), 0.0)
    z = z.astype(mm_dtype).reshape(H, W, C)

    # ---- reflect-pad z into mm_dtype VMEM scratch (stores + boundary fixups,
    #      no concatenate materializations) ----
    pad_ref[1:H + 1, 1:W + 1, :] = z
    pad_ref[1:H + 1, 0:1, :] = z[:, 1:2, :]                   # left  col <- col 1
    pad_ref[1:H + 1, W + 1:W + 2, :] = z[:, W - 2:W - 1, :]   # right col <- col W-2
    pad_ref[0:1, :, :] = pad_ref[2:3, :, :]                   # top row (incl. corners)
    pad_ref[H + 1:H + 2, :, :] = pad_ref[H - 1:H, :, :]       # bottom row

    # ---- conv2 + InstanceNorm + residual ----
    y = _instance_norm(conv(pad_ref, w2_ref), inv_n).reshape(H, W, C)
    x = xp_ref[1:H + 1, 1:W + 1, :]          # residual slice, loaded only here
    o_ref[...] = (x + y).astype(o_ref.dtype)


# ------------------------ wrappers ------------------------

def prepare_weights(w1_pt, w2_pt, matmul_dtype=jnp.bfloat16, lane_pad=True):
    """One-time param prep (hoist out of the model loop): OIHW [C,C,3,3] ->
    [9, Cin, Cout] in the MXU operand dtype, zero-padded to a multiple of 128
    channels so kernel stores are lane-dense even for small C.  Zero-padding
    is exact through conv -> non-affine InstanceNorm -> conv -> residual."""
    C = w1_pt.shape[0]
    Cp = _round_up(C, _LANE) if lane_pad else C

    def prep(w):
        w = jnp.transpose(w, (2, 3, 1, 0)).reshape(9, C, C)
        if Cp != C:
            w = jnp.pad(w, ((0, 0), (0, Cp - C), (0, Cp - C)))
        return w.astype(matmul_dtype)

    return prep(w1_pt), prep(w2_pt)


def _vmem_limit_bytes(est):
    # Generation-aware cap: ~80% of physical VMEM (v5e/v6e 128 MiB -> ~102 MiB,
    # v7x 64 MiB -> ~51 MiB); 64 MiB fallback if the query is unavailable.
    cap = 64 * 2 ** 20
    try:
        phys = getattr(pltpu.get_tpu_info(), "vmem_capacity_bytes", None)
        if phys:
            cap = int(phys * 0.8)
    except Exception:
        pass
    return int(min(cap, max(32 * 2 ** 20, 2 * est)))


@functools.partial(jax.jit, static_argnames=("conv_impl",))
def residual_block_nhwc(x_nhwc, w1, w2, *, conv_impl="dots"):
    """Hot path: NHWC activations; w1/w2 from prepare_weights (possibly
    lane-padded, dtype = MXU operand dtype)."""
    B, H, W, C = x_nhwc.shape
    assert H >= 2 and W >= 2, "ReflectionPad2d(1) requires H, W >= 2"
    Cp = w1.shape[-1]
    assert w1.shape == (9, Cp, Cp) and w2.shape == (9, Cp, Cp) and Cp >= C
    mm_dtype = w1.dtype
    use_im2col = conv_impl == "im2col"

    if Cp != C:                      # lane-dense channel padding (exact, see prepare_weights)
        x_nhwc = jnp.pad(x_nhwc, ((0, 0), (0, 0), (0, 0), (0, Cp - C)))

    # First reflect-pad done once with a cheap XLA pad: the kernel never builds
    # a padded copy of x and the residual slice is free.
    xp = jnp.pad(x_nhwc, ((0, 0), (1, 1), (1, 1), (0, 0)), mode="reflect")

    mm_item = jnp.dtype(mm_dtype).itemsize
    n_pad, n = (H + 2) * (W + 2), H * W
    scratch = [pltpu.VMEM((H + 2, W + 2, Cp), mm_dtype)]      # reflect-pad buf
    if use_im2col:
        scratch.append(pltpu.VMEM((n, 9 * Cp), mm_dtype))     # im2col slab

    est = (2 * n_pad * Cp * 4                  # input block  (x2 pipeline bufs)
           + 2 * n * Cp * 4                    # output block (x2)
           + 2 * 2 * 9 * Cp * Cp * mm_item     # weights (constant-index; pipeline
                                               #  may still double-buffer them)
           + n_pad * Cp * mm_item              # reflect-pad scratch
           + (n * 9 * Cp * mm_item if use_im2col else 0)
           + 6 * n * Cp * 4)                   # in-flight f32 temporaries

    kernel = functools.partial(residual_block_kernel, H=H, W=W, C=Cp,
                               mm_dtype=mm_dtype, use_im2col=use_im2col)
    out = pl.pallas_call(
        kernel,
        out_shape=jax.ShapeDtypeStruct((B, H, W, Cp), x_nhwc.dtype),
        grid_spec=pltpu.PrefetchScalarGridSpec(
            num_scalar_prefetch=0,
            grid=(B,),
            in_specs=[
                pl.BlockSpec((None, H + 2, W + 2, Cp), lambda b: (b, 0, 0, 0)),
                pl.BlockSpec((9, Cp, Cp), lambda b: (0, 0, 0)),
                pl.BlockSpec((9, Cp, Cp), lambda b: (0, 0, 0)),
            ],
            out_specs=pl.BlockSpec((None, H, W, Cp), lambda b: (b, 0, 0, 0)),
            scratch_shapes=scratch),
        compiler_params=pltpu.CompilerParams(
            dimension_semantics=("parallel",),
            vmem_limit_bytes=_vmem_limit_bytes(est)),
    )(xp, w1, w2)
    return out[..., :C] if Cp != C else out


def residual_block(x_nchw, w1_pt, b1, w2_pt, b2, *, matmul_dtype=jnp.bfloat16,
                   conv_impl="dots", lane_pad=True):
    """Drop-in NCHW wrapper matching the PyTorch module.

    b1/b2 are accepted for signature compatibility but unused: each conv is
    immediately followed by a non-affine InstanceNorm2d whose mean subtraction
    cancels any per-channel constant exactly.  (Do not reuse this kernel for
    affine=True or norm-less variants.)  In a real model call prepare_weights()
    once and keep activations NHWC so the transposes below are off the hot path.
    """
    del b1, b2
    w1, w2 = prepare_weights(w1_pt, w2_pt, matmul_dtype, lane_pad=lane_pad)
    x = jnp.transpose(x_nchw, (0, 2, 3, 1))
    out = residual_block_nhwc(x, w1, w2, conv_impl=conv_impl)
    return jnp.transpose(out, (0, 3, 1, 2))


# ------------------------ pure-JAX reference ------------------------

def reference(x_nchw, w1, b1, w2, b2):
    def conv(x, w, b):
        xp = jnp.pad(x, ((0, 0), (0, 0), (1, 1), (1, 1)), mode="reflect")
        y = lax.conv_general_dilated(
            xp, w, (1, 1), "VALID",
            dimension_numbers=("NCHW", "OIHW", "NCHW"),
            precision=lax.Precision.HIGHEST)
        return y + b.reshape(1, -1, 1, 1)

    def inorm(y):
        mu = jnp.mean(y, axis=(2, 3), keepdims=True)
        var = jnp.mean((y - mu) ** 2, axis=(2, 3), keepdims=True)
        return (y - mu) / jnp.sqrt(var + EPS)

    y = jnp.maximum(inorm(conv(x_nchw, w1, b1)), 0.0)
    y = inorm(conv(y, w2, b2))
    return x_nchw + y


# ------------------------ test ------------------------

if __name__ == "__main__":
    def make_inputs(key, B, C, H, W):
        kx, kw1, kb1, kw2, kb2 = jax.random.split(key, 5)
        fan_in = C * 9
        bound = 1.0 / (fan_in ** 0.5)
        x = jax.random.normal(kx, (B, C, H, W), jnp.float32)
        w1 = jax.random.uniform(kw1, (C, C, 3, 3), jnp.float32, -bound, bound)
        b1 = jax.random.uniform(kb1, (C,), jnp.float32, -bound, bound)
        w2 = jax.random.uniform(kw2, (C, C, 3, 3), jnp.float32, -bound, bound)
        b2 = jax.random.uniform(kb2, (C,), jnp.float32, -bound, bound)
        return x, w1, b1, w2, b2

    # --- test 1: module-spec small shape (C=4, lane-padded to 128) ---
    x, w1, b1, w2, b2 = make_inputs(jax.random.PRNGKey(0), 2, 4, 16, 16)
    ref = jax.block_until_ready(reference(x, w1, b1, w2, b2))

    out = jax.block_until_ready(residual_block(x, w1, b1, w2, b2))   # bf16 default
    assert out.shape == x.shape
    err = float(jnp.max(jnp.abs(out - ref)))
    assert err < 0.15, f"bf16/C=4 max err {err}"

    out32 = jax.block_until_ready(
        residual_block(x, w1, b1, w2, b2, matmul_dtype=jnp.float32))
    err = float(jnp.max(jnp.abs(out32 - ref)))
    assert err < 5e-3, f"f32/C=4 max err {err}"

    # --- test 2: natively lane-dense shape (C=128) ---
    x, w1, b1, w2, b2 = make_inputs(jax.random.PRNGKey(1), 2, 128, 8, 8)
    ref = jax.block_until_ready(reference(x, w1, b1, w2, b2))

    for impl in ("dots", "im2col"):
        out32 = jax.block_until_ready(residual_block(
            x, w1, b1, w2, b2, matmul_dtype=jnp.float32, conv_impl=impl))
        err = float(jnp.max(jnp.abs(out32 - ref)))
        assert err < 5e-2, f"f32/C=128/{impl} max err {err}"

    out_bf16 = jax.block_until_ready(residual_block(x, w1, b1, w2, b2))
    err = float(jnp.max(jnp.abs(out_bf16 - ref)))
    assert err < 0.2, f"bf16/C=128 max err {err}"

    print("KERNEL_OK")
</pallas_src>

<mosaic_0001>
module attributes {stable_mosaic.version = 11 : i64} {
  func.func @residual_block_kernel(%arg0: i32, %arg1: memref<1x18x18x128xf32, #tpu.memory_space<vmem>>, %arg2: memref<9x128x128xbf16, #tpu.memory_space<vmem>>, %arg3: memref<9x128x128xbf16, #tpu.memory_space<vmem>>, %arg4: memref<1x16x16x128xf32, #tpu.memory_space<vmem>>, %arg5: memref<18x18x128xbf16, #tpu.memory_space<vmem>>) attributes {dimension_semantics = [#tpu.dimension_semantics<parallel>], iteration_bounds = array<i64: 2>, scalar_prefetch = 0 : i64, scratch_operands = 1 : i64, tpu.core_type = #tpu.core_type<tc>, window_params = [{transform_indices = @transform_0, window_bounds = array<i64: 1, 18, 18, 128>}, {pipeline_mode = #tpu.pipeline_mode<synchronous>, transform_indices = @transform_1, window_bounds = array<i64: 9, 128, 128>}, {pipeline_mode = #tpu.pipeline_mode<synchronous>, transform_indices = @transform_2, window_bounds = array<i64: 9, 128, 128>}, {transform_indices = @transform_3, window_bounds = array<i64: 1, 16, 16, 128>}]} {
    %c0 = arith.constant 0 : index
    %c0_0 = arith.constant 0 : index
    %c0_1 = arith.constant 0 : index
    %0 = vector.load %arg2[%c0, %c0_0, %c0_1] : memref<9x128x128xbf16, #tpu.memory_space<vmem>>, vector<9x128x128xbf16>
    %cst = arith.constant 0.000000e+00 : f32
    %1 = vector.broadcast %cst : f32 to vector<256x128xf32>
    %c0_2 = arith.constant 0 : index
    %c0_3 = arith.constant 0 : index
    %c0_4 = arith.constant 0 : index
    %c0_5 = arith.constant 0 : index
    %2 = vector.load %arg1[%c0_2, %c0_3, %c0_4, %c0_5] : memref<1x18x18x128xf32, #tpu.memory_space<vmem>>, vector<1x16x16x128xf32>
    %3 = vector.shape_cast %2 : vector<1x16x16x128xf32> to vector<16x16x128xf32>
    %4 = vector.shape_cast %3 : vector<16x16x128xf32> to vector<256x128xf32>
    %5 = arith.truncf %4 : vector<256x128xf32> to vector<256x128xbf16>
    %6 = vector.extract_strided_slice %0 {offsets = [0, 0, 0], sizes = [1, 128, 128], strides = [1, 1, 1]} : vector<9x128x128xbf16> to vector<1x128x128xbf16>
    %7 = vector.shape_cast %6 : vector<1x128x128xbf16> to vector<128x128xbf16>
    %cst_6 = arith.constant dense<0.000000e+00> : vector<256x128xf32>
    %8 = tpu.matmul %5, %7, %cst_6 {dimension_numbers = #tpu.dot_dimension_numbers<[1], [0], [0], [1], [0, 0, 1, 1], [], []>} : vector<256x128xbf16>, vector<128x128xbf16>, vector<256x128xf32> -> vector<256x128xf32>
    %9 = arith.addf %1, %8 : vector<256x128xf32>
    %c0_7 = arith.constant 0 : index
    %c0_8 = arith.constant 0 : index
    %c1 = arith.constant 1 : index
    %c0_9 = arith.constant 0 : index
    %10 = vector.load %arg1[%c0_7, %c0_8, %c1, %c0_9] : memref<1x18x18x128xf32, #tpu.memory_space<vmem>>, vector<1x16x16x128xf32>
    %11 = vector.shape_cast %10 : vector<1x16x16x128xf32> to vector<16x16x128xf32>
    %12 = vector.shape_cast %11 : vector<16x16x128xf32> to vector<256x128xf32>
    %13 = arith.truncf %12 : vector<256x128xf32> to vector<256x128xbf16>
    %14 = vector.extract_strided_slice %0 {offsets = [1, 0, 0], sizes = [1, 128, 128], strides = [1, 1, 1]} : vector<9x128x128xbf16> to vector<1x128x128xbf16>
    %15 = vector.shape_cast %14 : vector<1x128x128xbf16> to vector<128x128xbf16>
    %cst_10 = arith.constant dense<0.000000e+00> : vector<256x128xf32>
    %16 = tpu.matmul %13, %15, %cst_10 {dimension_numbers = #tpu.dot_dimension_numbers<[1], [0], [0], [1], [0, 0, 1, 1], [], []>} : vector<256x128xbf16>, vector<128x128xbf16>, vector<256x128xf32> -> vector<256x128xf32>
    %17 = arith.addf %9, %16 : vector<256x128xf32>
    %c0_11 = arith.constant 0 : index
    %c0_12 = arith.constant 0 : index
    %c2 = arith.constant 2 : index
    %c0_13 = arith.constant 0 : index
    %18 = vector.load %arg1[%c0_11, %c0_12, %c2, %c0_13] : memref<1x18x18x128xf32, #tpu.memory_space<vmem>>, vector<1x16x16x128xf32>
    %19 = vector.shape_cast %18 : vector<1x16x16x128xf32> to vector<16x16x128xf32>
    %20 = vector.shape_cast %19 : vector<16x16x128xf32> to vector<256x128xf32>
    %21 = arith.truncf %20 : vector<256x128xf32> to vector<256x128xbf16>
    %22 = vector.extract_strided_slice %0 {offsets = [2, 0, 0], sizes = [1, 128, 128], strides = [1, 1, 1]} : vector<9x128x128xbf16> to vector<1x128x128xbf16>
    %23 = vector.shape_cast %22 : vector<1x128x128xbf16> to vector<128x128xbf16>
    %cst_14 = arith.constant dense<0.000000e+00> : vector<256x128xf32>
    %24 = tpu.matmul %21, %23, %cst_14 {dimension_numbers = #tpu.dot_dimension_numbers<[1], [0], [0], [1], [0, 0, 1, 1], [], []>} : vector<256x128xbf16>, vector<128x128xbf16>, vector<256x128xf32> -> vector<256x128xf32>
    %25 = arith.addf %17, %24 : vector<256x128xf32>
    %c0_15 = arith.constant 0 : index
    %c1_16 = arith.constant 1 : index
    %c0_17 = arith.constant 0 : index
    %c0_18 = arith.constant 0 : index
    %26 = vector.load %arg1[%c0_15, %c1_16, %c0_17, %c0_18] : memref<1x18x18x128xf32, #tpu.memory_space<vmem>>, vector<1x16x16x128xf32>
    %27 = vector.shape_cast %26 : vector<1x16x16x128xf32> to vector<16x16x128xf32>
    %28 = vector.shape_cast %27 : vector<16x16x128xf32> to vector<256x128xf32>
    %29 = arith.truncf %28 : vector<256x128xf32> to vector<256x128xbf16>
    %30 = vector.extract_strided_slice %0 {offsets = [3, 0, 0], sizes = [1, 128, 128], strides = [1, 1, 1]} : vector<9x128x128xbf16> to vector<1x128x128xbf16>
    %31 = vector.shape_cast %30 : vector<1x128x128xbf16> to vector<128x128xbf16>
    %cst_19 = arith.constant dense<0.000000e+00> : vector<256x128xf32>
    %32 = tpu.matmul %29, %31, %cst_19 {dimension_numbers = #tpu.dot_dimension_numbers<[1], [0], [0], [1], [0, 0, 1, 1], [], []>} : vector<256x128xbf16>, vector<128x128xbf16>, vector<256x128xf32> -> vector<256x128xf32>
    %33 = arith.addf %25, %32 : vector<256x128xf32>
    %c0_20 = arith.constant 0 : index
    %c1_21 = arith.constant 1 : index
    %c1_22 = arith.constant 1 : index
    %c0_23 = arith.constant 0 : index
    %34 = vector.load %arg1[%c0_20, %c1_21, %c1_22, %c0_23] : memref<1x18x18x128xf32, #tpu.memory_space<vmem>>, vector<1x16x16x128xf32>
    %35 = vector.shape_cast %34 : vector<1x16x16x128xf32> to vector<16x16x128xf32>
    %36 = vector.shape_cast %35 : vector<16x16x128xf32> to vector<256x128xf32>
    %37 = arith.truncf %36 : vector<256x128xf32> to vector<256x128xbf16>
    %38 = vector.extract_strided_slice %0 {offsets = [4, 0, 0], sizes = [1, 128, 128], strides = [1, 1, 1]} : vector<9x128x128xbf16> to vector<1x128x128xbf16>
    %39 = vector.shape_cast %38 : vector<1x128x128xbf16> to vector<128x128xbf16>
    %cst_24 = arith.constant dense<0.000000e+00> : vector<256x128xf32>
    %40 = tpu.matmul %37, %39, %cst_24 {dimension_numbers = #tpu.dot_dimension_numbers<[1], [0], [0], [1], [0, 0, 1, 1], [], []>} : vector<256x128xbf16>, vector<128x128xbf16>, vector<256x128xf32> -> vector<256x128xf32>
    %41 = arith.addf %33, %40 : vector<256x128xf32>
    %c0_25 = arith.constant 0 : index
    %c1_26 = arith.constant 1 : index
    %c2_27 = arith.constant 2 : index
    %c0_28 = arith.constant 0 : index
    %42 = vector.load %arg1[%c0_25, %c1_26, %c2_27, %c0_28] : memref<1x18x18x128xf32, #tpu.memory_space<vmem>>, vector<1x16x16x128xf32>
    %43 = vector.shape_cast %42 : vector<1x16x16x128xf32> to vector<16x16x128xf32>
    %44 = vector.shape_cast %43 : vector<16x16x128xf32> to vector<256x128xf32>
    %45 = arith.truncf %44 : vector<256x128xf32> to vector<256x128xbf16>
    %46 = vector.extract_strided_slice %0 {offsets = [5, 0, 0], sizes = [1, 128, 128], strides = [1, 1, 1]} : vector<9x128x128xbf16> to vector<1x128x128xbf16>
    %47 = vector.shape_cast %46 : vector<1x128x128xbf16> to vector<128x128xbf16>
    %cst_29 = arith.constant dense<0.000000e+00> : vector<256x128xf32>
    %48 = tpu.matmul %45, %47, %cst_29 {dimension_numbers = #tpu.dot_dimension_numbers<[1], [0], [0], [1], [0, 0, 1, 1], [], []>} : vector<256x128xbf16>, vector<128x128xbf16>, vector<256x128xf32> -> vector<256x128xf32>
    %49 = arith.addf %41, %48 : vector<256x128xf32>
    %c0_30 = arith.constant 0 : index
    %c2_31 = arith.constant 2 : index
    %c0_32 = arith.constant 0 : index
    %c0_33 = arith.constant 0 : index
    %50 = vector.load %arg1[%c0_30, %c2_31, %c0_32, %c0_33] : memref<1x18x18x128xf32, #tpu.memory_space<vmem>>, vector<1x16x16x128xf32>
    %51 = vector.shape_cast %50 : vector<1x16x16x128xf32> to vector<16x16x128xf32>
    %52 = vector.shape_cast %51 : vector<16x16x128xf32> to vector<256x128xf32>
    %53 = arith.truncf %52 : vector<256x128xf32> to vector<256x128xbf16>
    %54 = vector.extract_strided_slice %0 {offsets = [6, 0, 0], sizes = [1, 128, 128], strides = [1, 1, 1]} : vector<9x128x128xbf16> to vector<1x128x128xbf16>
    %55 = vector.shape_cast %54 : vector<1x128x128xbf16> to vector<128x128xbf16>
    %cst_34 = arith.constant dense<0.000000e+00> : vector<256x128xf32>
    %56 = tpu.matmul %53, %55, %cst_34 {dimension_numbers = #tpu.dot_dimension_numbers<[1], [0], [0], [1], [0, 0, 1, 1], [], []>} : vector<256x128xbf16>, vector<128x128xbf16>, vector<256x128xf32> -> vector<256x128xf32>
    %57 = arith.addf %49, %56 : vector<256x128xf32>
    %c0_35 = arith.constant 0 : index
    %c2_36 = arith.constant 2 : index
    %c1_37 = arith.constant 1 : index
    %c0_38 = arith.constant 0 : index
    %58 = vector.load %arg1[%c0_35, %c2_36, %c1_37, %c0_38] : memref<1x18x18x128xf32, #tpu.memory_space<vmem>>, vector<1x16x16x128xf32>
    %59 = vector.shape_cast %58 : vector<1x16x16x128xf32> to vector<16x16x128xf32>
    %60 = vector.shape_cast %59 : vector<16x16x128xf32> to vector<256x128xf32>
    %61 = arith.truncf %60 : vector<256x128xf32> to vector<256x128xbf16>
    %62 = vector.extract_strided_slice %0 {offsets = [7, 0, 0], sizes = [1, 128, 128], strides = [1, 1, 1]} : vector<9x128x128xbf16> to vector<1x128x128xbf16>
    %63 = vector.shape_cast %62 : vector<1x128x128xbf16> to vector<128x128xbf16>
    %cst_39 = arith.constant dense<0.000000e+00> : vector<256x128xf32>
    %64 = tpu.matmul %61, %63, %cst_39 {dimension_numbers = #tpu.dot_dimension_numbers<[1], [0], [0], [1], [0, 0, 1, 1], [], []>} : vector<256x128xbf16>, vector<128x128xbf16>, vector<256x128xf32> -> vector<256x128xf32>
    %65 = arith.addf %57, %64 : vector<256x128xf32>
    %c0_40 = arith.constant 0 : index
    %c2_41 = arith.constant 2 : index
    %c2_42 = arith.constant 2 : index
    %c0_43 = arith.constant 0 : index
    %66 = vector.load %arg1[%c0_40, %c2_41, %c2_42, %c0_43] : memref<1x18x18x128xf32, #tpu.memory_space<vmem>>, vector<1x16x16x128xf32>
    %67 = vector.shape_cast %66 : vector<1x16x16x128xf32> to vector<16x16x128xf32>
    %68 = vector.shape_cast %67 : vector<16x16x128xf32> to vector<256x128xf32>
    %69 = arith.truncf %68 : vector<256x128xf32> to vector<256x128xbf16>
    %70 = vector.extract_strided_slice %0 {offsets = [8, 0, 0], sizes = [1, 128, 128], strides = [1, 1, 1]} : vector<9x128x128xbf16> to vector<1x128x128xbf16>
    %71 = vector.shape_cast %70 : vector<1x128x128xbf16> to vector<128x128xbf16>
    %cst_44 = arith.constant dense<0.000000e+00> : vector<256x128xf32>
    %72 = tpu.matmul %69, %71, %cst_44 {dimension_numbers = #tpu.dot_dimension_numbers<[1], [0], [0], [1], [0, 0, 1, 1], [], []>} : vector<256x128xbf16>, vector<128x128xbf16>, vector<256x128xf32> -> vector<256x128xf32>
    %73 = arith.addf %65, %72 : vector<256x128xf32>
    %cst_45 = arith.constant dense<0.000000e+00> : vector<128xf32>
    %74 = vector.multi_reduction <add>, %73, %cst_45 [0] : vector<256x128xf32> to vector<128xf32>
    %75 = vector.shape_cast %74 : vector<128xf32> to vector<1x128xf32>
    %cst_46 = arith.constant 3.906250e-03 : f32
    %76 = vector.broadcast %cst_46 : f32 to vector<1x128xf32>
    %77 = arith.mulf %75, %76 : vector<1x128xf32>
    %78 = vector.broadcast %77 : vector<1x128xf32> to vector<256x128xf32>
    %79 = arith.subf %73, %78 : vector<256x128xf32>
    %80 = arith.mulf %79, %79 : vector<256x128xf32>
    %cst_47 = arith.constant dense<0.000000e+00> : vector<128xf32>
    %81 = vector.multi_reduction <add>, %80, %cst_47 [0] : vector<256x128xf32> to vector<128xf32>
    %82 = vector.shape_cast %81 : vector<128xf32> to vector<1x128xf32>
    %cst_48 = arith.constant 3.906250e-03 : f32
    %83 = vector.broadcast %cst_48 : f32 to vector<1x128xf32>
    %84 = arith.mulf %82, %83 : vector<1x128xf32>
    %cst_49 = arith.constant 9.99999974E-6 : f32
    %85 = vector.broadcast %cst_49 : f32 to vector<1x128xf32>
    %86 = arith.addf %84, %85 : vector<1x128xf32>
    %87 = math.rsqrt %86 : vector<1x128xf32>
    %88 = vector.broadcast %87 : vector<1x128xf32> to vector<256x128xf32>
    %89 = arith.mulf %79, %88 : vector<256x128xf32>
    %cst_50 = arith.constant 0.000000e+00 : f32
    %90 = vector.broadcast %cst_50 : f32 to vector<256x128xf32>
    %91 = arith.maximumf %89, %90 : vector<256x128xf32>
    %92 = arith.truncf %91 : vector<256x128xf32> to vector<256x128xbf16>
    %93 = vector.shape_cast %92 : vector<256x128xbf16> to vector<16x16x128xbf16>
    %c1_51 = arith.constant 1 : index
    %c1_52 = arith.constant 1 : index
    %c0_53 = arith.constant 0 : index
    %94 = vector.load %arg5[%c1_51, %c1_52, %c0_53] : memref<18x18x128xbf16, #tpu.memory_space<vmem>>, vector<16x16x128xbf16>
    tpu.vector_store %arg5[%c1_51, %c1_52, %c0_53], %93 {strides = array<i32>} : memref<18x18x128xbf16, #tpu.memory_space<vmem>>, vector<16x16x128xbf16>,
    %95 = vector.extract_strided_slice %93 {offsets = [0, 1, 0], sizes = [16, 1, 128], strides = [1, 1, 1]} : vector<16x16x128xbf16> to vector<16x1x128xbf16>
    %c1_54 = arith.constant 1 : index
    %c0_55 = arith.constant 0 : index
    %c0_56 = arith.constant 0 : index
    %96 = vector.load %arg5[%c1_54, %c0_55, %c0_56] : memref<18x18x128xbf16, #tpu.memory_space<vmem>>, vector<16x1x128xbf16>
    tpu.vector_store %arg5[%c1_54, %c0_55, %c0_56], %95 {strides = array<i32>} : memref<18x18x128xbf16, #tpu.memory_space<vmem>>, vector<16x1x128xbf16>,
    %97 = vector.extract_strided_slice %93 {offsets = [0, 14, 0], sizes = [16, 1, 128], strides = [1, 1, 1]} : vector<16x16x128xbf16> to vector<16x1x128xbf16>
    %c1_57 = arith.constant 1 : index
    %c17 = arith.constant 17 : index
    %c0_58 = arith.constant 0 : index
    %98 = vector.load %arg5[%c1_57, %c17, %c0_58] : memref<18x18x128xbf16, #tpu.memory_space<vmem>>, vector<16x1x128xbf16>
    tpu.vector_store %arg5[%c1_57, %c17, %c0_58], %97 {strides = array<i32>} : memref<18x18x128xbf16, #tpu.memory_space<vmem>>, vector<16x1x128xbf16>,
    %c2_59 = arith.constant 2 : index
    %c0_60 = arith.constant 0 : index
    %c0_61 = arith.constant 0 : index
    %99 = vector.load %arg5[%c2_59, %c0_60, %c0_61] : memref<18x18x128xbf16, #tpu.memory_space<vmem>>, vector<1x18x128xbf16>
    %c0_62 = arith.constant 0 : index
    %c0_63 = arith.constant 0 : index
    %c0_64 = arith.constant 0 : index
    %100 = vector.load %arg5[%c0_62, %c0_63, %c0_64] : memref<18x18x128xbf16, #tpu.memory_space<vmem>>, vector<1x18x128xbf16>
    tpu.vector_store %arg5[%c0_62, %c0_63, %c0_64], %99 {strides = array<i32>} : memref<18x18x128xbf16, #tpu.memory_space<vmem>>, vector<1x18x128xbf16>,
    %c15 = arith.constant 15 : index
    %c0_65 = arith.constant 0 : index
    %c0_66 = arith.constant 0 : index
    %101 = vector.load %arg5[%c15, %c0_65, %c0_66] : memref<18x18x128xbf16, #tpu.memory_space<vmem>>, vector<1x18x128xbf16>
    %c17_67 = arith.constant 17 : index
    %c0_68 = arith.constant 0 : index
    %c0_69 = arith.constant 0 : index
    %102 = vector.load %arg5[%c17_67, %c0_68, %c0_69] : memref<18x18x128xbf16, #tpu.memory_space<vmem>>, vector<1x18x128xbf16>
    tpu.vector_store %arg5[%c17_67, %c0_68, %c0_69], %101 {strides = array<i32>} : memref<18x18x128xbf16, #tpu.memory_space<vmem>>, vector<1x18x128xbf16>,
    %c0_70 = arith.constant 0 : index
    %c0_71 = arith.constant 0 : index
    %c0_72 = arith.constant 0 : index
    %103 = vector.load %arg3[%c0_70, %c0_71, %c0_72] : memref<9x128x128xbf16, #tpu.memory_space<vmem>>, vector<9x128x128xbf16>
    %cst_73 = arith.constant 0.000000e+00 : f32
    %104 = vector.broadcast %cst_73 : f32 to vector<256x128xf32>
    %c0_74 = arith.constant 0 : index
    %c0_75 = arith.constant 0 : index
    %c0_76 = arith.constant 0 : index
    %105 = vector.load %arg5[%c0_74, %c0_75, %c0_76] : memref<18x18x128xbf16, #tpu.memory_space<vmem>>, vector<16x16x128xbf16>
    %106 = vector.shape_cast %105 : vector<16x16x128xbf16> to vector<256x128xbf16>
    %107 = vector.extract_strided_slice %103 {offsets = [0, 0, 0], sizes = [1, 128, 128], strides = [1, 1, 1]} : vector<9x128x128xbf16> to vector<1x128x128xbf16>
    %108 = vector.shape_cast %107 : vector<1x128x128xbf16> to vector<128x128xbf16>
    %cst_77 = arith.constant dense<0.000000e+00> : vector<256x128xf32>
    %109 = tpu.matmul %106, %108, %cst_77 {dimension_numbers = #tpu.dot_dimension_numbers<[1], [0], [0], [1], [0, 0, 1, 1], [], []>} : vector<256x128xbf16>, vector<128x128xbf16>, vector<256x128xf32> -> vector<256x128xf32>
    %110 = arith.addf %104, %109 : vector<256x128xf32>
    %c0_78 = arith.constant 0 : index
    %c1_79 = arith.constant 1 : index
    %c0_80 = arith.constant 0 : index
    %111 = vector.load %arg5[%c0_78, %c1_79, %c0_80] : memref<18x18x128xbf16, #tpu.memory_space<vmem>>, vector<16x16x128xbf16>
    %112 = vector.shape_cast %111 : vector<16x16x128xbf16> to vector<256x128xbf16>
    %113 = vector.extract_strided_slice %103 {offsets = [1, 0, 0], sizes = [1, 128, 128], strides = [1, 1, 1]} : vector<9x128x128xbf16> to vector<1x128x128xbf16>
    %114 = vector.shape_cast %113 : vector<1x128x128xbf16> to vector<128x128xbf16>
    %cst_81 = arith.constant dense<0.000000e+00> : vector<256x128xf32>
    %115 = tpu.matmul %112, %114, %cst_81 {dimension_numbers = #tpu.dot_dimension_numbers<[1], [0], [0], [1], [0, 0, 1, 1], [], []>} : vector<256x128xbf16>, vector<128x128xbf16>, vector<256x128xf32> -> vector<256x128xf32>
    %116 = arith.addf %110, %115 : vector<256x128xf32>
    %c0_82 = arith.constant 0 : index
    %c2_83 = arith.constant 2 : index
    %c0_84 = arith.constant 0 : index
    %117 = vector.load %arg5[%c0_82, %c2_83, %c0_84] : memref<18x18x128xbf16, #tpu.memory_space<vmem>>, vector<16x16x128xbf16>
    %118 = vector.shape_cast %117 : vector<16x16x128xbf16> to vector<256x128xbf16>
    %119 = vector.extract_strided_slice %103 {offsets = [2, 0, 0], sizes = [1, 128, 128], strides = [1, 1, 1]} : vector<9x128x128xbf16> to vector<1x128x128xbf16>
    %120 = vector.shape_cast %119 : vector<1x128x128xbf16> to vector<128x128xbf16>
    %cst_85 = arith.constant dense<0.000000e+00> : vector<256x128xf32>
    %121 = tpu.matmul %118, %120, %cst_85 {dimension_numbers = #tpu.dot_dimension_numbers<[1], [0], [0], [1], [0, 0, 1, 1], [], []>} : vector<256x128xbf16>, vector<128x128xbf16>, vector<256x128xf32> -> vector<256x128xf32>
    %122 = arith.addf %116, %121 : vector<256x128xf32>
    %c1_86 = arith.constant 1 : index
    %c0_87 = arith.constant 0 : index
    %c0_88 = arith.constant 0 : index
    %123 = vector.load %arg5[%c1_86, %c0_87, %c0_88] : memref<18x18x128xbf16, #tpu.memory_space<vmem>>, vector<16x16x128xbf16>
    %124 = vector.shape_cast %123 : vector<16x16x128xbf16> to vector<256x128xbf16>
    %125 = vector.extract_strided_slice %103 {offsets = [3, 0, 0], sizes = [1, 128, 128], strides = [1, 1, 1]} : vector<9x128x128xbf16> to vector<1x128x128xbf16>
    %126 = vector.shape_cast %125 : vector<1x128x128xbf16> to vector<128x128xbf16>
    %cst_89 = arith.constant dense<0.000000e+00> : vector<256x128xf32>
    %127 = tpu.matmul %124, %126, %cst_89 {dimension_numbers = #tpu.dot_dimension_numbers<[1], [0], [0], [1], [0, 0, 1, 1], [], []>} : vector<256x128xbf16>, vector<128x128xbf16>, vector<256x128xf32> -> vector<256x128xf32>
    %128 = arith.addf %122, %127 : vector<256x128xf32>
    %c1_90 = arith.constant 1 : index
    %c1_91 = arith.constant 1 : index
    %c0_92 = arith.constant 0 : index
    %129 = vector.load %arg5[%c1_90, %c1_91, %c0_92] : memref<18x18x128xbf16, #tpu.memory_space<vmem>>, vector<16x16x128xbf16>
    %130 = vector.shape_cast %129 : vector<16x16x128xbf16> to vector<256x128xbf16>
    %131 = vector.extract_strided_slice %103 {offsets = [4, 0, 0], sizes = [1, 128, 128], strides = [1, 1, 1]} : vector<9x128x128xbf16> to vector<1x128x128xbf16>
    %132 = vector.shape_cast %131 : vector<1x128x128xbf16> to vector<128x128xbf16>
    %cst_93 = arith.constant dense<0.000000e+00> : vector<256x128xf32>
    %133 = tpu.matmul %130, %132, %cst_93 {dimension_numbers = #tpu.dot_dimension_numbers<[1], [0], [0], [1], [0, 0, 1, 1], [], []>} : vector<256x128xbf16>, vector<128x128xbf16>, vector<256x128xf32> -> vector<256x128xf32>
    %134 = arith.addf %128, %133 : vector<256x128xf32>
    %c1_94 = arith.constant 1 : index
    %c2_95 = arith.constant 2 : index
    %c0_96 = arith.constant 0 : index
    %135 = vector.load %arg5[%c1_94, %c2_95, %c0_96] : memref<18x18x128xbf16, #tpu.memory_space<vmem>>, vector<16x16x128xbf16>
    %136 = vector.shape_cast %135 : vector<16x16x128xbf16> to vector<256x128xbf16>
    %137 = vector.extract_strided_slice %103 {offsets = [5, 0, 0], sizes = [1, 128, 128], strides = [1, 1, 1]} : vector<9x128x128xbf16> to vector<1x128x128xbf16>
    %138 = vector.shape_cast %137 : vector<1x128x128xbf16> to vector<128x128xbf16>
    %cst_97 = arith.constant dense<0.000000e+00> : vector<256x128xf32>
    %139 = tpu.matmul %136, %138, %cst_97 {dimension_numbers = #tpu.dot_dimension_numbers<[1], [0], [0], [1], [0, 0, 1, 1], [], []>} : vector<256x128xbf16>, vector<128x128xbf16>, vector<256x128xf32> -> vector<256x128xf32>
    %140 = arith.addf %134, %139 : vector<256x128xf32>
    %c2_98 = arith.constant 2 : index
    %c0_99 = arith.constant 0 : index
    %c0_100 = arith.constant 0 : index
    %141 = vector.load %arg5[%c2_98, %c0_99, %c0_100] : memref<18x18x128xbf16, #tpu.memory_space<vmem>>, vector<16x16x128xbf16>
    %142 = vector.shape_cast %141 : vector<16x16x128xbf16> to vector<256x128xbf16>
    %143 = vector.extract_strided_slice %103 {offsets = [6, 0, 0], sizes = [1, 128, 128], strides = [1, 1, 1]} : vector<9x128x128xbf16> to vector<1x128x128xbf16>
    %144 = vector.shape_cast %143 : vector<1x128x128xbf16> to vector<128x128xbf16>
    %cst_101 = arith.constant dense<0.000000e+00> : vector<256x128xf32>
    %145 = tpu.matmul %142, %144, %cst_101 {dimension_numbers = #tpu.dot_dimension_numbers<[1], [0], [0], [1], [0, 0, 1, 1], [], []>} : vector<256x128xbf16>, vector<128x128xbf16>, vector<256x128xf32> -> vector<256x128xf32>
    %146 = arith.addf %140, %145 : vector<256x128xf32>
    %c2_102 = arith.constant 2 : index
    %c1_103 = arith.constant 1 : index
    %c0_104 = arith.constant 0 : index
    %147 = vector.load %arg5[%c2_102, %c1_103, %c0_104] : memref<18x18x128xbf16, #tpu.memory_space<vmem>>, vector<16x16x128xbf16>
    %148 = vector.shape_cast %147 : vector<16x16x128xbf16> to vector<256x128xbf16>
    %149 = vector.extract_strided_slice %103 {offsets = [7, 0, 0], sizes = [1, 128, 128], strides = [1, 1, 1]} : vector<9x128x128xbf16> to vector<1x128x128xbf16>
    %150 = vector.shape_cast %149 : vector<1x128x128xbf16> to vector<128x128xbf16>
    %cst_105 = arith.constant dense<0.000000e+00> : vector<256x128xf32>
    %151 = tpu.matmul %148, %150, %cst_105 {dimension_numbers = #tpu.dot_dimension_numbers<[1], [0], [0], [1], [0, 0, 1, 1], [], []>} : vector<256x128xbf16>, vector<128x128xbf16>, vector<256x128xf32> -> vector<256x128xf32>
    %152 = arith.addf %146, %151 : vector<256x128xf32>
    %c2_106 = arith.constant 2 : index
    %c2_107 = arith.constant 2 : index
    %c0_108 = arith.constant 0 : index
    %153 = vector.load %arg5[%c2_106, %c2_107, %c0_108] : memref<18x18x128xbf16, #tpu.memory_space<vmem>>, vector<16x16x128xbf16>
    %154 = vector.shape_cast %153 : vector<16x16x128xbf16> to vector<256x128xbf16>
    %155 = vector.extract_strided_slice %103 {offsets = [8, 0, 0], sizes = [1, 128, 128], strides = [1, 1, 1]} : vector<9x128x128xbf16> to vector<1x128x128xbf16>
    %156 = vector.shape_cast %155 : vector<1x128x128xbf16> to vector<128x128xbf16>
    %cst_109 = arith.constant dense<0.000000e+00> : vector<256x128xf32>
    %157 = tpu.matmul %154, %156, %cst_109 {dimension_numbers = #tpu.dot_dimension_numbers<[1], [0], [0], [1], [0, 0, 1, 1], [], []>} : vector<256x128xbf16>, vector<128x128xbf16>, vector<256x128xf32> -> vector<256x128xf32>
    %158 = arith.addf %152, %157 : vector<256x128xf32>
    %cst_110 = arith.constant dense<0.000000e+00> : vector<128xf32>
    %159 = vector.multi_reduction <add>, %158, %cst_110 [0] : vector<256x128xf32> to vector<128xf32>
    %160 = vector.shape_cast %159 : vector<128xf32> to vector<1x128xf32>
    %cst_111 = arith.constant 3.906250e-03 : f32
    %161 = vector.broadcast %cst_111 : f32 to vector<1x128xf32>
    %162 = arith.mulf %160, %161 : vector<1x128xf32>
    %163 = vector.broadcast %162 : vector<1x128xf32> to vector<256x128xf32>
    %164 = arith.subf %158, %163 : vector<256x128xf32>
    %165 = arith.mulf %164, %164 : vector<256x128xf32>
    %cst_112 = arith.constant dense<0.000000e+00> : vector<128xf32>
    %166 = vector.multi_reduction <add>, %165, %cst_112 [0] : vector<256x128xf32> to vector<128xf32>
    %167 = vector.shape_cast %166 : vector<128xf32> to vector<1x128xf32>
    %cst_113 = arith.constant 3.906250e-03 : f32
    %168 = vector.broadcast %cst_113 : f32 to vector<1x128xf32>
    %169 = arith.mulf %167, %168 : vector<1x128xf32>
    %cst_114 = arith.constant 9.99999974E-6 : f32
    %170 = vector.broadcast %cst_114 : f32 to vector<1x128xf32>
    %171 = arith.addf %169, %170 : vector<1x128xf32>
    %172 = math.rsqrt %171 : vector<1x128xf32>
    %173 = vector.broadcast %172 : vector<1x128xf32> to vector<256x128xf32>
    %174 = arith.mulf %164, %173 : vector<256x128xf32>
    %175 = vector.shape_cast %174 : vector<256x128xf32> to vector<16x16x128xf32>
    %c0_115 = arith.constant 0 : index
    %c1_116 = arith.constant 1 : index
    %c1_117 = arith.constant 1 : index
    %c0_118 = arith.constant 0 : index
    %176 = vector.load %arg1[%c0_115, %c1_116, %c1_117, %c0_118] : memref<1x18x18x128xf32, #tpu.memory_space<vmem>>, vector<1x16x16x128xf32>
    %177 = vector.shape_cast %176 : vector<1x16x16x128xf32> to vector<16x16x128xf32>
    %178 = arith.addf %177, %175 : vector<16x16x128xf32>
    %c0_119 = arith.constant 0 : index
    %c0_120 = arith.constant 0 : index
    %c0_121 = arith.constant 0 : index
    %c0_122 = arith.constant 0 : index
    %179 = vector.load %arg4[%c0_119, %c0_120, %c0_121, %c0_122] : memref<1x16x16x128xf32, #tpu.memory_space<vmem>>, vector<1x16x16x128xf32>
    %180 = vector.shape_cast %179 : vector<1x16x16x128xf32> to vector<16x16x128xf32>
    %181 = vector.shape_cast %178 : vector<16x16x128xf32> to vector<1x16x16x128xf32>
    tpu.vector_store %arg4[%c0_119, %c0_120, %c0_121, %c0_122], %181 {strides = array<i32>} : memref<1x16x16x128xf32, #tpu.memory_space<vmem>>, vector<1x16x16x128xf32>,
    return
  }
  func.func @transform_0(%arg0: i32) -> (i32, i32, i32, i32) {
    %c0_i32 = arith.constant 0 : i32
    %c0_i32_0 = arith.constant 0 : i32
    %c0_i32_1 = arith.constant 0 : i32
    %c0_i32_2 = arith.constant 0 : i32
    return %arg0, %c0_i32, %c0_i32_0, %c0_i32_1 : i32, i32, i32, i32
  }
  func.func @transform_1(%arg0: i32) -> (i32, i32, i32) {
    %c0_i32 = arith.constant 0 : i32
    %c0_i32_0 = arith.constant 0 : i32
    %c0_i32_1 = arith.constant 0 : i32
    %c0_i32_2 = arith.constant 0 : i32
    return %c0_i32, %c0_i32_0, %c0_i32_1 : i32, i32, i32
  }
  func.func @transform_2(%arg0: i32) -> (i32, i32, i32) {
    %c0_i32 = arith.constant 0 : i32
    %c0_i32_0 = arith.constant 0 : i32
    %c0_i32_1 = arith.constant 0 : i32
    %c0_i32_2 = arith.constant 0 : i32
    return %c0_i32, %c0_i32_0, %c0_i32_1 : i32, i32, i32
  }
  func.func @transform_3(%arg0: i32) -> (i32, i32, i32, i32) {
    %c0_i32 = arith.constant 0 : i32
    %c0_i32_0 = arith.constant 0 : i32
    %c0_i32_1 = arith.constant 0 : i32
    %c0_i32_2 = arith.constant 0 : i32
    return %arg0, %c0_i32, %c0_i32_0, %c0_i32_1 : i32, i32, i32, i32
  }
}

</mosaic_0001>

<llo_original>
// kernel: residual_block_nhwc.1
$region0: #{residual_block_nhwc.1}
  #allocation0 [shape = 'u32[]', space=smem, size = 0x4, offset = 0x4, fixed_abs, tag = 'smem constant byte address 0x4 - core index']
  #allocation1 [shape = 'u32[144,128]{1,0:T(1,128)}', space=vmem, size = 0x12000, scoped, tag = 'internal scratch']
  #allocation2 [shape = 'bf16[18,18,128]{2,1,0:T(8,128)(2,1)}', space=vmem, size = 0x1b000, scoped, tag = 'scratch operand']
  %s0 = inlined_call_operand.vmem [shape: f32[2,18,18,128], index: 0, kind: input, shape index: {}]
  %s1 = inlined_call_operand.vmem [shape: bf16[9,128,128], index: 1, kind: input, shape index: {}]
  %s2 = inlined_call_operand.vmem [shape: bf16[9,128,128], index: 2, kind: input, shape index: {}]
  %s3 = inlined_call_operand.vmem [shape: f32[2,16,16,128], index: 3, kind: output, shape index: {}]
  %s4 = sld [smem:[#allocation0]]
  $region45: #{residual_block_nhwc.1} parent=0
    _
  %s6 = ssub.s32 1, %s4
  %s7 = scalar_select 0, %s6, %s4
  loop: start=0, step=1, limit=4
  $region2: #{residual_block_nhwc.1} parent=0 // loop_pre_header
    _
  $region3: #{residual_block_nhwc.1} parent=0 // loop_header
    %s9 = sphi 0, %s13
    %p10 = scmp.ge.s32.totalorder %s9, 4
    %s19 = sphi 0, %s21
    %s22 = sphi 0, %s19
    %s23 = sphi 0, %s22
    %s39 = sphi 0, %s23
    %s43 = sphi 0, %s43
    %s45 = sphi 0, %s43
    %s46 = sphi 0, %s45
    %s60 = sphi 0, %s46
    %s64 = sphi 0, %s64
    %s66 = sphi 0, %s64
    %s67 = sphi 0, %s66
    %s81 = sphi 0, %s67
    %s87 = sphi 0, %s89
    %s90 = sphi 0, %s87
    %s91 = sphi 0, %s90
    %s107 = sphi 0, %s91
  $region4: #{residual_block_nhwc.1} parent=0 // loop_header_branch
    %12 = sbr.rel (%p10) target = $region8
  $region5: #{residual_block_nhwc.1} parent=0 // loop_body
    %s14 = ssub.s32 %s9, 1
    %s15 = ssub.s32 %s9, 2
    %s16 = sadd.s32 %s9, 1
    %s17 = ssub.s32 %s9, %s16
    %p18 = scmp.eq.s32.totalorder %s17, 0
    %s20 = sadd.s32 %s19, 1
    %s21 = scalar_select %p18, %s19, %s20
    %p24 = pneg %p18
    %p25 = scmp.eq.s32.totalorder %s9, 1
    %p26 = por %p24, %p25
    %p27 = scmp.ne.s32.totalorder %s19, %s22
    %p28 = scmp.eq.s32.totalorder %s9, 0
    %p29 = por %p27, %p28
    %p30 = scmp.ne.s32.totalorder %s19, %s22
    %p31 = scmp.eq.s32.totalorder %s14, 1
    %p32 = por %p30, %p31
    %p33 = scmp.ne.s32.totalorder %s22, %s23
    %p34 = scmp.eq.s32.totalorder %s14, 0
    %p35 = por %p33, %p34
    %p36 = scmp.ne.s32.totalorder %s22, %s23
    %p37 = scmp.eq.s32.totalorder %s15, 1
    %p38 = por %p36, %p37
    %p40 = scmp.ne.s32.totalorder %s23, %s39
    %p41 = scmp.eq.s32.totalorder %s15, 0
    %p42 = por %p40, %p41
    %s44 = sadd.s32 %s43, 1
    %p47 = scmp.eq.s32.totalorder %s9, 1
    %p48 = scmp.ne.s32.totalorder %s43, %s45
    %p49 = scmp.eq.s32.totalorder %s9, 0
    %p50 = por %p48, %p49
    %p51 = scmp.ne.s32.totalorder %s43, %s45
    %p52 = scmp.eq.s32.totalorder %s14, 1
    %p53 = por %p51, %p52
    %p54 = scmp.ne.s32.totalorder %s45, %s46
    %p55 = scmp.eq.s32.totalorder %s14, 0
    %p56 = por %p54, %p55
    %p57 = scmp.ne.s32.totalorder %s45, %s46
    %p58 = scmp.eq.s32.totalorder %s15, 1
    %p59 = por %p57, %p58
    %p61 = scmp.ne.s32.totalorder %s46, %s60
    %p62 = scmp.eq.s32.totalorder %s15, 0
    %p63 = por %p61, %p62
    %s65 = sadd.s32 %s64, 1
    %p68 = scmp.eq.s32.totalorder %s9, 1
    %p69 = scmp.ne.s32.totalorder %s64, %s66
    %p70 = scmp.eq.s32.totalorder %s9, 0
    %p71 = por %p69, %p70
    %p72 = scmp.ne.s32.totalorder %s64, %s66
    %p73 = scmp.eq.s32.totalorder %s14, 1
    %p74 = por %p72, %p73
    %p75 = scmp.ne.s32.totalorder %s66, %s67
    %p76 = scmp.eq.s32.totalorder %s14, 0
    %p77 = por %p75, %p76
    %p78 = scmp.ne.s32.totalorder %s66, %s67
    %p79 = scmp.eq.s32.totalorder %s15, 1
    %p80 = por %p78, %p79
    %p82 = scmp.ne.s32.totalorder %s67, %s81
    %p83 = scmp.eq.s32.totalorder %s15, 0
    %p84 = por %p82, %p83
    %s85 = ssub.s32 %s9, %s16
    %p86 = scmp.eq.s32.totalorder %s85, 0
    %s88 = sadd.s32 %s87, 1
    %s89 = scalar_select %p86, %s87, %s88
    %p92 = pneg %p86
    %p93 = scmp.eq.s32.totalorder %s9, 1
    %p94 = por %p92, %p93
    %p95 = scmp.ne.s32.totalorder %s87, %s90
    %p96 = scmp.eq.s32.totalorder %s9, 0
    %p97 = por %p95, %p96
    %p98 = scmp.ne.s32.totalorder %s87, %s90
    %p99 = scmp.eq.s32.totalorder %s14, 1
    %p100 = por %p98, %p99
    %p101 = scmp.ne.s32.totalorder %s90, %s91
    %p102 = scmp.eq.s32.totalorder %s14, 0
    %p103 = por %p101, %p102
    %p104 = scmp.ne.s32.totalorder %s90, %s91
    %p105 = scmp.eq.s32.totalorder %s15, 1
    %p106 = por %p104, %p105
    %p108 = scmp.ne.s32.totalorder %s91, %s107
    %p109 = scmp.eq.s32.totalorder %s15, 0
    %p110 = por %p108, %p109
    %p111 = scmp.le.s32.totalorder 1, %s9
    %p112 = scmp.lt.s32.totalorder %s9, 3
    %p113 = pnand %p111, %p112
    %p114 = pneg %p113
    // Predicated region
    $region9: #{residual_block_nhwc.1} parent=5 // pred_check
      _
    $region10: #{residual_block_nhwc.1} parent=5 // pred_check_branch
      %116 = sbr.rel (%p113) target = $region12
    $region11: #{residual_block_nhwc.1} parent=5 // pred_region
      %s117 = ssub.s32 %s9, 1
      // Predicated region
      $region13: #{residual_block_nhwc.1} parent=11 // pred_check
        %p118 = pneg %p56
      $region14: #{residual_block_nhwc.1} parent=11 // pred_check_branch
        %120 = sbr.rel (%p118) target = $region16
      $region15: #{residual_block_nhwc.1} parent=11 // pred_region
        _
      $region16: #{residual_block_nhwc.1} parent=11 // pred_fallthru
        _
      // Predicated region
      $region17: #{residual_block_nhwc.1} parent=11 // pred_check
        %p121 = pneg %p77
      $region18: #{residual_block_nhwc.1} parent=11 // pred_check_branch
        %123 = sbr.rel (%p121) target = $region20
      $region19: #{residual_block_nhwc.1} parent=11 // pred_region
        _
      $region20: #{residual_block_nhwc.1} parent=11 // pred_fallthru
        _
    $region12: #{residual_block_nhwc.1} parent=5 // pred_fallthru
      _
    %p124 = scmp.lt.s32.totalorder %s9, 2
    // Predicated region
    $region21: #{residual_block_nhwc.1} parent=5 // pred_check
      %p125 = pneg %p124
    $region22: #{residual_block_nhwc.1} parent=5 // pred_check_branch
      %127 = sbr.rel (%p125) target = $region24
    $region23: #{residual_block_nhwc.1} parent=5 // pred_region
      // Predicated region
      $region25: #{residual_block_nhwc.1} parent=23 // pred_check
        %p128 = pneg %p29
      $region26: #{residual_block_nhwc.1} parent=23 // pred_check_branch
        %130 = sbr.rel (%p128) target = $region28
      $region27: #{residual_block_nhwc.1} parent=23 // pred_region
        %p131 = scmp.lt.s32.totalorder %s9, 1
        %s132 = scalar_select %p131, %s9, 1
        %s133 = smul.addr %s132, 54
        %s134 = smul.addr %s133, 8
        %s135 = scalar_lea.vmem %s0, %s134
      $region28: #{residual_block_nhwc.1} parent=23 // pred_fallthru
        _
    $region24: #{residual_block_nhwc.1} parent=5 // pred_fallthru
      _
    %p136 = scmp.le.s32.totalorder 1, %s9
    %p137 = scmp.lt.s32.totalorder %s9, 3
    %p138 = pnand %p136, %p137
    %p139 = pneg %p138
    // Predicated region
    $region29: #{residual_block_nhwc.1} parent=5 // pred_check
      _
    $region30: #{residual_block_nhwc.1} parent=5 // pred_check_branch
      %141 = sbr.rel (%p138) target = $region32
    $region31: #{residual_block_nhwc.1} parent=5 // pred_region
      %s142 = ssub.s32 %s9, 1
      %p143 = scmp.lt.s32.totalorder %s14, 1
      %s144 = scalar_select %p143, %s14, 1
      %s145 = smul.addr %s144, 54
      %s146 = smul.addr %s145, 8
      %s147 = scalar_lea.vmem %s0, %s146
      %p148 = pneg %p35
      %p149 = pneg %p32
      %p150 = pneg %p56
      %p151 = pneg %p53
      %p152 = pneg %p77
      %p153 = pneg %p74
      %p154 = pneg %p103
      %p155 = pneg %p100
      %p156 = scmp.lt.s32.totalorder %s14, 1
      %s157 = scalar_select %p156, %s14, 1
      %s158 = smul.addr %s157, 32
      %s159 = smul.addr %s158, 8
      %s160 = scalar_lea.vmem %s3, %s159
      %p161 = scmp.lt.s32.totalorder %s14, 1
      %s162 = scalar_select %p161, %s14, 1
      %s163 = smul.addr %s162, 54
      %s164 = smul.addr %s163, 8
      %s165 = scalar_lea.vmem %s0, %s164
      %p166 = scmp.lt.s32.totalorder %s14, 1
      %s167 = scalar_select %p166, %s14, 1
      %s168 = smul.addr %s167, 32
      %s169 = smul.addr %s168, 8
      %s170 = scalar_lea.vmem %s3, %s169
      %v172 = vld [vmem:[%s1] sm:$0xf]
      %v173 = vld [vmem:[%s1 + $0x4] sm:$0xf]
      %v174 = vld [vmem:[%s1 + $0x8] sm:$0xf]
      %v175 = vld [vmem:[%s1 + $0xc] sm:$0xf]
      %v176 = vld [vmem:[%s1 + $0x10] sm:$0xf]
      %v177 = vld [vmem:[%s1 + $0x14] sm:$0xf]
      %v178 = vld [vmem:[%s1 + $0x18] sm:$0xf]
      %v179 = vld [vmem:[%s1 + $0x1c] sm:$0xf]
      %v180 = vld [vmem:[%s1 + $0x20] sm:$0xf]
      %v181 = vld [vmem:[%s1 + $0x24] sm:$0xf]
      %v182 = vld [vmem:[%s1 + $0x28] sm:$0xf]
      %v183 = vld [vmem:[%s1 + $0x2c] sm:$0xf]
      %v184 = vld [vmem:[%s1 + $0x30] sm:$0xf]
      %v185 = vld [vmem:[%s1 + $0x34] sm:$0xf]
      %v186 = vld [vmem:[%s1 + $0x38] sm:$0xf]
      %v187 = vld [vmem:[%s1 + $0x3c] sm:$0xf]
      %v188 = vld [vmem:[%s1 + $0x40] sm:$0xf]
      %v189 = vld [vmem:[%s1 + $0x44] sm:$0xf]
      %v190 = vld [vmem:[%s1 + $0x48] sm:$0xf]
      %v191 = vld [vmem:[%s1 + $0x4c] sm:$0xf]
      %v192 = vld [vmem:[%s1 + $0x50] sm:$0xf]
      %v193 = vld [vmem:[%s1 + $0x54] sm:$0xf]
      %v194 = vld [vmem:[%s1 + $0x58] sm:$0xf]
      %v195 = vld [vmem:[%s1 + $0x5c] sm:$0xf]
      %v196 = vld [vmem:[%s1 + $0x60] sm:$0xf]
      %v197 = vld [vmem:[%s1 + $0x64] sm:$0xf]
      %v198 = vld [vmem:[%s1 + $0x68] sm:$0xf]
      %v199 = vld [vmem:[%s1 + $0x6c] sm:$0xf]
      %v200 = vld [vmem:[%s1 + $0x70] sm:$0xf]
      %v201 = vld [vmem:[%s1 + $0x74] sm:$0xf]
      %v202 = vld [vmem:[%s1 + $0x78] sm:$0xf]
      %v203 = vld [vmem:[%s1 + $0x7c] sm:$0xf]
      %v204 = vld [vmem:[%s1 + $0x80] sm:$0xf]
      %v205 = vld [vmem:[%s1 + $0x84] sm:$0xf]
      %v206 = vld [vmem:[%s1 + $0x88] sm:$0xf]
      %v207 = vld [vmem:[%s1 + $0x8c] sm:$0xf]
      %v208 = vld [vmem:[%s1 + $0x90] sm:$0xf]
      %v209 = vld [vmem:[%s1 + $0x94] sm:$0xf]
      %v210 = vld [vmem:[%s1 + $0x98] sm:$0xf]
      %v211 = vld [vmem:[%s1 + $0x9c] sm:$0xf]
      %v212 = vld [vmem:[%s1 + $0xa0] sm:$0xf]
      %v213 = vld [vmem:[%s1 + $0xa4] sm:$0xf]
      %v214 = vld [vmem:[%s1 + $0xa8] sm:$0xf]
      %v215 = vld [vmem:[%s1 + $0xac] sm:$0xf]
      %v216 = vld [vmem:[%s1 + $0xb0] sm:$0xf]
      %v217 = vld [vmem:[%s1 + $0xb4] sm:$0xf]
      %v218 = vld [vmem:[%s1 + $0xb8] sm:$0xf]
      %v219 = vld [vmem:[%s1 + $0xbc] sm:$0xf]
      %v220 = vld [vmem:[%s1 + $0xc0] sm:$0xf]
      %v221 = vld [vmem:[%s1 + $0xc4] sm:$0xf]
      %v222 = vld [vmem:[%s1 + $0xc8] sm:$0xf]
      %v223 = vld [vmem:[%s1 + $0xcc] sm:$0xf]
      %v224 = vld [vmem:[%s1 + $0xd0] sm:$0xf]
      %v225 = vld [vmem:[%s1 + $0xd4] sm:$0xf]
      %v226 = vld [vmem:[%s1 + $0xd8] sm:$0xf]
      %v227 = vld [vmem:[%s1 + $0xdc] sm:$0xf]
      %v228 = vld [vmem:[%s1 + $0xe0] sm:$0xf]
      %v229 = vld [vmem:[%s1 + $0xe4] sm:$0xf]
      %v230 = vld [vmem:[%s1 + $0xe8] sm:$0xf]
      %v231 = vld [vmem:[%s1 + $0xec] sm:$0xf]
      %v232 = vld [vmem:[%s1 + $0xf0] sm:$0xf]
      %v233 = vld [vmem:[%s1 + $0xf4] sm:$0xf]
      %v234 = vld [vmem:[%s1 + $0xf8] sm:$0xf]
      %v235 = vld [vmem:[%s1 + $0xfc] sm:$0xf]
      %v236 = vld [vmem:[%s1 + $0x100] sm:$0xf]
      %v237 = vld [vmem:[%s1 + $0x104] sm:$0xf]
      %v238 = vld [vmem:[%s1 + $0x108] sm:$0xf]
      %v239 = vld [vmem:[%s1 + $0x10c] sm:$0xf]
      %v240 = vld [vmem:[%s1 + $0x110] sm:$0xf]
      %v241 = vld [vmem:[%s1 + $0x114] sm:$0xf]
      %v242 = vld [vmem:[%s1 + $0x118] sm:$0xf]
      %v243 = vld [vmem:[%s1 + $0x11c] sm:$0xf]
      %v244 = vld [vmem:[%s1 + $0x120] sm:$0xf]
      %v245 = vld [vmem:[%s1 + $0x124] sm:$0xf]
      %v246 = vld [vmem:[%s1 + $0x128] sm:$0xf]
      %v247 = vld [vmem:[%s1 + $0x12c] sm:$0xf]
      %v248 = vld [vmem:[%s1 + $0x130] sm:$0xf]
      %v249 = vld [vmem:[%s1 + $0x134] sm:$0xf]
      %v250 = vld [vmem:[%s1 + $0x138] sm:$0xf]
      %v251 = vld [vmem:[%s1 + $0x13c] sm:$0xf]
      %v252 = vld [vmem:[%s1 + $0x140] sm:$0xf]
      %v253 = vld [vmem:[%s1 + $0x144] sm:$0xf]
      %v254 = vld [vmem:[%s1 + $0x148] sm:$0xf]
      %v255 = vld [vmem:[%s1 + $0x14c] sm:$0xf]
      %v256 = vld [vmem:[%s1 + $0x150] sm:$0xf]
      %v257 = vld [vmem:[%s1 + $0x154] sm:$0xf]
      %v258 = vld [vmem:[%s1 + $0x158] sm:$0xf]
      %v259 = vld [vmem:[%s1 + $0x15c] sm:$0xf]
      %v260 = vld [vmem:[%s1 + $0x160] sm:$0xf]
      %v261 = vld [vmem:[%s1 + $0x164] sm:$0xf]
      %v262 = vld [vmem:[%s1 + $0x168] sm:$0xf]
      %v263 = vld [vmem:[%s1 + $0x16c] sm:$0xf]
      %v264 = vld [vmem:[%s1 + $0x170] sm:$0xf]
      %v265 = vld [vmem:[%s1 + $0x174] sm:$0xf]
      %v266 = vld [vmem:[%s1 + $0x178] sm:$0xf]
      %v267 = vld [vmem:[%s1 + $0x17c] sm:$0xf]
      %v268 = vld [vmem:[%s1 + $0x180] sm:$0xf]
      %v269 = vld [vmem:[%s1 + $0x184] sm:$0xf]
      %v270 = vld [vmem:[%s1 + $0x188] sm:$0xf]
      %v271 = vld [vmem:[%s1 + $0x18c] sm:$0xf]
      %v272 = vld [vmem:[%s1 + $0x190] sm:$0xf]
      %v273 = vld [vmem:[%s1 + $0x194] sm:$0xf]
      %v274 = vld [vmem:[%s1 + $0x198] sm:$0xf]
      %v275 = vld [vmem:[%s1 + $0x19c] sm:$0xf]
      %v276 = vld [vmem:[%s1 + $0x1a0] sm:$0xf]
      %v277 = vld [vmem:[%s1 + $0x1a4] sm:$0xf]
      %v278 = vld [vmem:[%s1 + $0x1a8] sm:$0xf]
      %v279 = vld [vmem:[%s1 + $0x1ac] sm:$0xf]
      %v280 = vld [vmem:[%s1 + $0x1b0] sm:$0xf]
      %v281 = vld [vmem:[%s1 + $0x1b4] sm:$0xf]
      %v282 = vld [vmem:[%s1 + $0x1b8] sm:$0xf]
      %v283 = vld [vmem:[%s1 + $0x1bc] sm:$0xf]
      %v284 = vld [vmem:[%s1 + $0x1c0] sm:$0xf]
      %v285 = vld [vmem:[%s1 + $0x1c4] sm:$0xf]
      %v286 = vld [vmem:[%s1 + $0x1c8] sm:$0xf]
      %v287 = vld [vmem:[%s1 + $0x1cc] sm:$0xf]
      %v288 = vld [vmem:[%s1 + $0x1d0] sm:$0xf]
      %v289 = vld [vmem:[%s1 + $0x1d4] sm:$0xf]
      %v290 = vld [vmem:[%s1 + $0x1d8] sm:$0xf]
      %v291 = vld [vmem:[%s1 + $0x1dc] sm:$0xf]
      %v292 = vld [vmem:[%s1 + $0x1e0] sm:$0xf]
      %v293 = vld [vmem:[%s1 + $0x1e4] sm:$0xf]
      %v294 = vld [vmem:[%s1 + $0x1e8] sm:$0xf]
      %v295 = vld [vmem:[%s1 + $0x1ec] sm:$0xf]
      %v296 = vld [vmem:[%s1 + $0x1f0] sm:$0xf]
      %v297 = vld [vmem:[%s1 + $0x1f4] sm:$0xf]
      %v298 = vld [vmem:[%s1 + $0x1f8] sm:$0xf]
      %v299 = vld [vmem:[%s1 + $0x1fc] sm:$0xf]
      %v300 = vld [vmem:[%s1 + $0x200] sm:$0xf]
      %v301 = vld [vmem:[%s1 + $0x204] sm:$0xf]
      %v302 = vld [vmem:[%s1 + $0x208] sm:$0xf]
      %v303 = vld [vmem:[%s1 + $0x20c] sm:$0xf]
      %v304 = vld [vmem:[%s1 + $0x210] sm:$0xf]
      %v305 = vld [vmem:[%s1 + $0x214] sm:$0xf]
      %v306 = vld [vmem:[%s1 + $0x218] sm:$0xf]
      %v307 = vld [vmem:[%s1 + $0x21c] sm:$0xf]
      %v308 = vld [vmem:[%s1 + $0x220] sm:$0xf]
      %v309 = vld [vmem:[%s1 + $0x224] sm:$0xf]
      %v310 = vld [vmem:[%s1 + $0x228] sm:$0xf]
      %v311 = vld [vmem:[%s1 + $0x22c] sm:$0xf]
      %v312 = vld [vmem:[%s1 + $0x230] sm:$0xf]
      %v313 = vld [vmem:[%s1 + $0x234] sm:$0xf]
      %v314 = vld [vmem:[%s1 + $0x238] sm:$0xf]
      %v315 = vld [vmem:[%s1 + $0x23c] sm:$0xf]
      %v316 = vld [vmem:[%s165] sm:$0xff]
      %v317 = vld [vmem:[%s165 + $0x8] sm:$0xff]
      %v318 = vld [vmem:[%s165 + $0x18] sm:$0xff]
      %v319 = vld [vmem:[%s165 + $0x20] sm:$0xff]
      %v320 = vld [vmem:[%s165 + $0x30] sm:$0xff]
      %v321 = vld [vmem:[%s165 + $0x38] sm:$0xff]
      %v322 = vld [vmem:[%s165 + $0x48] sm:$0xff]
      %v323 = vld [vmem:[%s165 + $0x50] sm:$0xff]
      %v324 = vld [vmem:[%s165 + $0x60] sm:$0xff]
      %v325 = vld [vmem:[%s165 + $0x68] sm:$0xff]
      %v326 = vld [vmem:[%s165 + $0x78] sm:$0xff]
      %v327 = vld [vmem:[%s165 + $0x80] sm:$0xff]
      %v328 = vld [vmem:[%s165 + $0x90] sm:$0xff]
      %v329 = vld [vmem:[%s165 + $0x98] sm:$0xff]
      %v330 = vld [vmem:[%s165 + $0xa8] sm:$0xff]
      %v331 = vld [vmem:[%s165 + $0xb0] sm:$0xff]
      %v332 = vld [vmem:[%s165 + $0xc0] sm:$0xff]
      %v333 = vld [vmem:[%s165 + $0xc8] sm:$0xff]
      %v334 = vld [vmem:[%s165 + $0xd8] sm:$0xff]
      %v335 = vld [vmem:[%s165 + $0xe0] sm:$0xff]
      %v336 = vld [vmem:[%s165 + $0xf0] sm:$0xff]
      %v337 = vld [vmem:[%s165 + $0xf8] sm:$0xff]
      %v338 = vld [vmem:[%s165 + $0x108] sm:$0xff]
      %v339 = vld [vmem:[%s165 + $0x110] sm:$0xff]
      %v340 = vld [vmem:[%s165 + $0x120] sm:$0xff]
      %v341 = vld [vmem:[%s165 + $0x128] sm:$0xff]
      %v342 = vld [vmem:[%s165 + $0x138] sm:$0xff]
      %v343 = vld [vmem:[%s165 + $0x140] sm:$0xff]
      %v344 = vld [vmem:[%s165 + $0x150] sm:$0xff]
      %v345 = vld [vmem:[%s165 + $0x158] sm:$0xff]
      %v346 = vld [vmem:[%s165 + $0x168] sm:$0xff]
      %v347 = vld [vmem:[%s165 + $0x170] sm:$0xff]
      %v348 = vpack.c.bf16 %v317, %v316
      %v349 = vpack.c.bf16 %v319, %v318
      %v350 = vpack.c.bf16 %v321, %v320
      %v351 = vpack.c.bf16 %v323, %v322
      %v352 = vpack.c.bf16 %v325, %v324
      %v353 = vpack.c.bf16 %v327, %v326
      %v354 = vpack.c.bf16 %v329, %v328
      %v355 = vpack.c.bf16 %v331, %v330
      %v356 = vpack.c.bf16 %v333, %v332
      %v357 = vpack.c.bf16 %v335, %v334
      %v358 = vpack.c.bf16 %v337, %v336
      %v359 = vpack.c.bf16 %v339, %v338
      %v360 = vpack.c.bf16 %v341, %v340
      %v361 = vpack.c.bf16 %v343, %v342
      %v362 = vpack.c.bf16 %v345, %v344
      %v363 = vpack.c.bf16 %v347, %v346
      %v364 = vld [vmem:[%s165 + $0x1] sm:$0xff]
      %v365 = vld [vmem:[%s165 + $0x9] sm:$0xff]
      %v366 = vld [vmem:[%s165 + $0x19] sm:$0xff]
      %v367 = vld [vmem:[%s165 + $0x21] sm:$0xff]
      %v368 = vld [vmem:[%s165 + $0x31] sm:$0xff]
      %v369 = vld [vmem:[%s165 + $0x39] sm:$0xff]
      %v370 = vld [vmem:[%s165 + $0x49] sm:$0xff]
      %v371 = vld [vmem:[%s165 + $0x51] sm:$0xff]
      %v372 = vld [vmem:[%s165 + $0x61] sm:$0xff]
      %v373 = vld [vmem:[%s165 + $0x69] sm:$0xff]
      %v374 = vld [vmem:[%s165 + $0x79] sm:$0xff]
      %v375 = vld [vmem:[%s165 + $0x81] sm:$0xff]
      %v376 = vld [vmem:[%s165 + $0x91] sm:$0xff]
      %v377 = vld [vmem:[%s165 + $0x99] sm:$0xff]
      %v378 = vld [vmem:[%s165 + $0xa9] sm:$0xff]
      %v379 = vld [vmem:[%s165 + $0xb1] sm:$0xff]
      %v380 = vld [vmem:[%s165 + $0xc1] sm:$0xff]
      %v381 = vld [vmem:[%s165 + $0xc9] sm:$0xff]
      %v382 = vld [vmem:[%s165 + $0xd9] sm:$0xff]
      %v383 = vld [vmem:[%s165 + $0xe1] sm:$0xff]
      %v384 = vld [vmem:[%s165 + $0xf1] sm:$0xff]
      %v385 = vld [vmem:[%s165 + $0xf9] sm:$0xff]
      %v386 = vld [vmem:[%s165 + $0x109] sm:$0xff]
      %v387 = vld [vmem:[%s165 + $0x111] sm:$0xff]
      %v388 = vld [vmem:[%s165 + $0x121] sm:$0xff]
      %v389 = vld [vmem:[%s165 + $0x129] sm:$0xff]
      %v390 = vld [vmem:[%s165 + $0x139] sm:$0xff]
      %v391 = vld [vmem:[%s165 + $0x141] sm:$0xff]
      %v392 = vld [vmem:[%s165 + $0x151] sm:$0xff]
      %v393 = vld [vmem:[%s165 + $0x159] sm:$0xff]
      %v394 = vld [vmem:[%s165 + $0x169] sm:$0xff]
      %v395 = vld [vmem:[%s165 + $0x171] sm:$0xff]
      %v396 = vpack.c.bf16 %v365, %v364
      %v397 = vpack.c.bf16 %v367, %v366
      %v398 = vpack.c.bf16 %v369, %v368
      %v399 = vpack.c.bf16 %v371, %v370
      %v400 = vpack.c.bf16 %v373, %v372
      %v401 = vpack.c.bf16 %v375, %v374
      %v402 = vpack.c.bf16 %v377, %v376
      %v403 = vpack.c.bf16 %v379, %v378
      %v404 = vpack.c.bf16 %v381, %v380
      %v405 = vpack.c.bf16 %v383, %v382
      %v406 = vpack.c.bf16 %v385, %v384
      %v407 = vpack.c.bf16 %v387, %v386
      %v408 = vpack.c.bf16 %v389, %v388
      %v409 = vpack.c.bf16 %v391, %v390
      %v410 = vpack.c.bf16 %v393, %v392
      %v411 = vpack.c.bf16 %v395, %v394
      %v428 = vunpack.c.l.b16 %v188
      %v429 = vunpack.c.l.b16 %v189
      %v430 = vunpack.c.l.b16 %v190
      %v431 = vunpack.c.l.b16 %v191
      %v432 = vunpack.c.l.b16 %v192
      %v433 = vunpack.c.l.b16 %v193
      %v434 = vunpack.c.l.b16 %v194
      %v435 = vunpack.c.l.b16 %v195
      %v436 = vunpack.c.l.b16 %v196
      %v437 = vunpack.c.l.b16 %v197
      %v438 = vunpack.c.l.b16 %v198
      %v439 = vunpack.c.l.b16 %v199
      %v440 = vunpack.c.l.b16 %v200
      %v441 = vunpack.c.l.b16 %v201
      %v442 = vunpack.c.l.b16 %v202
      %v443 = vunpack.c.l.b16 %v203
      %v444 = vpack.c.b16 %v429, %v428
      %v445 = vpack.c.b16 %v431, %v430
      %v446 = vpack.c.b16 %v433, %v432
      %v447 = vpack.c.b16 %v435, %v434
      %v448 = vpack.c.b16 %v437, %v436
      %v449 = vpack.c.b16 %v439, %v438
      %v450 = vpack.c.b16 %v441, %v440
      %v451 = vpack.c.b16 %v443, %v442
      %460 = vmatprep.subr.bf16.mxu0 0
      %461 = vmatpush1.bf16.msra.mxu0 %v444
      %462 = vmatprep.subr.bf16.mxu0 0
      %463 = vmatpush1.bf16.msra.mxu0 %v445
      %464 = vmatprep.subr.bf16.mxu0 0
      %465 = vmatpush1.bf16.msra.mxu0 %v446
      %466 = vmatprep.subr.bf16.mxu0 0
      %467 = vmatpush1.bf16.msra.mxu0 %v447
      %468 = vmatprep.subr.bf16.mxu0 0
      %469 = vmatpush1.bf16.msra.mxu0 %v448
      %470 = vmatprep.subr.bf16.mxu0 0
      %471 = vmatpush1.bf16.msra.mxu0 %v449
      %472 = vmatprep.subr.bf16.mxu0 0
      %473 = vmatpush1.bf16.msra.mxu0 %v450
      %474 = vmatprep.subr.bf16.mxu0 0
      %475 = vmatpush1.bf16.msra.mxu0 %v451
      %476 = vmatprep.subr.bf16.mxu0 0
      %477 = vmatpush1.bf16.msra.mxu0 0
      %478 = vmatprep.subr.bf16.mxu0 0
      %479 = vmatpush1.bf16.msra.mxu0 0
      %480 = vmatprep.subr.bf16.mxu0 0
      %481 = vmatpush1.bf16.msra.mxu0 0
      %482 = vmatprep.subr.bf16.mxu0 0
      %483 = vmatpush1.bf16.msra.mxu0 0
      %484 = vmatprep.subr.bf16.mxu0 0
      %485 = vmatpush1.bf16.msra.mxu0 0
      %486 = vmatprep.subr.bf16.mxu0 0
      %487 = vmatpush1.bf16.msra.mxu0 0
      %488 = vmatprep.subr.bf16.mxu0 0
      %489 = vmatpush1.bf16.msra.mxu0 0
      %490 = vmatprep.subr.bf16.mxu0 0
      %491 = vmatpush1.bf16.msra.mxu0 0
      %492 = vmatprep.mubr.bf16.mxu0 0
      %493 = vmatmul.mubr.bf16.gmra.mrb[0].mxu0 %v396
      %v494 = vpop.f32.mrb[0].mxu0
      %v495 = vadd.f32 0.0, %v494
      %v496 = vpop.f32.mrb[0].mxu0
      %v497 = vpop.f32.mrb[0].mxu0
      %v498 = vadd.f32 0.0, %v497
      %v499 = vpop.f32.mrb[0].mxu0
      %500 = vmatprep.mubr.bf16.mxu0 0
      %501 = vmatmul.mubr.bf16.gmra.mrb[0].mxu0 %v397
      %v502 = vpop.f32.mrb[0].mxu0
      %v503 = vadd.f32 0.0, %v502
      %v504 = vpop.f32.mrb[0].mxu0
      %v505 = vpop.f32.mrb[0].mxu0
      %v506 = vadd.f32 0.0, %v505
      %v507 = vpop.f32.mrb[0].mxu0
      %508 = vmatprep.mubr.bf16.mxu0 0
      %509 = vmatmul.mubr.bf16.gmra.mrb[0].mxu0 %v398
      %v510 = vpop.f32.mrb[0].mxu0
      %v511 = vadd.f32 0.0, %v510
      %v512 = vpop.f32.mrb[0].mxu0
      %v513 = vpop.f32.mrb[0].mxu0
      %v514 = vadd.f32 0.0, %v513
      %v515 = vpop.f32.mrb[0].mxu0
      %516 = vmatprep.mubr.bf16.mxu0 0
      %517 = vmatmul.mubr.bf16.gmra.mrb[0].mxu0 %v399
      %v518 = vpop.f32.mrb[0].mxu0
      %v519 = vadd.f32 0.0, %v518
      %v520 = vpop.f32.mrb[0].mxu0
      %v521 = vpop.f32.mrb[0].mxu0
      %v522 = vadd.f32 0.0, %v521
      %v523 = vpop.f32.mrb[0].mxu0
      %524 = vmatprep.mubr.bf16.mxu0 0
      %525 = vmatmul.mubr.bf16.gmra.mrb[0].mxu0 %v400
      %v526 = vpop.f32.mrb[0].mxu0
      %v527 = vadd.f32 0.0, %v526
      %v528 = vpop.f32.mrb[0].mxu0
      %v529 = vpop.f32.mrb[0].mxu0
      %v530 = vadd.f32 0.0, %v529
      %v531 = vpop.f32.mrb[0].mxu0
      %532 = vmatprep.mubr.bf16.mxu0 0
      %533 = vmatmul.mubr.bf16.gmra.mrb[0].mxu0 %v401
      %v534 = vpop.f32.mrb[0].mxu0
      %v535 = vadd.f32 0.0, %v534
      %v536 = vpop.f32.mrb[0].mxu0
      %v537 = vpop.f32.mrb[0].mxu0
      %v538 = vadd.f32 0.0, %v537
      %v539 = vpop.f32.mrb[0].mxu0
      %540 = vmatprep.mubr.bf16.mxu0 0
      %541 = vmatmul.mubr.bf16.gmra.mrb[0].mxu0 %v402
      %v542 = vpop.f32.mrb[0].mxu0
      %v543 = vadd.f32 0.0, %v542
      %v544 = vpop.f32.mrb[0].mxu0
      %v545 = vpop.f32.mrb[0].mxu0
      %v546 = vadd.f32 0.0, %v545
      %v547 = vpop.f32.mrb[0].mxu0
      %548 = vmatprep.mubr.bf16.mxu0 0
      %549 = vmatmul.mubr.bf16.gmra.mrb[0].mxu0 %v403
      %v550 = vpop.f32.mrb[0].mxu0
      %v551 = vadd.f32 0.0, %v550
      %v552 = vpop.f32.mrb[0].mxu0
      %v553 = vpop.f32.mrb[0].mxu0
      %v554 = vadd.f32 0.0, %v553
      %v555 = vpop.f32.mrb[0].mxu0
      %556 = vmatprep.mubr.bf16.mxu0 0
      %557 = vmatmul.mubr.bf16.gmra.mrb[0].mxu0 %v404
      %v558 = vpop.f32.mrb[0].mxu0
      %v559 = vadd.f32 0.0, %v558
      %v560 = vpop.f32.mrb[0].mxu0
      %v561 = vpop.f32.mrb[0].mxu0
      %v562 = vadd.f32 0.0, %v561
      %v563 = vpop.f32.mrb[0].mxu0
      %564 = vmatprep.mubr.bf16.mxu0 0
      %565 = vmatmul.mubr.bf16.gmra.mrb[0].mxu0 %v405
      %v566 = vpop.f32.mrb[0].mxu0
      %v567 = vadd.f32 0.0, %v566
      %v568 = vpop.f32.mrb[0].mxu0
      %v569 = vpop.f32.mrb[0].mxu0
      %v570 = vadd.f32 0.0, %v569
      %v571 = vpop.f32.mrb[0].mxu0
      %572 = vmatprep.mubr.bf16.mxu0 0
      %573 = vmatmul.mubr.bf16.gmra.mrb[0].mxu0 %v406
      %v574 = vpop.f32.mrb[0].mxu0
      %v575 = vadd.f32 0.0, %v574
      %v576 = vpop.f32.mrb[0].mxu0
      %v577 = vpop.f32.mrb[0].mxu0
      %v578 = vadd.f32 0.0, %v577
      %v579 = vpop.f32.mrb[0].mxu0
      %580 = vmatprep.mubr.bf16.mxu0 0
      %581 = vmatmul.mubr.bf16.gmra.mrb[0].mxu0 %v407
      %v582 = vpop.f32.mrb[0].mxu0
      %v583 = vadd.f32 0.0, %v582
      %v584 = vpop.f32.mrb[0].mxu0
      %v585 = vpop.f32.mrb[0].mxu0
      %v586 = vadd.f32 0.0, %v585
      %v587 = vpop.f32.mrb[0].mxu0
      %588 = vmatprep.mubr.bf16.mxu0 0
      %589 = vmatmul.mubr.bf16.gmra.mrb[0].mxu0 %v408
      %v590 = vpop.f32.mrb[0].mxu0
      %v591 = vadd.f32 0.0, %v590
      %v592 = vpop.f32.mrb[0].mxu0
      %v593 = vpop.f32.mrb[0].mxu0
      %v594 = vadd.f32 0.0, %v593
      %v595 = vpop.f32.mrb[0].mxu0
      %596 = vmatprep.mubr.bf16.mxu0 0
      %597 = vmatmul.mubr.bf16.gmra.mrb[0].mxu0 %v409
      %v598 = vpop.f32.mrb[0].mxu0
      %v599 = vadd.f32 0.0, %v598
      %v600 = vpop.f32.mrb[0].mxu0
      %v601 = vpop.f32.mrb[0].mxu0
      %v602 = vadd.f32 0.0, %v601
      %v603 = vpop.f32.mrb[0].mxu0
      %604 = vmatprep.mubr.bf16.mxu0 0
      %605 = vmatmul.mubr.bf16.gmra.mrb[0].mxu0 %v410
      %v606 = vpop.f32.mrb[0].mxu0
      %v607 = vadd.f32 0.0, %v606
      %v608 = vpop.f32.mrb[0].mxu0
      %v609 = vpop.f32.mrb[0].mxu0
      %v610 = vadd.f32 0.0, %v609
      %v611 = vpop.f32.mrb[0].mxu0
      %612 = vmatprep.mubr.bf16.mxu0 0
      %613 = vmatmul.mubr.bf16.gmra.mrb[0].mxu0 %v411
      %v614 = vpop.f32.mrb[0].mxu0
      %v615 = vadd.f32 0.0, %v614
      %v616 = vpop.f32.mrb[0].mxu0
      %v617 = vpop.f32.mrb[0].mxu0
      %v618 = vadd.f32 0.0, %v617
      %v619 = vpop.f32.mrb[0].mxu0
      %620 = vdwg.mxu0
      %v637 = vunpack.c.l.b16 %v172
      %v638 = vunpack.c.l.b16 %v173
      %v639 = vunpack.c.l.b16 %v174
      %v640 = vunpack.c.l.b16 %v175
      %v641 = vunpack.c.l.b16 %v176
      %v642 = vunpack.c.l.b16 %v177
      %v643 = vunpack.c.l.b16 %v178
      %v644 = vunpack.c.l.b16 %v179
      %v645 = vunpack.c.l.b16 %v180
      %v646 = vunpack.c.l.b16 %v181
      %v647 = vunpack.c.l.b16 %v182
      %v648 = vunpack.c.l.b16 %v183
      %v649 = vunpack.c.l.b16 %v184
      %v650 = vunpack.c.l.b16 %v185
      %v651 = vunpack.c.l.b16 %v186
      %v652 = vunpack.c.l.b16 %v187
      %v653 = vpack.c.b16 %v638, %v637
      %v654 = vpack.c.b16 %v640, %v639
      %v655 = vpack.c.b16 %v642, %v641
      %v656 = vpack.c.b16 %v644, %v643
      %v657 = vpack.c.b16 %v646, %v645
      %v658 = vpack.c.b16 %v648, %v647
      %v659 = vpack.c.b16 %v650, %v649
      %v660 = vpack.c.b16 %v652, %v651
      %669 = vmatprep.subr.bf16.mxu0 0
      %670 = vmatpush1.bf16.msra.mxu0 %v653
      %671 = vmatprep.subr.bf16.mxu0 0
      %672 = vmatpush1.bf16.msra.mxu0 %v654
      %673 = vmatprep.subr.bf16.mxu0 0
      %674 = vmatpush1.bf16.msra.mxu0 %v655
      %675 = vmatprep.subr.bf16.mxu0 0
      %676 = vmatpush1.bf16.msra.mxu0 %v656
      %677 = vmatprep.subr.bf16.mxu0 0
      %678 = vmatpush1.bf16.msra.mxu0 %v657
      %679 = vmatprep.subr.bf16.mxu0 0
      %680 = vmatpush1.bf16.msra.mxu0 %v658
      %681 = vmatprep.subr.bf16.mxu0 0
      %682 = vmatpush1.bf16.msra.mxu0 %v659
      %683 = vmatprep.subr.bf16.mxu0 0
      %684 = vmatpush1.bf16.msra.mxu0 %v660
      %685 = vmatprep.subr.bf16.mxu0 0
      %686 = vmatpush1.bf16.msra.mxu0 0
      %687 = vmatprep.subr.bf16.mxu0 0
      %688 = vmatpush1.bf16.msra.mxu0 0
      %689 = vmatprep.subr.bf16.mxu0 0
      %690 = vmatpush1.bf16.msra.mxu0 0
      %691 = vmatprep.subr.bf16.mxu0 0
      %692 = vmatpush1.bf16.msra.mxu0 0
      %693 = vmatprep.subr.bf16.mxu0 0
      %694 = vmatpush1.bf16.msra.mxu0 0
      %695 = vmatprep.subr.bf16.mxu0 0
      %696 = vmatpush1.bf16.msra.mxu0 0
      %697 = vmatprep.subr.bf16.mxu0 0
      %698 = vmatpush1.bf16.msra.mxu0 0
      %699 = vmatprep.subr.bf16.mxu0 0
      %700 = vmatpush1.bf16.msra.mxu0 0
      %701 = vmatprep.mubr.bf16.mxu0 0
      %702 = vmatmul.mubr.bf16.gmra.mrb[0].mxu0 %v348
      %v703 = vpop.f32.mrb[0].mxu0
      %v704 = vadd.f32 %v495, %v703
      %v705 = vpop.f32.mrb[0].mxu0
      %v706 = vpop.f32.mrb[0].mxu0
      %v707 = vadd.f32 %v498, %v706
      %v708 = vpop.f32.mrb[0].mxu0
      %709 = vmatprep.mubr.bf16.mxu0 0
      %710 = vmatmul.mubr.bf16.gmra.mrb[0].mxu0 %v349
      %v711 = vpop.f32.mrb[0].mxu0
      %v712 = vadd.f32 %v503, %v711
      %v713 = vpop.f32.mrb[0].mxu0
      %v714 = vpop.f32.mrb[0].mxu0
      %v715 = vadd.f32 %v506, %v714
      %v716 = vpop.f32.mrb[0].mxu0
      %717 = vmatprep.mubr.bf16.mxu0 0
      %718 = vmatmul.mubr.bf16.gmra.mrb[0].mxu0 %v350
      %v719 = vpop.f32.mrb[0].mxu0
      %v720 = vadd.f32 %v511, %v719
      %v721 = vpop.f32.mrb[0].mxu0
      %v722 = vpop.f32.mrb[0].mxu0
      %v723 = vadd.f32 %v514, %v722
      %v724 = vpop.f32.mrb[0].mxu0
      %725 = vmatprep.mubr.bf16.mxu0 0
      %726 = vmatmul.mubr.bf16.gmra.mrb[0].mxu0 %v351
      %v727 = vpop.f32.mrb[0].mxu0
      %v728 = vadd.f32 %v519, %v727
      %v729 = vpop.f32.mrb[0].mxu0
      %v730 = vpop.f32.mrb[0].mxu0
      %v731 = vadd.f32 %v522, %v730
      %v732 = vpop.f32.mrb[0].mxu0
      %733 = vmatprep.mubr.bf16.mxu0 0
      %734 = vmatmul.mubr.bf16.gmra.mrb[0].mxu0 %v352
      %v735 = vpop.f32.mrb[0].mxu0
      %v736 = vadd.f32 %v527, %v735
      %v737 = vpop.f32.mrb[0].mxu0
      %v738 = vpop.f32.mrb[0].mxu0
      %v739 = vadd.f32 %v530, %v738
      %v740 = vpop.f32.mrb[0].mxu0
      %741 = vmatprep.mubr.bf16.mxu0 0
      %742 = vmatmul.mubr.bf16.gmra.mrb[0].mxu0 %v353
      %v743 = vpop.f32.mrb[0].mxu0
      %v744 = vadd.f32 %v535, %v743
      %v745 = vpop.f32.mrb[0].mxu0
      %v746 = vpop.f32.mrb[0].mxu0
      %v747 = vadd.f32 %v538, %v746
      %v748 = vpop.f32.mrb[0].mxu0
      %749 = vmatprep.mubr.bf16.mxu0 0
      %750 = vmatmul.mubr.bf16.gmra.mrb[0].mxu0 %v354
      %v751 = vpop.f32.mrb[0].mxu0
      %v752 = vadd.f32 %v543, %v751
      %v753 = vpop.f32.mrb[0].mxu0
      %v754 = vpop.f32.mrb[0].mxu0
      %v755 = vadd.f32 %v546, %v754
      %v756 = vpop.f32.mrb[0].mxu0
      %757 = vmatprep.mubr.bf16.mxu0 0
      %758 = vmatmul.mubr.bf16.gmra.mrb[0].mxu0 %v355
      %v759 = vpop.f32.mrb[0].mxu0
      %v760 = vadd.f32 %v551, %v759
      %v761 = vpop.f32.mrb[0].mxu0
      %v762 = vpop.f32.mrb[0].mxu0
      %v763 = vadd.f32 %v554, %v762
      %v764 = vpop.f32.mrb[0].mxu0
      %765 = vmatprep.mubr.bf16.mxu0 0
      %766 = vmatmul.mubr.bf16.gmra.mrb[0].mxu0 %v356
      %v767 = vpop.f32.mrb[0].mxu0
      %v768 = vadd.f32 %v559, %v767
      %v769 = vpop.f32.mrb[0].mxu0
      %v770 = vpop.f32.mrb[0].mxu0
      %v771 = vadd.f32 %v562, %v770
      %v772 = vpop.f32.mrb[0].mxu0
      %773 = vmatprep.mubr.bf16.mxu0 0
      %774 = vmatmul.mubr.bf16.gmra.mrb[0].mxu0 %v357
      %v775 = vpop.f32.mrb[0].mxu0
      %v776 = vadd.f32 %v567, %v775
      %v777 = vpop.f32.mrb[0].mxu0
      %v778 = vpop.f32.mrb[0].mxu0
      %v779 = vadd.f32 %v570, %v778
      %v780 = vpop.f32.mrb[0].mxu0
      %781 = vmatprep.mubr.bf16.mxu0 0
      %782 = vmatmul.mubr.bf16.gmra.mrb[0].mxu0 %v358
      %v783 = vpop.f32.mrb[0].mxu0
      %v784 = vadd.f32 %v575, %v783
      %v785 = vpop.f32.mrb[0].mxu0
      %v786 = vpop.f32.mrb[0].mxu0
      %v787 = vadd.f32 %v578, %v786
      %v788 = vpop.f32.mrb[0].mxu0
      %789 = vmatprep.mubr.bf16.mxu0 0
      %790 = vmatmul.mubr.bf16.gmra.mrb[0].mxu0 %v359
      %v791 = vpop.f32.mrb[0].mxu0
      %v792 = vadd.f32 %v583, %v791
      %v793 = vpop.f32.mrb[0].mxu0
      %v794 = vpop.f32.mrb[0].mxu0
      %v795 = vadd.f32 %v586, %v794
      %v796 = vpop.f32.mrb[0].mxu0
      %797 = vmatprep.mubr.bf16.mxu0 0
      %798 = vmatmul.mubr.bf16.gmra.mrb[0].mxu0 %v360
      %v799 = vpop.f32.mrb[0].mxu0
      %v800 = vadd.f32 %v591, %v799
      %v801 = vpop.f32.mrb[0].mxu0
      %v802 = vpop.f32.mrb[0].mxu0
      %v803 = vadd.f32 %v594, %v802
      %v804 = vpop.f32.mrb[0].mxu0
      %805 = vmatprep.mubr.bf16.mxu0 0
      %806 = vmatmul.mubr.bf16.gmra.mrb[0].mxu0 %v361
      %v807 = vpop.f32.mrb[0].mxu0
      %v808 = vadd.f32 %v599, %v807
      %v809 = vpop.f32.mrb[0].mxu0
      %v810 = vpop.f32.mrb[0].mxu0
      %v811 = vadd.f32 %v602, %v810
      %v812 = vpop.f32.mrb[0].mxu0
      %813 = vmatprep.mubr.bf16.mxu0 0
      %814 = vmatmul.mubr.bf16.gmra.mrb[0].mxu0 %v362
      %v815 = vpop.f32.mrb[0].mxu0
      %v816 = vadd.f32 %v607, %v815
      %v817 = vpop.f32.mrb[0].mxu0
      %v818 = vpop.f32.mrb[0].mxu0
      %v819 = vadd.f32 %v610, %v818
      %v820 = vpop.f32.mrb[0].mxu0
      %821 = vmatprep.mubr.bf16.mxu0 0
      %822 = vmatmul.mubr.bf16.gmra.mrb[0].mxu0 %v363
      %v823 = vpop.f32.mrb[0].mxu0
      %v824 = vadd.f32 %v615, %v823
      %v825 = vpop.f32.mrb[0].mxu0
      %v826 = vpop.f32.mrb[0].mxu0
      %v827 = vadd.f32 %v618, %v826
      %v828 = vpop.f32.mrb[0].mxu0
      %829 = vdwg.mxu0
      %v830 = vld [vmem:[%s165 + $0x2] sm:$0xff]
      %v831 = vld [vmem:[%s165 + $0xa] sm:$0xff]
      %v832 = vld [vmem:[%s165 + $0x1a] sm:$0xff]
      %v833 = vld [vmem:[%s165 + $0x22] sm:$0xff]
      %v834 = vld [vmem:[%s165 + $0x32] sm:$0xff]
      %v835 = vld [vmem:[%s165 + $0x3a] sm:$0xff]
      %v836 = vld [vmem:[%s165 + $0x4a] sm:$0xff]
      %v837 = vld [vmem:[%s165 + $0x52] sm:$0xff]
      %v838 = vld [vmem:[%s165 + $0x62] sm:$0xff]
      %v839 = vld [vmem:[%s165 + $0x6a] sm:$0xff]
      %v840 = vld [vmem:[%s165 + $0x7a] sm:$0xff]
      %v841 = vld [vmem:[%s165 + $0x82] sm:$0xff]
      %v842 = vld [vmem:[%s165 + $0x92] sm:$0xff]
      %v843 = vld [vmem:[%s165 + $0x9a] sm:$0xff]
      %v844 = vld [vmem:[%s165 + $0xaa] sm:$0xff]
      %v845 = vld [vmem:[%s165 + $0xb2] sm:$0xff]
      %v846 = vld [vmem:[%s165 + $0xc2] sm:$0xff]
      %v847 = vld [vmem:[%s165 + $0xca] sm:$0xff]
      %v848 = vld [vmem:[%s165 + $0xda] sm:$0xff]
      %v849 = vld [vmem:[%s165 + $0xe2] sm:$0xff]
      %v850 = vld [vmem:[%s165 + $0xf2] sm:$0xff]
      %v851 = vld [vmem:[%s165 + $0xfa] sm:$0xff]
      %v852 = vld [vmem:[%s165 + $0x10a] sm:$0xff]
      %v853 = vld [vmem:[%s165 + $0x112] sm:$0xff]
      %v854 = vld [vmem:[%s165 + $0x122] sm:$0xff]
      %v855 = vld [vmem:[%s165 + $0x12a] sm:$0xff]
      %v856 = vld [vmem:[%s165 + $0x13a] sm:$0xff]
      %v857 = vld [vmem:[%s165 + $0x142] sm:$0xff]
      %v858 = vld [vmem:[%s165 + $0x152] sm:$0xff]
      %v859 = vld [vmem:[%s165 + $0x15a] sm:$0xff]
      %v860 = vld [vmem:[%s165 + $0x16a] sm:$0xff]
      %v861 = vld [vmem:[%s165 + $0x172] sm:$0xff]
      %v862 = vpack.c.bf16 %v831, %v830
      %v863 = vpack.c.bf16 %v833, %v832
      %v864 = vpack.c.bf16 %v835, %v834
      %v865 = vpack.c.bf16 %v837, %v836
      %v866 = vpack.c.bf16 %v839, %v838
      %v867 = vpack.c.bf16 %v841, %v840
      %v868 = vpack.c.bf16 %v843, %v842
      %v869 = vpack.c.bf16 %v845, %v844
      %v870 = vpack.c.bf16 %v847, %v846
      %v871 = vpack.c.bf16 %v849, %v848
      %v872 = vpack.c.bf16 %v851, %v850
      %v873 = vpack.c.bf16 %v853, %v852
      %v874 = vpack.c.bf16 %v855, %v854
      %v875 = vpack.c.bf16 %v857, %v856
      %v876 = vpack.c.bf16 %v859, %v858
      %v877 = vpack.c.bf16 %v861, %v860
      %v894 = vunpack.c.l.b16 %v204
      %v895 = vunpack.c.l.b16 %v205
      %v896 = vunpack.c.l.b16 %v206
      %v897 = vunpack.c.l.b16 %v207
      %v898 = vunpack.c.l.b16 %v208
      %v899 = vunpack.c.l.b16 %v209
      %v900 = vunpack.c.l.b16 %v210
      %v901 = vunpack.c.l.b16 %v211
      %v902 = vunpack.c.l.b16 %v212
      %v903 = vunpack.c.l.b16 %v213
      %v904 = vunpack.c.l.b16 %v214
      %v905 = vunpack.c.l.b16 %v215
      %v906 = vunpack.c.l.b16 %v216
      %v907 = vunpack.c.l.b16 %v217
      %v908 = vunpack.c.l.b16 %v218
      %v909 = vunpack.c.l.b16 %v219
      %v910 = vpack.c.b16 %v895, %v894
      %v911 = vpack.c.b16 %v897, %v896
      %v912 = vpack.c.b16 %v899, %v898
      %v913 = vpack.c.b16 %v901, %v900
      %v914 = vpack.c.b16 %v903, %v902
      %v915 = vpack.c.b16 %v905, %v904
      %v916 = vpack.c.b16 %v907, %v906
      %v917 = vpack.c.b16 %v909, %v908
      %926 = vmatprep.subr.bf16.mxu0 0
      %927 = vmatpush1.bf16.msra.mxu0 %v910
      %928 = vmatprep.subr.bf16.mxu0 0
      %929 = vmatpush1.bf16.msra.mxu0 %v911
      %930 = vmatprep.subr.bf16.mxu0 0
      %931 = vmatpush1.bf16.msra.mxu0 %v912
      %932 = vmatprep.subr.bf16.mxu0 0
      %933 = vmatpush1.bf16.msra.mxu0 %v913
      %934 = vmatprep.subr.bf16.mxu0 0
      %935 = vmatpush1.bf16.msra.mxu0 %v914
      %936 = vmatprep.subr.bf16.mxu0 0
      %937 = vmatpush1.bf16.msra.mxu0 %v915
      %938 = vmatprep.subr.bf16.mxu0 0
      %939 = vmatpush1.bf16.msra.mxu0 %v916
      %940 = vmatprep.subr.bf16.mxu0 0
      %941 = vmatpush1.bf16.msra.mxu0 %v917
      %942 = vmatprep.subr.bf16.mxu0 0
      %943 = vmatpush1.bf16.msra.mxu0 0
      %944 = vmatprep.subr.bf16.mxu0 0
      %945 = vmatpush1.bf16.msra.mxu0 0
      %946 = vmatprep.subr.bf16.mxu0 0
      %947 = vmatpush1.bf16.msra.mxu0 0
      %948 = vmatprep.subr.bf16.mxu0 0
      %949 = vmatpush1.bf16.msra.mxu0 0
      %950 = vmatprep.subr.bf16.mxu0 0
      %951 = vmatpush1.bf16.msra.mxu0 0
      %952 = vmatprep.subr.bf16.mxu0 0
      %953 = vmatpush1.bf16.msra.mxu0 0
      %954 = vmatprep.subr.bf16.mxu0 0
      %955 = vmatpush1.bf16.msra.mxu0 0
      %956 = vmatprep.subr.bf16.mxu0 0
      %957 = vmatpush1.bf16.msra.mxu0 0
      %958 = vmatprep.mubr.bf16.mxu0 0
      %959 = vmatmul.mubr.bf16.gmra.mrb[0].mxu0 %v862
      %v960 = vpop.f32.mrb[0].mxu0
      %v961 = vadd.f32 0.0, %v960
      %v962 = vpop.f32.mrb[0].mxu0
      %v963 = vpop.f32.mrb[0].mxu0
      %v964 = vadd.f32 0.0, %v963
      %v965 = vpop.f32.mrb[0].mxu0
      %966 = vmatprep.mubr.bf16.mxu0 0
      %967 = vmatmul.mubr.bf16.gmra.mrb[0].mxu0 %v863
      %v968 = vpop.f32.mrb[0].mxu0
      %v969 = vadd.f32 0.0, %v968
      %v970 = vpop.f32.mrb[0].mxu0
      %v971 = vpop.f32.mrb[0].mxu0
      %v972 = vadd.f32 0.0, %v971
      %v973 = vpop.f32.mrb[0].mxu0
      %974 = vmatprep.mubr.bf16.mxu0 0
      %975 = vmatmul.mubr.bf16.gmra.mrb[0].mxu0 %v864
      %v976 = vpop.f32.mrb[0].mxu0
      %v977 = vadd.f32 0.0, %v976
      %v978 = vpop.f32.mrb[0].mxu0
      %v979 = vpop.f32.mrb[0].mxu0
      %v980 = vadd.f32 0.0, %v979
      %v981 = vpop.f32.mrb[0].mxu0
      %982 = vmatprep.mubr.bf16.mxu0 0
      %983 = vmatmul.mubr.bf16.gmra.mrb[0].mxu0 %v865
      %v984 = vpop.f32.mrb[0].mxu0
      %v985 = vadd.f32 0.0, %v984
      %v986 = vpop.f32.mrb[0].mxu0
      %v987 = vpop.f32.mrb[0].mxu0
      %v988 = vadd.f32 0.0, %v987
      %v989 = vpop.f32.mrb[0].mxu0
      %990 = vmatprep.mubr.bf16.mxu0 0
      %991 = vmatmul.mubr.bf16.gmra.mrb[0].mxu0 %v866
      %v992 = vpop.f32.mrb[0].mxu0
      %v993 = vadd.f32 0.0, %v992
      %v994 = vpop.f32.mrb[0].mxu0
      %v995 = vpop.f32.mrb[0].mxu0
      %v996 = vadd.f32 0.0, %v995
      %v997 = vpop.f32.mrb[0].mxu0
      %998 = vmatprep.mubr.bf16.mxu0 0
      %999 = vmatmul.mubr.bf16.gmra.mrb[0].mxu0 %v867
      %v1000 = vpop.f32.mrb[0].mxu0
      %v1001 = vadd.f32 0.0, %v1000
      %v1002 = vpop.f32.mrb[0].mxu0
      %v1003 = vpop.f32.mrb[0].mxu0
      %v1004 = vadd.f32 0.0, %v1003
      %v1005 = vpop.f32.mrb[0].mxu0
      %1006 = vmatprep.mubr.bf16.mxu0 0
      %1007 = vmatmul.mubr.bf16.gmra.mrb[0].mxu0 %v868
      %v1008 = vpop.f32.mrb[0].mxu0
      %v1009 = vadd.f32 0.0, %v1008
      %v1010 = vpop.f32.mrb[0].mxu0
      %v1011 = vpop.f32.mrb[0].mxu0
      %v1012 = vadd.f32 0.0, %v1011
      %v1013 = vpop.f32.mrb[0].mxu0
      %1014 = vmatprep.mubr.bf16.mxu0 0
      %1015 = vmatmul.mubr.bf16.gmra.mrb[0].mxu0 %v869
      %v1016 = vpop.f32.mrb[0].mxu0
      %v1017 = vadd.f32 0.0, %v1016
      %v1018 = vpop.f32.mrb[0].mxu0
      %v1019 = vpop.f32.mrb[0].mxu0
      %v1020 = vadd.f32 0.0, %v1019
      %v1021 = vpop.f32.mrb[0].mxu0
      %1022 = vmatprep.mubr.bf16.mxu0 0
      %1023 = vmatmul.mubr.bf16.gmra.mrb[0].mxu0 %v870
      %v1024 = vpop.f32.mrb[0].mxu0
      %v1025 = vadd.f32 0.0, %v1024
      %v1026 = vpop.f32.mrb[0].mxu0
      %v1027 = vpop.f32.mrb[0].mxu0
      %v1028 = vadd.f32 0.0, %v1027
      %v1029 = vpop.f32.mrb[0].mxu0
      %1030 = vmatprep.mubr.bf16.mxu0 0
      %1031 = vmatmul.mubr.bf16.gmra.mrb[0].mxu0 %v871
      %v1032 = vpop.f32.mrb[0].mxu0
      %v1033 = vadd.f32 0.0, %v1032
      %v1034 = vpop.f32.mrb[0].mxu0
      %v1035 = vpop.f32.mrb[0].mxu0
      %v1036 = vadd.f32 0.0, %v1035
      %v1037 = vpop.f32.mrb[0].mxu0
      %1038 = vmatprep.mubr.bf16.mxu0 0
      %1039 = vmatmul.mubr.bf16.gmra.mrb[0].mxu0 %v872
      %v1040 = vpop.f32.mrb[0].mxu0
      %v1041 = vadd.f32 0.0, %v1040
      %v1042 = vpop.f32.mrb[0].mxu0
      %v1043 = vpop.f32.mrb[0].mxu0
      %v1044 = vadd.f32 0.0, %v1043
      %v1045 = vpop.f32.mrb[0].mxu0
      %1046 = vmatprep.mubr.bf16.mxu0 0
      %1047 = vmatmul.mubr.bf16.gmra.mrb[0].mxu0 %v873
      %v1048 = vpop.f32.mrb[0].mxu0
      %v1049 = vadd.f32 0.0, %v1048
      %v1050 = vpop.f32.mrb[0].mxu0
      %v1051 = vpop.f32.mrb[0].mxu0
      %v1052 = vadd.f32 0.0, %v1051
      %v1053 = vpop.f32.mrb[0].mxu0
      %1054 = vmatprep.mubr.bf16.mxu0 0
      %1055 = vmatmul.mubr.bf16.gmra.mrb[0].mxu0 %v874
      %v1056 = vpop.f32.mrb[0].mxu0
      %v1057 = vadd.f32 0.0, %v1056
      %v1058 = vpop.f32.mrb[0].mxu0
      %v1059 = vpop.f32.mrb[0].mxu0
      %v1060 = vadd.f32 0.0, %v1059
      %v1061 = vpop.f32.mrb[0].mxu0
      %1062 = vmatprep.mubr.bf16.mxu0 0
      %1063 = vmatmul.mubr.bf16.gmra.mrb[0].mxu0 %v875
      %v1064 = vpop.f32.mrb[0].mxu0
      %v1065 = vadd.f32 0.0, %v1064
      %v1066 = vpop.f32.mrb[0].mxu0
      %v1067 = vpop.f32.mrb[0].mxu0
      %v1068 = vadd.f32 0.0, %v1067
      %v1069 = vpop.f32.mrb[0].mxu0
      %1070 = vmatprep.mubr.bf16.mxu0 0
      %1071 = vmatmul.mubr.bf16.gmra.mrb[0].mxu0 %v876
      %v1072 = vpop.f32.mrb[0].mxu0
      %v1073 = vadd.f32 0.0, %v1072
      %v1074 = vpop.f32.mrb[0].mxu0
      %v1075 = vpop.f32.mrb[0].mxu0
      %v1076 = vadd.f32 0.0, %v1075
      %v1077 = vpop.f32.mrb[0].mxu0
      %1078 = vmatprep.mubr.bf16.mxu0 0
      %1079 = vmatmul.mubr.bf16.gmra.mrb[0].mxu0 %v877
      %v1080 = vpop.f32.mrb[0].mxu0
      %v1081 = vadd.f32 0.0, %v1080
      %v1082 = vpop.f32.mrb[0].mxu0
      %v1083 = vpop.f32.mrb[0].mxu0
      %v1084 = vadd.f32 0.0, %v1083
      %v1085 = vpop.f32.mrb[0].mxu0
      %1086 = vdwg.mxu0
      %v1087 = vadd.f32 %v704, %v961
      %v1088 = vadd.f32 %v707, %v964
      %v1089 = vadd.f32 %v712, %v969
      %v1090 = vadd.f32 %v715, %v972
      %v1091 = vadd.f32 %v720, %v977
      %v1092 = vadd.f32 %v723, %v980
      %v1093 = vadd.f32 %v728, %v985
      %v1094 = vadd.f32 %v731, %v988
      %v1095 = vadd.f32 %v736, %v993
      %v1096 = vadd.f32 %v739, %v996
      %v1097 = vadd.f32 %v744, %v1001
      %v1098 = vadd.f32 %v747, %v1004
      %v1099 = vadd.f32 %v752, %v1009
      %v1100 = vadd.f32 %v755, %v1012
      %v1101 = vadd.f32 %v760, %v1017
      %v1102 = vadd.f32 %v763, %v1020
      %v1103 = vadd.f32 %v768, %v1025
      %v1104 = vadd.f32 %v771, %v1028
      %v1105 = vadd.f32 %v776, %v1033
      %v1106 = vadd.f32 %v779, %v1036
      %v1107 = vadd.f32 %v784, %v1041
      %v1108 = vadd.f32 %v787, %v1044
      %v1109 = vadd.f32 %v792, %v1049
      %v1110 = vadd.f32 %v795, %v1052
      %v1111 = vadd.f32 %v800, %v1057
      %v1112 = vadd.f32 %v803, %v1060
      %v1113 = vadd.f32 %v808, %v1065
      %v1114 = vadd.f32 %v811, %v1068
      %v1115 = vadd.f32 %v816, %v1073
      %v1116 = vadd.f32 %v819, %v1076
      %v1117 = vadd.f32 %v824, %v1081
      %v1118 = vadd.f32 %v827, %v1084
      %s1119 = scalar_lea.vmem %s165, 24
      %v1120 = vld [vmem:[%s1119] sm:$0xff]
      %v1121 = vld [vmem:[%s1119 + $0x8] sm:$0xff]
      %v1122 = vld [vmem:[%s1119 + $0x18] sm:$0xff]
      %v1123 = vld [vmem:[%s1119 + $0x20] sm:$0xff]
      %v1124 = vld [vmem:[%s1119 + $0x30] sm:$0xff]
      %v1125 = vld [vmem:[%s1119 + $0x38] sm:$0xff]
      %v1126 = vld [vmem:[%s1119 + $0x48] sm:$0xff]
      %v1127 = vld [vmem:[%s1119 + $0x50] sm:$0xff]
      %v1128 = vld [vmem:[%s1119 + $0x60] sm:$0xff]
      %v1129 = vld [vmem:[%s1119 + $0x68] sm:$0xff]
      %v1130 = vld [vmem:[%s1119 + $0x78] sm:$0xff]
      %v1131 = vld [vmem:[%s1119 + $0x80] sm:$0xff]
      %v1132 = vld [vmem:[%s1119 + $0x90] sm:$0xff]
      %v1133 = vld [vmem:[%s1119 + $0x98] sm:$0xff]
      %v1134 = vld [vmem:[%s1119 + $0xa8] sm:$0xff]
      %v1135 = vld [vmem:[%s1119 + $0xb0] sm:$0xff]
      %v1136 = vld [vmem:[%s1119 + $0xc0] sm:$0xff]
      %v1137 = vld [vmem:[%s1119 + $0xc8] sm:$0xff]
      %v1138 = vld [vmem:[%s1119 + $0xd8] sm:$0xff]
      %v1139 = vld [vmem:[%s1119 + $0xe0] sm:$0xff]
      %v1140 = vld [vmem:[%s1119 + $0xf0] sm:$0xff]
      %v1141 = vld [vmem:[%s1119 + $0xf8] sm:$0xff]
      %v1142 = vld [vmem:[%s1119 + $0x108] sm:$0xff]
      %v1143 = vld [vmem:[%s1119 + $0x110] sm:$0xff]
      %v1144 = vld [vmem:[%s1119 + $0x120] sm:$0xff]
      %v1145 = vld [vmem:[%s1119 + $0x128] sm:$0xff]
      %v1146 = vld [vmem:[%s1119 + $0x138] sm:$0xff]
      %v1147 = vld [vmem:[%s1119 + $0x140] sm:$0xff]
      %v1148 = vld [vmem:[%s1119 + $0x150] sm:$0xff]
      %v1149 = vld [vmem:[%s1119 + $0x158] sm:$0xff]
      %v1150 = vld [vmem:[%s1119 + $0x168] sm:$0xff]
      %v1151 = vld [vmem:[%s1119 + $0x170] sm:$0xff]
      %v1152 = vpack.c.bf16 %v1121, %v1120
      %v1153 = vpack.c.bf16 %v1123, %v1122
      %v1154 = vpack.c.bf16 %v1125, %v1124
      %v1155 = vpack.c.bf16 %v1127, %v1126
      %v1156 = vpack.c.bf16 %v1129, %v1128
      %v1157 = vpack.c.bf16 %v1131, %v1130
      %v1158 = vpack.c.bf16 %v1133, %v1132
      %v1159 = vpack.c.bf16 %v1135, %v1134
      %v1160 = vpack.c.bf16 %v1137, %v1136
      %v1161 = vpack.c.bf16 %v1139, %v1138
      %v1162 = vpack.c.bf16 %v1141, %v1140
      %v1163 = vpack.c.bf16 %v1143, %v1142
      %v1164 = vpack.c.bf16 %v1145, %v1144
      %v1165 = vpack.c.bf16 %v1147, %v1146
      %v1166 = vpack.c.bf16 %v1149, %v1148
      %v1167 = vpack.c.bf16 %v1151, %v1150
      %v1184 = vunpack.c.l.b16 %v220
      %v1185 = vunpack.c.l.b16 %v221
      %v1186 = vunpack.c.l.b16 %v222
      %v1187 = vunpack.c.l.b16 %v223
      %v1188 = vunpack.c.l.b16 %v224
      %v1189 = vunpack.c.l.b16 %v225
      %v1190 = vunpack.c.l.b16 %v226
      %v1191 = vunpack.c.l.b16 %v227
      %v1192 = vunpack.c.l.b16 %v228
      %v1193 = vunpack.c.l.b16 %v229
      %v1194 = vunpack.c.l.b16 %v230
      %v1195 = vunpack.c.l.b16 %v231
      %v1196 = vunpack.c.l.b16 %v232
      %v1197 = vunpack.c.l.b16 %v233
      %v1198 = vunpack.c.l.b16 %v234
      %v1199 = vunpack.c.l.b16 %v235
      %v1200 = vpack.c.b16 %v1185, %v1184
      %v1201 = vpack.c.b16 %v1187, %v1186
      %v1202 = vpack.c.b16 %v1189, %v1188
      %v1203 = vpack.c.b16 %v1191, %v1190
      %v1204 = vpack.c.b16 %v1193, %v1192
      %v1205 = vpack.c.b16 %v1195, %v1194
      %v1206 = vpack.c.b16 %v1197, %v1196
      %v1207 = vpack.c.b16 %v1199, %v1198
      %1216 = vmatprep.subr.bf16.mxu0 0
      %1217 = vmatpush1.bf16.msra.mxu0 %v1200
      %1218 = vmatprep.subr.bf16.mxu0 0
      %1219 = vmatpush1.bf16.msra.mxu0 %v1201
      %1220 = vmatprep.subr.bf16.mxu0 0
      %1221 = vmatpush1.bf16.msra.mxu0 %v1202
      %1222 = vmatprep.subr.bf16.mxu0 0
      %1223 = vmatpush1.bf16.msra.mxu0 %v1203
      %1224 = vmatprep.subr.bf16.mxu0 0
      %1225 = vmatpush1.bf16.msra.mxu0 %v1204
      %1226 = vmatprep.subr.bf16.mxu0 0
      %1227 = vmatpush1.bf16.msra.mxu0 %v1205
      %1228 = vmatprep.subr.bf16.mxu0 0
      %1229 = vmatpush1.bf16.msra.mxu0 %v1206
      %1230 = vmatprep.subr.bf16.mxu0 0
      %1231 = vmatpush1.bf16.msra.mxu0 %v1207
      %1232 = vmatprep.subr.bf16.mxu0 0
      %1233 = vmatpush1.bf16.msra.mxu0 0
      %1234 = vmatprep.subr.bf16.mxu0 0
      %1235 = vmatpush1.bf16.msra.mxu0 0
      %1236 = vmatprep.subr.bf16.mxu0 0
      %1237 = vmatpush1.bf16.msra.mxu0 0
      %1238 = vmatprep.subr.bf16.mxu0 0
      %1239 = vmatpush1.bf16.msra.mxu0 0
      %1240 = vmatprep.subr.bf16.mxu0 0
      %1241 = vmatpush1.bf16.msra.mxu0 0
      %1242 = vmatprep.subr.bf16.mxu0 0
      %1243 = vmatpush1.bf16.msra.mxu0 0
      %1244 = vmatprep.subr.bf16.mxu0 0
      %1245 = vmatpush1.bf16.msra.mxu0 0
      %1246 = vmatprep.subr.bf16.mxu0 0
      %1247 = vmatpush1.bf16.msra.mxu0 0
      %1248 = vmatprep.mubr.bf16.mxu0 0
      %1249 = vmatmul.mubr.bf16.gmra.mrb[0].mxu0 %v1152
      %v1250 = vpop.f32.mrb[0].mxu0
      %v1251 = vadd.f32 0.0, %v1250
      %v1252 = vpop.f32.mrb[0].mxu0
      %v1253 = vpop.f32.mrb[0].mxu0
      %v1254 = vadd.f32 0.0, %v1253
      %v1255 = vpop.f32.mrb[0].mxu0
      %1256 = vmatprep.mubr.bf16.mxu0 0
      %1257 = vmatmul.mubr.bf16.gmra.mrb[0].mxu0 %v1153
      %v1258 = vpop.f32.mrb[0].mxu0
      %v1259 = vadd.f32 0.0, %v1258
      %v1260 = vpop.f32.mrb[0].mxu0
      %v1261 = vpop.f32.mrb[0].mxu0
      %v1262 = vadd.f32 0.0, %v1261
      %v1263 = vpop.f32.mrb[0].mxu0
      %1264 = vmatprep.mubr.bf16.mxu0 0
      %1265 = vmatmul.mubr.bf16.gmra.mrb[0].mxu0 %v1154
      %v1266 = vpop.f32.mrb[0].mxu0
      %v1267 = vadd.f32 0.0, %v1266
      %v1268 = vpop.f32.mrb[0].mxu0
      %v1269 = vpop.f32.mrb[0].mxu0
      %v1270 = vadd.f32 0.0, %v1269
      %v1271 = vpop.f32.mrb[0].mxu0
      %1272 = vmatprep.mubr.bf16.mxu0 0
      %1273 = vmatmul.mubr.bf16.gmra.mrb[0].mxu0 %v1155
      %v1274 = vpop.f32.mrb[0].mxu0
      %v1275 = vadd.f32 0.0, %v1274
      %v1276 = vpop.f32.mrb[0].mxu0
      %v1277 = vpop.f32.mrb[0].mxu0
      %v1278 = vadd.f32 0.0, %v1277
      %v1279 = vpop.f32.mrb[0].mxu0
      %1280 = vmatprep.mubr.bf16.mxu0 0
      %1281 = vmatmul.mubr.bf16.gmra.mrb[0].mxu0 %v1156
      %v1282 = vpop.f32.mrb[0].mxu0
      %v1283 = vadd.f32 0.0, %v1282
      %v1284 = vpop.f32.mrb[0].mxu0
      %v1285 = vpop.f32.mrb[0].mxu0
      %v1286 = vadd.f32 0.0, %v1285
      %v1287 = vpop.f32.mrb[0].mxu0
      %1288 = vmatprep.mubr.bf16.mxu0 0
      %1289 = vmatmul.mubr.bf16.gmra.mrb[0].mxu0 %v1157
      %v1290 = vpop.f32.mrb[0].mxu0
      %v1291 = vadd.f32 0.0, %v1290
      %v1292 = vpop.f32.mrb[0].mxu0
      %v1293 = vpop.f32.mrb[0].mxu0
      %v1294 = vadd.f32 0.0, %v1293
      %v1295 = vpop.f32.mrb[0].mxu0
      %1296 = vmatprep.mubr.bf16.mxu0 0
      %1297 = vmatmul.mubr.bf16.gmra.mrb[0].mxu0 %v1158
      %v1298 = vpop.f32.mrb[0].mxu0
      %v1299 = vadd.f32 0.0, %v1298
      %v1300 = vpop.f32.mrb[0].mxu0
      %v1301 = vpop.f32.mrb[0].mxu0
      %v1302 = vadd.f32 0.0, %v1301
      %v1303 = vpop.f32.mrb[0].mxu0
      %1304 = vmatprep.mubr.bf16.mxu0 0
      %1305 = vmatmul.mubr.bf16.gmra.mrb[0].mxu0 %v1159
      %v1306 = vpop.f32.mrb[0].mxu0
      %v1307 = vadd.f32 0.0, %v1306
      %v1308 = vpop.f32.mrb[0].mxu0
      %v1309 = vpop.f32.mrb[0].mxu0
      %v1310 = vadd.f32 0.0, %v1309
      %v1311 = vpop.f32.mrb[0].mxu0
      %1312 = vmatprep.mubr.bf16.mxu0 0
      %1313 = vmatmul.mubr.bf16.gmra.mrb[0].mxu0 %v1160
      %v1314 = vpop.f32.mrb[0].mxu0
      %v1315 = vadd.f32 0.0, %v1314
      %v1316 = vpop.f32.mrb[0].mxu0
      %v1317 = vpop.f32.mrb[0].mxu0
      %v1318 = vadd.f32 0.0, %v1317
      %v1319 = vpop.f32.mrb[0].mxu0
      %1320 = vmatprep.mubr.bf16.mxu0 0
      %1321 = vmatmul.mubr.bf16.gmra.mrb[0].mxu0 %v1161
      %v1322 = vpop.f32.mrb[0].mxu0
      %v1323 = vadd.f32 0.0, %v1322
      %v1324 = vpop.f32.mrb[0].mxu0
      %v1325 = vpop.f32.mrb[0].mxu0
      %v1326 = vadd.f32 0.0, %v1325
      %v1327 = vpop.f32.mrb[0].mxu0
      %1328 = vmatprep.mubr.bf16.mxu0 0
      %1329 = vmatmul.mubr.bf16.gmra.mrb[0].mxu0 %v1162
      %v1330 = vpop.f32.mrb[0].mxu0
      %v1331 = vadd.f32 0.0, %v1330
      %v1332 = vpop.f32.mrb[0].mxu0
      %v1333 = vpop.f32.mrb[0].mxu0
      %v1334 = vadd.f32 0.0, %v1333
      %v1335 = vpop.f32.mrb[0].mxu0
      %1336 = vmatprep.mubr.bf16.mxu0 0
      %1337 = vmatmul.mubr.bf16.gmra.mrb[0].mxu0 %v1163
      %v1338 = vpop.f32.mrb[0].mxu0
      %v1339 = vadd.f32 0.0, %v1338
      %v1340 = vpop.f32.mrb[0].mxu0
      %v1341 = vpop.f32.mrb[0].mxu0
      %v1342 = vadd.f32 0.0, %v1341
      %v1343 = vpop.f32.mrb[0].mxu0
      %1344 = vmatprep.mubr.bf16.mxu0 0
      %1345 = vmatmul.mubr.bf16.gmra.mrb[0].mxu0 %v1164
      %v1346 = vpop.f32.mrb[0].mxu0
      %v1347 = vadd.f32 0.0, %v1346
      %v1348 = vpop.f32.mrb[0].mxu0
      %v1349 = vpop.f32.mrb[0].mxu0
      %v1350 = vadd.f32 0.0, %v1349
      %v1351 = vpop.f32.mrb[0].mxu0
      %1352 = vmatprep.mubr.bf16.mxu0 0
      %1353 = vmatmul.mubr.bf16.gmra.mrb[0].mxu0 %v1165
      %v1354 = vpop.f32.mrb[0].mxu0
      %v1355 = vadd.f32 0.0, %v1354
      %v1356 = vpop.f32.mrb[0].mxu0
      %v1357 = vpop.f32.mrb[0].mxu0
      %v1358 = vadd.f32 0.0, %v1357
      %v1359 = vpop.f32.mrb[0].mxu0
      %1360 = vmatprep.mubr.bf16.mxu0 0
      %1361 = vmatmul.mubr.bf16.gmra.mrb[0].mxu0 %v1166
      %v1362 = vpop.f32.mrb[0].mxu0
      %v1363 = vadd.f32 0.0, %v1362
      %v1364 = vpop.f32.mrb[0].mxu0
      %v1365 = vpop.f32.mrb[0].mxu0
      %v1366 = vadd.f32 0.0, %v1365
      %v1367 = vpop.f32.mrb[0].mxu0
      %1368 = vmatprep.mubr.bf16.mxu0 0
      %1369 = vmatmul.mubr.bf16.gmra.mrb[0].mxu0 %v1167
      %v1370 = vpop.f32.mrb[0].mxu0
      %v1371 = vadd.f32 0.0, %v1370
      %v1372 = vpop.f32.mrb[0].mxu0
      %v1373 = vpop.f32.mrb[0].mxu0
      %v1374 = vadd.f32 0.0, %v1373
      %v1375 = vpop.f32.mrb[0].mxu0
      %1376 = vdwg.mxu0
      %v1377 = vadd.f32 %v1087, %v1251
      %v1378 = vadd.f32 %v1088, %v1254
      %v1379 = vadd.f32 %v1089, %v1259
      %v1380 = vadd.f32 %v1090, %v1262
      %v1381 = vadd.f32 %v1091, %v1267
      %v1382 = vadd.f32 %v1092, %v1270
      %v1383 = vadd.f32 %v1093, %v1275
      %v1384 = vadd.f32 %v1094, %v1278
      %v1385 = vadd.f32 %v1095, %v1283
      %v1386 = vadd.f32 %v1096, %v1286
      %v1387 = vadd.f32 %v1097, %v1291
      %v1388 = vadd.f32 %v1098, %v1294
      %v1389 = vadd.f32 %v1099, %v1299
      %v1390 = vadd.f32 %v1100, %v1302
      %v1391 = vadd.f32 %v1101, %v1307
      %v1392 = vadd.f32 %v1102, %v1310
      %v1393 = vadd.f32 %v1103, %v1315
      %v1394 = vadd.f32 %v1104, %v1318
      %v1395 = vadd.f32 %v1105, %v1323
      %v1396 = vadd.f32 %v1106, %v1326
      %v1397 = vadd.f32 %v1107, %v1331
      %v1398 = vadd.f32 %v1108, %v1334
      %v1399 = vadd.f32 %v1109, %v1339
      %v1400 = vadd.f32 %v1110, %v1342
      %v1401 = vadd.f32 %v1111, %v1347
      %v1402 = vadd.f32 %v1112, %v1350
      %v1403 = vadd.f32 %v1113, %v1355
      %v1404 = vadd.f32 %v1114, %v1358
      %v1405 = vadd.f32 %v1115, %v1363
      %v1406 = vadd.f32 %v1116, %v1366
      %v1407 = vadd.f32 %v1117, %v1371
      %v1408 = vadd.f32 %v1118, %v1374
      %v1409 = vld [vmem:[%s1119 + $0x1] sm:$0xff]
      %v1410 = vld [vmem:[%s1119 + $0x9] sm:$0xff]
      %v1411 = vld [vmem:[%s1119 + $0x19] sm:$0xff]
      %v1412 = vld [vmem:[%s1119 + $0x21] sm:$0xff]
      %v1413 = vld [vmem:[%s1119 + $0x31] sm:$0xff]
      %v1414 = vld [vmem:[%s1119 + $0x39] sm:$0xff]
      %v1415 = vld [vmem:[%s1119 + $0x49] sm:$0xff]
      %v1416 = vld [vmem:[%s1119 + $0x51] sm:$0xff]
      %v1417 = vld [vmem:[%s1119 + $0x61] sm:$0xff]
      %v1418 = vld [vmem:[%s1119 + $0x69] sm:$0xff]
      %v1419 = vld [vmem:[%s1119 + $0x79] sm:$0xff]
      %v1420 = vld [vmem:[%s1119 + $0x81] sm:$0xff]
      %v1421 = vld [vmem:[%s1119 + $0x91] sm:$0xff]
      %v1422 = vld [vmem:[%s1119 + $0x99] sm:$0xff]
      %v1423 = vld [vmem:[%s1119 + $0xa9] sm:$0xff]
      %v1424 = vld [vmem:[%s1119 + $0xb1] sm:$0xff]
      %v1425 = vld [vmem:[%s1119 + $0xc1] sm:$0xff]
      %v1426 = vld [vmem:[%s1119 + $0xc9] sm:$0xff]
      %v1427 = vld [vmem:[%s1119 + $0xd9] sm:$0xff]
      %v1428 = vld [vmem:[%s1119 + $0xe1] sm:$0xff]
      %v1429 = vld [vmem:[%s1119 + $0xf1] sm:$0xff]
      %v1430 = vld [vmem:[%s1119 + $0xf9] sm:$0xff]
      %v1431 = vld [vmem:[%s1119 + $0x109] sm:$0xff]
      %v1432 = vld [vmem:[%s1119 + $0x111] sm:$0xff]
      %v1433 = vld [vmem:[%s1119 + $0x121] sm:$0xff]
      %v1434 = vld [vmem:[%s1119 + $0x129] sm:$0xff]
      %v1435 = vld [vmem:[%s1119 + $0x139] sm:$0xff]
      %v1436 = vld [vmem:[%s1119 + $0x141] sm:$0xff]
      %v1437 = vld [vmem:[%s1119 + $0x151] sm:$0xff]
      %v1438 = vld [vmem:[%s1119 + $0x159] sm:$0xff]
      %v1439 = vld [vmem:[%s1119 + $0x169] sm:$0xff]
      %v1440 = vld [vmem:[%s1119 + $0x171] sm:$0xff]
      %v1441 = vpack.c.bf16 %v1410, %v1409
      %v1442 = vpack.c.bf16 %v1412, %v1411
      %v1443 = vpack.c.bf16 %v1414, %v1413
      %v1444 = vpack.c.bf16 %v1416, %v1415
      %v1445 = vpack.c.bf16 %v1418, %v1417
      %v1446 = vpack.c.bf16 %v1420, %v1419
      %v1447 = vpack.c.bf16 %v1422, %v1421
      %v1448 = vpack.c.bf16 %v1424, %v1423
      %v1449 = vpack.c.bf16 %v1426, %v1425
      %v1450 = vpack.c.bf16 %v1428, %v1427
      %v1451 = vpack.c.bf16 %v1430, %v1429
      %v1452 = vpack.c.bf16 %v1432, %v1431
      %v1453 = vpack.c.bf16 %v1434, %v1433
      %v1454 = vpack.c.bf16 %v1436, %v1435
      %v1455 = vpack.c.bf16 %v1438, %v1437
      %v1456 = vpack.c.bf16 %v1440, %v1439
      %v1473 = vunpack.c.l.b16 %v236
      %v1474 = vunpack.c.l.b16 %v237
      %v1475 = vunpack.c.l.b16 %v238
      %v1476 = vunpack.c.l.b16 %v239
      %v1477 = vunpack.c.l.b16 %v240
      %v1478 = vunpack.c.l.b16 %v241
      %v1479 = vunpack.c.l.b16 %v242
      %v1480 = vunpack.c.l.b16 %v243
      %v1481 = vunpack.c.l.b16 %v244
      %v1482 = vunpack.c.l.b16 %v245
      %v1483 = vunpack.c.l.b16 %v246
      %v1484 = vunpack.c.l.b16 %v247
      %v1485 = vunpack.c.l.b16 %v248
      %v1486 = vunpack.c.l.b16 %v249
      %v1487 = vunpack.c.l.b16 %v250
      %v1488 = vunpack.c.l.b16 %v251
      %v1489 = vpack.c.b16 %v1474, %v1473
      %v1490 = vpack.c.b16 %v1476, %v1475
      %v1491 = vpack.c.b16 %v1478, %v1477
      %v1492 = vpack.c.b16 %v1480, %v1479
      %v1493 = vpack.c.b16 %v1482, %v1481
      %v1494 = vpack.c.b16 %v1484, %v1483
      %v1495 = vpack.c.b16 %v1486, %v1485
      %v1496 = vpack.c.b16 %v1488, %v1487
      %1505 = vmatprep.subr.bf16.mxu0 0
      %1506 = vmatpush1.bf16.msra.mxu0 %v1489
      %1507 = vmatprep.subr.bf16.mxu0 0
      %1508 = vmatpush1.bf16.msra.mxu0 %v1490
      %1509 = vmatprep.subr.bf16.mxu0 0
      %1510 = vmatpush1.bf16.msra.mxu0 %v1491
      %1511 = vmatprep.subr.bf16.mxu0 0
      %1512 = vmatpush1.bf16.msra.mxu0 %v1492
      %1513 = vmatprep.subr.bf16.mxu0 0
      %1514 = vmatpush1.bf16.msra.mxu0 %v1493
      %1515 = vmatprep.subr.bf16.mxu0 0
      %1516 = vmatpush1.bf16.msra.mxu0 %v1494
      %1517 = vmatprep.subr.bf16.mxu0 0
      %1518 = vmatpush1.bf16.msra.mxu0 %v1495
      %1519 = vmatprep.subr.bf16.mxu0 0
      %1520 = vmatpush1.bf16.msra.mxu0 %v1496
      %1521 = vmatprep.subr.bf16.mxu0 0
      %1522 = vmatpush1.bf16.msra.mxu0 0
      %1523 = vmatprep.subr.bf16.mxu0 0
      %1524 = vmatpush1.bf16.msra.mxu0 0
      %1525 = vmatprep.subr.bf16.mxu0 0
      %1526 = vmatpush1.bf16.msra.mxu0 0
      %1527 = vmatprep.subr.bf16.mxu0 0
      %1528 = vmatpush1.bf16.msra.mxu0 0
      %1529 = vmatprep.subr.bf16.mxu0 0
      %1530 = vmatpush1.bf16.msra.mxu0 0
      %1531 = vmatprep.subr.bf16.mxu0 0
      %1532 = vmatpush1.bf16.msra.mxu0 0
      %1533 = vmatprep.subr.bf16.mxu0 0
      %1534 = vmatpush1.bf16.msra.mxu0 0
      %1535 = vmatprep.subr.bf16.mxu0 0
      %1536 = vmatpush1.bf16.msra.mxu0 0
      %1537 = vmatprep.mubr.bf16.mxu0 0
      %1538 = vmatmul.mubr.bf16.gmra.mrb[0].mxu0 %v1441
      %v1539 = vpop.f32.mrb[0].mxu0
      %v1540 = vadd.f32 0.0, %v1539
      %v1541 = vpop.f32.mrb[0].mxu0
      %v1542 = vpop.f32.mrb[0].mxu0
      %v1543 = vadd.f32 0.0, %v1542
      %v1544 = vpop.f32.mrb[0].mxu0
      %1545 = vmatprep.mubr.bf16.mxu0 0
      %1546 = vmatmul.mubr.bf16.gmra.mrb[0].mxu0 %v1442
      %v1547 = vpop.f32.mrb[0].mxu0
      %v1548 = vadd.f32 0.0, %v1547
      %v1549 = vpop.f32.mrb[0].mxu0
      %v1550 = vpop.f32.mrb[0].mxu0
      %v1551 = vadd.f32 0.0, %v1550
      %v1552 = vpop.f32.mrb[0].mxu0
      %1553 = vmatprep.mubr.bf16.mxu0 0
      %1554 = vmatmul.mubr.bf16.gmra.mrb[0].mxu0 %v1443
      %v1555 = vpop.f32.mrb[0].mxu0
      %v1556 = vadd.f32 0.0, %v1555
      %v1557 = vpop.f32.mrb[0].mxu0
      %v1558 = vpop.f32.mrb[0].mxu0
      %v1559 = vadd.f32 0.0, %v1558
      %v1560 = vpop.f32.mrb[0].mxu0
      %1561 = vmatprep.mubr.bf16.mxu0 0
      %1562 = vmatmul.mubr.bf16.gmra.mrb[0].mxu0 %v1444
      %v1563 = vpop.f32.mrb[0].mxu0
      %v1564 = vadd.f32 0.0, %v1563
      %v1565 = vpop.f32.mrb[0].mxu0
      %v1566 = vpop.f32.mrb[0].mxu0
      %v1567 = vadd.f32 0.0, %v1566
      %v1568 = vpop.f32.mrb[0].mxu0
      %1569 = vmatprep.mubr.bf16.mxu0 0
      %1570 = vmatmul.mubr.bf16.gmra.mrb[0].mxu0 %v1445
      %v1571 = vpop.f32.mrb[0].mxu0
      %v1572 = vadd.f32 0.0, %v1571
      %v1573 = vpop.f32.mrb[0].mxu0
      %v1574 = vpop.f32.mrb[0].mxu0
      %v1575 = vadd.f32 0.0, %v1574
      %v1576 = vpop.f32.mrb[0].mxu0
      %1577 = vmatprep.mubr.bf16.mxu0 0
      %1578 = vmatmul.mubr.bf16.gmra.mrb[0].mxu0 %v1446
      %v1579 = vpop.f32.mrb[0].mxu0
      %v1580 = vadd.f32 0.0, %v1579
      %v1581 = vpop.f32.mrb[0].mxu0
      %v1582 = vpop.f32.mrb[0].mxu0
      %v1583 = vadd.f32 0.0, %v1582
      %v1584 = vpop.f32.mrb[0].mxu0
      %1585 = vmatprep.mubr.bf16.mxu0 0
      %1586 = vmatmul.mubr.bf16.gmra.mrb[0].mxu0 %v1447
      %v1587 = vpop.f32.mrb[0].mxu0
      %v1588 = vadd.f32 0.0, %v1587
      %v1589 = vpop.f32.mrb[0].mxu0
      %v1590 = vpop.f32.mrb[0].mxu0
      %v1591 = vadd.f32 0.0, %v1590
      %v1592 = vpop.f32.mrb[0].mxu0
      %1593 = vmatprep.mubr.bf16.mxu0 0
      %1594 = vmatmul.mubr.bf16.gmra.mrb[0].mxu0 %v1448
      %v1595 = vpop.f32.mrb[0].mxu0
      %v1596 = vadd.f32 0.0, %v1595
      %v1597 = vpop.f32.mrb[0].mxu0
      %v1598 = vpop.f32.mrb[0].mxu0
      %v1599 = vadd.f32 0.0, %v1598
      %v1600 = vpop.f32.mrb[0].mxu0
      %1601 = vmatprep.mubr.bf16.mxu0 0
      %1602 = vmatmul.mubr.bf16.gmra.mrb[0].mxu0 %v1449
      %v1603 = vpop.f32.mrb[0].mxu0
      %v1604 = vadd.f32 0.0, %v1603
      %v1605 = vpop.f32.mrb[0].mxu0
      %v1606 = vpop.f32.mrb[0].mxu0
      %v1607 = vadd.f32 0.0, %v1606
      %v1608 = vpop.f32.mrb[0].mxu0
      %1609 = vmatprep.mubr.bf16.mxu0 0
      %1610 = vmatmul.mubr.bf16.gmra.mrb[0].mxu0 %v1450
      %v1611 = vpop.f32.mrb[0].mxu0
      %v1612 = vadd.f32 0.0, %v1611
      %v1613 = vpop.f32.mrb[0].mxu0
      %v1614 = vpop.f32.mrb[0].mxu0
      %v1615 = vadd.f32 0.0, %v1614
      %v1616 = vpop.f32.mrb[0].mxu0
      %1617 = vmatprep.mubr.bf16.mxu0 0
      %1618 = vmatmul.mubr.bf16.gmra.mrb[0].mxu0 %v1451
      %v1619 = vpop.f32.mrb[0].mxu0
      %v1620 = vadd.f32 0.0, %v1619
      %v1621 = vpop.f32.mrb[0].mxu0
      %v1622 = vpop.f32.mrb[0].mxu0
      %v1623 = vadd.f32 0.0, %v1622
      %v1624 = vpop.f32.mrb[0].mxu0
      %1625 = vmatprep.mubr.bf16.mxu0 0
      %1626 = vmatmul.mubr.bf16.gmra.mrb[0].mxu0 %v1452
      %v1627 = vpop.f32.mrb[0].mxu0
      %v1628 = vadd.f32 0.0, %v1627
      %v1629 = vpop.f32.mrb[0].mxu0
      %v1630 = vpop.f32.mrb[0].mxu0
      %v1631 = vadd.f32 0.0, %v1630
      %v1632 = vpop.f32.mrb[0].mxu0
      %1633 = vmatprep.mubr.bf16.mxu0 0
      %1634 = vmatmul.mubr.bf16.gmra.mrb[0].mxu0 %v1453
      %v1635 = vpop.f32.mrb[0].mxu0
      %v1636 = vadd.f32 0.0, %v1635
      %v1637 = vpop.f32.mrb[0].mxu0
      %v1638 = vpop.f32.mrb[0].mxu0
      %v1639 = vadd.f32 0.0, %v1638
      %v1640 = vpop.f32.mrb[0].mxu0
      %1641 = vmatprep.mubr.bf16.mxu0 0
      %1642 = vmatmul.mubr.bf16.gmra.mrb[0].mxu0 %v1454
      %v1643 = vpop.f32.mrb[0].mxu0
      %v1644 = vadd.f32 0.0, %v1643
      %v1645 = vpop.f32.mrb[0].mxu0
      %v1646 = vpop.f32.mrb[0].mxu0
      %v1647 = vadd.f32 0.0, %v1646
      %v1648 = vpop.f32.mrb[0].mxu0
      %1649 = vmatprep.mubr.bf16.mxu0 0
      %1650 = vmatmul.mubr.bf16.gmra.mrb[0].mxu0 %v1455
      %v1651 = vpop.f32.mrb[0].mxu0
      %v1652 = vadd.f32 0.0, %v1651
      %v1653 = vpop.f32.mrb[0].mxu0
      %v1654 = vpop.f32.mrb[0].mxu0
      %v1655 = vadd.f32 0.0, %v1654
      %v1656 = vpop.f32.mrb[0].mxu0
      %1657 = vmatprep.mubr.bf16.mxu0 0
      %1658 = vmatmul.mubr.bf16.gmra.mrb[0].mxu0 %v1456
      %v1659 = vpop.f32.mrb[0].mxu0
      %v1660 = vadd.f32 0.0, %v1659
      %v1661 = vpop.f32.mrb[0].mxu0
      %v1662 = vpop.f32.mrb[0].mxu0
      %v1663 = vadd.f32 0.0, %v1662
      %v1664 = vpop.f32.mrb[0].mxu0
      %1665 = vdwg.mxu0
      %v1666 = vadd.f32 %v1377, %v1540
      %v1667 = vadd.f32 %v1378, %v1543
      %v1668 = vadd.f32 %v1379, %v1548
      %v1669 = vadd.f32 %v1380, %v1551
      %v1670 = vadd.f32 %v1381, %v1556
      %v1671 = vadd.f32 %v1382, %v1559
      %v1672 = vadd.f32 %v1383, %v1564
      %v1673 = vadd.f32 %v1384, %v1567
      %v1674 = vadd.f32 %v1385, %v1572
      %v1675 = vadd.f32 %v1386, %v1575
      %v1676 = vadd.f32 %v1387, %v1580
      %v1677 = vadd.f32 %v1388, %v1583
      %v1678 = vadd.f32 %v1389, %v1588
      %v1679 = vadd.f32 %v1390, %v1591
      %v1680 = vadd.f32 %v1391, %v1596
      %v1681 = vadd.f32 %v1392, %v1599
      %v1682 = vadd.f32 %v1393, %v1604
      %v1683 = vadd.f32 %v1394, %v1607
      %v1684 = vadd.f32 %v1395, %v1612
      %v1685 = vadd.f32 %v1396, %v1615
      %v1686 = vadd.f32 %v1397, %v1620
      %v1687 = vadd.f32 %v1398, %v1623
      %v1688 = vadd.f32 %v1399, %v1628
      %v1689 = vadd.f32 %v1400, %v1631
      %v1690 = vadd.f32 %v1401, %v1636
      %v1691 = vadd.f32 %v1402, %v1639
      %v1692 = vadd.f32 %v1403, %v1644
      %v1693 = vadd.f32 %v1404, %v1647
      %v1694 = vadd.f32 %v1405, %v1652
      %v1695 = vadd.f32 %v1406, %v1655
      %v1696 = vadd.f32 %v1407, %v1660
      %v1697 = vadd.f32 %v1408, %v1663
      %v1698 = vld [vmem:[%s1119 + $0x2] sm:$0xff]
      %v1699 = vld [vmem:[%s1119 + $0xa] sm:$0xff]
      %v1700 = vld [vmem:[%s1119 + $0x1a] sm:$0xff]
      %v1701 = vld [vmem:[%s1119 + $0x22] sm:$0xff]
      %v1702 = vld [vmem:[%s1119 + $0x32] sm:$0xff]
      %v1703 = vld [vmem:[%s1119 + $0x3a] sm:$0xff]
      %v1704 = vld [vmem:[%s1119 + $0x4a] sm:$0xff]
      %v1705 = vld [vmem:[%s1119 + $0x52] sm:$0xff]
      %v1706 = vld [vmem:[%s1119 + $0x62] sm:$0xff]
      %v1707 = vld [vmem:[%s1119 + $0x6a] sm:$0xff]
      %v1708 = vld [vmem:[%s1119 + $0x7a] sm:$0xff]
      %v1709 = vld [vmem:[%s1119 + $0x82] sm:$0xff]
      %v1710 = vld [vmem:[%s1119 + $0x92] sm:$0xff]
      %v1711 = vld [vmem:[%s1119 + $0x9a] sm:$0xff]
      %v1712 = vld [vmem:[%s1119 + $0xaa] sm:$0xff]
      %v1713 = vld [vmem:[%s1119 + $0xb2] sm:$0xff]
      %v1714 = vld [vmem:[%s1119 + $0xc2] sm:$0xff]
      %v1715 = vld [vmem:[%s1119 + $0xca] sm:$0xff]
      %v1716 = vld [vmem:[%s1119 + $0xda] sm:$0xff]
      %v1717 = vld [vmem:[%s1119 + $0xe2] sm:$0xff]
      %v1718 = vld [vmem:[%s1119 + $0xf2] sm:$0xff]
      %v1719 = vld [vmem:[%s1119 + $0xfa] sm:$0xff]
      %v1720 = vld [vmem:[%s1119 + $0x10a] sm:$0xff]
      %v1721 = vld [vmem:[%s1119 + $0x112] sm:$0xff]
      %v1722 = vld [vmem:[%s1119 + $0x122] sm:$0xff]
      %v1723 = vld [vmem:[%s1119 + $0x12a] sm:$0xff]
      %v1724 = vld [vmem:[%s1119 + $0x13a] sm:$0xff]
      %v1725 = vld [vmem:[%s1119 + $0x142] sm:$0xff]
      %v1726 = vld [vmem:[%s1119 + $0x152] sm:$0xff]
      %v1727 = vld [vmem:[%s1119 + $0x15a] sm:$0xff]
      %v1728 = vld [vmem:[%s1119 + $0x16a] sm:$0xff]
      %v1729 = vld [vmem:[%s1119 + $0x172] sm:$0xff]
      %v1730 = vpack.c.bf16 %v1699, %v1698
      %v1731 = vpack.c.bf16 %v1701, %v1700
      %v1732 = vpack.c.bf16 %v1703, %v1702
      %v1733 = vpack.c.bf16 %v1705, %v1704
      %v1734 = vpack.c.bf16 %v1707, %v1706
      %v1735 = vpack.c.bf16 %v1709, %v1708
      %v1736 = vpack.c.bf16 %v1711, %v1710
      %v1737 = vpack.c.bf16 %v1713, %v1712
      %v1738 = vpack.c.bf16 %v1715, %v1714
      %v1739 = vpack.c.bf16 %v1717, %v1716
      %v1740 = vpack.c.bf16 %v1719, %v1718
      %v1741 = vpack.c.bf16 %v1721, %v1720
      %v1742 = vpack.c.bf16 %v1723, %v1722
      %v1743 = vpack.c.bf16 %v1725, %v1724
      %v1744 = vpack.c.bf16 %v1727, %v1726
      %v1745 = vpack.c.bf16 %v1729, %v1728
      %v1762 = vunpack.c.l.b16 %v252
      %v1763 = vunpack.c.l.b16 %v253
      %v1764 = vunpack.c.l.b16 %v254
      %v1765 = vunpack.c.l.b16 %v255
      %v1766 = vunpack.c.l.b16 %v256
      %v1767 = vunpack.c.l.b16 %v257
      %v1768 = vunpack.c.l.b16 %v258
      %v1769 = vunpack.c.l.b16 %v259
      %v1770 = vunpack.c.l.b16 %v260
      %v1771 = vunpack.c.l.b16 %v261
      %v1772 = vunpack.c.l.b16 %v262
      %v1773 = vunpack.c.l.b16 %v263
      %v1774 = vunpack.c.l.b16 %v264
      %v1775 = vunpack.c.l.b16 %v265
      %v1776 = vunpack.c.l.b16 %v266
      %v1777 = vunpack.c.l.b16 %v267
      %v1778 = vpack.c.b16 %v1763, %v1762
      %v1779 = vpack.c.b16 %v1765, %v1764
      %v1780 = vpack.c.b16 %v1767, %v1766
      %v1781 = vpack.c.b16 %v1769, %v1768
      %v1782 = vpack.c.b16 %v1771, %v1770
      %v1783 = vpack.c.b16 %v1773, %v1772
      %v1784 = vpack.c.b16 %v1775, %v1774
      %v1785 = vpack.c.b16 %v1777, %v1776
      %1794 = vmatprep.subr.bf16.mxu0 0
      %1795 = vmatpush1.bf16.msra.mxu0 %v1778
      %1796 = vmatprep.subr.bf16.mxu0 0
      %1797 = vmatpush1.bf16.msra.mxu0 %v1779
      %1798 = vmatprep.subr.bf16.mxu0 0
      %1799 = vmatpush1.bf16.msra.mxu0 %v1780
      %1800 = vmatprep.subr.bf16.mxu0 0
      %1801 = vmatpush1.bf16.msra.mxu0 %v1781
      %1802 = vmatprep.subr.bf16.mxu0 0
      %1803 = vmatpush1.bf16.msra.mxu0 %v1782
      %1804 = vmatprep.subr.bf16.mxu0 0
      %1805 = vmatpush1.bf16.msra.mxu0 %v1783
      %1806 = vmatprep.subr.bf16.mxu0 0
      %1807 = vmatpush1.bf16.msra.mxu0 %v1784
      %1808 = vmatprep.subr.bf16.mxu0 0
      %1809 = vmatpush1.bf16.msra.mxu0 %v1785
      %1810 = vmatprep.subr.bf16.mxu0 0
      %1811 = vmatpush1.bf16.msra.mxu0 0
      %1812 = vmatprep.subr.bf16.mxu0 0
      %1813 = vmatpush1.bf16.msra.mxu0 0
      %1814 = vmatprep.subr.bf16.mxu0 0
      %1815 = vmatpush1.bf16.msra.mxu0 0
      %1816 = vmatprep.subr.bf16.mxu0 0
      %1817 = vmatpush1.bf16.msra.mxu0 0
      %1818 = vmatprep.subr.bf16.mxu0 0
      %1819 = vmatpush1.bf16.msra.mxu0 0
      %1820 = vmatprep.subr.bf16.mxu0 0
      %1821 = vmatpush1.bf16.msra.mxu0 0
      %1822 = vmatprep.subr.bf16.mxu0 0
      %1823 = vmatpush1.bf16.msra.mxu0 0
      %1824 = vmatprep.subr.bf16.mxu0 0
      %1825 = vmatpush1.bf16.msra.mxu0 0
      %1826 = vmatprep.mubr.bf16.mxu0 0
      %1827 = vmatmul.mubr.bf16.gmra.mrb[0].mxu0 %v1730
      %v1828 = vpop.f32.mrb[0].mxu0
      %v1829 = vadd.f32 0.0, %v1828
      %v1830 = vpop.f32.mrb[0].mxu0
      %v1831 = vpop.f32.mrb[0].mxu0
      %v1832 = vadd.f32 0.0, %v1831
      %v1833 = vpop.f32.mrb[0].mxu0
      %1834 = vmatprep.mubr.bf16.mxu0 0
      %1835 = vmatmul.mubr.bf16.gmra.mrb[0].mxu0 %v1731
      %v1836 = vpop.f32.mrb[0].mxu0
      %v1837 = vadd.f32 0.0, %v1836
      %v1838 = vpop.f32.mrb[0].mxu0
      %v1839 = vpop.f32.mrb[0].mxu0
      %v1840 = vadd.f32 0.0, %v1839
      %v1841 = vpop.f32.mrb[0].mxu0
      %1842 = vmatprep.mubr.bf16.mxu0 0
      %1843 = vmatmul.mubr.bf16.gmra.mrb[0].mxu0 %v1732
      %v1844 = vpop.f32.mrb[0].mxu0
      %v1845 = vadd.f32 0.0, %v1844
      %v1846 = vpop.f32.mrb[0].mxu0
      %v1847 = vpop.f32.mrb[0].mxu0
      %v1848 = vadd.f32 0.0, %v1847
      %v1849 = vpop.f32.mrb[0].mxu0
      %1850 = vmatprep.mubr.bf16.mxu0 0
      %1851 = vmatmul.mubr.bf16.gmra.mrb[0].mxu0 %v1733
      %v1852 = vpop.f32.mrb[0].mxu0
      %v1853 = vadd.f32 0.0, %v1852
      %v1854 = vpop.f32.mrb[0].mxu0
      %v1855 = vpop.f32.mrb[0].mxu0
      %v1856 = vadd.f32 0.0, %v1855
      %v1857 = vpop.f32.mrb[0].mxu0
      %1858 = vmatprep.mubr.bf16.mxu0 0
      %1859 = vmatmul.mubr.bf16.gmra.mrb[0].mxu0 %v1734
      %v1860 = vpop.f32.mrb[0].mxu0
      %v1861 = vadd.f32 0.0, %v1860
      %v1862 = vpop.f32.mrb[0].mxu0
      %v1863 = vpop.f32.mrb[0].mxu0
      %v1864 = vadd.f32 0.0, %v1863
      %v1865 = vpop.f32.mrb[0].mxu0
      %1866 = vmatprep.mubr.bf16.mxu0 0
      %1867 = vmatmul.mubr.bf16.gmra.mrb[0].mxu0 %v1735
      %v1868 = vpop.f32.mrb[0].mxu0
      %v1869 = vadd.f32 0.0, %v1868
      %v1870 = vpop.f32.mrb[0].mxu0
      %v1871 = vpop.f32.mrb[0].mxu0
      %v1872 = vadd.f32 0.0, %v1871
      %v1873 = vpop.f32.mrb[0].mxu0
      %1874 = vmatprep.mubr.bf16.mxu0 0
      %1875 = vmatmul.mubr.bf16.gmra.mrb[0].mxu0 %v1736
      %v1876 = vpop.f32.mrb[0].mxu0
      %v1877 = vadd.f32 0.0, %v1876
      %v1878 = vpop.f32.mrb[0].mxu0
      %v1879 = vpop.f32.mrb[0].mxu0
      %v1880 = vadd.f32 0.0, %v1879
      %v1881 = vpop.f32.mrb[0].mxu0
      %1882 = vmatprep.mubr.bf16.mxu0 0
      %1883 = vmatmul.mubr.bf16.gmra.mrb[0].mxu0 %v1737
      %v1884 = vpop.f32.mrb[0].mxu0
      %v1885 = vadd.f32 0.0, %v1884
      %v1886 = vpop.f32.mrb[0].mxu0
      %v1887 = vpop.f32.mrb[0].mxu0
      %v1888 = vadd.f32 0.0, %v1887
      %v1889 = vpop.f32.mrb[0].mxu0
      %1890 = vmatprep.mubr.bf16.mxu0 0
      %1891 = vmatmul.mubr.bf16.gmra.mrb[0].mxu0 %v1738
      %v1892 = vpop.f32.mrb[0].mxu0
      %v1893 = vadd.f32 0.0, %v1892
      %v1894 = vpop.f32.mrb[0].mxu0
      %v1895 = vpop.f32.mrb[0].mxu0
      %v1896 = vadd.f32 0.0, %v1895
      %v1897 = vpop.f32.mrb[0].mxu0
      %1898 = vmatprep.mubr.bf16.mxu0 0
      %1899 = vmatmul.mubr.bf16.gmra.mrb[0].mxu0 %v1739
      %v1900 = vpop.f32.mrb[0].mxu0
      %v1901 = vadd.f32 0.0, %v1900
      %v1902 = vpop.f32.mrb[0].mxu0
      %v1903 = vpop.f32.mrb[0].mxu0
      %v1904 = vadd.f32 0.0, %v1903
      %v1905 = vpop.f32.mrb[0].mxu0
      %1906 = vmatprep.mubr.bf16.mxu0 0
      %1907 = vmatmul.mubr.bf16.gmra.mrb[0].mxu0 %v1740
      %v1908 = vpop.f32.mrb[0].mxu0
      %v1909 = vadd.f32 0.0, %v1908
      %v1910 = vpop.f32.mrb[0].mxu0
      %v1911 = vpop.f32.mrb[0].mxu0
      %v1912 = vadd.f32 0.0, %v1911
      %v1913 = vpop.f32.mrb[0].mxu0
      %1914 = vmatprep.mubr.bf16.mxu0 0
      %1915 = vmatmul.mubr.bf16.gmra.mrb[0].mxu0 %v1741
      %v1916 = vpop.f32.mrb[0].mxu0
      %v1917 = vadd.f32 0.0, %v1916
      %v1918 = vpop.f32.mrb[0].mxu0
      %v1919 = vpop.f32.mrb[0].mxu0
      %v1920 = vadd.f32 0.0, %v1919
      %v1921 = vpop.f32.mrb[0].mxu0
      %1922 = vmatprep.mubr.bf16.mxu0 0
      %1923 = vmatmul.mubr.bf16.gmra.mrb[0].mxu0 %v1742
      %v1924 = vpop.f32.mrb[0].mxu0
      %v1925 = vadd.f32 0.0, %v1924
      %v1926 = vpop.f32.mrb[0].mxu0
      %v1927 = vpop.f32.mrb[0].mxu0
      %v1928 = vadd.f32 0.0, %v1927
      %v1929 = vpop.f32.mrb[0].mxu0
      %1930 = vmatprep.mubr.bf16.mxu0 0
      %1931 = vmatmul.mubr.bf16.gmra.mrb[0].mxu0 %v1743
      %v1932 = vpop.f32.mrb[0].mxu0
      %v1933 = vadd.f32 0.0, %v1932
      %v1934 = vpop.f32.mrb[0].mxu0
      %v1935 = vpop.f32.mrb[0].mxu0
      %v1936 = vadd.f32 0.0, %v1935
      %v1937 = vpop.f32.mrb[0].mxu0
      %1938 = vmatprep.mubr.bf16.mxu0 0
      %1939 = vmatmul.mubr.bf16.gmra.mrb[0].mxu0 %v1744
      %v1940 = vpop.f32.mrb[0].mxu0
      %v1941 = vadd.f32 0.0, %v1940
      %v1942 = vpop.f32.mrb[0].mxu0
      %v1943 = vpop.f32.mrb[0].mxu0
      %v1944 = vadd.f32 0.0, %v1943
      %v1945 = vpop.f32.mrb[0].mxu0
      %1946 = vmatprep.mubr.bf16.mxu0 0
      %1947 = vmatmul.mubr.bf16.gmra.mrb[0].mxu0 %v1745
      %v1948 = vpop.f32.mrb[0].mxu0
      %v1949 = vadd.f32 0.0, %v1948
      %v1950 = vpop.f32.mrb[0].mxu0
      %v1951 = vpop.f32.mrb[0].mxu0
      %v1952 = vadd.f32 0.0, %v1951
      %v1953 = vpop.f32.mrb[0].mxu0
      %1954 = vdwg.mxu0
      %v1955 = vadd.f32 %v1666, %v1829
      %v1956 = vadd.f32 %v1667, %v1832
      %v1957 = vadd.f32 %v1668, %v1837
      %v1958 = vadd.f32 %v1669, %v1840
      %v1959 = vadd.f32 %v1670, %v1845
      %v1960 = vadd.f32 %v1671, %v1848
      %v1961 = vadd.f32 %v1672, %v1853
      %v1962 = vadd.f32 %v1673, %v1856
      %v1963 = vadd.f32 %v1674, %v1861
      %v1964 = vadd.f32 %v1675, %v1864
      %v1965 = vadd.f32 %v1676, %v1869
      %v1966 = vadd.f32 %v1677, %v1872
      %v1967 = vadd.f32 %v1678, %v1877
      %v1968 = vadd.f32 %v1679, %v1880
      %v1969 = vadd.f32 %v1680, %v1885
      %v1970 = vadd.f32 %v1681, %v1888
      %v1971 = vadd.f32 %v1682, %v1893
      %v1972 = vadd.f32 %v1683, %v1896
      %v1973 = vadd.f32 %v1684, %v1901
      %v1974 = vadd.f32 %v1685, %v1904
      %v1975 = vadd.f32 %v1686, %v1909
      %v1976 = vadd.f32 %v1687, %v1912
      %v1977 = vadd.f32 %v1688, %v1917
      %v1978 = vadd.f32 %v1689, %v1920
      %v1979 = vadd.f32 %v1690, %v1925
      %v1980 = vadd.f32 %v1691, %v1928
      %v1981 = vadd.f32 %v1692, %v1933
      %v1982 = vadd.f32 %v1693, %v1936
      %v1983 = vadd.f32 %v1694, %v1941
      %v1984 = vadd.f32 %v1695, %v1944
      %v1985 = vadd.f32 %v1696, %v1949
      %v1986 = vadd.f32 %v1697, %v1952
      %s1987 = scalar_lea.vmem %s165, 48
      %v1988 = vld [vmem:[%s1987] sm:$0xff]
      %v1989 = vld [vmem:[%s1987 + $0x8] sm:$0xff]
      %v1990 = vld [vmem:[%s1987 + $0x18] sm:$0xff]
      %v1991 = vld [vmem:[%s1987 + $0x20] sm:$0xff]
      %v1992 = vld [vmem:[%s1987 + $0x30] sm:$0xff]
      %v1993 = vld [vmem:[%s1987 + $0x38] sm:$0xff]
      %v1994 = vld [vmem:[%s1987 + $0x48] sm:$0xff]
      %v1995 = vld [vmem:[%s1987 + $0x50] sm:$0xff]
      %v1996 = vld [vmem:[%s1987 + $0x60] sm:$0xff]
      %v1997 = vld [vmem:[%s1987 + $0x68] sm:$0xff]
      %v1998 = vld [vmem:[%s1987 + $0x78] sm:$0xff]
      %v1999 = vld [vmem:[%s1987 + $0x80] sm:$0xff]
      %v2000 = vld [vmem:[%s1987 + $0x90] sm:$0xff]
      %v2001 = vld [vmem:[%s1987 + $0x98] sm:$0xff]
      %v2002 = vld [vmem:[%s1987 + $0xa8] sm:$0xff]
      %v2003 = vld [vmem:[%s1987 + $0xb0] sm:$0xff]
      %v2004 = vld [vmem:[%s1987 + $0xc0] sm:$0xff]
      %v2005 = vld [vmem:[%s1987 + $0xc8] sm:$0xff]
      %v2006 = vld [vmem:[%s1987 + $0xd8] sm:$0xff]
      %v2007 = vld [vmem:[%s1987 + $0xe0] sm:$0xff]
      %v2008 = vld [vmem:[%s1987 + $0xf0] sm:$0xff]
      %v2009 = vld [vmem:[%s1987 + $0xf8] sm:$0xff]
      %v2010 = vld [vmem:[%s1987 + $0x108] sm:$0xff]
      %v2011 = vld [vmem:[%s1987 + $0x110] sm:$0xff]
      %v2012 = vld [vmem:[%s1987 + $0x120] sm:$0xff]
      %v2013 = vld [vmem:[%s1987 + $0x128] sm:$0xff]
      %v2014 = vld [vmem:[%s1987 + $0x138] sm:$0xff]
      %v2015 = vld [vmem:[%s1987 + $0x140] sm:$0xff]
      %v2016 = vld [vmem:[%s1987 + $0x150] sm:$0xff]
      %v2017 = vld [vmem:[%s1987 + $0x158] sm:$0xff]
      %v2018 = vld [vmem:[%s1987 + $0x168] sm:$0xff]
      %v2019 = vld [vmem:[%s1987 + $0x170] sm:$0xff]
      %v2020 = vpack.c.bf16 %v1989, %v1988
      %v2021 = vpack.c.bf16 %v1991, %v1990
      %v2022 = vpack.c.bf16 %v1993, %v1992
      %v2023 = vpack.c.bf16 %v1995, %v1994
      %v2024 = vpack.c.bf16 %v1997, %v1996
      %v2025 = vpack.c.bf16 %v1999, %v1998
      %v2026 = vpack.c.bf16 %v2001, %v2000
      %v2027 = vpack.c.bf16 %v2003, %v2002
      %v2028 = vpack.c.bf16 %v2005, %v2004
      %v2029 = vpack.c.bf16 %v2007, %v2006
      %v2030 = vpack.c.bf16 %v2009, %v2008
      %v2031 = vpack.c.bf16 %v2011, %v2010
      %v2032 = vpack.c.bf16 %v2013, %v2012
      %v2033 = vpack.c.bf16 %v2015, %v2014
      %v2034 = vpack.c.bf16 %v2017, %v2016
      %v2035 = vpack.c.bf16 %v2019, %v2018
      %v2052 = vunpack.c.l.b16 %v268
      %v2053 = vunpack.c.l.b16 %v269
      %v2054 = vunpack.c.l.b16 %v270
      %v2055 = vunpack.c.l.b16 %v271
      %v2056 = vunpack.c.l.b16 %v272
      %v2057 = vunpack.c.l.b16 %v273
      %v2058 = vunpack.c.l.b16 %v274
      %v2059 = vunpack.c.l.b16 %v275
      %v2060 = vunpack.c.l.b16 %v276
      %v2061 = vunpack.c.l.b16 %v277
      %v2062 = vunpack.c.l.b16 %v278
      %v2063 = vunpack.c.l.b16 %v279
      %v2064 = vunpack.c.l.b16 %v280
      %v2065 = vunpack.c.l.b16 %v281
      %v2066 = vunpack.c.l.b16 %v282
      %v2067 = vunpack.c.l.b16 %v283
      %v2068 = vpack.c.b16 %v2053, %v2052
      %v2069 = vpack.c.b16 %v2055, %v2054
      %v2070 = vpack.c.b16 %v2057, %v2056
      %v2071 = vpack.c.b16 %v2059, %v2058
      %v2072 = vpack.c.b16 %v2061, %v2060
      %v2073 = vpack.c.b16 %v2063, %v2062
      %v2074 = vpack.c.b16 %v2065, %v2064
      %v2075 = vpack.c.b16 %v2067, %v2066
      %2084 = vmatprep.subr.bf16.mxu0 0
      %2085 = vmatpush1.bf16.msra.mxu0 %v2068
      %2086 = vmatprep.subr.bf16.mxu0 0
      %2087 = vmatpush1.bf16.msra.mxu0 %v2069
      %2088 = vmatprep.subr.bf16.mxu0 0
      %2089 = vmatpush1.bf16.msra.mxu0 %v2070
      %2090 = vmatprep.subr.bf16.mxu0 0
      %2091 = vmatpush1.bf16.msra.mxu0 %v2071
      %2092 = vmatprep.subr.bf16.mxu0 0
      %2093 = vmatpush1.bf16.msra.mxu0 %v2072
      %2094 = vmatprep.subr.bf16.mxu0 0
      %2095 = vmatpush1.bf16.msra.mxu0 %v2073
      %2096 = vmatprep.subr.bf16.mxu0 0
      %2097 = vmatpush1.bf16.msra.mxu0 %v2074
      %2098 = vmatprep.subr.bf16.mxu0 0
      %2099 = vmatpush1.bf16.msra.mxu0 %v2075
      %2100 = vmatprep.subr.bf16.mxu0 0
      %2101 = vmatpush1.bf16.msra.mxu0 0
      %2102 = vmatprep.subr.bf16.mxu0 0
      %2103 = vmatpush1.bf16.msra.mxu0 0
      %2104 = vmatprep.subr.bf16.mxu0 0
      %2105 = vmatpush1.bf16.msra.mxu0 0
      %2106 = vmatprep.subr.bf16.mxu0 0
      %2107 = vmatpush1.bf16.msra.mxu0 0
      %2108 = vmatprep.subr.bf16.mxu0 0
      %2109 = vmatpush1.bf16.msra.mxu0 0
      %2110 = vmatprep.subr.bf16.mxu0 0
      %2111 = vmatpush1.bf16.msra.mxu0 0
      %2112 = vmatprep.subr.bf16.mxu0 0
      %2113 = vmatpush1.bf16.msra.mxu0 0
      %2114 = vmatprep.subr.bf16.mxu0 0
      %2115 = vmatpush1.bf16.msra.mxu0 0
      %2116 = vmatprep.mubr.bf16.mxu0 0
      %2117 = vmatmul.mubr.bf16.gmra.mrb[0].mxu0 %v2020
      %v2118 = vpop.f32.mrb[0].mxu0
      %v2119 = vadd.f32 0.0, %v2118
      %v2120 = vpop.f32.mrb[0].mxu0
      %v2121 = vpop.f32.mrb[0].mxu0
      %v2122 = vadd.f32 0.0, %v2121
      %v2123 = vpop.f32.mrb[0].mxu0
      %2124 = vmatprep.mubr.bf16.mxu0 0
      %2125 = vmatmul.mubr.bf16.gmra.mrb[0].mxu0 %v2021
      %v2126 = vpop.f32.mrb[0].mxu0
      %v2127 = vadd.f32 0.0, %v2126
      %v2128 = vpop.f32.mrb[0].mxu0
      %v2129 = vpop.f32.mrb[0].mxu0
      %v2130 = vadd.f32 0.0, %v2129
      %v2131 = vpop.f32.mrb[0].mxu0
      %2132 = vmatprep.mubr.bf16.mxu0 0
      %2133 = vmatmul.mubr.bf16.gmra.mrb[0].mxu0 %v2022
      %v2134 = vpop.f32.mrb[0].mxu0
      %v2135 = vadd.f32 0.0, %v2134
      %v2136 = vpop.f32.mrb[0].mxu0
      %v2137 = vpop.f32.mrb[0].mxu0
      %v2138 = vadd.f32 0.0, %v2137
      %v2139 = vpop.f32.mrb[0].mxu0
      %2140 = vmatprep.mubr.bf16.mxu0 0
      %2141 = vmatmul.mubr.bf16.gmra.mrb[0].mxu0 %v2023
      %v2142 = vpop.f32.mrb[0].mxu0
      %v2143 = vadd.f32 0.0, %v2142
      %v2144 = vpop.f32.mrb[0].mxu0
      %v2145 = vpop.f32.mrb[0].mxu0
      %v2146 = vadd.f32 0.0, %v2145
      %v2147 = vpop.f32.mrb[0].mxu0
      %2148 = vmatprep.mubr.bf16.mxu0 0
      %2149 = vmatmul.mubr.bf16.gmra.mrb[0].mxu0 %v2024
      %v2150 = vpop.f32.mrb[0].mxu0
      %v2151 = vadd.f32 0.0, %v2150
      %v2152 = vpop.f32.mrb[0].mxu0
      %v2153 = vpop.f32.mrb[0].mxu0
      %v2154 = vadd.f32 0.0, %v2153
      %v2155 = vpop.f32.mrb[0].mxu0
      %2156 = vmatprep.mubr.bf16.mxu0 0
      %2157 = vmatmul.mubr.bf16.gmra.mrb[0].mxu0 %v2025
      %v2158 = vpop.f32.mrb[0].mxu0
      %v2159 = vadd.f32 0.0, %v2158
      %v2160 = vpop.f32.mrb[0].mxu0
      %v2161 = vpop.f32.mrb[0].mxu0
      %v2162 = vadd.f32 0.0, %v2161
      %v2163 = vpop.f32.mrb[0].mxu0
      %2164 = vmatprep.mubr.bf16.mxu0 0
      %2165 = vmatmul.mubr.bf16.gmra.mrb[0].mxu0 %v2026
      %v2166 = vpop.f32.mrb[0].mxu0
      %v2167 = vadd.f32 0.0, %v2166
      %v2168 = vpop.f32.mrb[0].mxu0
      %v2169 = vpop.f32.mrb[0].mxu0
      %v2170 = vadd.f32 0.0, %v2169
      %v2171 = vpop.f32.mrb[0].mxu0
      %2172 = vmatprep.mubr.bf16.mxu0 0
      %2173 = vmatmul.mubr.bf16.gmra.mrb[0].mxu0 %v2027
      %v2174 = vpop.f32.mrb[0].mxu0
      %v2175 = vadd.f32 0.0, %v2174
      %v2176 = vpop.f32.mrb[0].mxu0
      %v2177 = vpop.f32.mrb[0].mxu0
      %v2178 = vadd.f32 0.0, %v2177
      %v2179 = vpop.f32.mrb[0].mxu0
      %2180 = vmatprep.mubr.bf16.mxu0 0
      %2181 = vmatmul.mubr.bf16.gmra.mrb[0].mxu0 %v2028
      %v2182 = vpop.f32.mrb[0].mxu0
      %v2183 = vadd.f32 0.0, %v2182
      %v2184 = vpop.f32.mrb[0].mxu0
      %v2185 = vpop.f32.mrb[0].mxu0
      %v2186 = vadd.f32 0.0, %v2185
      %v2187 = vpop.f32.mrb[0].mxu0
      %2188 = vmatprep.mubr.bf16.mxu0 0
      %2189 = vmatmul.mubr.bf16.gmra.mrb[0].mxu0 %v2029
      %v2190 = vpop.f32.mrb[0].mxu0
      %v2191 = vadd.f32 0.0, %v2190
      %v2192 = vpop.f32.mrb[0].mxu0
      %v2193 = vpop.f32.mrb[0].mxu0
      %v2194 = vadd.f32 0.0, %v2193
      %v2195 = vpop.f32.mrb[0].mxu0
      %2196 = vmatprep.mubr.bf16.mxu0 0
      %2197 = vmatmul.mubr.bf16.gmra.mrb[0].mxu0 %v2030
      %v2198 = vpop.f32.mrb[0].mxu0
      %v2199 = vadd.f32 0.0, %v2198
      %v2200 = vpop.f32.mrb[0].mxu0
      %v2201 = vpop.f32.mrb[0].mxu0
      %v2202 = vadd.f32 0.0, %v2201
      %v2203 = vpop.f32.mrb[0].mxu0
      %2204 = vmatprep.mubr.bf16.mxu0 0
      %2205 = vmatmul.mubr.bf16.gmra.mrb[0].mxu0 %v2031
      %v2206 = vpop.f32.mrb[0].mxu0
      %v2207 = vadd.f32 0.0, %v2206
      %v2208 = vpop.f32.mrb[0].mxu0
      %v2209 = vpop.f32.mrb[0].mxu0
      %v2210 = vadd.f32 0.0, %v2209
      %v2211 = vpop.f32.mrb[0].mxu0
      %2212 = vmatprep.mubr.bf16.mxu0 0
      %2213 = vmatmul.mubr.bf16.gmra.mrb[0].mxu0 %v2032
      %v2214 = vpop.f32.mrb[0].mxu0
      %v2215 = vadd.f32 0.0, %v2214
      %v2216 = vpop.f32.mrb[0].mxu0
      %v2217 = vpop.f32.mrb[0].mxu0
      %v2218 = vadd.f32 0.0, %v2217
      %v2219 = vpop.f32.mrb[0].mxu0
      %2220 = vmatprep.mubr.bf16.mxu0 0
      %2221 = vmatmul.mubr.bf16.gmra.mrb[0].mxu0 %v2033
      %v2222 = vpop.f32.mrb[0].mxu0
      %v2223 = vadd.f32 0.0, %v2222
      %v2224 = vpop.f32.mrb[0].mxu0
      %v2225 = vpop.f32.mrb[0].mxu0
      %v2226 = vadd.f32 0.0, %v2225
      %v2227 = vpop.f32.mrb[0].mxu0
      %2228 = vmatprep.mubr.bf16.mxu0 0
      %2229 = vmatmul.mubr.bf16.gmra.mrb[0].mxu0 %v2034
      %v2230 = vpop.f32.mrb[0].mxu0
      %v2231 = vadd.f32 0.0, %v2230
      %v2232 = vpop.f32.mrb[0].mxu0
      %v2233 = vpop.f32.mrb[0].mxu0
      %v2234 = vadd.f32 0.0, %v2233
      %v2235 = vpop.f32.mrb[0].mxu0
      %2236 = vmatprep.mubr.bf16.mxu0 0
      %2237 = vmatmul.mubr.bf16.gmra.mrb[0].mxu0 %v2035
      %v2238 = vpop.f32.mrb[0].mxu0
      %v2239 = vadd.f32 0.0, %v2238
      %v2240 = vpop.f32.mrb[0].mxu0
      %v2241 = vpop.f32.mrb[0].mxu0
      %v2242 = vadd.f32 0.0, %v2241
      %v2243 = vpop.f32.mrb[0].mxu0
      %2244 = vdwg.mxu0
      %v2245 = vadd.f32 %v1955, %v2119
      %v2246 = vadd.f32 %v1956, %v2122
      %v2247 = vadd.f32 %v1957, %v2127
      %v2248 = vadd.f32 %v1958, %v2130
      %v2249 = vadd.f32 %v1959, %v2135
      %v2250 = vadd.f32 %v1960, %v2138
      %v2251 = vadd.f32 %v1961, %v2143
      %v2252 = vadd.f32 %v1962, %v2146
      %v2253 = vadd.f32 %v1963, %v2151
      %v2254 = vadd.f32 %v1964, %v2154
      %v2255 = vadd.f32 %v1965, %v2159
      %v2256 = vadd.f32 %v1966, %v2162
      %v2257 = vadd.f32 %v1967, %v2167
      %v2258 = vadd.f32 %v1968, %v2170
      %v2259 = vadd.f32 %v1969, %v2175
      %v2260 = vadd.f32 %v1970, %v2178
      %v2261 = vadd.f32 %v1971, %v2183
      %v2262 = vadd.f32 %v1972, %v2186
      %v2263 = vadd.f32 %v1973, %v2191
      %v2264 = vadd.f32 %v1974, %v2194
      %v2265 = vadd.f32 %v1975, %v2199
      %v2266 = vadd.f32 %v1976, %v2202
      %v2267 = vadd.f32 %v1977, %v2207
      %v2268 = vadd.f32 %v1978, %v2210
      %v2269 = vadd.f32 %v1979, %v2215
      %v2270 = vadd.f32 %v1980, %v2218
      %v2271 = vadd.f32 %v1981, %v2223
      %v2272 = vadd.f32 %v1982, %v2226
      %v2273 = vadd.f32 %v1983, %v2231
      %v2274 = vadd.f32 %v1984, %v2234
      %v2275 = vadd.f32 %v1985, %v2239
      %v2276 = vadd.f32 %v1986, %v2242
      %v2277 = vld [vmem:[%s1987 + $0x1] sm:$0xff]
      %v2278 = vld [vmem:[%s1987 + $0x9] sm:$0xff]
      %v2279 = vld [vmem:[%s1987 + $0x19] sm:$0xff]
      %v2280 = vld [vmem:[%s1987 + $0x21] sm:$0xff]
      %v2281 = vld [vmem:[%s1987 + $0x31] sm:$0xff]
      %v2282 = vld [vmem:[%s1987 + $0x39] sm:$0xff]
      %v2283 = vld [vmem:[%s1987 + $0x49] sm:$0xff]
      %v2284 = vld [vmem:[%s1987 + $0x51] sm:$0xff]
      %v2285 = vld [vmem:[%s1987 + $0x61] sm:$0xff]
      %v2286 = vld [vmem:[%s1987 + $0x69] sm:$0xff]
      %v2287 = vld [vmem:[%s1987 + $0x79] sm:$0xff]
      %v2288 = vld [vmem:[%s1987 + $0x81] sm:$0xff]
      %v2289 = vld [vmem:[%s1987 + $0x91] sm:$0xff]
      %v2290 = vld [vmem:[%s1987 + $0x99] sm:$0xff]
      %v2291 = vld [vmem:[%s1987 + $0xa9] sm:$0xff]
      %v2292 = vld [vmem:[%s1987 + $0xb1] sm:$0xff]
      %v2293 = vld [vmem:[%s1987 + $0xc1] sm:$0xff]
      %v2294 = vld [vmem:[%s1987 + $0xc9] sm:$0xff]
      %v2295 = vld [vmem:[%s1987 + $0xd9] sm:$0xff]
      %v2296 = vld [vmem:[%s1987 + $0xe1] sm:$0xff]
      %v2297 = vld [vmem:[%s1987 + $0xf1] sm:$0xff]
      %v2298 = vld [vmem:[%s1987 + $0xf9] sm:$0xff]
      %v2299 = vld [vmem:[%s1987 + $0x109] sm:$0xff]
      %v2300 = vld [vmem:[%s1987 + $0x111] sm:$0xff]
      %v2301 = vld [vmem:[%s1987 + $0x121] sm:$0xff]
      %v2302 = vld [vmem:[%s1987 + $0x129] sm:$0xff]
      %v2303 = vld [vmem:[%s1987 + $0x139] sm:$0xff]
      %v2304 = vld [vmem:[%s1987 + $0x141] sm:$0xff]
      %v2305 = vld [vmem:[%s1987 + $0x151] sm:$0xff]
      %v2306 = vld [vmem:[%s1987 + $0x159] sm:$0xff]
      %v2307 = vld [vmem:[%s1987 + $0x169] sm:$0xff]
      %v2308 = vld [vmem:[%s1987 + $0x171] sm:$0xff]
      %v2309 = vpack.c.bf16 %v2278, %v2277
      %v2310 = vpack.c.bf16 %v2280, %v2279
      %v2311 = vpack.c.bf16 %v2282, %v2281
      %v2312 = vpack.c.bf16 %v2284, %v2283
      %v2313 = vpack.c.bf16 %v2286, %v2285
      %v2314 = vpack.c.bf16 %v2288, %v2287
      %v2315 = vpack.c.bf16 %v2290, %v2289
      %v2316 = vpack.c.bf16 %v2292, %v2291
      %v2317 = vpack.c.bf16 %v2294, %v2293
      %v2318 = vpack.c.bf16 %v2296, %v2295
      %v2319 = vpack.c.bf16 %v2298, %v2297
      %v2320 = vpack.c.bf16 %v2300, %v2299
      %v2321 = vpack.c.bf16 %v2302, %v2301
      %v2322 = vpack.c.bf16 %v2304, %v2303
      %v2323 = vpack.c.bf16 %v2306, %v2305
      %v2324 = vpack.c.bf16 %v2308, %v2307
      %v2341 = vunpack.c.l.b16 %v284
      %v2342 = vunpack.c.l.b16 %v285
      %v2343 = vunpack.c.l.b16 %v286
      %v2344 = vunpack.c.l.b16 %v287
      %v2345 = vunpack.c.l.b16 %v288
      %v2346 = vunpack.c.l.b16 %v289
      %v2347 = vunpack.c.l.b16 %v290
      %v2348 = vunpack.c.l.b16 %v291
      %v2349 = vunpack.c.l.b16 %v292
      %v2350 = vunpack.c.l.b16 %v293
      %v2351 = vunpack.c.l.b16 %v294
      %v2352 = vunpack.c.l.b16 %v295
      %v2353 = vunpack.c.l.b16 %v296
      %v2354 = vunpack.c.l.b16 %v297
      %v2355 = vunpack.c.l.b16 %v298
      %v2356 = vunpack.c.l.b16 %v299
      %v2357 = vpack.c.b16 %v2342, %v2341
      %v2358 = vpack.c.b16 %v2344, %v2343
      %v2359 = vpack.c.b16 %v2346, %v2345
      %v2360 = vpack.c.b16 %v2348, %v2347
      %v2361 = vpack.c.b16 %v2350, %v2349
      %v2362 = vpack.c.b16 %v2352, %v2351
      %v2363 = vpack.c.b16 %v2354, %v2353
      %v2364 = vpack.c.b16 %v2356, %v2355
      %2373 = vmatprep.subr.bf16.mxu0 0
      %2374 = vmatpush1.bf16.msra.mxu0 %v2357
      %2375 = vmatprep.subr.bf16.mxu0 0
      %2376 = vmatpush1.bf16.msra.mxu0 %v2358
      %2377 = vmatprep.subr.bf16.mxu0 0
      %2378 = vmatpush1.bf16.msra.mxu0 %v2359
      %2379 = vmatprep.subr.bf16.mxu0 0
      %2380 = vmatpush1.bf16.msra.mxu0 %v2360
      %2381 = vmatprep.subr.bf16.mxu0 0
      %2382 = vmatpush1.bf16.msra.mxu0 %v2361
      %2383 = vmatprep.subr.bf16.mxu0 0
      %2384 = vmatpush1.bf16.msra.mxu0 %v2362
      %2385 = vmatprep.subr.bf16.mxu0 0
      %2386 = vmatpush1.bf16.msra.mxu0 %v2363
      %2387 = vmatprep.subr.bf16.mxu0 0
      %2388 = vmatpush1.bf16.msra.mxu0 %v2364
      %2389 = vmatprep.subr.bf16.mxu0 0
      %2390 = vmatpush1.bf16.msra.mxu0 0
      %2391 = vmatprep.subr.bf16.mxu0 0
      %2392 = vmatpush1.bf16.msra.mxu0 0
      %2393 = vmatprep.subr.bf16.mxu0 0
      %2394 = vmatpush1.bf16.msra.mxu0 0
      %2395 = vmatprep.subr.bf16.mxu0 0
      %2396 = vmatpush1.bf16.msra.mxu0 0
      %2397 = vmatprep.subr.bf16.mxu0 0
      %2398 = vmatpush1.bf16.msra.mxu0 0
      %2399 = vmatprep.subr.bf16.mxu0 0
      %2400 = vmatpush1.bf16.msra.mxu0 0
      %2401 = vmatprep.subr.bf16.mxu0 0
      %2402 = vmatpush1.bf16.msra.mxu0 0
      %2403 = vmatprep.subr.bf16.mxu0 0
      %2404 = vmatpush1.bf16.msra.mxu0 0
      %2405 = vmatprep.mubr.bf16.mxu0 0
      %2406 = vmatmul.mubr.bf16.gmra.mrb[0].mxu0 %v2309
      %v2407 = vpop.f32.mrb[0].mxu0
      %v2408 = vadd.f32 0.0, %v2407
      %v2409 = vpop.f32.mrb[0].mxu0
      %v2410 = vpop.f32.mrb[0].mxu0
      %v2411 = vadd.f32 0.0, %v2410
      %v2412 = vpop.f32.mrb[0].mxu0
      %2413 = vmatprep.mubr.bf16.mxu0 0
      %2414 = vmatmul.mubr.bf16.gmra.mrb[0].mxu0 %v2310
      %v2415 = vpop.f32.mrb[0].mxu0
      %v2416 = vadd.f32 0.0, %v2415
      %v2417 = vpop.f32.mrb[0].mxu0
      %v2418 = vpop.f32.mrb[0].mxu0
      %v2419 = vadd.f32 0.0, %v2418
      %v2420 = vpop.f32.mrb[0].mxu0
      %2421 = vmatprep.mubr.bf16.mxu0 0
      %2422 = vmatmul.mubr.bf16.gmra.mrb[0].mxu0 %v2311
      %v2423 = vpop.f32.mrb[0].mxu0
      %v2424 = vadd.f32 0.0, %v2423
      %v2425 = vpop.f32.mrb[0].mxu0
      %v2426 = vpop.f32.mrb[0].mxu0
      %v2427 = vadd.f32 0.0, %v2426
      %v2428 = vpop.f32.mrb[0].mxu0
      %2429 = vmatprep.mubr.bf16.mxu0 0
      %2430 = vmatmul.mubr.bf16.gmra.mrb[0].mxu0 %v2312
      %v2431 = vpop.f32.mrb[0].mxu0
      %v2432 = vadd.f32 0.0, %v2431
      %v2433 = vpop.f32.mrb[0].mxu0
      %v2434 = vpop.f32.mrb[0].mxu0
      %v2435 = vadd.f32 0.0, %v2434
      %v2436 = vpop.f32.mrb[0].mxu0
      %2437 = vmatprep.mubr.bf16.mxu0 0
      %2438 = vmatmul.mubr.bf16.gmra.mrb[0].mxu0 %v2313
      %v2439 = vpop.f32.mrb[0].mxu0
      %v2440 = vadd.f32 0.0, %v2439
      %v2441 = vpop.f32.mrb[0].mxu0
      %v2442 = vpop.f32.mrb[0].mxu0
      %v2443 = vadd.f32 0.0, %v2442
      %v2444 = vpop.f32.mrb[0].mxu0
      %2445 = vmatprep.mubr.bf16.mxu0 0
      %2446 = vmatmul.mubr.bf16.gmra.mrb[0].mxu0 %v2314
      %v2447 = vpop.f32.mrb[0].mxu0
      %v2448 = vadd.f32 0.0, %v2447
      %v2449 = vpop.f32.mrb[0].mxu0
      %v2450 = vpop.f32.mrb[0].mxu0
      %v2451 = vadd.f32 0.0, %v2450
      %v2452 = vpop.f32.mrb[0].mxu0
      %2453 = vmatprep.mubr.bf16.mxu0 0
      %2454 = vmatmul.mubr.bf16.gmra.mrb[0].mxu0 %v2315
      %v2455 = vpop.f32.mrb[0].mxu0
      %v2456 = vadd.f32 0.0, %v2455
      %v2457 = vpop.f32.mrb[0].mxu0
      %v2458 = vpop.f32.mrb[0].mxu0
      %v2459 = vadd.f32 0.0, %v2458
      %v2460 = vpop.f32.mrb[0].mxu0
      %2461 = vmatprep.mubr.bf16.mxu0 0
      %2462 = vmatmul.mubr.bf16.gmra.mrb[0].mxu0 %v2316
      %v2463 = vpop.f32.mrb[0].mxu0
      %v2464 = vadd.f32 0.0, %v2463
      %v2465 = vpop.f32.mrb[0].mxu0
      %v2466 = vpop.f32.mrb[0].mxu0
      %v2467 = vadd.f32 0.0, %v2466
      %v2468 = vpop.f32.mrb[0].mxu0
      %2469 = vmatprep.mubr.bf16.mxu0 0
      %2470 = vmatmul.mubr.bf16.gmra.mrb[0].mxu0 %v2317
      %v2471 = vpop.f32.mrb[0].mxu0
      %v2472 = vadd.f32 0.0, %v2471
      %v2473 = vpop.f32.mrb[0].mxu0
      %v2474 = vpop.f32.mrb[0].mxu0
      %v2475 = vadd.f32 0.0, %v2474
      %v2476 = vpop.f32.mrb[0].mxu0
      %2477 = vmatprep.mubr.bf16.mxu0 0
      %2478 = vmatmul.mubr.bf16.gmra.mrb[0].mxu0 %v2318
      %v2479 = vpop.f32.mrb[0].mxu0
      %v2480 = vadd.f32 0.0, %v2479
      %v2481 = vpop.f32.mrb[0].mxu0
      %v2482 = vpop.f32.mrb[0].mxu0
      %v2483 = vadd.f32 0.0, %v2482
      %v2484 = vpop.f32.mrb[0].mxu0
      %2485 = vmatprep.mubr.bf16.mxu0 0
      %2486 = vmatmul.mubr.bf16.gmra.mrb[0].mxu0 %v2319
      %v2487 = vpop.f32.mrb[0].mxu0
      %v2488 = vadd.f32 0.0, %v2487
      %v2489 = vpop.f32.mrb[0].mxu0
      %v2490 = vpop.f32.mrb[0].mxu0
      %v2491 = vadd.f32 0.0, %v2490
      %v2492 = vpop.f32.mrb[0].mxu0
      %2493 = vmatprep.mubr.bf16.mxu0 0
      %2494 = vmatmul.mubr.bf16.gmra.mrb[0].mxu0 %v2320
      %v2495 = vpop.f32.mrb[0].mxu0
      %v2496 = vadd.f32 0.0, %v2495
      %v2497 = vpop.f32.mrb[0].mxu0
      %v2498 = vpop.f32.mrb[0].mxu0
      %v2499 = vadd.f32 0.0, %v2498
      %v2500 = vpop.f32.mrb[0].mxu0
      %2501 = vmatprep.mubr.bf16.mxu0 0
      %2502 = vmatmul.mubr.bf16.gmra.mrb[0].mxu0 %v2321
      %v2503 = vpop.f32.mrb[0].mxu0
      %v2504 = vadd.f32 0.0, %v2503
      %v2505 = vpop.f32.mrb[0].mxu0
      %v2506 = vpop.f32.mrb[0].mxu0
      %v2507 = vadd.f32 0.0, %v2506
      %v2508 = vpop.f32.mrb[0].mxu0
      %2509 = vmatprep.mubr.bf16.mxu0 0
      %2510 = vmatmul.mubr.bf16.gmra.mrb[0].mxu0 %v2322
      %v2511 = vpop.f32.mrb[0].mxu0
      %v2512 = vadd.f32 0.0, %v2511
      %v2513 = vpop.f32.mrb[0].mxu0
      %v2514 = vpop.f32.mrb[0].mxu0
      %v2515 = vadd.f32 0.0, %v2514
      %v2516 = vpop.f32.mrb[0].mxu0
      %2517 = vmatprep.mubr.bf16.mxu0 0
      %2518 = vmatmul.mubr.bf16.gmra.mrb[0].mxu0 %v2323
      %v2519 = vpop.f32.mrb[0].mxu0
      %v2520 = vadd.f32 0.0, %v2519
      %v2521 = vpop.f32.mrb[0].mxu0
      %v2522 = vpop.f32.mrb[0].mxu0
      %v2523 = vadd.f32 0.0, %v2522
      %v2524 = vpop.f32.mrb[0].mxu0
      %2525 = vmatprep.mubr.bf16.mxu0 0
      %2526 = vmatmul.mubr.bf16.gmra.mrb[0].mxu0 %v2324
      %v2527 = vpop.f32.mrb[0].mxu0
      %v2528 = vadd.f32 0.0, %v2527
      %v2529 = vpop.f32.mrb[0].mxu0
      %v2530 = vpop.f32.mrb[0].mxu0
      %v2531 = vadd.f32 0.0, %v2530
      %v2532 = vpop.f32.mrb[0].mxu0
      %2533 = vdwg.mxu0
      %v2534 = vadd.f32 %v2245, %v2408
      %v2535 = vadd.f32 %v2246, %v2411
      %v2536 = vadd.f32 %v2247, %v2416
      %v2537 = vadd.f32 %v2248, %v2419
      %v2538 = vadd.f32 %v2249, %v2424
      %v2539 = vadd.f32 %v2250, %v2427
      %v2540 = vadd.f32 %v2251, %v2432
      %v2541 = vadd.f32 %v2252, %v2435
      %v2542 = vadd.f32 %v2253, %v2440
      %v2543 = vadd.f32 %v2254, %v2443
      %v2544 = vadd.f32 %v2255, %v2448
      %v2545 = vadd.f32 %v2256, %v2451
      %v2546 = vadd.f32 %v2257, %v2456
      %v2547 = vadd.f32 %v2258, %v2459
      %v2548 = vadd.f32 %v2259, %v2464
      %v2549 = vadd.f32 %v2260, %v2467
      %v2550 = vadd.f32 %v2261, %v2472
      %v2551 = vadd.f32 %v2262, %v2475
      %v2552 = vadd.f32 %v2263, %v2480
      %v2553 = vadd.f32 %v2264, %v2483
      %v2554 = vadd.f32 %v2265, %v2488
      %v2555 = vadd.f32 %v2266, %v2491
      %v2556 = vadd.f32 %v2267, %v2496
      %v2557 = vadd.f32 %v2268, %v2499
      %v2558 = vadd.f32 %v2269, %v2504
      %v2559 = vadd.f32 %v2270, %v2507
      %v2560 = vadd.f32 %v2271, %v2512
      %v2561 = vadd.f32 %v2272, %v2515
      %v2562 = vadd.f32 %v2273, %v2520
      %v2563 = vadd.f32 %v2274, %v2523
      %v2564 = vadd.f32 %v2275, %v2528
      %v2565 = vadd.f32 %v2276, %v2531
      %v2566 = vld [vmem:[%s1987 + $0x2] sm:$0xff]
      %v2567 = vld [vmem:[%s1987 + $0xa] sm:$0xff]
      %v2568 = vld [vmem:[%s1987 + $0x1a] sm:$0xff]
      %v2569 = vld [vmem:[%s1987 + $0x22] sm:$0xff]
      %v2570 = vld [vmem:[%s1987 + $0x32] sm:$0xff]
      %v2571 = vld [vmem:[%s1987 + $0x3a] sm:$0xff]
      %v2572 = vld [vmem:[%s1987 + $0x4a] sm:$0xff]
      %v2573 = vld [vmem:[%s1987 + $0x52] sm:$0xff]
      %v2574 = vld [vmem:[%s1987 + $0x62] sm:$0xff]
      %v2575 = vld [vmem:[%s1987 + $0x6a] sm:$0xff]
      %v2576 = vld [vmem:[%s1987 + $0x7a] sm:$0xff]
      %v2577 = vld [vmem:[%s1987 + $0x82] sm:$0xff]
      %v2578 = vld [vmem:[%s1987 + $0x92] sm:$0xff]
      %v2579 = vld [vmem:[%s1987 + $0x9a] sm:$0xff]
      %v2580 = vld [vmem:[%s1987 + $0xaa] sm:$0xff]
      %v2581 = vld [vmem:[%s1987 + $0xb2] sm:$0xff]
      %v2582 = vld [vmem:[%s1987 + $0xc2] sm:$0xff]
      %v2583 = vld [vmem:[%s1987 + $0xca] sm:$0xff]
      %v2584 = vld [vmem:[%s1987 + $0xda] sm:$0xff]
      %v2585 = vld [vmem:[%s1987 + $0xe2] sm:$0xff]
      %v2586 = vld [vmem:[%s1987 + $0xf2] sm:$0xff]
      %v2587 = vld [vmem:[%s1987 + $0xfa] sm:$0xff]
      %v2588 = vld [vmem:[%s1987 + $0x10a] sm:$0xff]
      %v2589 = vld [vmem:[%s1987 + $0x112] sm:$0xff]
      %v2590 = vld [vmem:[%s1987 + $0x122] sm:$0xff]
      %v2591 = vld [vmem:[%s1987 + $0x12a] sm:$0xff]
      %v2592 = vld [vmem:[%s1987 + $0x13a] sm:$0xff]
      %v2593 = vld [vmem:[%s1987 + $0x142] sm:$0xff]
      %v2594 = vld [vmem:[%s1987 + $0x152] sm:$0xff]
      %v2595 = vld [vmem:[%s1987 + $0x15a] sm:$0xff]
      %v2596 = vld [vmem:[%s1987 + $0x16a] sm:$0xff]
      %v2597 = vld [vmem:[%s1987 + $0x172] sm:$0xff]
      %v2598 = vpack.c.bf16 %v2567, %v2566
      %v2599 = vpack.c.bf16 %v2569, %v2568
      %v2600 = vpack.c.bf16 %v2571, %v2570
      %v2601 = vpack.c.bf16 %v2573, %v2572
      %v2602 = vpack.c.bf16 %v2575, %v2574
      %v2603 = vpack.c.bf16 %v2577, %v2576
      %v2604 = vpack.c.bf16 %v2579, %v2578
      %v2605 = vpack.c.bf16 %v2581, %v2580
      %v2606 = vpack.c.bf16 %v2583, %v2582
      %v2607 = vpack.c.bf16 %v2585, %v2584
      %v2608 = vpack.c.bf16 %v2587, %v2586
      %v2609 = vpack.c.bf16 %v2589, %v2588
      %v2610 = vpack.c.bf16 %v2591, %v2590
      %v2611 = vpack.c.bf16 %v2593, %v2592
      %v2612 = vpack.c.bf16 %v2595, %v2594
      %v2613 = vpack.c.bf16 %v2597, %v2596
      %v2630 = vunpack.c.l.b16 %v300
      %v2631 = vunpack.c.l.b16 %v301
      %v2632 = vunpack.c.l.b16 %v302
      %v2633 = vunpack.c.l.b16 %v303
      %v2634 = vunpack.c.l.b16 %v304
      %v2635 = vunpack.c.l.b16 %v305
      %v2636 = vunpack.c.l.b16 %v306
      %v2637 = vunpack.c.l.b16 %v307
      %v2638 = vunpack.c.l.b16 %v308
      %v2639 = vunpack.c.l.b16 %v309
      %v2640 = vunpack.c.l.b16 %v310
      %v2641 = vunpack.c.l.b16 %v311
      %v2642 = vunpack.c.l.b16 %v312
      %v2643 = vunpack.c.l.b16 %v313
      %v2644 = vunpack.c.l.b16 %v314
      %v2645 = vunpack.c.l.b16 %v315
      %v2646 = vpack.c.b16 %v2631, %v2630
      %v2647 = vpack.c.b16 %v2633, %v2632
      %v2648 = vpack.c.b16 %v2635, %v2634
      %v2649 = vpack.c.b16 %v2637, %v2636
      %v2650 = vpack.c.b16 %v2639, %v2638
      %v2651 = vpack.c.b16 %v2641, %v2640
      %v2652 = vpack.c.b16 %v2643, %v2642
      %v2653 = vpack.c.b16 %v2645, %v2644
      %2662 = vmatprep.subr.bf16.mxu0 0
      %2663 = vmatpush1.bf16.msra.mxu0 %v2646
      %2664 = vmatprep.subr.bf16.mxu0 0
      %2665 = vmatpush1.bf16.msra.mxu0 %v2647
      %2666 = vmatprep.subr.bf16.mxu0 0
      %2667 = vmatpush1.bf16.msra.mxu0 %v2648
      %2668 = vmatprep.subr.bf16.mxu0 0
      %2669 = vmatpush1.bf16.msra.mxu0 %v2649
      %2670 = vmatprep.subr.bf16.mxu0 0
      %2671 = vmatpush1.bf16.msra.mxu0 %v2650
      %2672 = vmatprep.subr.bf16.mxu0 0
      %2673 = vmatpush1.bf16.msra.mxu0 %v2651
      %2674 = vmatprep.subr.bf16.mxu0 0
      %2675 = vmatpush1.bf16.msra.mxu0 %v2652
      %2676 = vmatprep.subr.bf16.mxu0 0
      %2677 = vmatpush1.bf16.msra.mxu0 %v2653
      %2678 = vmatprep.subr.bf16.mxu0 0
      %2679 = vmatpush1.bf16.msra.mxu0 0
      %2680 = vmatprep.subr.bf16.mxu0 0
      %2681 = vmatpush1.bf16.msra.mxu0 0
      %2682 = vmatprep.subr.bf16.mxu0 0
      %2683 = vmatpush1.bf16.msra.mxu0 0
      %2684 = vmatprep.subr.bf16.mxu0 0
      %2685 = vmatpush1.bf16.msra.mxu0 0
      %2686 = vmatprep.subr.bf16.mxu0 0
      %2687 = vmatpush1.bf16.msra.mxu0 0
      %2688 = vmatprep.subr.bf16.mxu0 0
      %2689 = vmatpush1.bf16.msra.mxu0 0
      %2690 = vmatprep.subr.bf16.mxu0 0
      %2691 = vmatpush1.bf16.msra.mxu0 0
      %2692 = vmatprep.subr.bf16.mxu0 0
      %2693 = vmatpush1.bf16.msra.mxu0 0
      %2694 = vmatprep.mubr.bf16.mxu0 0
      %2695 = vmatmul.mubr.bf16.gmra.mrb[0].mxu0 %v2598
      %v2696 = vpop.f32.mrb[0].mxu0
      %v2697 = vadd.f32 0.0, %v2696
      %v2698 = vpop.f32.mrb[0].mxu0
      %v2699 = vpop.f32.mrb[0].mxu0
      %v2700 = vadd.f32 0.0, %v2699
      %v2701 = vpop.f32.mrb[0].mxu0
      %2702 = vmatprep.mubr.bf16.mxu0 0
      %2703 = vmatmul.mubr.bf16.gmra.mrb[0].mxu0 %v2599
      %v2704 = vpop.f32.mrb[0].mxu0
      %v2705 = vadd.f32 0.0, %v2704
      %v2706 = vpop.f32.mrb[0].mxu0
      %v2707 = vpop.f32.mrb[0].mxu0
      %v2708 = vadd.f32 0.0, %v2707
      %v2709 = vpop.f32.mrb[0].mxu0
      %2710 = vmatprep.mubr.bf16.mxu0 0
      %2711 = vmatmul.mubr.bf16.gmra.mrb[0].mxu0 %v2600
      %v2712 = vpop.f32.mrb[0].mxu0
      %v2713 = vadd.f32 0.0, %v2712
      %v2714 = vpop.f32.mrb[0].mxu0
      %v2715 = vpop.f32.mrb[0].mxu0
      %v2716 = vadd.f32 0.0, %v2715
      %v2717 = vpop.f32.mrb[0].mxu0
      %2718 = vmatprep.mubr.bf16.mxu0 0
      %2719 = vmatmul.mubr.bf16.gmra.mrb[0].mxu0 %v2601
      %v2720 = vpop.f32.mrb[0].mxu0
      %v2721 = vadd.f32 0.0, %v2720
      %v2722 = vpop.f32.mrb[0].mxu0
      %v2723 = vpop.f32.mrb[0].mxu0
      %v2724 = vadd.f32 0.0, %v2723
      %v2725 = vpop.f32.mrb[0].mxu0
      %2726 = vmatprep.mubr.bf16.mxu0 0
      %2727 = vmatmul.mubr.bf16.gmra.mrb[0].mxu0 %v2602
      %v2728 = vpop.f32.mrb[0].mxu0
      %v2729 = vadd.f32 0.0, %v2728
      %v2730 = vpop.f32.mrb[0].mxu0
      %v2731 = vpop.f32.mrb[0].mxu0
      %v2732 = vadd.f32 0.0, %v2731
      %v2733 = vpop.f32.mrb[0].mxu0
      %2734 = vmatprep.mubr.bf16.mxu0 0
      %2735 = vmatmul.mubr.bf16.gmra.mrb[0].mxu0 %v2603
      %v2736 = vpop.f32.mrb[0].mxu0
      %v2737 = vadd.f32 0.0, %v2736
      %v2738 = vpop.f32.mrb[0].mxu0
      %v2739 = vpop.f32.mrb[0].mxu0
      %v2740 = vadd.f32 0.0, %v2739
      %v2741 = vpop.f32.mrb[0].mxu0
      %2742 = vmatprep.mubr.bf16.mxu0 0
      %2743 = vmatmul.mubr.bf16.gmra.mrb[0].mxu0 %v2604
      %v2744 = vpop.f32.mrb[0].mxu0
      %v2745 = vadd.f32 0.0, %v2744
      %v2746 = vpop.f32.mrb[0].mxu0
      %v2747 = vpop.f32.mrb[0].mxu0
      %v2748 = vadd.f32 0.0, %v2747
      %v2749 = vpop.f32.mrb[0].mxu0
      %2750 = vmatprep.mubr.bf16.mxu0 0
      %2751 = vmatmul.mubr.bf16.gmra.mrb[0].mxu0 %v2605
      %v2752 = vpop.f32.mrb[0].mxu0
      %v2753 = vadd.f32 0.0, %v2752
      %v2754 = vpop.f32.mrb[0].mxu0
      %v2755 = vpop.f32.mrb[0].mxu0
      %v2756 = vadd.f32 0.0, %v2755
      %v2757 = vpop.f32.mrb[0].mxu0
      %2758 = vmatprep.mubr.bf16.mxu0 0
      %2759 = vmatmul.mubr.bf16.gmra.mrb[0].mxu0 %v2606
      %v2760 = vpop.f32.mrb[0].mxu0
      %v2761 = vadd.f32 0.0, %v2760
      %v2762 = vpop.f32.mrb[0].mxu0
      %v2763 = vpop.f32.mrb[0].mxu0
      %v2764 = vadd.f32 0.0, %v2763
      %v2765 = vpop.f32.mrb[0].mxu0
      %2766 = vmatprep.mubr.bf16.mxu0 0
      %2767 = vmatmul.mubr.bf16.gmra.mrb[0].mxu0 %v2607
      %v2768 = vpop.f32.mrb[0].mxu0
      %v2769 = vadd.f32 0.0, %v2768
      %v2770 = vpop.f32.mrb[0].mxu0
      %v2771 = vpop.f32.mrb[0].mxu0
      %v2772 = vadd.f32 0.0, %v2771
      %v2773 = vpop.f32.mrb[0].mxu0
      %2774 = vmatprep.mubr.bf16.mxu0 0
      %2775 = vmatmul.mubr.bf16.gmra.mrb[0].mxu0 %v2608
      %v2776 = vpop.f32.mrb[0].mxu0
      %v2777 = vadd.f32 0.0, %v2776
      %v2778 = vpop.f32.mrb[0].mxu0
      %v2779 = vpop.f32.mrb[0].mxu0
      %v2780 = vadd.f32 0.0, %v2779
      %v2781 = vpop.f32.mrb[0].mxu0
      %2782 = vmatprep.mubr.bf16.mxu0 0
      %2783 = vmatmul.mubr.bf16.gmra.mrb[0].mxu0 %v2609
      %v2784 = vpop.f32.mrb[0].mxu0
      %v2785 = vadd.f32 0.0, %v2784
      %v2786 = vpop.f32.mrb[0].mxu0
      %v2787 = vpop.f32.mrb[0].mxu0
      %v2788 = vadd.f32 0.0, %v2787
      %v2789 = vpop.f32.mrb[0].mxu0
      %2790 = vmatprep.mubr.bf16.mxu0 0
      %2791 = vmatmul.mubr.bf16.gmra.mrb[0].mxu0 %v2610
      %v2792 = vpop.f32.mrb[0].mxu0
      %v2793 = vadd.f32 0.0, %v2792
      %v2794 = vpop.f32.mrb[0].mxu0
      %v2795 = vpop.f32.mrb[0].mxu0
      %v2796 = vadd.f32 0.0, %v2795
      %v2797 = vpop.f32.mrb[0].mxu0
      %2798 = vmatprep.mubr.bf16.mxu0 0
      %2799 = vmatmul.mubr.bf16.gmra.mrb[0].mxu0 %v2611
      %v2800 = vpop.f32.mrb[0].mxu0
      %v2801 = vadd.f32 0.0, %v2800
      %v2802 = vpop.f32.mrb[0].mxu0
      %v2803 = vpop.f32.mrb[0].mxu0
      %v2804 = vadd.f32 0.0, %v2803
      %v2805 = vpop.f32.mrb[0].mxu0
      %2806 = vmatprep.mubr.bf16.mxu0 0
      %2807 = vmatmul.mubr.bf16.gmra.mrb[0].mxu0 %v2612
      %v2808 = vpop.f32.mrb[0].mxu0
      %v2809 = vadd.f32 0.0, %v2808
      %v2810 = vpop.f32.mrb[0].mxu0
      %v2811 = vpop.f32.mrb[0].mxu0
      %v2812 = vadd.f32 0.0, %v2811
      %v2813 = vpop.f32.mrb[0].mxu0
      %2814 = vmatprep.mubr.bf16.mxu0 0
      %2815 = vmatmul.mubr.bf16.gmra.mrb[0].mxu0 %v2613
      %v2816 = vpop.f32.mrb[0].mxu0
      %v2817 = vadd.f32 0.0, %v2816
      %v2818 = vpop.f32.mrb[0].mxu0
      %v2819 = vpop.f32.mrb[0].mxu0
      %v2820 = vadd.f32 0.0, %v2819
      %v2821 = vpop.f32.mrb[0].mxu0
      %2822 = vdwg.mxu0
      %v2823 = vadd.f32 %v2534, %v2697
      %v2824 = vadd.f32 %v2535, %v2700
      %v2825 = vadd.f32 %v2536, %v2705
      %v2826 = vadd.f32 %v2537, %v2708
      %v2827 = vadd.f32 %v2538, %v2713
      %v2828 = vadd.f32 %v2539, %v2716
      %v2829 = vadd.f32 %v2540, %v2721
      %v2830 = vadd.f32 %v2541, %v2724
      %v2831 = vadd.f32 %v2542, %v2729
      %v2832 = vadd.f32 %v2543, %v2732
      %v2833 = vadd.f32 %v2544, %v2737
      %v2834 = vadd.f32 %v2545, %v2740
      %v2835 = vadd.f32 %v2546, %v2745
      %v2836 = vadd.f32 %v2547, %v2748
      %v2837 = vadd.f32 %v2548, %v2753
      %v2838 = vadd.f32 %v2549, %v2756
      %v2839 = vadd.f32 %v2550, %v2761
      %v2840 = vadd.f32 %v2551, %v2764
      %v2841 = vadd.f32 %v2552, %v2769
      %v2842 = vadd.f32 %v2553, %v2772
      %v2843 = vadd.f32 %v2554, %v2777
      %v2844 = vadd.f32 %v2555, %v2780
      %v2845 = vadd.f32 %v2556, %v2785
      %v2846 = vadd.f32 %v2557, %v2788
      %v2847 = vadd.f32 %v2558, %v2793
      %v2848 = vadd.f32 %v2559, %v2796
      %v2849 = vadd.f32 %v2560, %v2801
      %v2850 = vadd.f32 %v2561, %v2804
      %v2851 = vadd.f32 %v2562, %v2809
      %v2852 = vadd.f32 %v2563, %v2812
      %v2853 = vadd.f32 %v2564, %v2817
      %v2854 = vadd.f32 %v2565, %v2820
      %v2855 = vadd.f32 %v2823, %v2824
      %v2856 = vadd.f32 %v2855, %v2825
      %v2857 = vadd.f32 %v2856, %v2826
      %v2858 = vadd.f32 %v2857, %v2827
      %v2859 = vadd.f32 %v2858, %v2828
      %v2860 = vadd.f32 %v2859, %v2829
      %v2861 = vadd.f32 %v2860, %v2830
      %v2862 = vadd.f32 %v2861, %v2831
      %v2863 = vadd.f32 %v2862, %v2832
      %v2864 = vadd.f32 %v2863, %v2833
      %v2865 = vadd.f32 %v2864, %v2834
      %v2866 = vadd.f32 %v2865, %v2835
      %v2867 = vadd.f32 %v2866, %v2836
      %v2868 = vadd.f32 %v2867, %v2837
      %v2869 = vadd.f32 %v2868, %v2838
      %v2870 = vadd.f32 %v2869, %v2839
      %v2871 = vadd.f32 %v2870, %v2840
      %v2872 = vadd.f32 %v2871, %v2841
      %v2873 = vadd.f32 %v2872, %v2842
      %v2874 = vadd.f32 %v2873, %v2843
      %v2875 = vadd.f32 %v2874, %v2844
      %v2876 = vadd.f32 %v2875, %v2845
      %v2877 = vadd.f32 %v2876, %v2846
      %v2878 = vadd.f32 %v2877, %v2847
      %v2879 = vadd.f32 %v2878, %v2848
      %v2880 = vadd.f32 %v2879, %v2849
      %v2881 = vadd.f32 %v2880, %v2850
      %v2882 = vadd.f32 %v2881, %v2851
      %v2883 = vadd.f32 %v2882, %v2852
      %v2884 = vadd.f32 %v2883, %v2853
      %v2885 = vadd.f32 %v2884, %v2854
      %v2886 = vrot.slane %v2885, 4
      %v2887 = vadd.f32 %v2885, %v2886
      %v2888 = vrot.slane %v2887, 2
      %v2889 = vadd.f32 %v2887, %v2888
      %v2890 = vrot.slane %v2889, 1
      %v2891 = vadd.f32 %v2889, %v2890
      %v2892 = vmul.f32 %v2891, 0.00390625
      %v2893 = vsub.f32 %v2823, %v2892
      %v2894 = vsub.f32 %v2824, %v2892
      %v2895 = vsub.f32 %v2825, %v2892
      %v2896 = vsub.f32 %v2826, %v2892
      %v2897 = vsub.f32 %v2827, %v2892
      %v2898 = vsub.f32 %v2828, %v2892
      %v2899 = vsub.f32 %v2829, %v2892
      %v2900 = vsub.f32 %v2830, %v2892
      %v2901 = vsub.f32 %v2831, %v2892
      %v2902 = vsub.f32 %v2832, %v2892
      %v2903 = vsub.f32 %v2833, %v2892
      %v2904 = vsub.f32 %v2834, %v2892
      %v2905 = vsub.f32 %v2835, %v2892
      %v2906 = vsub.f32 %v2836, %v2892
      %v2907 = vsub.f32 %v2837, %v2892
      %v2908 = vsub.f32 %v2838, %v2892
      %v2909 = vsub.f32 %v2839, %v2892
      %v2910 = vsub.f32 %v2840, %v2892
      %v2911 = vsub.f32 %v2841, %v2892
      %v2912 = vsub.f32 %v2842, %v2892
      %v2913 = vsub.f32 %v2843, %v2892
      %v2914 = vsub.f32 %v2844, %v2892
      %v2915 = vsub.f32 %v2845, %v2892
      %v2916 = vsub.f32 %v2846, %v2892
      %v2917 = vsub.f32 %v2847, %v2892
      %v2918 = vsub.f32 %v2848, %v2892
      %v2919 = vsub.f32 %v2849, %v2892
      %v2920 = vsub.f32 %v2850, %v2892
      %v2921 = vsub.f32 %v2851, %v2892
      %v2922 = vsub.f32 %v2852, %v2892
      %v2923 = vsub.f32 %v2853, %v2892
      %v2924 = vsub.f32 %v2854, %v2892
      %v2925 = vmul.f32 %v2893, %v2893
      %v2926 = vmul.f32 %v2894, %v2894
      %v2927 = vmul.f32 %v2895, %v2895
      %v2928 = vmul.f32 %v2896, %v2896
      %v2929 = vmul.f32 %v2897, %v2897
      %v2930 = vmul.f32 %v2898, %v2898
      %v2931 = vmul.f32 %v2899, %v2899
      %v2932 = vmul.f32 %v2900, %v2900
      %v2933 = vmul.f32 %v2901, %v2901
      %v2934 = vmul.f32 %v2902, %v2902
      %v2935 = vmul.f32 %v2903, %v2903
      %v2936 = vmul.f32 %v2904, %v2904
      %v2937 = vmul.f32 %v2905, %v2905
      %v2938 = vmul.f32 %v2906, %v2906
      %v2939 = vmul.f32 %v2907, %v2907
      %v2940 = vmul.f32 %v2908, %v2908
      %v2941 = vmul.f32 %v2909, %v2909
      %v2942 = vmul.f32 %v2910, %v2910
      %v2943 = vmul.f32 %v2911, %v2911
      %v2944 = vmul.f32 %v2912, %v2912
      %v2945 = vmul.f32 %v2913, %v2913
      %v2946 = vmul.f32 %v2914, %v2914
      %v2947 = vmul.f32 %v2915, %v2915
      %v2948 = vmul.f32 %v2916, %v2916
      %v2949 = vmul.f32 %v2917, %v2917
      %v2950 = vmul.f32 %v2918, %v2918
      %v2951 = vmul.f32 %v2919, %v2919
      %v2952 = vmul.f32 %v2920, %v2920
      %v2953 = vmul.f32 %v2921, %v2921
      %v2954 = vmul.f32 %v2922, %v2922
      %v2955 = vmul.f32 %v2923, %v2923
      %v2956 = vmul.f32 %v2924, %v2924
      %v2957 = vadd.f32 %v2925, %v2926
      %v2958 = vadd.f32 %v2957, %v2927
      %v2959 = vadd.f32 %v2958, %v2928
      %v2960 = vadd.f32 %v2959, %v2929
      %v2961 = vadd.f32 %v2960, %v2930
      %v2962 = vadd.f32 %v2961, %v2931
      %v2963 = vadd.f32 %v2962, %v2932
      %v2964 = vadd.f32 %v2963, %v2933
      %v2965 = vadd.f32 %v2964, %v2934
      %v2966 = vadd.f32 %v2965, %v2935
      %v2967 = vadd.f32 %v2966, %v2936
      %v2968 = vadd.f32 %v2967, %v2937
      %v2969 = vadd.f32 %v2968, %v2938
      %v2970 = vadd.f32 %v2969, %v2939
      %v2971 = vadd.f32 %v2970, %v2940
      %v2972 = vadd.f32 %v2971, %v2941
      %v2973 = vadd.f32 %v2972, %v2942
      %v2974 = vadd.f32 %v2973, %v2943
      %v2975 = vadd.f32 %v2974, %v2944
      %v2976 = vadd.f32 %v2975, %v2945
      %v2977 = vadd.f32 %v2976, %v2946
      %v2978 = vadd.f32 %v2977, %v2947
      %v2979 = vadd.f32 %v2978, %v2948
      %v2980 = vadd.f32 %v2979, %v2949
      %v2981 = vadd.f32 %v2980, %v2950
      %v2982 = vadd.f32 %v2981, %v2951
      %v2983 = vadd.f32 %v2982, %v2952
      %v2984 = vadd.f32 %v2983, %v2953
      %v2985 = vadd.f32 %v2984, %v2954
      %v2986 = vadd.f32 %v2985, %v2955
      %v2987 = vadd.f32 %v2986, %v2956
      %v2988 = vrot.slane %v2987, 4
      %v2989 = vadd.f32 %v2987, %v2988
      %v2990 = vrot.slane %v2989, 2
      %v2991 = vadd.f32 %v2989, %v2990
      %v2992 = vrot.slane %v2991, 1
      %v2993 = vadd.f32 %v2991, %v2992
      %v2994 = vmul.f32 %v2993, 0.00390625
      %v2995 = vadd.f32 %v2994, 1e-05
      %v2996 = vrsqrt.pop %v2995
      %v2997 = vmul.f32 %v2893, %v2996
      %v2998 = vmul.f32 %v2894, %v2996
      %v2999 = vmul.f32 %v2895, %v2996
      %v3000 = vmul.f32 %v2896, %v2996
      %v3001 = vmul.f32 %v2897, %v2996
      %v3002 = vmul.f32 %v2898, %v2996
      %v3003 = vmul.f32 %v2899, %v2996
      %v3004 = vmul.f32 %v2900, %v2996
      %v3005 = vmul.f32 %v2901, %v2996
      %v3006 = vmul.f32 %v2902, %v2996
      %v3007 = vmul.f32 %v2903, %v2996
      %v3008 = vmul.f32 %v2904, %v2996
      %v3009 = vmul.f32 %v2905, %v2996
      %v3010 = vmul.f32 %v2906, %v2996
      %v3011 = vmul.f32 %v2907, %v2996
      %v3012 = vmul.f32 %v2908, %v2996
      %v3013 = vmul.f32 %v2909, %v2996
      %v3014 = vmul.f32 %v2910, %v2996
      %v3015 = vmul.f32 %v2911, %v2996
      %v3016 = vmul.f32 %v2912, %v2996
      %v3017 = vmul.f32 %v2913, %v2996
      %v3018 = vmul.f32 %v2914, %v2996
      %v3019 = vmul.f32 %v2915, %v2996
      %v3020 = vmul.f32 %v2916, %v2996
      %v3021 = vmul.f32 %v2917, %v2996
      %v3022 = vmul.f32 %v2918, %v2996
      %v3023 = vmul.f32 %v2919, %v2996
      %v3024 = vmul.f32 %v2920, %v2996
      %v3025 = vmul.f32 %v2921, %v2996
      %v3026 = vmul.f32 %v2922, %v2996
      %v3027 = vmul.f32 %v2923, %v2996
      %v3028 = vmul.f32 %v2924, %v2996
      %v3029 = vmax.f32 %v2997, 0.0
      %v3030 = vmax.f32 %v2998, 0.0
      %v3031 = vmax.f32 %v2999, 0.0
      %v3032 = vmax.f32 %v3000, 0.0
      %v3033 = vmax.f32 %v3001, 0.0
      %v3034 = vmax.f32 %v3002, 0.0
      %v3035 = vmax.f32 %v3003, 0.0
      %v3036 = vmax.f32 %v3004, 0.0
      %v3037 = vmax.f32 %v3005, 0.0
      %v3038 = vmax.f32 %v3006, 0.0
      %v3039 = vmax.f32 %v3007, 0.0
      %v3040 = vmax.f32 %v3008, 0.0
      %v3041 = vmax.f32 %v3009, 0.0
      %v3042 = vmax.f32 %v3010, 0.0
      %v3043 = vmax.f32 %v3011, 0.0
      %v3044 = vmax.f32 %v3012, 0.0
      %v3045 = vmax.f32 %v3013, 0.0
      %v3046 = vmax.f32 %v3014, 0.0
      %v3047 = vmax.f32 %v3015, 0.0
      %v3048 = vmax.f32 %v3016, 0.0
      %v3049 = vmax.f32 %v3017, 0.0
      %v3050 = vmax.f32 %v3018, 0.0
      %v3051 = vmax.f32 %v3019, 0.0
      %v3052 = vmax.f32 %v3020, 0.0
      %v3053 = vmax.f32 %v3021, 0.0
      %v3054 = vmax.f32 %v3022, 0.0
      %v3055 = vmax.f32 %v3023, 0.0
      %v3056 = vmax.f32 %v3024, 0.0
      %v3057 = vmax.f32 %v3025, 0.0
      %v3058 = vmax.f32 %v3026, 0.0
      %v3059 = vmax.f32 %v3027, 0.0
      %v3060 = vmax.f32 %v3028, 0.0
      %v3061 = vpack.c.bf16 %v3030, %v3029
      %v3062 = vpack.c.bf16 %v3032, %v3031
      %v3063 = vpack.c.bf16 %v3034, %v3033
      %v3064 = vpack.c.bf16 %v3036, %v3035
      %v3065 = vpack.c.bf16 %v3038, %v3037
      %v3066 = vpack.c.bf16 %v3040, %v3039
      %v3067 = vpack.c.bf16 %v3042, %v3041
      %v3068 = vpack.c.bf16 %v3044, %v3043
      %v3069 = vpack.c.bf16 %v3046, %v3045
      %v3070 = vpack.c.bf16 %v3048, %v3047
      %v3071 = vpack.c.bf16 %v3050, %v3049
      %v3072 = vpack.c.bf16 %v3052, %v3051
      %v3073 = vpack.c.bf16 %v3054, %v3053
      %v3074 = vpack.c.bf16 %v3056, %v3055
      %v3075 = vpack.c.bf16 %v3058, %v3057
      %v3076 = vpack.c.bf16 %v3060, %v3059
      %v3093 = vunpack.c.l.b16 %v3061
      %v3094 = vunpack.c.h.b16 %v3061
      %v3095 = vunpack.c.l.b16 %v3062
      %v3096 = vunpack.c.h.b16 %v3062
      %v3097 = vunpack.c.l.b16 %v3063
      %v3098 = vunpack.c.h.b16 %v3063
      %v3099 = vunpack.c.l.b16 %v3064
      %v3100 = vunpack.c.h.b16 %v3064
      %v3101 = vunpack.c.l.b16 %v3065
      %v3102 = vunpack.c.h.b16 %v3065
      %v3103 = vunpack.c.l.b16 %v3066
      %v3104 = vunpack.c.h.b16 %v3066
      %v3105 = vunpack.c.l.b16 %v3067
      %v3106 = vunpack.c.h.b16 %v3067
      %v3107 = vunpack.c.l.b16 %v3068
      %v3108 = vunpack.c.h.b16 %v3068
      %v3109 = vunpack.c.l.b16 %v3069
      %v3110 = vunpack.c.h.b16 %v3069
      %v3111 = vunpack.c.l.b16 %v3070
      %v3112 = vunpack.c.h.b16 %v3070
      %v3113 = vunpack.c.l.b16 %v3071
      %v3114 = vunpack.c.h.b16 %v3071
      %v3115 = vunpack.c.l.b16 %v3072
      %v3116 = vunpack.c.h.b16 %v3072
      %v3117 = vunpack.c.l.b16 %v3073
      %v3118 = vunpack.c.h.b16 %v3073
      %v3119 = vunpack.c.l.b16 %v3074
      %v3120 = vunpack.c.h.b16 %v3074
      %v3121 = vunpack.c.l.b16 %v3075
      %v3122 = vunpack.c.h.b16 %v3075
      %v3123 = vunpack.c.l.b16 %v3076
      %v3124 = vunpack.c.h.b16 %v3076
      %v3125 = vpack.c.b16 %v3093, %v3093
      %v3126 = vpack.c.b16 %v3094, %v3094
      %v3127 = vpack.c.b16 %v3095, %v3095
      %v3128 = vpack.c.b16 %v3096, %v3096
      %v3129 = vpack.c.b16 %v3097, %v3097
      %v3130 = vpack.c.b16 %v3098, %v3098
      %v3131 = vpack.c.b16 %v3099, %v3099
      %v3132 = vpack.c.b16 %v3100, %v3100
      %v3133 = vpack.c.b16 %v3101, %v3101
      %v3134 = vpack.c.b16 %v3102, %v3102
      %v3135 = vpack.c.b16 %v3103, %v3103
      %v3136 = vpack.c.b16 %v3104, %v3104
      %v3137 = vpack.c.b16 %v3105, %v3105
      %v3138 = vpack.c.b16 %v3106, %v3106
      %v3139 = vpack.c.b16 %v3107, %v3107
      %v3140 = vpack.c.b16 %v3108, %v3108
      %v3141 = vpack.c.b16 %v3109, %v3109
      %v3142 = vpack.c.b16 %v3110, %v3110
      %v3143 = vpack.c.b16 %v3111, %v3111
      %v3144 = vpack.c.b16 %v3112, %v3112
      %v3145 = vpack.c.b16 %v3113, %v3113
      %v3146 = vpack.c.b16 %v3114, %v3114
      %v3147 = vpack.c.b16 %v3115, %v3115
      %v3148 = vpack.c.b16 %v3116, %v3116
      %v3149 = vpack.c.b16 %v3117, %v3117
      %v3150 = vpack.c.b16 %v3118, %v3118
      %v3151 = vpack.c.b16 %v3119, %v3119
      %v3152 = vpack.c.b16 %v3120, %v3120
      %v3153 = vpack.c.b16 %v3121, %v3121
      %v3154 = vpack.c.b16 %v3122, %v3122
      %v3155 = vpack.c.b16 %v3123, %v3123
      %v3156 = vpack.c.b16 %v3124, %v3124
      %vm3157 = vsmask.f32 256
      %vm3158 = vsmask.f32 4368
      %vm3159 = vmor %vm3157, %vm3158
      %v3161 = vshrl.u32 %v3125, 16
      %v3163 = vrot.slane %v3161, 7
      %v3164 = vshll.u32 %v3125, 16
      %v3166 = vor.u32 %v3163, %v3164
      %v3167 = vrot.slane %v3163, 4
      %v3169 = vshrl.u32 %v3126, 16
      %v3171 = vrot.slane %v3169, 7
      %v3172 = vshll.u32 %v3126, 16
      %v3174 = vor.u32 %v3171, %v3172
      %v3175 = vsel %vm3159, %v3167, %v3174
      %v3176 = vrot.slane %v3171, 4
      %v3178 = vshrl.u32 %v3127, 16
      %v3180 = vrot.slane %v3178, 7
      %v3181 = vshll.u32 %v3127, 16
      %v3183 = vor.u32 %v3180, %v3181
      %v3184 = vrot.slane %v3180, 4
      %v3186 = vshrl.u32 %v3128, 16
      %v3188 = vrot.slane %v3186, 7
      %v3189 = vshll.u32 %v3128, 16
      %v3191 = vor.u32 %v3188, %v3189
      %v3192 = vsel %vm3159, %v3184, %v3191
      %v3193 = vrot.slane %v3188, 4
      %v3195 = vshrl.u32 %v3129, 16
      %v3197 = vrot.slane %v3195, 7
      %v3198 = vshll.u32 %v3129, 16
      %v3200 = vor.u32 %v3197, %v3198
      %v3201 = vrot.slane %v3197, 4
      %v3203 = vshrl.u32 %v3130, 16
      %v3205 = vrot.slane %v3203, 7
      %v3206 = vshll.u32 %v3130, 16
      %v3208 = vor.u32 %v3205, %v3206
      %v3209 = vsel %vm3159, %v3201, %v3208
      %v3210 = vrot.slane %v3205, 4
      %v3212 = vshrl.u32 %v3131, 16
      %v3214 = vrot.slane %v3212, 7
      %v3215 = vshll.u32 %v3131, 16
      %v3217 = vor.u32 %v3214, %v3215
      %v3218 = vrot.slane %v3214, 4
      %v3220 = vshrl.u32 %v3132, 16
      %v3222 = vrot.slane %v3220, 7
      %v3223 = vshll.u32 %v3132, 16
      %v3225 = vor.u32 %v3222, %v3223
      %v3226 = vsel %vm3159, %v3218, %v3225
      %v3227 = vrot.slane %v3222, 4
      %v3229 = vshrl.u32 %v3133, 16
      %v3231 = vrot.slane %v3229, 7
      %v3232 = vshll.u32 %v3133, 16
      %v3234 = vor.u32 %v3231, %v3232
      %v3235 = vrot.slane %v3231, 4
      %v3237 = vshrl.u32 %v3134, 16
      %v3239 = vrot.slane %v3237, 7
      %v3240 = vshll.u32 %v3134, 16
      %v3242 = vor.u32 %v3239, %v3240
      %v3243 = vsel %vm3159, %v3235, %v3242
      %v3244 = vrot.slane %v3239, 4
      %v3246 = vshrl.u32 %v3135, 16
      %v3248 = vrot.slane %v3246, 7
      %v3249 = vshll.u32 %v3135, 16
      %v3251 = vor.u32 %v3248, %v3249
      %v3252 = vrot.slane %v3248, 4
      %v3254 = vshrl.u32 %v3136, 16
      %v3256 = vrot.slane %v3254, 7
      %v3257 = vshll.u32 %v3136, 16
      %v3259 = vor.u32 %v3256, %v3257
      %v3260 = vsel %vm3159, %v3252, %v3259
      %v3261 = vrot.slane %v3256, 4
      %v3263 = vshrl.u32 %v3137, 16
      %v3265 = vrot.slane %v3263, 7
      %v3266 = vshll.u32 %v3137, 16
      %v3268 = vor.u32 %v3265, %v3266
      %v3269 = vrot.slane %v3265, 4
      %v3271 = vshrl.u32 %v3138, 16
      %v3273 = vrot.slane %v3271, 7
      %v3274 = vshll.u32 %v3138, 16
      %v3276 = vor.u32 %v3273, %v3274
      %v3277 = vsel %vm3159, %v3269, %v3276
      %v3278 = vrot.slane %v3273, 4
      %v3280 = vshrl.u32 %v3139, 16
      %v3282 = vrot.slane %v3280, 7
      %v3283 = vshll.u32 %v3139, 16
      %v3285 = vor.u32 %v3282, %v3283
      %v3286 = vrot.slane %v3282, 4
      %v3288 = vshrl.u32 %v3140, 16
      %v3290 = vrot.slane %v3288, 7
      %v3291 = vshll.u32 %v3140, 16
      %v3293 = vor.u32 %v3290, %v3291
      %v3294 = vsel %vm3159, %v3286, %v3293
      %v3295 = vrot.slane %v3290, 4
      %v3297 = vshrl.u32 %v3141, 16
      %v3299 = vrot.slane %v3297, 7
      %v3300 = vshll.u32 %v3141, 16
      %v3302 = vor.u32 %v3299, %v3300
      %v3303 = vrot.slane %v3299, 4
      %v3305 = vshrl.u32 %v3142, 16
      %v3307 = vrot.slane %v3305, 7
      %v3308 = vshll.u32 %v3142, 16
      %v3310 = vor.u32 %v3307, %v3308
      %v3311 = vsel %vm3159, %v3303, %v3310
      %v3312 = vrot.slane %v3307, 4
      %v3314 = vshrl.u32 %v3143, 16
      %v3316 = vrot.slane %v3314, 7
      %v3317 = vshll.u32 %v3143, 16
      %v3319 = vor.u32 %v3316, %v3317
      %v3320 = vrot.slane %v3316, 4
      %v3322 = vshrl.u32 %v3144, 16
      %v3324 = vrot.slane %v3322, 7
      %v3325 = vshll.u32 %v3144, 16
      %v3327 = vor.u32 %v3324, %v3325
      %v3328 = vsel %vm3159, %v3320, %v3327
      %v3329 = vrot.slane %v3324, 4
      %v3331 = vshrl.u32 %v3145, 16
      %v3333 = vrot.slane %v3331, 7
      %v3334 = vshll.u32 %v3145, 16
      %v3336 = vor.u32 %v3333, %v3334
      %v3337 = vrot.slane %v3333, 4
      %v3339 = vshrl.u32 %v3146, 16
      %v3341 = vrot.slane %v3339, 7
      %v3342 = vshll.u32 %v3146, 16
      %v3344 = vor.u32 %v3341, %v3342
      %v3345 = vsel %vm3159, %v3337, %v3344
      %v3346 = vrot.slane %v3341, 4
      %v3348 = vshrl.u32 %v3147, 16
      %v3350 = vrot.slane %v3348, 7
      %v3351 = vshll.u32 %v3147, 16
      %v3353 = vor.u32 %v3350, %v3351
      %v3354 = vrot.slane %v3350, 4
      %v3356 = vshrl.u32 %v3148, 16
      %v3358 = vrot.slane %v3356, 7
      %v3359 = vshll.u32 %v3148, 16
      %v3361 = vor.u32 %v3358, %v3359
      %v3362 = vsel %vm3159, %v3354, %v3361
      %v3363 = vrot.slane %v3358, 4
      %v3365 = vshrl.u32 %v3149, 16
      %v3367 = vrot.slane %v3365, 7
      %v3368 = vshll.u32 %v3149, 16
      %v3370 = vor.u32 %v3367, %v3368
      %v3371 = vrot.slane %v3367, 4
      %v3373 = vshrl.u32 %v3150, 16
      %v3375 = vrot.slane %v3373, 7
      %v3376 = vshll.u32 %v3150, 16
      %v3378 = vor.u32 %v3375, %v3376
      %v3379 = vsel %vm3159, %v3371, %v3378
      %v3380 = vrot.slane %v3375, 4
      %v3382 = vshrl.u32 %v3151, 16
      %v3384 = vrot.slane %v3382, 7
      %v3385 = vshll.u32 %v3151, 16
      %v3387 = vor.u32 %v3384, %v3385
      %v3388 = vrot.slane %v3384, 4
      %v3390 = vshrl.u32 %v3152, 16
      %v3392 = vrot.slane %v3390, 7
      %v3393 = vshll.u32 %v3152, 16
      %v3395 = vor.u32 %v3392, %v3393
      %v3396 = vsel %vm3159, %v3388, %v3395
      %v3397 = vrot.slane %v3392, 4
      %v3399 = vshrl.u32 %v3153, 16
      %v3401 = vrot.slane %v3399, 7
      %v3402 = vshll.u32 %v3153, 16
      %v3404 = vor.u32 %v3401, %v3402
      %v3405 = vrot.slane %v3401, 4
      %v3407 = vshrl.u32 %v3154, 16
      %v3409 = vrot.slane %v3407, 7
      %v3410 = vshll.u32 %v3154, 16
      %v3412 = vor.u32 %v3409, %v3410
      %v3413 = vsel %vm3159, %v3405, %v3412
      %v3414 = vrot.slane %v3409, 4
      %v3416 = vshrl.u32 %v3155, 16
      %v3418 = vrot.slane %v3416, 7
      %v3419 = vshll.u32 %v3155, 16
      %v3421 = vor.u32 %v3418, %v3419
      %v3422 = vrot.slane %v3418, 4
      %v3424 = vshrl.u32 %v3156, 16
      %v3426 = vrot.slane %v3424, 7
      %v3427 = vshll.u32 %v3156, 16
      %v3429 = vor.u32 %v3426, %v3427
      %v3430 = vsel %vm3159, %v3422, %v3429
      %v3431 = vrot.slane %v3426, 4
      %s3480 = scalar_lea.vmem [#allocation2], 12
      %vm3481 = vcmask 1043456
      %vm3482 = vsmask.f32 7938
      %vm3483 = vmand %vm3481, %vm3482
      %v3484 = vld [vmem:[%s3480] sm:$0xf]
      %v3485 = vsel %vm3483, %v3166, %v3484
      %3486 = vst [vmem:[%s3480] sm:$0xf] %v3485
      %3487 = vst [vmem:[%s3480 + $0x4] sm:$0xf] %v3175
      %vm3488 = vcmask 1040384
      %vm3489 = vmand %vm3488, %vm3157
      %v3490 = vld [vmem:[%s3480 + $0x8] sm:$0x1]
      %v3491 = vsel %vm3489, %v3176, %v3490
      %3492 = vst [vmem:[%s3480 + $0x8] sm:$0x1] %v3491
      %v3493 = vld [vmem:[%s3480 + $0xc] sm:$0xf]
      %v3494 = vsel %vm3483, %v3183, %v3493
      %3495 = vst [vmem:[%s3480 + $0xc] sm:$0xf] %v3494
      %3496 = vst [vmem:[%s3480 + $0x10] sm:$0xf] %v3192
      %v3497 = vld [vmem:[%s3480 + $0x14] sm:$0x1]
      %v3498 = vsel %vm3489, %v3193, %v3497
      %3499 = vst [vmem:[%s3480 + $0x14] sm:$0x1] %v3498
      %v3500 = vld [vmem:[%s3480 + $0x18] sm:$0xf]
      %v3501 = vsel %vm3483, %v3200, %v3500
      %3502 = vst [vmem:[%s3480 + $0x18] sm:$0xf] %v3501
      %3503 = vst [vmem:[%s3480 + $0x1c] sm:$0xf] %v3209
      %v3504 = vld [vmem:[%s3480 + $0x20] sm:$0x1]
      %v3505 = vsel %vm3489, %v3210, %v3504
      %3506 = vst [vmem:[%s3480 + $0x20] sm:$0x1] %v3505
      %v3507 = vld [vmem:[%s3480 + $0x24] sm:$0xf]
      %v3508 = vsel %vm3483, %v3217, %v3507
      %3509 = vst [vmem:[%s3480 + $0x24] sm:$0xf] %v3508
      %3510 = vst [vmem:[%s3480 + $0x28] sm:$0xf] %v3226
      %v3511 = vld [vmem:[%s3480 + $0x2c] sm:$0x1]
      %v3512 = vsel %vm3489, %v3227, %v3511
      %3513 = vst [vmem:[%s3480 + $0x2c] sm:$0x1] %v3512
      %v3514 = vld [vmem:[%s3480 + $0x30] sm:$0xf]
      %v3515 = vsel %vm3483, %v3234, %v3514
      %3516 = vst [vmem:[%s3480 + $0x30] sm:$0xf] %v3515
      %3517 = vst [vmem:[%s3480 + $0x34] sm:$0xf] %v3243
      %v3518 = vld [vmem:[%s3480 + $0x38] sm:$0x1]
      %v3519 = vsel %vm3489, %v3244, %v3518
      %3520 = vst [vmem:[%s3480 + $0x38] sm:$0x1] %v3519
      %v3521 = vld [vmem:[%s3480 + $0x3c] sm:$0xf]
      %v3522 = vsel %vm3483, %v3251, %v3521
      %3523 = vst [vmem:[%s3480 + $0x3c] sm:$0xf] %v3522
      %3524 = vst [vmem:[%s3480 + $0x40] sm:$0xf] %v3260
      %v3525 = vld [vmem:[%s3480 + $0x44] sm:$0x1]
      %v3526 = vsel %vm3489, %v3261, %v3525
      %3527 = vst [vmem:[%s3480 + $0x44] sm:$0x1] %v3526
      %v3528 = vld [vmem:[%s3480 + $0x48] sm:$0xf]
      %v3529 = vsel %vm3483, %v3268, %v3528
      %3530 = vst [vmem:[%s3480 + $0x48] sm:$0xf] %v3529
      %3531 = vst [vmem:[%s3480 + $0x4c] sm:$0xf] %v3277
      %v3532 = vld [vmem:[%s3480 + $0x50] sm:$0x1]
      %v3533 = vsel %vm3489, %v3278, %v3532
      %3534 = vst [vmem:[%s3480 + $0x50] sm:$0x1] %v3533
      %v3535 = vld [vmem:[%s3480 + $0x54] sm:$0xf]
      %v3536 = vsel %vm3483, %v3285, %v3535
      %3537 = vst [vmem:[%s3480 + $0x54] sm:$0xf] %v3536
      %3538 = vst [vmem:[%s3480 + $0x58] sm:$0xf] %v3294
      %v3539 = vld [vmem:[%s3480 + $0x5c] sm:$0x1]
      %v3540 = vsel %vm3489, %v3295, %v3539
      %3541 = vst [vmem:[%s3480 + $0x5c] sm:$0x1] %v3540
      %v3542 = vld [vmem:[%s3480 + $0x60] sm:$0xf]
      %v3543 = vsel %vm3483, %v3302, %v3542
      %3544 = vst [vmem:[%s3480 + $0x60] sm:$0xf] %v3543
      %3545 = vst [vmem:[%s3480 + $0x64] sm:$0xf] %v3311
      %v3546 = vld [vmem:[%s3480 + $0x68] sm:$0x1]
      %v3547 = vsel %vm3489, %v3312, %v3546
      %3548 = vst [vmem:[%s3480 + $0x68] sm:$0x1] %v3547
      %v3549 = vld [vmem:[%s3480 + $0x6c] sm:$0xf]
      %v3550 = vsel %vm3483, %v3319, %v3549
      %3551 = vst [vmem:[%s3480 + $0x6c] sm:$0xf] %v3550
      %3552 = vst [vmem:[%s3480 + $0x70] sm:$0xf] %v3328
      %v3553 = vld [vmem:[%s3480 + $0x74] sm:$0x1]
      %v3554 = vsel %vm3489, %v3329, %v3553
      %3555 = vst [vmem:[%s3480 + $0x74] sm:$0x1] %v3554
      %v3556 = vld [vmem:[%s3480 + $0x78] sm:$0xf]
      %v3557 = vsel %vm3483, %v3336, %v3556
      %3558 = vst [vmem:[%s3480 + $0x78] sm:$0xf] %v3557
      %3559 = vst [vmem:[%s3480 + $0x7c] sm:$0xf] %v3345
      %v3560 = vld [vmem:[%s3480 + $0x80] sm:$0x1]
      %v3561 = vsel %vm3489, %v3346, %v3560
      %3562 = vst [vmem:[%s3480 + $0x80] sm:$0x1] %v3561
      %v3563 = vld [vmem:[%s3480 + $0x84] sm:$0xf]
      %v3564 = vsel %vm3483, %v3353, %v3563
      %3565 = vst [vmem:[%s3480 + $0x84] sm:$0xf] %v3564
      %3566 = vst [vmem:[%s3480 + $0x88] sm:$0xf] %v3362
      %v3567 = vld [vmem:[%s3480 + $0x8c] sm:$0x1]
      %v3568 = vsel %vm3489, %v3363, %v3567
      %3569 = vst [vmem:[%s3480 + $0x8c] sm:$0x1] %v3568
      %v3570 = vld [vmem:[%s3480 + $0x90] sm:$0xf]
      %v3571 = vsel %vm3483, %v3370, %v3570
      %3572 = vst [vmem:[%s3480 + $0x90] sm:$0xf] %v3571
      %3573 = vst [vmem:[%s3480 + $0x94] sm:$0xf] %v3379
      %v3574 = vld [vmem:[%s3480 + $0x98] sm:$0x1]
      %v3575 = vsel %vm3489, %v3380, %v3574
      %3576 = vst [vmem:[%s3480 + $0x98] sm:$0x1] %v3575
      %v3577 = vld [vmem:[%s3480 + $0x9c] sm:$0xf]
      %v3578 = vsel %vm3483, %v3387, %v3577
      %3579 = vst [vmem:[%s3480 + $0x9c] sm:$0xf] %v3578
      %3580 = vst [vmem:[%s3480 + $0xa0] sm:$0xf] %v3396
      %v3581 = vld [vmem:[%s3480 + $0xa4] sm:$0x1]
      %v3582 = vsel %vm3489, %v3397, %v3581
      %3583 = vst [vmem:[%s3480 + $0xa4] sm:$0x1] %v3582
      %v3584 = vld [vmem:[%s3480 + $0xa8] sm:$0xf]
      %v3585 = vsel %vm3483, %v3404, %v3584
      %3586 = vst [vmem:[%s3480 + $0xa8] sm:$0xf] %v3585
      %3587 = vst [vmem:[%s3480 + $0xac] sm:$0xf] %v3413
      %v3588 = vld [vmem:[%s3480 + $0xb0] sm:$0x1]
      %v3589 = vsel %vm3489, %v3414, %v3588
      %3590 = vst [vmem:[%s3480 + $0xb0] sm:$0x1] %v3589
      %v3591 = vld [vmem:[%s3480 + $0xb4] sm:$0xf]
      %v3592 = vsel %vm3483, %v3421, %v3591
      %3593 = vst [vmem:[%s3480 + $0xb4] sm:$0xf] %v3592
      %3594 = vst [vmem:[%s3480 + $0xb8] sm:$0xf] %v3430
      %v3595 = vld [vmem:[%s3480 + $0xbc] sm:$0x1]
      %v3596 = vsel %vm3489, %v3431, %v3595
      %3597 = vst [vmem:[%s3480 + $0xbc] sm:$0x1] %v3596
      %v3598 = vrot.slane %v3161, 4
      %v3599 = vrot.slane %v3598, 4
      %v3600 = vrot.slane %v3178, 4
      %v3601 = vrot.slane %v3600, 4
      %v3602 = vrot.slane %v3195, 4
      %v3603 = vrot.slane %v3602, 4
      %v3604 = vrot.slane %v3212, 4
      %v3605 = vrot.slane %v3604, 4
      %v3606 = vrot.slane %v3229, 4
      %v3607 = vrot.slane %v3606, 4
      %v3608 = vrot.slane %v3246, 4
      %v3609 = vrot.slane %v3608, 4
      %v3610 = vrot.slane %v3263, 4
      %v3611 = vrot.slane %v3610, 4
      %v3612 = vrot.slane %v3280, 4
      %v3613 = vrot.slane %v3612, 4
      %v3614 = vrot.slane %v3297, 4
      %v3615 = vrot.slane %v3614, 4
      %v3616 = vrot.slane %v3314, 4
      %v3617 = vrot.slane %v3616, 4
      %v3618 = vrot.slane %v3331, 4
      %v3619 = vrot.slane %v3618, 4
      %v3620 = vrot.slane %v3348, 4
      %v3621 = vrot.slane %v3620, 4
      %v3622 = vrot.slane %v3365, 4
      %v3623 = vrot.slane %v3622, 4
      %v3624 = vrot.slane %v3382, 4
      %v3625 = vrot.slane %v3624, 4
      %v3626 = vrot.slane %v3399, 4
      %v3627 = vrot.slane %v3626, 4
      %v3628 = vrot.slane %v3416, 4
      %v3629 = vrot.slane %v3628, 4
      %v3646 = vld [vmem:[%s3480] sm:$0x1]
      %v3647 = vsel %vm3489, %v3599, %v3646
      %3648 = vst [vmem:[%s3480] sm:$0x1] %v3647
      %v3649 = vld [vmem:[%s3480 + $0xc] sm:$0x1]
      %v3650 = vsel %vm3489, %v3601, %v3649
      %3651 = vst [vmem:[%s3480 + $0xc] sm:$0x1] %v3650
      %v3652 = vld [vmem:[%s3480 + $0x18] sm:$0x1]
      %v3653 = vsel %vm3489, %v3603, %v3652
      %3654 = vst [vmem:[%s3480 + $0x18] sm:$0x1] %v3653
      %v3655 = vld [vmem:[%s3480 + $0x24] sm:$0x1]
      %v3656 = vsel %vm3489, %v3605, %v3655
      %3657 = vst [vmem:[%s3480 + $0x24] sm:$0x1] %v3656
      %v3658 = vld [vmem:[%s3480 + $0x30] sm:$0x1]
      %v3659 = vsel %vm3489, %v3607, %v3658
      %3660 = vst [vmem:[%s3480 + $0x30] sm:$0x1] %v3659
      %v3661 = vld [vmem:[%s3480 + $0x3c] sm:$0x1]
      %v3662 = vsel %vm3489, %v3609, %v3661
      %3663 = vst [vmem:[%s3480 + $0x3c] sm:$0x1] %v3662
      %v3664 = vld [vmem:[%s3480 + $0x48] sm:$0x1]
      %v3665 = vsel %vm3489, %v3611, %v3664
      %3666 = vst [vmem:[%s3480 + $0x48] sm:$0x1] %v3665
      %v3667 = vld [vmem:[%s3480 + $0x54] sm:$0x1]
      %v3668 = vsel %vm3489, %v3613, %v3667
      %3669 = vst [vmem:[%s3480 + $0x54] sm:$0x1] %v3668
      %v3670 = vld [vmem:[%s3480 + $0x60] sm:$0x1]
      %v3671 = vsel %vm3489, %v3615, %v3670
      %3672 = vst [vmem:[%s3480 + $0x60] sm:$0x1] %v3671
      %v3673 = vld [vmem:[%s3480 + $0x6c] sm:$0x1]
      %v3674 = vsel %vm3489, %v3617, %v3673
      %3675 = vst [vmem:[%s3480 + $0x6c] sm:$0x1] %v3674
      %v3676 = vld [vmem:[%s3480 + $0x78] sm:$0x1]
      %v3677 = vsel %vm3489, %v3619, %v3676
      %3678 = vst [vmem:[%s3480 + $0x78] sm:$0x1] %v3677
      %v3679 = vld [vmem:[%s3480 + $0x84] sm:$0x1]
      %v3680 = vsel %vm3489, %v3621, %v3679
      %3681 = vst [vmem:[%s3480 + $0x84] sm:$0x1] %v3680
      %v3682 = vld [vmem:[%s3480 + $0x90] sm:$0x1]
      %v3683 = vsel %vm3489, %v3623, %v3682
      %3684 = vst [vmem:[%s3480 + $0x90] sm:$0x1] %v3683
      %v3685 = vld [vmem:[%s3480 + $0x9c] sm:$0x1]
      %v3686 = vsel %vm3489, %v3625, %v3685
      %3687 = vst [vmem:[%s3480 + $0x9c] sm:$0x1] %v3686
      %v3688 = vld [vmem:[%s3480 + $0xa8] sm:$0x1]
      %v3689 = vsel %vm3489, %v3627, %v3688
      %3690 = vst [vmem:[%s3480 + $0xa8] sm:$0x1] %v3689
      %v3691 = vld [vmem:[%s3480 + $0xb4] sm:$0x1]
      %v3692 = vsel %vm3489, %v3629, %v3691
      %3693 = vst [vmem:[%s3480 + $0xb4] sm:$0x1] %v3692
      %v3694 = vrot.slane %v3172, 7
      %v3695 = vrot.slane %v3694, 4
      %v3696 = vrot.slane %v3189, 7
      %v3697 = vrot.slane %v3696, 4
      %v3698 = vrot.slane %v3206, 7
      %v3699 = vrot.slane %v3698, 4
      %v3700 = vrot.slane %v3223, 7
      %v3701 = vrot.slane %v3700, 4
      %v3702 = vrot.slane %v3240, 7
      %v3703 = vrot.slane %v3702, 4
      %v3704 = vrot.slane %v3257, 7
      %v3705 = vrot.slane %v3704, 4
      %v3706 = vrot.slane %v3274, 7
      %v3707 = vrot.slane %v3706, 4
      %v3708 = vrot.slane %v3291, 7
      %v3709 = vrot.slane %v3708, 4
      %v3710 = vrot.slane %v3308, 7
      %v3711 = vrot.slane %v3710, 4
      %v3712 = vrot.slane %v3325, 7
      %v3713 = vrot.slane %v3712, 4
      %v3714 = vrot.slane %v3342, 7
      %v3715 = vrot.slane %v3714, 4
      %v3716 = vrot.slane %v3359, 7
      %v3717 = vrot.slane %v3716, 4
      %v3718 = vrot.slane %v3376, 7
      %v3719 = vrot.slane %v3718, 4
      %v3720 = vrot.slane %v3393, 7
      %v3721 = vrot.slane %v3720, 4
      %v3722 = vrot.slane %v3410, 7
      %v3723 = vrot.slane %v3722, 4
      %v3724 = vrot.slane %v3427, 7
      %v3725 = vrot.slane %v3724, 4
      %vm3742 = vmand %vm3488, %vm3482
      %v3743 = vld [vmem:[%s3480 + $0x8] sm:$0x1]
      %v3744 = vsel %vm3742, %v3695, %v3743
      %3745 = vst [vmem:[%s3480 + $0x8] sm:$0x1] %v3744
      %v3746 = vld [vmem:[%s3480 + $0x14] sm:$0x1]
      %v3747 = vsel %vm3742, %v3697, %v3746
      %3748 = vst [vmem:[%s3480 + $0x14] sm:$0x1] %v3747
      %v3749 = vld [vmem:[%s3480 + $0x20] sm:$0x1]
      %v3750 = vsel %vm3742, %v3699, %v3749
      %3751 = vst [vmem:[%s3480 + $0x20] sm:$0x1] %v3750
      %v3752 = vld [vmem:[%s3480 + $0x2c] sm:$0x1]
      %v3753 = vsel %vm3742, %v3701, %v3752
      %3754 = vst [vmem:[%s3480 + $0x2c] sm:$0x1] %v3753
      %v3755 = vld [vmem:[%s3480 + $0x38] sm:$0x1]
      %v3756 = vsel %vm3742, %v3703, %v3755
      %3757 = vst [vmem:[%s3480 + $0x38] sm:$0x1] %v3756
      %v3758 = vld [vmem:[%s3480 + $0x44] sm:$0x1]
      %v3759 = vsel %vm3742, %v3705, %v3758
      %3760 = vst [vmem:[%s3480 + $0x44] sm:$0x1] %v3759
      %v3761 = vld [vmem:[%s3480 + $0x50] sm:$0x1]
      %v3762 = vsel %vm3742, %v3707, %v3761
      %3763 = vst [vmem:[%s3480 + $0x50] sm:$0x1] %v3762
      %v3764 = vld [vmem:[%s3480 + $0x5c] sm:$0x1]
      %v3765 = vsel %vm3742, %v3709, %v3764
      %3766 = vst [vmem:[%s3480 + $0x5c] sm:$0x1] %v3765
      %v3767 = vld [vmem:[%s3480 + $0x68] sm:$0x1]
      %v3768 = vsel %vm3742, %v3711, %v3767
      %3769 = vst [vmem:[%s3480 + $0x68] sm:$0x1] %v3768
      %v3770 = vld [vmem:[%s3480 + $0x74] sm:$0x1]
      %v3771 = vsel %vm3742, %v3713, %v3770
      %3772 = vst [vmem:[%s3480 + $0x74] sm:$0x1] %v3771
      %v3773 = vld [vmem:[%s3480 + $0x80] sm:$0x1]
      %v3774 = vsel %vm3742, %v3715, %v3773
      %3775 = vst [vmem:[%s3480 + $0x80] sm:$0x1] %v3774
      %v3776 = vld [vmem:[%s3480 + $0x8c] sm:$0x1]
      %v3777 = vsel %vm3742, %v3717, %v3776
      %3778 = vst [vmem:[%s3480 + $0x8c] sm:$0x1] %v3777
      %v3779 = vld [vmem:[%s3480 + $0x98] sm:$0x1]
      %v3780 = vsel %vm3742, %v3719, %v3779
      %3781 = vst [vmem:[%s3480 + $0x98] sm:$0x1] %v3780
      %v3782 = vld [vmem:[%s3480 + $0xa4] sm:$0x1]
      %v3783 = vsel %vm3742, %v3721, %v3782
      %3784 = vst [vmem:[%s3480 + $0xa4] sm:$0x1] %v3783
      %v3785 = vld [vmem:[%s3480 + $0xb0] sm:$0x1]
      %v3786 = vsel %vm3742, %v3723, %v3785
      %3787 = vst [vmem:[%s3480 + $0xb0] sm:$0x1] %v3786
      %v3788 = vld [vmem:[%s3480 + $0xbc] sm:$0x1]
      %v3789 = vsel %vm3742, %v3725, %v3788
      %3790 = vst [vmem:[%s3480 + $0xbc] sm:$0x1] %v3789
      %s3791 = scalar_lea.vmem [#allocation2], 24
      %v3792 = vld [vmem:[%s3791] sm:$0xf]
      %v3793 = vld [vmem:[%s3791 + $0x4] sm:$0xf]
      %v3794 = vld [vmem:[%s3791 + $0x8] sm:$0x1]
      %3795 = vst [vmem:[#allocation2] sm:$0xf] %v3792
      %3796 = vst [vmem:[#allocation2 + $0x4] sm:$0xf] %v3793
      %3797 = vst [vmem:[#allocation2 + $0x8] sm:$0x1] %v3794
      %s3798 = scalar_lea.vmem [#allocation2], 180
      %v3799 = vld [vmem:[%s3798] sm:$0xf]
      %v3800 = vld [vmem:[%s3798 + $0x4] sm:$0xf]
      %v3801 = vld [vmem:[%s3798 + $0x8] sm:$0x1]
      %s3802 = scalar_lea.vmem [#allocation2], 204
      %3803 = vst [vmem:[%s3802] sm:$0xf] %v3799
      %3804 = vst [vmem:[%s3802 + $0x4] sm:$0xf] %v3800
      %3805 = vst [vmem:[%s3802 + $0x8] sm:$0x1] %v3801
      %v3806 = vld [vmem:[%s2] sm:$0xf]
      %v3807 = vld [vmem:[%s2 + $0x4] sm:$0xf]
      %v3808 = vld [vmem:[%s2 + $0x8] sm:$0xf]
      %v3809 = vld [vmem:[%s2 + $0xc] sm:$0xf]
      %v3810 = vld [vmem:[%s2 + $0x10] sm:$0xf]
      %v3811 = vld [vmem:[%s2 + $0x14] sm:$0xf]
      %v3812 = vld [vmem:[%s2 + $0x18] sm:$0xf]
      %v3813 = vld [vmem:[%s2 + $0x1c] sm:$0xf]
      %v3814 = vld [vmem:[%s2 + $0x20] sm:$0xf]
      %v3815 = vld [vmem:[%s2 + $0x24] sm:$0xf]
      %v3816 = vld [vmem:[%s2 + $0x28] sm:$0xf]
      %v3817 = vld [vmem:[%s2 + $0x2c] sm:$0xf]
      %v3818 = vld [vmem:[%s2 + $0x30] sm:$0xf]
      %v3819 = vld [vmem:[%s2 + $0x34] sm:$0xf]
      %v3820 = vld [vmem:[%s2 + $0x38] sm:$0xf]
      %v3821 = vld [vmem:[%s2 + $0x3c] sm:$0xf]
      %v3822 = vld [vmem:[%s2 + $0x40] sm:$0xf]
      %v3823 = vld [vmem:[%s2 + $0x44] sm:$0xf]
      %v3824 = vld [vmem:[%s2 + $0x48] sm:$0xf]
      %v3825 = vld [vmem:[%s2 + $0x4c] sm:$0xf]
      %v3826 = vld [vmem:[%s2 + $0x50] sm:$0xf]
      %v3827 = vld [vmem:[%s2 + $0x54] sm:$0xf]
      %v3828 = vld [vmem:[%s2 + $0x58] sm:$0xf]
      %v3829 = vld [vmem:[%s2 + $0x5c] sm:$0xf]
      %v3830 = vld [vmem:[%s2 + $0x60] sm:$0xf]
      %v3831 = vld [vmem:[%s2 + $0x64] sm:$0xf]
      %v3832 = vld [vmem:[%s2 + $0x68] sm:$0xf]
      %v3833 = vld [vmem:[%s2 + $0x6c] sm:$0xf]
      %v3834 = vld [vmem:[%s2 + $0x70] sm:$0xf]
      %v3835 = vld [vmem:[%s2 + $0x74] sm:$0xf]
      %v3836 = vld [vmem:[%s2 + $0x78] sm:$0xf]
      %v3837 = vld [vmem:[%s2 + $0x7c] sm:$0xf]
      %v3838 = vld [vmem:[%s2 + $0x80] sm:$0xf]
      %v3839 = vld [vmem:[%s2 + $0x84] sm:$0xf]
      %v3840 = vld [vmem:[%s2 + $0x88] sm:$0xf]
      %v3841 = vld [vmem:[%s2 + $0x8c] sm:$0xf]
      %v3842 = vld [vmem:[%s2 + $0x90] sm:$0xf]
      %v3843 = vld [vmem:[%s2 + $0x94] sm:$0xf]
      %v3844 = vld [vmem:[%s2 + $0x98] sm:$0xf]
      %v3845 = vld [vmem:[%s2 + $0x9c] sm:$0xf]
      %v3846 = vld [vmem:[%s2 + $0xa0] sm:$0xf]
      %v3847 = vld [vmem:[%s2 + $0xa4] sm:$0xf]
      %v3848 = vld [vmem:[%s2 + $0xa8] sm:$0xf]
      %v3849 = vld [vmem:[%s2 + $0xac] sm:$0xf]
      %v3850 = vld [vmem:[%s2 + $0xb0] sm:$0xf]
      %v3851 = vld [vmem:[%s2 + $0xb4] sm:$0xf]
      %v3852 = vld [vmem:[%s2 + $0xb8] sm:$0xf]
      %v3853 = vld [vmem:[%s2 + $0xbc] sm:$0xf]
      %v3854 = vld [vmem:[%s2 + $0xc0] sm:$0xf]
      %v3855 = vld [vmem:[%s2 + $0xc4] sm:$0xf]
      %v3856 = vld [vmem:[%s2 + $0xc8] sm:$0xf]
      %v3857 = vld [vmem:[%s2 + $0xcc] sm:$0xf]
      %v3858 = vld [vmem:[%s2 + $0xd0] sm:$0xf]
      %v3859 = vld [vmem:[%s2 + $0xd4] sm:$0xf]
      %v3860 = vld [vmem:[%s2 + $0xd8] sm:$0xf]
      %v3861 = vld [vmem:[%s2 + $0xdc] sm:$0xf]
      %v3862 = vld [vmem:[%s2 + $0xe0] sm:$0xf]
      %v3863 = vld [vmem:[%s2 + $0xe4] sm:$0xf]
      %v3864 = vld [vmem:[%s2 + $0xe8] sm:$0xf]
      %v3865 = vld [vmem:[%s2 + $0xec] sm:$0xf]
      %v3866 = vld [vmem:[%s2 + $0xf0] sm:$0xf]
      %v3867 = vld [vmem:[%s2 + $0xf4] sm:$0xf]
      %v3868 = vld [vmem:[%s2 + $0xf8] sm:$0xf]
      %v3869 = vld [vmem:[%s2 + $0xfc] sm:$0xf]
      %v3870 = vld [vmem:[%s2 + $0x100] sm:$0xf]
      %v3871 = vld [vmem:[%s2 + $0x104] sm:$0xf]
      %v3872 = vld [vmem:[%s2 + $0x108] sm:$0xf]
      %v3873 = vld [vmem:[%s2 + $0x10c] sm:$0xf]
      %v3874 = vld [vmem:[%s2 + $0x110] sm:$0xf]
      %v3875 = vld [vmem:[%s2 + $0x114] sm:$0xf]
      %v3876 = vld [vmem:[%s2 + $0x118] sm:$0xf]
      %v3877 = vld [vmem:[%s2 + $0x11c] sm:$0xf]
      %v3878 = vld [vmem:[%s2 + $0x120] sm:$0xf]
      %v3879 = vld [vmem:[%s2 + $0x124] sm:$0xf]
      %v3880 = vld [vmem:[%s2 + $0x128] sm:$0xf]
      %v3881 = vld [vmem:[%s2 + $0x12c] sm:$0xf]
      %v3882 = vld [vmem:[%s2 + $0x130] sm:$0xf]
      %v3883 = vld [vmem:[%s2 + $0x134] sm:$0xf]
      %v3884 = vld [vmem:[%s2 + $0x138] sm:$0xf]
      %v3885 = vld [vmem:[%s2 + $0x13c] sm:$0xf]
      %v3886 = vld [vmem:[%s2 + $0x140] sm:$0xf]
      %v3887 = vld [vmem:[%s2 + $0x144] sm:$0xf]
      %v3888 = vld [vmem:[%s2 + $0x148] sm:$0xf]
      %v3889 = vld [vmem:[%s2 + $0x14c] sm:$0xf]
      %v3890 = vld [vmem:[%s2 + $0x150] sm:$0xf]
      %v3891 = vld [vmem:[%s2 + $0x154] sm:$0xf]
      %v3892 = vld [vmem:[%s2 + $0x158] sm:$0xf]
      %v3893 = vld [vmem:[%s2 + $0x15c] sm:$0xf]
      %v3894 = vld [vmem:[%s2 + $0x160] sm:$0xf]
      %v3895 = vld [vmem:[%s2 + $0x164] sm:$0xf]
      %v3896 = vld [vmem:[%s2 + $0x168] sm:$0xf]
      %v3897 = vld [vmem:[%s2 + $0x16c] sm:$0xf]
      %v3898 = vld [vmem:[%s2 + $0x170] sm:$0xf]
      %v3899 = vld [vmem:[%s2 + $0x174] sm:$0xf]
      %v3900 = vld [vmem:[%s2 + $0x178] sm:$0xf]
      %v3901 = vld [vmem:[%s2 + $0x17c] sm:$0xf]
      %v3902 = vld [vmem:[%s2 + $0x180] sm:$0xf]
      %v3903 = vld [vmem:[%s2 + $0x184] sm:$0xf]
      %v3904 = vld [vmem:[%s2 + $0x188] sm:$0xf]
      %v3905 = vld [vmem:[%s2 + $0x18c] sm:$0xf]
      %v3906 = vld [vmem:[%s2 + $0x190] sm:$0xf]
      %v3907 = vld [vmem:[%s2 + $0x194] sm:$0xf]
      %v3908 = vld [vmem:[%s2 + $0x198] sm:$0xf]
      %v3909 = vld [vmem:[%s2 + $0x19c] sm:$0xf]
      %v3910 = vld [vmem:[%s2 + $0x1a0] sm:$0xf]
      %v3911 = vld [vmem:[%s2 + $0x1a4] sm:$0xf]
      %v3912 = vld [vmem:[%s2 + $0x1a8] sm:$0xf]
      %v3913 = vld [vmem:[%s2 + $0x1ac] sm:$0xf]
      %v3914 = vld [vmem:[%s2 + $0x1b0] sm:$0xf]
      %v3915 = vld [vmem:[%s2 + $0x1b4] sm:$0xf]
      %v3916 = vld [vmem:[%s2 + $0x1b8] sm:$0xf]
      %v3917 = vld [vmem:[%s2 + $0x1bc] sm:$0xf]
      %v3918 = vld [vmem:[%s2 + $0x1c0] sm:$0xf]
      %v3919 = vld [vmem:[%s2 + $0x1c4] sm:$0xf]
      %v3920 = vld [vmem:[%s2 + $0x1c8] sm:$0xf]
      %v3921 = vld [vmem:[%s2 + $0x1cc] sm:$0xf]
      %v3922 = vld [vmem:[%s2 + $0x1d0] sm:$0xf]
      %v3923 = vld [vmem:[%s2 + $0x1d4] sm:$0xf]
      %v3924 = vld [vmem:[%s2 + $0x1d8] sm:$0xf]
      %v3925 = vld [vmem:[%s2 + $0x1dc] sm:$0xf]
      %v3926 = vld [vmem:[%s2 + $0x1e0] sm:$0xf]
      %v3927 = vld [vmem:[%s2 + $0x1e4] sm:$0xf]
      %v3928 = vld [vmem:[%s2 + $0x1e8] sm:$0xf]
      %v3929 = vld [vmem:[%s2 + $0x1ec] sm:$0xf]
      %v3930 = vld [vmem:[%s2 + $0x1f0] sm:$0xf]
      %v3931 = vld [vmem:[%s2 + $0x1f4] sm:$0xf]
      %v3932 = vld [vmem:[%s2 + $0x1f8] sm:$0xf]
      %v3933 = vld [vmem:[%s2 + $0x1fc] sm:$0xf]
      %v3934 = vld [vmem:[%s2 + $0x200] sm:$0xf]
      %v3935 = vld [vmem:[%s2 + $0x204] sm:$0xf]
      %v3936 = vld [vmem:[%s2 + $0x208] sm:$0xf]
      %v3937 = vld [vmem:[%s2 + $0x20c] sm:$0xf]
      %v3938 = vld [vmem:[%s2 + $0x210] sm:$0xf]
      %v3939 = vld [vmem:[%s2 + $0x214] sm:$0xf]
      %v3940 = vld [vmem:[%s2 + $0x218] sm:$0xf]
      %v3941 = vld [vmem:[%s2 + $0x21c] sm:$0xf]
      %v3942 = vld [vmem:[%s2 + $0x220] sm:$0xf]
      %v3943 = vld [vmem:[%s2 + $0x224] sm:$0xf]
      %v3944 = vld [vmem:[%s2 + $0x228] sm:$0xf]
      %v3945 = vld [vmem:[%s2 + $0x22c] sm:$0xf]
      %v3946 = vld [vmem:[%s2 + $0x230] sm:$0xf]
      %v3947 = vld [vmem:[%s2 + $0x234] sm:$0xf]
      %v3948 = vld [vmem:[%s2 + $0x238] sm:$0xf]
      %v3949 = vld [vmem:[%s2 + $0x23c] sm:$0xf]
      %v3950 = vld [vmem:[#allocation2] sm:$0xf]
      %v3951 = vld [vmem:[#allocation2 + $0x4] sm:$0xf]
      %v3952 = vld [vmem:[#allocation2 + $0xc] sm:$0xf]
      %v3953 = vld [vmem:[#allocation2 + $0x10] sm:$0xf]
      %v3954 = vld [vmem:[#allocation2 + $0x18] sm:$0xf]
      %v3955 = vld [vmem:[#allocation2 + $0x1c] sm:$0xf]
      %v3956 = vld [vmem:[#allocation2 + $0x24] sm:$0xf]
      %v3957 = vld [vmem:[#allocation2 + $0x28] sm:$0xf]
      %v3958 = vld [vmem:[#allocation2 + $0x30] sm:$0xf]
      %v3959 = vld [vmem:[#allocation2 + $0x34] sm:$0xf]
      %v3960 = vld [vmem:[#allocation2 + $0x3c] sm:$0xf]
      %v3961 = vld [vmem:[#allocation2 + $0x40] sm:$0xf]
      %v3962 = vld [vmem:[#allocation2 + $0x48] sm:$0xf]
      %v3963 = vld [vmem:[#allocation2 + $0x4c] sm:$0xf]
      %v3964 = vld [vmem:[#allocation2 + $0x54] sm:$0xf]
      %v3965 = vld [vmem:[#allocation2 + $0x58] sm:$0xf]
      %v3966 = vld [vmem:[#allocation2 + $0x60] sm:$0xf]
      %v3967 = vld [vmem:[#allocation2 + $0x64] sm:$0xf]
      %v3968 = vld [vmem:[#allocation2 + $0x6c] sm:$0xf]
      %v3969 = vld [vmem:[#allocation2 + $0x70] sm:$0xf]
      %v3970 = vld [vmem:[#allocation2 + $0x78] sm:$0xf]
      %v3971 = vld [vmem:[#allocation2 + $0x7c] sm:$0xf]
      %v3972 = vld [vmem:[#allocation2 + $0x84] sm:$0xf]
      %v3973 = vld [vmem:[#allocation2 + $0x88] sm:$0xf]
      %v3974 = vld [vmem:[#allocation2 + $0x90] sm:$0xf]
      %v3975 = vld [vmem:[#allocation2 + $0x94] sm:$0xf]
      %v3976 = vld [vmem:[#allocation2 + $0x9c] sm:$0xf]
      %v3977 = vld [vmem:[#allocation2 + $0xa0] sm:$0xf]
      %v3978 = vld [vmem:[#allocation2 + $0xa8] sm:$0xf]
      %v3979 = vld [vmem:[#allocation2 + $0xac] sm:$0xf]
      %v3980 = vld [vmem:[#allocation2 + $0xb4] sm:$0xf]
      %v3981 = vld [vmem:[#allocation2 + $0xb8] sm:$0xf]
      %v3982 = vld [vmem:[#allocation2 + $0x8] sm:$0x1]
      %v3983 = vld [vmem:[#allocation2 + $0x14] sm:$0x1]
      %v3984 = vld [vmem:[#allocation2 + $0x20] sm:$0x1]
      %v3985 = vld [vmem:[#allocation2 + $0x2c] sm:$0x1]
      %v3986 = vld [vmem:[#allocation2 + $0x38] sm:$0x1]
      %v3987 = vld [vmem:[#allocation2 + $0x44] sm:$0x1]
      %v3988 = vld [vmem:[#allocation2 + $0x50] sm:$0x1]
      %v3989 = vld [vmem:[#allocation2 + $0x5c] sm:$0x1]
      %v3990 = vld [vmem:[#allocation2 + $0x68] sm:$0x1]
      %v3991 = vld [vmem:[#allocation2 + $0x74] sm:$0x1]
      %v3992 = vld [vmem:[#allocation2 + $0x80] sm:$0x1]
      %v3993 = vld [vmem:[#allocation2 + $0x8c] sm:$0x1]
      %v3994 = vld [vmem:[#allocation2 + $0x98] sm:$0x1]
      %v3995 = vld [vmem:[#allocation2 + $0xa4] sm:$0x1]
      %v3996 = vld [vmem:[#allocation2 + $0xb0] sm:$0x1]
      %v3997 = vld [vmem:[#allocation2 + $0xbc] sm:$0x1]
      %vm3998 = vsmask.f32 3328
      %vm3999 = vsmask.f32 7440
      %vm4000 = vmor %vm3998, %vm3999
      %v4002 = vshrl.u32 %v3950, 16
      %v4004 = vrot.slane %v4002, 4
      %v4005 = vshll.u32 %v3950, 16
      %v4007 = vrot.slane %v4005, 5
      %v4008 = vor.u32 %v4004, %v4007
      %v4009 = vrot.slane %v4008, 4
      %v4011 = vshll.u32 %v3951, 16
      %v4013 = vrot.slane %v4011, 5
      %v4014 = vsel %vm4000, %v4009, %v4013
      %v4015 = vshrl.u32 %v3951, 16
      %v4017 = vrot.slane %v4015, 4
      %v4018 = vor.u32 %v4017, %v4013
      %v4019 = vrot.slane %v4018, 4
      %v4021 = vshll.u32 %v3982, 16
      %v4023 = vrot.slane %v4021, 5
      %v4024 = vsel %vm4000, %v4019, %v4023
      %v4026 = vshrl.u32 %v3952, 16
      %v4028 = vrot.slane %v4026, 4
      %v4029 = vshll.u32 %v3952, 16
      %v4031 = vrot.slane %v4029, 5
      %v4032 = vor.u32 %v4028, %v4031
      %v4033 = vrot.slane %v4032, 4
      %v4035 = vshll.u32 %v3953, 16
      %v4037 = vrot.slane %v4035, 5
      %v4038 = vsel %vm4000, %v4033, %v4037
      %v4039 = vshrl.u32 %v3953, 16
      %v4041 = vrot.slane %v4039, 4
      %v4042 = vor.u32 %v4041, %v4037
      %v4043 = vrot.slane %v4042, 4
      %v4045 = vshll.u32 %v3983, 16
      %v4047 = vrot.slane %v4045, 5
      %v4048 = vsel %vm4000, %v4043, %v4047
      %v4050 = vshrl.u32 %v3954, 16
      %v4052 = vrot.slane %v4050, 4
      %v4053 = vshll.u32 %v3954, 16
      %v4055 = vrot.slane %v4053, 5
      %v4056 = vor.u32 %v4052, %v4055
      %v4057 = vrot.slane %v4056, 4
      %v4059 = vshll.u32 %v3955, 16
      %v4061 = vrot.slane %v4059, 5
      %v4062 = vsel %vm4000, %v4057, %v4061
      %v4063 = vshrl.u32 %v3955, 16
      %v4065 = vrot.slane %v4063, 4
      %v4066 = vor.u32 %v4065, %v4061
      %v4067 = vrot.slane %v4066, 4
      %v4069 = vshll.u32 %v3984, 16
      %v4071 = vrot.slane %v4069, 5
      %v4072 = vsel %vm4000, %v4067, %v4071
      %v4074 = vshrl.u32 %v3956, 16
      %v4076 = vrot.slane %v4074, 4
      %v4077 = vshll.u32 %v3956, 16
      %v4079 = vrot.slane %v4077, 5
      %v4080 = vor.u32 %v4076, %v4079
      %v4081 = vrot.slane %v4080, 4
      %v4083 = vshll.u32 %v3957, 16
      %v4085 = vrot.slane %v4083, 5
      %v4086 = vsel %vm4000, %v4081, %v4085
      %v4087 = vshrl.u32 %v3957, 16
      %v4089 = vrot.slane %v4087, 4
      %v4090 = vor.u32 %v4089, %v4085
      %v4091 = vrot.slane %v4090, 4
      %v4093 = vshll.u32 %v3985, 16
      %v4095 = vrot.slane %v4093, 5
      %v4096 = vsel %vm4000, %v4091, %v4095
      %v4098 = vshrl.u32 %v3958, 16
      %v4100 = vrot.slane %v4098, 4
      %v4101 = vshll.u32 %v3958, 16
      %v4103 = vrot.slane %v4101, 5
      %v4104 = vor.u32 %v4100, %v4103
      %v4105 = vrot.slane %v4104, 4
      %v4107 = vshll.u32 %v3959, 16
      %v4109 = vrot.slane %v4107, 5
      %v4110 = vsel %vm4000, %v4105, %v4109
      %v4111 = vshrl.u32 %v3959, 16
      %v4113 = vrot.slane %v4111, 4
      %v4114 = vor.u32 %v4113, %v4109
      %v4115 = vrot.slane %v4114, 4
      %v4117 = vshll.u32 %v3986, 16
      %v4119 = vrot.slane %v4117, 5
      %v4120 = vsel %vm4000, %v4115, %v4119
      %v4122 = vshrl.u32 %v3960, 16
      %v4124 = vrot.slane %v4122, 4
      %v4125 = vshll.u32 %v3960, 16
      %v4127 = vrot.slane %v4125, 5
      %v4128 = vor.u32 %v4124, %v4127
      %v4129 = vrot.slane %v4128, 4
      %v4131 = vshll.u32 %v3961, 16
      %v4133 = vrot.slane %v4131, 5
      %v4134 = vsel %vm4000, %v4129, %v4133
      %v4135 = vshrl.u32 %v3961, 16
      %v4137 = vrot.slane %v4135, 4
      %v4138 = vor.u32 %v4137, %v4133
      %v4139 = vrot.slane %v4138, 4
      %v4141 = vshll.u32 %v3987, 16
      %v4143 = vrot.slane %v4141, 5
      %v4144 = vsel %vm4000, %v4139, %v4143
      %v4146 = vshrl.u32 %v3962, 16
      %v4148 = vrot.slane %v4146, 4
      %v4149 = vshll.u32 %v3962, 16
      %v4151 = vrot.slane %v4149, 5
      %v4152 = vor.u32 %v4148, %v4151
      %v4153 = vrot.slane %v4152, 4
      %v4155 = vshll.u32 %v3963, 16
      %v4157 = vrot.slane %v4155, 5
      %v4158 = vsel %vm4000, %v4153, %v4157
      %v4159 = vshrl.u32 %v3963, 16
      %v4161 = vrot.slane %v4159, 4
      %v4162 = vor.u32 %v4161, %v4157
      %v4163 = vrot.slane %v4162, 4
      %v4165 = vshll.u32 %v3988, 16
      %v4167 = vrot.slane %v4165, 5
      %v4168 = vsel %vm4000, %v4163, %v4167
      %v4170 = vshrl.u32 %v3964, 16
      %v4172 = vrot.slane %v4170, 4
      %v4173 = vshll.u32 %v3964, 16
      %v4175 = vrot.slane %v4173, 5
      %v4176 = vor.u32 %v4172, %v4175
      %v4177 = vrot.slane %v4176, 4
      %v4179 = vshll.u32 %v3965, 16
      %v4181 = vrot.slane %v4179, 5
      %v4182 = vsel %vm4000, %v4177, %v4181
      %v4183 = vshrl.u32 %v3965, 16
      %v4185 = vrot.slane %v4183, 4
      %v4186 = vor.u32 %v4185, %v4181
      %v4187 = vrot.slane %v4186, 4
      %v4189 = vshll.u32 %v3989, 16
      %v4191 = vrot.slane %v4189, 5
      %v4192 = vsel %vm4000, %v4187, %v4191
      %v4194 = vshrl.u32 %v3966, 16
      %v4196 = vrot.slane %v4194, 4
      %v4197 = vshll.u32 %v3966, 16
      %v4199 = vrot.slane %v4197, 5
      %v4200 = vor.u32 %v4196, %v4199
      %v4201 = vrot.slane %v4200, 4
      %v4203 = vshll.u32 %v3967, 16
      %v4205 = vrot.slane %v4203, 5
      %v4206 = vsel %vm4000, %v4201, %v4205
      %v4207 = vshrl.u32 %v3967, 16
      %v4209 = vrot.slane %v4207, 4
      %v4210 = vor.u32 %v4209, %v4205
      %v4211 = vrot.slane %v4210, 4
      %v4213 = vshll.u32 %v3990, 16
      %v4215 = vrot.slane %v4213, 5
      %v4216 = vsel %vm4000, %v4211, %v4215
      %v4218 = vshrl.u32 %v3968, 16
      %v4220 = vrot.slane %v4218, 4
      %v4221 = vshll.u32 %v3968, 16
      %v4223 = vrot.slane %v4221, 5
      %v4224 = vor.u32 %v4220, %v4223
      %v4225 = vrot.slane %v4224, 4
      %v4227 = vshll.u32 %v3969, 16
      %v4229 = vrot.slane %v4227, 5
      %v4230 = vsel %vm4000, %v4225, %v4229
      %v4231 = vshrl.u32 %v3969, 16
      %v4233 = vrot.slane %v4231, 4
      %v4234 = vor.u32 %v4233, %v4229
      %v4235 = vrot.slane %v4234, 4
      %v4237 = vshll.u32 %v3991, 16
      %v4239 = vrot.slane %v4237, 5
      %v4240 = vsel %vm4000, %v4235, %v4239
      %v4242 = vshrl.u32 %v3970, 16
      %v4244 = vrot.slane %v4242, 4
      %v4245 = vshll.u32 %v3970, 16
      %v4247 = vrot.slane %v4245, 5
      %v4248 = vor.u32 %v4244, %v4247
      %v4249 = vrot.slane %v4248, 4
      %v4251 = vshll.u32 %v3971, 16
      %v4253 = vrot.slane %v4251, 5
      %v4254 = vsel %vm4000, %v4249, %v4253
      %v4255 = vshrl.u32 %v3971, 16
      %v4257 = vrot.slane %v4255, 4
      %v4258 = vor.u32 %v4257, %v4253
      %v4259 = vrot.slane %v4258, 4
      %v4261 = vshll.u32 %v3992, 16
      %v4263 = vrot.slane %v4261, 5
      %v4264 = vsel %vm4000, %v4259, %v4263
      %v4266 = vshrl.u32 %v3972, 16
      %v4268 = vrot.slane %v4266, 4
      %v4269 = vshll.u32 %v3972, 16
      %v4271 = vrot.slane %v4269, 5
      %v4272 = vor.u32 %v4268, %v4271
      %v4273 = vrot.slane %v4272, 4
      %v4275 = vshll.u32 %v3973, 16
      %v4277 = vrot.slane %v4275, 5
      %v4278 = vsel %vm4000, %v4273, %v4277
      %v4279 = vshrl.u32 %v3973, 16
      %v4281 = vrot.slane %v4279, 4
      %v4282 = vor.u32 %v4281, %v4277
      %v4283 = vrot.slane %v4282, 4
      %v4285 = vshll.u32 %v3993, 16
      %v4287 = vrot.slane %v4285, 5
      %v4288 = vsel %vm4000, %v4283, %v4287
      %v4290 = vshrl.u32 %v3974, 16
      %v4292 = vrot.slane %v4290, 4
      %v4293 = vshll.u32 %v3974, 16
      %v4295 = vrot.slane %v4293, 5
      %v4296 = vor.u32 %v4292, %v4295
      %v4297 = vrot.slane %v4296, 4
      %v4299 = vshll.u32 %v3975, 16
      %v4301 = vrot.slane %v4299, 5
      %v4302 = vsel %vm4000, %v4297, %v4301
      %v4303 = vshrl.u32 %v3975, 16
      %v4305 = vrot.slane %v4303, 4
      %v4306 = vor.u32 %v4305, %v4301
      %v4307 = vrot.slane %v4306, 4
      %v4309 = vshll.u32 %v3994, 16
      %v4311 = vrot.slane %v4309, 5
      %v4312 = vsel %vm4000, %v4307, %v4311
      %v4314 = vshrl.u32 %v3976, 16
      %v4316 = vrot.slane %v4314, 4
      %v4317 = vshll.u32 %v3976, 16
      %v4319 = vrot.slane %v4317, 5
      %v4320 = vor.u32 %v4316, %v4319
      %v4321 = vrot.slane %v4320, 4
      %v4323 = vshll.u32 %v3977, 16
      %v4325 = vrot.slane %v4323, 5
      %v4326 = vsel %vm4000, %v4321, %v4325
      %v4327 = vshrl.u32 %v3977, 16
      %v4329 = vrot.slane %v4327, 4
      %v4330 = vor.u32 %v4329, %v4325
      %v4331 = vrot.slane %v4330, 4
      %v4333 = vshll.u32 %v3995, 16
      %v4335 = vrot.slane %v4333, 5
      %v4336 = vsel %vm4000, %v4331, %v4335
      %v4338 = vshrl.u32 %v3978, 16
      %v4340 = vrot.slane %v4338, 4
      %v4341 = vshll.u32 %v3978, 16
      %v4343 = vrot.slane %v4341, 5
      %v4344 = vor.u32 %v4340, %v4343
      %v4345 = vrot.slane %v4344, 4
      %v4347 = vshll.u32 %v3979, 16
      %v4349 = vrot.slane %v4347, 5
      %v4350 = vsel %vm4000, %v4345, %v4349
      %v4351 = vshrl.u32 %v3979, 16
      %v4353 = vrot.slane %v4351, 4
      %v4354 = vor.u32 %v4353, %v4349
      %v4355 = vrot.slane %v4354, 4
      %v4357 = vshll.u32 %v3996, 16
      %v4359 = vrot.slane %v4357, 5
      %v4360 = vsel %vm4000, %v4355, %v4359
      %v4362 = vshrl.u32 %v3980, 16
      %v4364 = vrot.slane %v4362, 4
      %v4365 = vshll.u32 %v3980, 16
      %v4367 = vrot.slane %v4365, 5
      %v4368 = vor.u32 %v4364, %v4367
      %v4369 = vrot.slane %v4368, 4
      %v4371 = vshll.u32 %v3981, 16
      %v4373 = vrot.slane %v4371, 5
      %v4374 = vsel %vm4000, %v4369, %v4373
      %v4375 = vshrl.u32 %v3981, 16
      %v4377 = vrot.slane %v4375, 4
      %v4378 = vor.u32 %v4377, %v4373
      %v4379 = vrot.slane %v4378, 4
      %v4381 = vshll.u32 %v3997, 16
      %v4383 = vrot.slane %v4381, 5
      %v4384 = vsel %vm4000, %v4379, %v4383
      %v4385 = vunpack.c.l.b16 %v4014
      %v4386 = vunpack.c.l.b16 %v4024
      %v4387 = vunpack.c.l.b16 %v4038
      %v4388 = vunpack.c.l.b16 %v4048
      %v4389 = vunpack.c.l.b16 %v4062
      %v4390 = vunpack.c.l.b16 %v4072
      %v4391 = vunpack.c.l.b16 %v4086
      %v4392 = vunpack.c.l.b16 %v4096
      %v4393 = vunpack.c.l.b16 %v4110
      %v4394 = vunpack.c.l.b16 %v4120
      %v4395 = vunpack.c.l.b16 %v4134
      %v4396 = vunpack.c.l.b16 %v4144
      %v4397 = vunpack.c.l.b16 %v4158
      %v4398 = vunpack.c.l.b16 %v4168
      %v4399 = vunpack.c.l.b16 %v4182
      %v4400 = vunpack.c.l.b16 %v4192
      %v4401 = vunpack.c.l.b16 %v4206
      %v4402 = vunpack.c.l.b16 %v4216
      %v4403 = vunpack.c.l.b16 %v4230
      %v4404 = vunpack.c.l.b16 %v4240
      %v4405 = vunpack.c.l.b16 %v4254
      %v4406 = vunpack.c.l.b16 %v4264
      %v4407 = vunpack.c.l.b16 %v4278
      %v4408 = vunpack.c.l.b16 %v4288
      %v4409 = vunpack.c.l.b16 %v4302
      %v4410 = vunpack.c.l.b16 %v4312
      %v4411 = vunpack.c.l.b16 %v4326
      %v4412 = vunpack.c.l.b16 %v4336
      %v4413 = vunpack.c.l.b16 %v4350
      %v4414 = vunpack.c.l.b16 %v4360
      %v4415 = vunpack.c.l.b16 %v4374
      %v4416 = vunpack.c.l.b16 %v4384
      %v4417 = vpack.c.b16 %v4386, %v4385
      %v4418 = vpack.c.b16 %v4388, %v4387
      %v4419 = vpack.c.b16 %v4390, %v4389
      %v4420 = vpack.c.b16 %v4392, %v4391
      %v4421 = vpack.c.b16 %v4394, %v4393
      %v4422 = vpack.c.b16 %v4396, %v4395
      %v4423 = vpack.c.b16 %v4398, %v4397
      %v4424 = vpack.c.b16 %v4400, %v4399
      %v4425 = vpack.c.b16 %v4402, %v4401
      %v4426 = vpack.c.b16 %v4404, %v4403
      %v4427 = vpack.c.b16 %v4406, %v4405
      %v4428 = vpack.c.b16 %v4408, %v4407
      %v4429 = vpack.c.b16 %v4410, %v4409
      %v4430 = vpack.c.b16 %v4412, %v4411
      %v4431 = vpack.c.b16 %v4414, %v4413
      %v4432 = vpack.c.b16 %v4416, %v4415
      %v4465 = vunpack.c.l.b16 %v3822
      %v4466 = vunpack.c.l.b16 %v3823
      %v4467 = vunpack.c.l.b16 %v3824
      %v4468 = vunpack.c.l.b16 %v3825
      %v4469 = vunpack.c.l.b16 %v3826
      %v4470 = vunpack.c.l.b16 %v3827
      %v4471 = vunpack.c.l.b16 %v3828
      %v4472 = vunpack.c.l.b16 %v3829
      %v4473 = vunpack.c.l.b16 %v3830
      %v4474 = vunpack.c.l.b16 %v3831
      %v4475 = vunpack.c.l.b16 %v3832
      %v4476 = vunpack.c.l.b16 %v3833
      %v4477 = vunpack.c.l.b16 %v3834
      %v4478 = vunpack.c.l.b16 %v3835
      %v4479 = vunpack.c.l.b16 %v3836
      %v4480 = vunpack.c.l.b16 %v3837
      %v4481 = vpack.c.b16 %v4466, %v4465
      %v4482 = vpack.c.b16 %v4468, %v4467
      %v4483 = vpack.c.b16 %v4470, %v4469
      %v4484 = vpack.c.b16 %v4472, %v4471
      %v4485 = vpack.c.b16 %v4474, %v4473
      %v4486 = vpack.c.b16 %v4476, %v4475
      %v4487 = vpack.c.b16 %v4478, %v4477
      %v4488 = vpack.c.b16 %v4480, %v4479
      %4497 = vmatprep.subr.bf16.mxu0 0
      %4498 = vmatpush1.bf16.msra.mxu0 %v4481
      %4499 = vmatprep.subr.bf16.mxu0 0
      %4500 = vmatpush1.bf16.msra.mxu0 %v4482
      %4501 = vmatprep.subr.bf16.mxu0 0
      %4502 = vmatpush1.bf16.msra.mxu0 %v4483
      %4503 = vmatprep.subr.bf16.mxu0 0
      %4504 = vmatpush1.bf16.msra.mxu0 %v4484
      %4505 = vmatprep.subr.bf16.mxu0 0
      %4506 = vmatpush1.bf16.msra.mxu0 %v4485
      %4507 = vmatprep.subr.bf16.mxu0 0
      %4508 = vmatpush1.bf16.msra.mxu0 %v4486
      %4509 = vmatprep.subr.bf16.mxu0 0
      %4510 = vmatpush1.bf16.msra.mxu0 %v4487
      %4511 = vmatprep.subr.bf16.mxu0 0
      %4512 = vmatpush1.bf16.msra.mxu0 %v4488
      %4513 = vmatprep.subr.bf16.mxu0 0
      %4514 = vmatpush1.bf16.msra.mxu0 0
      %4515 = vmatprep.subr.bf16.mxu0 0
      %4516 = vmatpush1.bf16.msra.mxu0 0
      %4517 = vmatprep.subr.bf16.mxu0 0
      %4518 = vmatpush1.bf16.msra.mxu0 0
      %4519 = vmatprep.subr.bf16.mxu0 0
      %4520 = vmatpush1.bf16.msra.mxu0 0
      %4521 = vmatprep.subr.bf16.mxu0 0
      %4522 = vmatpush1.bf16.msra.mxu0 0
      %4523 = vmatprep.subr.bf16.mxu0 0
      %4524 = vmatpush1.bf16.msra.mxu0 0
      %4525 = vmatprep.subr.bf16.mxu0 0
      %4526 = vmatpush1.bf16.msra.mxu0 0
      %4527 = vmatprep.subr.bf16.mxu0 0
      %4528 = vmatpush1.bf16.msra.mxu0 0
      %4529 = vmatprep.mubr.bf16.mxu0 0
      %4530 = vmatmul.mubr.bf16.gmra.mrb[0].mxu0 %v4417
      %v4531 = vpop.f32.mrb[0].mxu0
      %v4532 = vadd.f32 0.0, %v4531
      %v4533 = vpop.f32.mrb[0].mxu0
      %v4534 = vpop.f32.mrb[0].mxu0
      %v4535 = vadd.f32 0.0, %v4534
      %v4536 = vpop.f32.mrb[0].mxu0
      %4537 = vmatprep.mubr.bf16.mxu0 0
      %4538 = vmatmul.mubr.bf16.gmra.mrb[0].mxu0 %v4418
      %v4539 = vpop.f32.mrb[0].mxu0
      %v4540 = vadd.f32 0.0, %v4539
      %v4541 = vpop.f32.mrb[0].mxu0
      %v4542 = vpop.f32.mrb[0].mxu0
      %v4543 = vadd.f32 0.0, %v4542
      %v4544 = vpop.f32.mrb[0].mxu0
      %4545 = vmatprep.mubr.bf16.mxu0 0
      %4546 = vmatmul.mubr.bf16.gmra.mrb[0].mxu0 %v4419
      %v4547 = vpop.f32.mrb[0].mxu0
      %v4548 = vadd.f32 0.0, %v4547
      %v4549 = vpop.f32.mrb[0].mxu0
      %v4550 = vpop.f32.mrb[0].mxu0
      %v4551 = vadd.f32 0.0, %v4550
      %v4552 = vpop.f32.mrb[0].mxu0
      %4553 = vmatprep.mubr.bf16.mxu0 0
      %4554 = vmatmul.mubr.bf16.gmra.mrb[0].mxu0 %v4420
      %v4555 = vpop.f32.mrb[0].mxu0
      %v4556 = vadd.f32 0.0, %v4555
      %v4557 = vpop.f32.mrb[0].mxu0
      %v4558 = vpop.f32.mrb[0].mxu0
      %v4559 = vadd.f32 0.0, %v4558
      %v4560 = vpop.f32.mrb[0].mxu0
      %4561 = vmatprep.mubr.bf16.mxu0 0
      %4562 = vmatmul.mubr.bf16.gmra.mrb[0].mxu0 %v4421
      %v4563 = vpop.f32.mrb[0].mxu0
      %v4564 = vadd.f32 0.0, %v4563
      %v4565 = vpop.f32.mrb[0].mxu0
      %v4566 = vpop.f32.mrb[0].mxu0
      %v4567 = vadd.f32 0.0, %v4566
      %v4568 = vpop.f32.mrb[0].mxu0
      %4569 = vmatprep.mubr.bf16.mxu0 0
      %4570 = vmatmul.mubr.bf16.gmra.mrb[0].mxu0 %v4422
      %v4571 = vpop.f32.mrb[0].mxu0
      %v4572 = vadd.f32 0.0, %v4571
      %v4573 = vpop.f32.mrb[0].mxu0
      %v4574 = vpop.f32.mrb[0].mxu0
      %v4575 = vadd.f32 0.0, %v4574
      %v4576 = vpop.f32.mrb[0].mxu0
      %4577 = vmatprep.mubr.bf16.mxu0 0
      %4578 = vmatmul.mubr.bf16.gmra.mrb[0].mxu0 %v4423
      %v4579 = vpop.f32.mrb[0].mxu0
      %v4580 = vadd.f32 0.0, %v4579
      %v4581 = vpop.f32.mrb[0].mxu0
      %v4582 = vpop.f32.mrb[0].mxu0
      %v4583 = vadd.f32 0.0, %v4582
      %v4584 = vpop.f32.mrb[0].mxu0
      %4585 = vmatprep.mubr.bf16.mxu0 0
      %4586 = vmatmul.mubr.bf16.gmra.mrb[0].mxu0 %v4424
      %v4587 = vpop.f32.mrb[0].mxu0
      %v4588 = vadd.f32 0.0, %v4587
      %v4589 = vpop.f32.mrb[0].mxu0
      %v4590 = vpop.f32.mrb[0].mxu0
      %v4591 = vadd.f32 0.0, %v4590
      %v4592 = vpop.f32.mrb[0].mxu0
      %4593 = vmatprep.mubr.bf16.mxu0 0
      %4594 = vmatmul.mubr.bf16.gmra.mrb[0].mxu0 %v4425
      %v4595 = vpop.f32.mrb[0].mxu0
      %v4596 = vadd.f32 0.0, %v4595
      %v4597 = vpop.f32.mrb[0].mxu0
      %v4598 = vpop.f32.mrb[0].mxu0
      %v4599 = vadd.f32 0.0, %v4598
      %v4600 = vpop.f32.mrb[0].mxu0
      %4601 = vmatprep.mubr.bf16.mxu0 0
      %4602 = vmatmul.mubr.bf16.gmra.mrb[0].mxu0 %v4426
      %v4603 = vpop.f32.mrb[0].mxu0
      %v4604 = vadd.f32 0.0, %v4603
      %v4605 = vpop.f32.mrb[0].mxu0
      %v4606 = vpop.f32.mrb[0].mxu0
      %v4607 = vadd.f32 0.0, %v4606
      %v4608 = vpop.f32.mrb[0].mxu0
      %4609 = vmatprep.mubr.bf16.mxu0 0
      %4610 = vmatmul.mubr.bf16.gmra.mrb[0].mxu0 %v4427
      %v4611 = vpop.f32.mrb[0].mxu0
      %v4612 = vadd.f32 0.0, %v4611
      %v4613 = vpop.f32.mrb[0].mxu0
      %v4614 = vpop.f32.mrb[0].mxu0
      %v4615 = vadd.f32 0.0, %v4614
      %v4616 = vpop.f32.mrb[0].mxu0
      %4617 = vmatprep.mubr.bf16.mxu0 0
      %4618 = vmatmul.mubr.bf16.gmra.mrb[0].mxu0 %v4428
      %v4619 = vpop.f32.mrb[0].mxu0
      %v4620 = vadd.f32 0.0, %v4619
      %v4621 = vpop.f32.mrb[0].mxu0
      %v4622 = vpop.f32.mrb[0].mxu0
      %v4623 = vadd.f32 0.0, %v4622
      %v4624 = vpop.f32.mrb[0].mxu0
      %4625 = vmatprep.mubr.bf16.mxu0 0
      %4626 = vmatmul.mubr.bf16.gmra.mrb[0].mxu0 %v4429
      %v4627 = vpop.f32.mrb[0].mxu0
      %v4628 = vadd.f32 0.0, %v4627
      %v4629 = vpop.f32.mrb[0].mxu0
      %v4630 = vpop.f32.mrb[0].mxu0
      %v4631 = vadd.f32 0.0, %v4630
      %v4632 = vpop.f32.mrb[0].mxu0
      %4633 = vmatprep.mubr.bf16.mxu0 0
      %4634 = vmatmul.mubr.bf16.gmra.mrb[0].mxu0 %v4430
      %v4635 = vpop.f32.mrb[0].mxu0
      %v4636 = vadd.f32 0.0, %v4635
      %v4637 = vpop.f32.mrb[0].mxu0
      %v4638 = vpop.f32.mrb[0].mxu0
      %v4639 = vadd.f32 0.0, %v4638
      %v4640 = vpop.f32.mrb[0].mxu0
      %4641 = vmatprep.mubr.bf16.mxu0 0
      %4642 = vmatmul.mubr.bf16.gmra.mrb[0].mxu0 %v4431
      %v4643 = vpop.f32.mrb[0].mxu0
      %v4644 = vadd.f32 0.0, %v4643
      %v4645 = vpop.f32.mrb[0].mxu0
      %v4646 = vpop.f32.mrb[0].mxu0
      %v4647 = vadd.f32 0.0, %v4646
      %v4648 = vpop.f32.mrb[0].mxu0
      %4649 = vmatprep.mubr.bf16.mxu0 0
      %4650 = vmatmul.mubr.bf16.gmra.mrb[0].mxu0 %v4432
      %v4651 = vpop.f32.mrb[0].mxu0
      %v4652 = vadd.f32 0.0, %v4651
      %v4653 = vpop.f32.mrb[0].mxu0
      %v4654 = vpop.f32.mrb[0].mxu0
      %v4655 = vadd.f32 0.0, %v4654
      %v4656 = vpop.f32.mrb[0].mxu0
      %4657 = vdwg.mxu0
      %v4690 = vunpack.c.l.b16 %v3950
      %v4691 = vunpack.c.l.b16 %v3951
      %v4692 = vunpack.c.l.b16 %v3952
      %v4693 = vunpack.c.l.b16 %v3953
      %v4694 = vunpack.c.l.b16 %v3954
      %v4695 = vunpack.c.l.b16 %v3955
      %v4696 = vunpack.c.l.b16 %v3956
      %v4697 = vunpack.c.l.b16 %v3957
      %v4698 = vunpack.c.l.b16 %v3958
      %v4699 = vunpack.c.l.b16 %v3959
      %v4700 = vunpack.c.l.b16 %v3960
      %v4701 = vunpack.c.l.b16 %v3961
      %v4702 = vunpack.c.l.b16 %v3962
      %v4703 = vunpack.c.l.b16 %v3963
      %v4704 = vunpack.c.l.b16 %v3964
      %v4705 = vunpack.c.l.b16 %v3965
      %v4706 = vunpack.c.l.b16 %v3966
      %v4707 = vunpack.c.l.b16 %v3967
      %v4708 = vunpack.c.l.b16 %v3968
      %v4709 = vunpack.c.l.b16 %v3969
      %v4710 = vunpack.c.l.b16 %v3970
      %v4711 = vunpack.c.l.b16 %v3971
      %v4712 = vunpack.c.l.b16 %v3972
      %v4713 = vunpack.c.l.b16 %v3973
      %v4714 = vunpack.c.l.b16 %v3974
      %v4715 = vunpack.c.l.b16 %v3975
      %v4716 = vunpack.c.l.b16 %v3976
      %v4717 = vunpack.c.l.b16 %v3977
      %v4718 = vunpack.c.l.b16 %v3978
      %v4719 = vunpack.c.l.b16 %v3979
      %v4720 = vunpack.c.l.b16 %v3980
      %v4721 = vunpack.c.l.b16 %v3981
      %v4722 = vpack.c.b16 %v4691, %v4690
      %v4723 = vpack.c.b16 %v4693, %v4692
      %v4724 = vpack.c.b16 %v4695, %v4694
      %v4725 = vpack.c.b16 %v4697, %v4696
      %v4726 = vpack.c.b16 %v4699, %v4698
      %v4727 = vpack.c.b16 %v4701, %v4700
      %v4728 = vpack.c.b16 %v4703, %v4702
      %v4729 = vpack.c.b16 %v4705, %v4704
      %v4730 = vpack.c.b16 %v4707, %v4706
      %v4731 = vpack.c.b16 %v4709, %v4708
      %v4732 = vpack.c.b16 %v4711, %v4710
      %v4733 = vpack.c.b16 %v4713, %v4712
      %v4734 = vpack.c.b16 %v4715, %v4714
      %v4735 = vpack.c.b16 %v4717, %v4716
      %v4736 = vpack.c.b16 %v4719, %v4718
      %v4737 = vpack.c.b16 %v4721, %v4720
      %v4770 = vunpack.c.l.b16 %v3806
      %v4771 = vunpack.c.l.b16 %v3807
      %v4772 = vunpack.c.l.b16 %v3808
      %v4773 = vunpack.c.l.b16 %v3809
      %v4774 = vunpack.c.l.b16 %v3810
      %v4775 = vunpack.c.l.b16 %v3811
      %v4776 = vunpack.c.l.b16 %v3812
      %v4777 = vunpack.c.l.b16 %v3813
      %v4778 = vunpack.c.l.b16 %v3814
      %v4779 = vunpack.c.l.b16 %v3815
      %v4780 = vunpack.c.l.b16 %v3816
      %v4781 = vunpack.c.l.b16 %v3817
      %v4782 = vunpack.c.l.b16 %v3818
      %v4783 = vunpack.c.l.b16 %v3819
      %v4784 = vunpack.c.l.b16 %v3820
      %v4785 = vunpack.c.l.b16 %v3821
      %v4786 = vpack.c.b16 %v4771, %v4770
      %v4787 = vpack.c.b16 %v4773, %v4772
      %v4788 = vpack.c.b16 %v4775, %v4774
      %v4789 = vpack.c.b16 %v4777, %v4776
      %v4790 = vpack.c.b16 %v4779, %v4778
      %v4791 = vpack.c.b16 %v4781, %v4780
      %v4792 = vpack.c.b16 %v4783, %v4782
      %v4793 = vpack.c.b16 %v4785, %v4784
      %4802 = vmatprep.subr.bf16.mxu0 0
      %4803 = vmatpush1.bf16.msra.mxu0 %v4786
      %4804 = vmatprep.subr.bf16.mxu0 0
      %4805 = vmatpush1.bf16.msra.mxu0 %v4787
      %4806 = vmatprep.subr.bf16.mxu0 0
      %4807 = vmatpush1.bf16.msra.mxu0 %v4788
      %4808 = vmatprep.subr.bf16.mxu0 0
      %4809 = vmatpush1.bf16.msra.mxu0 %v4789
      %4810 = vmatprep.subr.bf16.mxu0 0
      %4811 = vmatpush1.bf16.msra.mxu0 %v4790
      %4812 = vmatprep.subr.bf16.mxu0 0
      %4813 = vmatpush1.bf16.msra.mxu0 %v4791
      %4814 = vmatprep.subr.bf16.mxu0 0
      %4815 = vmatpush1.bf16.msra.mxu0 %v4792
      %4816 = vmatprep.subr.bf16.mxu0 0
      %4817 = vmatpush1.bf16.msra.mxu0 %v4793
      %4818 = vmatprep.subr.bf16.mxu0 0
      %4819 = vmatpush1.bf16.msra.mxu0 0
      %4820 = vmatprep.subr.bf16.mxu0 0
      %4821 = vmatpush1.bf16.msra.mxu0 0
      %4822 = vmatprep.subr.bf16.mxu0 0
      %4823 = vmatpush1.bf16.msra.mxu0 0
      %4824 = vmatprep.subr.bf16.mxu0 0
      %4825 = vmatpush1.bf16.msra.mxu0 0
      %4826 = vmatprep.subr.bf16.mxu0 0
      %4827 = vmatpush1.bf16.msra.mxu0 0
      %4828 = vmatprep.subr.bf16.mxu0 0
      %4829 = vmatpush1.bf16.msra.mxu0 0
      %4830 = vmatprep.subr.bf16.mxu0 0
      %4831 = vmatpush1.bf16.msra.mxu0 0
      %4832 = vmatprep.subr.bf16.mxu0 0
      %4833 = vmatpush1.bf16.msra.mxu0 0
      %4834 = vmatprep.mubr.bf16.mxu0 0
      %4835 = vmatmul.mubr.bf16.gmra.mrb[0].mxu0 %v4722
      %v4836 = vpop.f32.mrb[0].mxu0
      %v4837 = vadd.f32 %v4532, %v4836
      %v4838 = vpop.f32.mrb[0].mxu0
      %v4839 = vpop.f32.mrb[0].mxu0
      %v4840 = vadd.f32 %v4535, %v4839
      %v4841 = vpop.f32.mrb[0].mxu0
      %4842 = vmatprep.mubr.bf16.mxu0 0
      %4843 = vmatmul.mubr.bf16.gmra.mrb[0].mxu0 %v4723
      %v4844 = vpop.f32.mrb[0].mxu0
      %v4845 = vadd.f32 %v4540, %v4844
      %v4846 = vpop.f32.mrb[0].mxu0
      %v4847 = vpop.f32.mrb[0].mxu0
      %v4848 = vadd.f32 %v4543, %v4847
      %v4849 = vpop.f32.mrb[0].mxu0
      %4850 = vmatprep.mubr.bf16.mxu0 0
      %4851 = vmatmul.mubr.bf16.gmra.mrb[0].mxu0 %v4724
      %v4852 = vpop.f32.mrb[0].mxu0
      %v4853 = vadd.f32 %v4548, %v4852
      %v4854 = vpop.f32.mrb[0].mxu0
      %v4855 = vpop.f32.mrb[0].mxu0
      %v4856 = vadd.f32 %v4551, %v4855
      %v4857 = vpop.f32.mrb[0].mxu0
      %4858 = vmatprep.mubr.bf16.mxu0 0
      %4859 = vmatmul.mubr.bf16.gmra.mrb[0].mxu0 %v4725
      %v4860 = vpop.f32.mrb[0].mxu0
      %v4861 = vadd.f32 %v4556, %v4860
      %v4862 = vpop.f32.mrb[0].mxu0
      %v4863 = vpop.f32.mrb[0].mxu0
      %v4864 = vadd.f32 %v4559, %v4863
      %v4865 = vpop.f32.mrb[0].mxu0
      %4866 = vmatprep.mubr.bf16.mxu0 0
      %4867 = vmatmul.mubr.bf16.gmra.mrb[0].mxu0 %v4726
      %v4868 = vpop.f32.mrb[0].mxu0
      %v4869 = vadd.f32 %v4564, %v4868
      %v4870 = vpop.f32.mrb[0].mxu0
      %v4871 = vpop.f32.mrb[0].mxu0
      %v4872 = vadd.f32 %v4567, %v4871
      %v4873 = vpop.f32.mrb[0].mxu0
      %4874 = vmatprep.mubr.bf16.mxu0 0
      %4875 = vmatmul.mubr.bf16.gmra.mrb[0].mxu0 %v4727
      %v4876 = vpop.f32.mrb[0].mxu0
      %v4877 = vadd.f32 %v4572, %v4876
      %v4878 = vpop.f32.mrb[0].mxu0
      %v4879 = vpop.f32.mrb[0].mxu0
      %v4880 = vadd.f32 %v4575, %v4879
      %v4881 = vpop.f32.mrb[0].mxu0
      %4882 = vmatprep.mubr.bf16.mxu0 0
      %4883 = vmatmul.mubr.bf16.gmra.mrb[0].mxu0 %v4728
      %v4884 = vpop.f32.mrb[0].mxu0
      %v4885 = vadd.f32 %v4580, %v4884
      %v4886 = vpop.f32.mrb[0].mxu0
      %v4887 = vpop.f32.mrb[0].mxu0
      %v4888 = vadd.f32 %v4583, %v4887
      %v4889 = vpop.f32.mrb[0].mxu0
      %4890 = vmatprep.mubr.bf16.mxu0 0
      %4891 = vmatmul.mubr.bf16.gmra.mrb[0].mxu0 %v4729
      %v4892 = vpop.f32.mrb[0].mxu0
      %v4893 = vadd.f32 %v4588, %v4892
      %v4894 = vpop.f32.mrb[0].mxu0
      %v4895 = vpop.f32.mrb[0].mxu0
      %v4896 = vadd.f32 %v4591, %v4895
      %v4897 = vpop.f32.mrb[0].mxu0
      %4898 = vmatprep.mubr.bf16.mxu0 0
      %4899 = vmatmul.mubr.bf16.gmra.mrb[0].mxu0 %v4730
      %v4900 = vpop.f32.mrb[0].mxu0
      %v4901 = vadd.f32 %v4596, %v4900
      %v4902 = vpop.f32.mrb[0].mxu0
      %v4903 = vpop.f32.mrb[0].mxu0
      %v4904 = vadd.f32 %v4599, %v4903
      %v4905 = vpop.f32.mrb[0].mxu0
      %4906 = vmatprep.mubr.bf16.mxu0 0
      %4907 = vmatmul.mubr.bf16.gmra.mrb[0].mxu0 %v4731
      %v4908 = vpop.f32.mrb[0].mxu0
      %v4909 = vadd.f32 %v4604, %v4908
      %v4910 = vpop.f32.mrb[0].mxu0
      %v4911 = vpop.f32.mrb[0].mxu0
      %v4912 = vadd.f32 %v4607, %v4911
      %v4913 = vpop.f32.mrb[0].mxu0
      %4914 = vmatprep.mubr.bf16.mxu0 0
      %4915 = vmatmul.mubr.bf16.gmra.mrb[0].mxu0 %v4732
      %v4916 = vpop.f32.mrb[0].mxu0
      %v4917 = vadd.f32 %v4612, %v4916
      %v4918 = vpop.f32.mrb[0].mxu0
      %v4919 = vpop.f32.mrb[0].mxu0
      %v4920 = vadd.f32 %v4615, %v4919
      %v4921 = vpop.f32.mrb[0].mxu0
      %4922 = vmatprep.mubr.bf16.mxu0 0
      %4923 = vmatmul.mubr.bf16.gmra.mrb[0].mxu0 %v4733
      %v4924 = vpop.f32.mrb[0].mxu0
      %v4925 = vadd.f32 %v4620, %v4924
      %v4926 = vpop.f32.mrb[0].mxu0
      %v4927 = vpop.f32.mrb[0].mxu0
      %v4928 = vadd.f32 %v4623, %v4927
      %v4929 = vpop.f32.mrb[0].mxu0
      %4930 = vmatprep.mubr.bf16.mxu0 0
      %4931 = vmatmul.mubr.bf16.gmra.mrb[0].mxu0 %v4734
      %v4932 = vpop.f32.mrb[0].mxu0
      %v4933 = vadd.f32 %v4628, %v4932
      %v4934 = vpop.f32.mrb[0].mxu0
      %v4935 = vpop.f32.mrb[0].mxu0
      %v4936 = vadd.f32 %v4631, %v4935
      %v4937 = vpop.f32.mrb[0].mxu0
      %4938 = vmatprep.mubr.bf16.mxu0 0
      %4939 = vmatmul.mubr.bf16.gmra.mrb[0].mxu0 %v4735
      %v4940 = vpop.f32.mrb[0].mxu0
      %v4941 = vadd.f32 %v4636, %v4940
      %v4942 = vpop.f32.mrb[0].mxu0
      %v4943 = vpop.f32.mrb[0].mxu0
      %v4944 = vadd.f32 %v4639, %v4943
      %v4945 = vpop.f32.mrb[0].mxu0
      %4946 = vmatprep.mubr.bf16.mxu0 0
      %4947 = vmatmul.mubr.bf16.gmra.mrb[0].mxu0 %v4736
      %v4948 = vpop.f32.mrb[0].mxu0
      %v4949 = vadd.f32 %v4644, %v4948
      %v4950 = vpop.f32.mrb[0].mxu0
      %v4951 = vpop.f32.mrb[0].mxu0
      %v4952 = vadd.f32 %v4647, %v4951
      %v4953 = vpop.f32.mrb[0].mxu0
      %4954 = vmatprep.mubr.bf16.mxu0 0
      %4955 = vmatmul.mubr.bf16.gmra.mrb[0].mxu0 %v4737
      %v4956 = vpop.f32.mrb[0].mxu0
      %v4957 = vadd.f32 %v4652, %v4956
      %v4958 = vpop.f32.mrb[0].mxu0
      %v4959 = vpop.f32.mrb[0].mxu0
      %v4960 = vadd.f32 %v4655, %v4959
      %v4961 = vpop.f32.mrb[0].mxu0
      %4962 = vdwg.mxu0
      %v4963 = vld [vmem:[#allocation2] sm:$0xe]
      %v4964 = vld [vmem:[#allocation2 + $0xc] sm:$0xe]
      %v4965 = vld [vmem:[#allocation2 + $0x18] sm:$0xe]
      %v4966 = vld [vmem:[#allocation2 + $0x24] sm:$0xe]
      %v4967 = vld [vmem:[#allocation2 + $0x30] sm:$0xe]
      %v4968 = vld [vmem:[#allocation2 + $0x3c] sm:$0xe]
      %v4969 = vld [vmem:[#allocation2 + $0x48] sm:$0xe]
      %v4970 = vld [vmem:[#allocation2 + $0x54] sm:$0xe]
      %v4971 = vld [vmem:[#allocation2 + $0x60] sm:$0xe]
      %v4972 = vld [vmem:[#allocation2 + $0x6c] sm:$0xe]
      %v4973 = vld [vmem:[#allocation2 + $0x78] sm:$0xe]
      %v4974 = vld [vmem:[#allocation2 + $0x84] sm:$0xe]
      %v4975 = vld [vmem:[#allocation2 + $0x90] sm:$0xe]
      %v4976 = vld [vmem:[#allocation2 + $0x9c] sm:$0xe]
      %v4977 = vld [vmem:[#allocation2 + $0xa8] sm:$0xe]
      %v4978 = vld [vmem:[#allocation2 + $0xb4] sm:$0xe]
      %vm5011 = vcmask 1042432
      %vm5012 = vcmask 1046532
      %vm5013 = vmor %vm5011, %vm5012
      %v5014 = vrot.slane %v4963, 5
      %v5015 = vrot.slane %v5014, 4
      %v5016 = vrot.slane %v3951, 5
      %v5017 = vsel %vm5013, %v5015, %v5016
      %v5018 = vrot.slane %v5016, 4
      %v5019 = vrot.slane %v3982, 5
      %v5020 = vsel %vm5013, %v5018, %v5019
      %v5021 = vrot.slane %v4964, 5
      %v5022 = vrot.slane %v5021, 4
      %v5023 = vrot.slane %v3953, 5
      %v5024 = vsel %vm5013, %v5022, %v5023
      %v5025 = vrot.slane %v5023, 4
      %v5026 = vrot.slane %v3983, 5
      %v5027 = vsel %vm5013, %v5025, %v5026
      %v5028 = vrot.slane %v4965, 5
      %v5029 = vrot.slane %v5028, 4
      %v5030 = vrot.slane %v3955, 5
      %v5031 = vsel %vm5013, %v5029, %v5030
      %v5032 = vrot.slane %v5030, 4
      %v5033 = vrot.slane %v3984, 5
      %v5034 = vsel %vm5013, %v5032, %v5033
      %v5035 = vrot.slane %v4966, 5
      %v5036 = vrot.slane %v5035, 4
      %v5037 = vrot.slane %v3957, 5
      %v5038 = vsel %vm5013, %v5036, %v5037
      %v5039 = vrot.slane %v5037, 4
      %v5040 = vrot.slane %v3985, 5
      %v5041 = vsel %vm5013, %v5039, %v5040
      %v5042 = vrot.slane %v4967, 5
      %v5043 = vrot.slane %v5042, 4
      %v5044 = vrot.slane %v3959, 5
      %v5045 = vsel %vm5013, %v5043, %v5044
      %v5046 = vrot.slane %v5044, 4
      %v5047 = vrot.slane %v3986, 5
      %v5048 = vsel %vm5013, %v5046, %v5047
      %v5049 = vrot.slane %v4968, 5
      %v5050 = vrot.slane %v5049, 4
      %v5051 = vrot.slane %v3961, 5
      %v5052 = vsel %vm5013, %v5050, %v5051
      %v5053 = vrot.slane %v5051, 4
      %v5054 = vrot.slane %v3987, 5
      %v5055 = vsel %vm5013, %v5053, %v5054
      %v5056 = vrot.slane %v4969, 5
      %v5057 = vrot.slane %v5056, 4
      %v5058 = vrot.slane %v3963, 5
      %v5059 = vsel %vm5013, %v5057, %v5058
      %v5060 = vrot.slane %v5058, 4
      %v5061 = vrot.slane %v3988, 5
      %v5062 = vsel %vm5013, %v5060, %v5061
      %v5063 = vrot.slane %v4970, 5
      %v5064 = vrot.slane %v5063, 4
      %v5065 = vrot.slane %v3965, 5
      %v5066 = vsel %vm5013, %v5064, %v5065
      %v5067 = vrot.slane %v5065, 4
      %v5068 = vrot.slane %v3989, 5
      %v5069 = vsel %vm5013, %v5067, %v5068
      %v5070 = vrot.slane %v4971, 5
      %v5071 = vrot.slane %v5070, 4
      %v5072 = vrot.slane %v3967, 5
      %v5073 = vsel %vm5013, %v5071, %v5072
      %v5074 = vrot.slane %v5072, 4
      %v5075 = vrot.slane %v3990, 5
      %v5076 = vsel %vm5013, %v5074, %v5075
      %v5077 = vrot.slane %v4972, 5
      %v5078 = vrot.slane %v5077, 4
      %v5079 = vrot.slane %v3969, 5
      %v5080 = vsel %vm5013, %v5078, %v5079
      %v5081 = vrot.slane %v5079, 4
      %v5082 = vrot.slane %v3991, 5
      %v5083 = vsel %vm5013, %v5081, %v5082
      %v5084 = vrot.slane %v4973, 5
      %v5085 = vrot.slane %v5084, 4
      %v5086 = vrot.slane %v3971, 5
      %v5087 = vsel %vm5013, %v5085, %v5086
      %v5088 = vrot.slane %v5086, 4
      %v5089 = vrot.slane %v3992, 5
      %v5090 = vsel %vm5013, %v5088, %v5089
      %v5091 = vrot.slane %v4974, 5
      %v5092 = vrot.slane %v5091, 4
      %v5093 = vrot.slane %v3973, 5
      %v5094 = vsel %vm5013, %v5092, %v5093
      %v5095 = vrot.slane %v5093, 4
      %v5096 = vrot.slane %v3993, 5
      %v5097 = vsel %vm5013, %v5095, %v5096
      %v5098 = vrot.slane %v4975, 5
      %v5099 = vrot.slane %v5098, 4
      %v5100 = vrot.slane %v3975, 5
      %v5101 = vsel %vm5013, %v5099, %v5100
      %v5102 = vrot.slane %v5100, 4
      %v5103 = vrot.slane %v3994, 5
      %v5104 = vsel %vm5013, %v5102, %v5103
      %v5105 = vrot.slane %v4976, 5
      %v5106 = vrot.slane %v5105, 4
      %v5107 = vrot.slane %v3977, 5
      %v5108 = vsel %vm5013, %v5106, %v5107
      %v5109 = vrot.slane %v5107, 4
      %v5110 = vrot.slane %v3995, 5
      %v5111 = vsel %vm5013, %v5109, %v5110
      %v5112 = vrot.slane %v4977, 5
      %v5113 = vrot.slane %v5112, 4
      %v5114 = vrot.slane %v3979, 5
      %v5115 = vsel %vm5013, %v5113, %v5114
      %v5116 = vrot.slane %v5114, 4
      %v5117 = vrot.slane %v3996, 5
      %v5118 = vsel %vm5013, %v5116, %v5117
      %v5119 = vrot.slane %v4978, 5
      %v5120 = vrot.slane %v5119, 4
      %v5121 = vrot.slane %v3981, 5
      %v5122 = vsel %vm5013, %v5120, %v5121
      %v5123 = vrot.slane %v5121, 4
      %v5124 = vrot.slane %v3997, 5
      %v5125 = vsel %vm5013, %v5123, %v5124
      %v5126 = vunpack.c.l.b16 %v5017
      %v5127 = vunpack.c.l.b16 %v5020
      %v5128 = vunpack.c.l.b16 %v5024
      %v5129 = vunpack.c.l.b16 %v5027
      %v5130 = vunpack.c.l.b16 %v5031
      %v5131 = vunpack.c.l.b16 %v5034
      %v5132 = vunpack.c.l.b16 %v5038
      %v5133 = vunpack.c.l.b16 %v5041
      %v5134 = vunpack.c.l.b16 %v5045
      %v5135 = vunpack.c.l.b16 %v5048
      %v5136 = vunpack.c.l.b16 %v5052
      %v5137 = vunpack.c.l.b16 %v5055
      %v5138 = vunpack.c.l.b16 %v5059
      %v5139 = vunpack.c.l.b16 %v5062
      %v5140 = vunpack.c.l.b16 %v5066
      %v5141 = vunpack.c.l.b16 %v5069
      %v5142 = vunpack.c.l.b16 %v5073
      %v5143 = vunpack.c.l.b16 %v5076
      %v5144 = vunpack.c.l.b16 %v5080
      %v5145 = vunpack.c.l.b16 %v5083
      %v5146 = vunpack.c.l.b16 %v5087
      %v5147 = vunpack.c.l.b16 %v5090
      %v5148 = vunpack.c.l.b16 %v5094
      %v5149 = vunpack.c.l.b16 %v5097
      %v5150 = vunpack.c.l.b16 %v5101
      %v5151 = vunpack.c.l.b16 %v5104
      %v5152 = vunpack.c.l.b16 %v5108
      %v5153 = vunpack.c.l.b16 %v5111
      %v5154 = vunpack.c.l.b16 %v5115
      %v5155 = vunpack.c.l.b16 %v5118
      %v5156 = vunpack.c.l.b16 %v5122
      %v5157 = vunpack.c.l.b16 %v5125
      %v5158 = vpack.c.b16 %v5127, %v5126
      %v5159 = vpack.c.b16 %v5129, %v5128
      %v5160 = vpack.c.b16 %v5131, %v5130
      %v5161 = vpack.c.b16 %v5133, %v5132
      %v5162 = vpack.c.b16 %v5135, %v5134
      %v5163 = vpack.c.b16 %v5137, %v5136
      %v5164 = vpack.c.b16 %v5139, %v5138
      %v5165 = vpack.c.b16 %v5141, %v5140
      %v5166 = vpack.c.b16 %v5143, %v5142
      %v5167 = vpack.c.b16 %v5145, %v5144
      %v5168 = vpack.c.b16 %v5147, %v5146
      %v5169 = vpack.c.b16 %v5149, %v5148
      %v5170 = vpack.c.b16 %v5151, %v5150
      %v5171 = vpack.c.b16 %v5153, %v5152
      %v5172 = vpack.c.b16 %v5155, %v5154
      %v5173 = vpack.c.b16 %v5157, %v5156
      %v5206 = vunpack.c.l.b16 %v3838
      %v5207 = vunpack.c.l.b16 %v3839
      %v5208 = vunpack.c.l.b16 %v3840
      %v5209 = vunpack.c.l.b16 %v3841
      %v5210 = vunpack.c.l.b16 %v3842
      %v5211 = vunpack.c.l.b16 %v3843
      %v5212 = vunpack.c.l.b16 %v3844
      %v5213 = vunpack.c.l.b16 %v3845
      %v5214 = vunpack.c.l.b16 %v3846
      %v5215 = vunpack.c.l.b16 %v3847
      %v5216 = vunpack.c.l.b16 %v3848
      %v5217 = vunpack.c.l.b16 %v3849
      %v5218 = vunpack.c.l.b16 %v3850
      %v5219 = vunpack.c.l.b16 %v3851
      %v5220 = vunpack.c.l.b16 %v3852
      %v5221 = vunpack.c.l.b16 %v3853
      %v5222 = vpack.c.b16 %v5207, %v5206
      %v5223 = vpack.c.b16 %v5209, %v5208
      %v5224 = vpack.c.b16 %v5211, %v5210
      %v5225 = vpack.c.b16 %v5213, %v5212
      %v5226 = vpack.c.b16 %v5215, %v5214
      %v5227 = vpack.c.b16 %v5217, %v5216
      %v5228 = vpack.c.b16 %v5219, %v5218
      %v5229 = vpack.c.b16 %v5221, %v5220
      %5238 = vmatprep.subr.bf16.mxu0 0
      %5239 = vmatpush1.bf16.msra.mxu0 %v5222
      %5240 = vmatprep.subr.bf16.mxu0 0
      %5241 = vmatpush1.bf16.msra.mxu0 %v5223
      %5242 = vmatprep.subr.bf16.mxu0 0
      %5243 = vmatpush1.bf16.msra.mxu0 %v5224
      %5244 = vmatprep.subr.bf16.mxu0 0
      %5245 = vmatpush1.bf16.msra.mxu0 %v5225
      %5246 = vmatprep.subr.bf16.mxu0 0
      %5247 = vmatpush1.bf16.msra.mxu0 %v5226
      %5248 = vmatprep.subr.bf16.mxu0 0
      %5249 = vmatpush1.bf16.msra.mxu0 %v5227
      %5250 = vmatprep.subr.bf16.mxu0 0
      %5251 = vmatpush1.bf16.msra.mxu0 %v5228
      %5252 = vmatprep.subr.bf16.mxu0 0
      %5253 = vmatpush1.bf16.msra.mxu0 %v5229
      %5254 = vmatprep.subr.bf16.mxu0 0
      %5255 = vmatpush1.bf16.msra.mxu0 0
      %5256 = vmatprep.subr.bf16.mxu0 0
      %5257 = vmatpush1.bf16.msra.mxu0 0
      %5258 = vmatprep.subr.bf16.mxu0 0
      %5259 = vmatpush1.bf16.msra.mxu0 0
      %5260 = vmatprep.subr.bf16.mxu0 0
      %5261 = vmatpush1.bf16.msra.mxu0 0
      %5262 = vmatprep.subr.bf16.mxu0 0
      %5263 = vmatpush1.bf16.msra.mxu0 0
      %5264 = vmatprep.subr.bf16.mxu0 0
      %5265 = vmatpush1.bf16.msra.mxu0 0
      %5266 = vmatprep.subr.bf16.mxu0 0
      %5267 = vmatpush1.bf16.msra.mxu0 0
      %5268 = vmatprep.subr.bf16.mxu0 0
      %5269 = vmatpush1.bf16.msra.mxu0 0
      %5270 = vmatprep.mubr.bf16.mxu0 0
      %5271 = vmatmul.mubr.bf16.gmra.mrb[0].mxu0 %v5158
      %v5272 = vpop.f32.mrb[0].mxu0
      %v5273 = vadd.f32 0.0, %v5272
      %v5274 = vpop.f32.mrb[0].mxu0
      %v5275 = vpop.f32.mrb[0].mxu0
      %v5276 = vadd.f32 0.0, %v5275
      %v5277 = vpop.f32.mrb[0].mxu0
      %5278 = vmatprep.mubr.bf16.mxu0 0
      %5279 = vmatmul.mubr.bf16.gmra.mrb[0].mxu0 %v5159
      %v5280 = vpop.f32.mrb[0].mxu0
      %v5281 = vadd.f32 0.0, %v5280
      %v5282 = vpop.f32.mrb[0].mxu0
      %v5283 = vpop.f32.mrb[0].mxu0
      %v5284 = vadd.f32 0.0, %v5283
      %v5285 = vpop.f32.mrb[0].mxu0
      %5286 = vmatprep.mubr.bf16.mxu0 0
      %5287 = vmatmul.mubr.bf16.gmra.mrb[0].mxu0 %v5160
      %v5288 = vpop.f32.mrb[0].mxu0
      %v5289 = vadd.f32 0.0, %v5288
      %v5290 = vpop.f32.mrb[0].mxu0
      %v5291 = vpop.f32.mrb[0].mxu0
      %v5292 = vadd.f32 0.0, %v5291
      %v5293 = vpop.f32.mrb[0].mxu0
      %5294 = vmatprep.mubr.bf16.mxu0 0
      %5295 = vmatmul.mubr.bf16.gmra.mrb[0].mxu0 %v5161
      %v5296 = vpop.f32.mrb[0].mxu0
      %v5297 = vadd.f32 0.0, %v5296
      %v5298 = vpop.f32.mrb[0].mxu0
      %v5299 = vpop.f32.mrb[0].mxu0
      %v5300 = vadd.f32 0.0, %v5299
      %v5301 = vpop.f32.mrb[0].mxu0
      %5302 = vmatprep.mubr.bf16.mxu0 0
      %5303 = vmatmul.mubr.bf16.gmra.mrb[0].mxu0 %v5162
      %v5304 = vpop.f32.mrb[0].mxu0
      %v5305 = vadd.f32 0.0, %v5304
      %v5306 = vpop.f32.mrb[0].mxu0
      %v5307 = vpop.f32.mrb[0].mxu0
      %v5308 = vadd.f32 0.0, %v5307
      %v5309 = vpop.f32.mrb[0].mxu0
      %5310 = vmatprep.mubr.bf16.mxu0 0
      %5311 = vmatmul.mubr.bf16.gmra.mrb[0].mxu0 %v5163
      %v5312 = vpop.f32.mrb[0].mxu0
      %v5313 = vadd.f32 0.0, %v5312
      %v5314 = vpop.f32.mrb[0].mxu0
      %v5315 = vpop.f32.mrb[0].mxu0
      %v5316 = vadd.f32 0.0, %v5315
      %v5317 = vpop.f32.mrb[0].mxu0
      %5318 = vmatprep.mubr.bf16.mxu0 0
      %5319 = vmatmul.mubr.bf16.gmra.mrb[0].mxu0 %v5164
      %v5320 = vpop.f32.mrb[0].mxu0
      %v5321 = vadd.f32 0.0, %v5320
      %v5322 = vpop.f32.mrb[0].mxu0
      %v5323 = vpop.f32.mrb[0].mxu0
      %v5324 = vadd.f32 0.0, %v5323
      %v5325 = vpop.f32.mrb[0].mxu0
      %5326 = vmatprep.mubr.bf16.mxu0 0
      %5327 = vmatmul.mubr.bf16.gmra.mrb[0].mxu0 %v5165
      %v5328 = vpop.f32.mrb[0].mxu0
      %v5329 = vadd.f32 0.0, %v5328
      %v5330 = vpop.f32.mrb[0].mxu0
      %v5331 = vpop.f32.mrb[0].mxu0
      %v5332 = vadd.f32 0.0, %v5331
      %v5333 = vpop.f32.mrb[0].mxu0
      %5334 = vmatprep.mubr.bf16.mxu0 0
      %5335 = vmatmul.mubr.bf16.gmra.mrb[0].mxu0 %v5166
      %v5336 = vpop.f32.mrb[0].mxu0
      %v5337 = vadd.f32 0.0, %v5336
      %v5338 = vpop.f32.mrb[0].mxu0
      %v5339 = vpop.f32.mrb[0].mxu0
      %v5340 = vadd.f32 0.0, %v5339
      %v5341 = vpop.f32.mrb[0].mxu0
      %5342 = vmatprep.mubr.bf16.mxu0 0
      %5343 = vmatmul.mubr.bf16.gmra.mrb[0].mxu0 %v5167
      %v5344 = vpop.f32.mrb[0].mxu0
      %v5345 = vadd.f32 0.0, %v5344
      %v5346 = vpop.f32.mrb[0].mxu0
      %v5347 = vpop.f32.mrb[0].mxu0
      %v5348 = vadd.f32 0.0, %v5347
      %v5349 = vpop.f32.mrb[0].mxu0
      %5350 = vmatprep.mubr.bf16.mxu0 0
      %5351 = vmatmul.mubr.bf16.gmra.mrb[0].mxu0 %v5168
      %v5352 = vpop.f32.mrb[0].mxu0
      %v5353 = vadd.f32 0.0, %v5352
      %v5354 = vpop.f32.mrb[0].mxu0
      %v5355 = vpop.f32.mrb[0].mxu0
      %v5356 = vadd.f32 0.0, %v5355
      %v5357 = vpop.f32.mrb[0].mxu0
      %5358 = vmatprep.mubr.bf16.mxu0 0
      %5359 = vmatmul.mubr.bf16.gmra.mrb[0].mxu0 %v5169
      %v5360 = vpop.f32.mrb[0].mxu0
      %v5361 = vadd.f32 0.0, %v5360
      %v5362 = vpop.f32.mrb[0].mxu0
      %v5363 = vpop.f32.mrb[0].mxu0
      %v5364 = vadd.f32 0.0, %v5363
      %v5365 = vpop.f32.mrb[0].mxu0
      %5366 = vmatprep.mubr.bf16.mxu0 0
      %5367 = vmatmul.mubr.bf16.gmra.mrb[0].mxu0 %v5170
      %v5368 = vpop.f32.mrb[0].mxu0
      %v5369 = vadd.f32 0.0, %v5368
      %v5370 = vpop.f32.mrb[0].mxu0
      %v5371 = vpop.f32.mrb[0].mxu0
      %v5372 = vadd.f32 0.0, %v5371
      %v5373 = vpop.f32.mrb[0].mxu0
      %5374 = vmatprep.mubr.bf16.mxu0 0
      %5375 = vmatmul.mubr.bf16.gmra.mrb[0].mxu0 %v5171
      %v5376 = vpop.f32.mrb[0].mxu0
      %v5377 = vadd.f32 0.0, %v5376
      %v5378 = vpop.f32.mrb[0].mxu0
      %v5379 = vpop.f32.mrb[0].mxu0
      %v5380 = vadd.f32 0.0, %v5379
      %v5381 = vpop.f32.mrb[0].mxu0
      %5382 = vmatprep.mubr.bf16.mxu0 0
      %5383 = vmatmul.mubr.bf16.gmra.mrb[0].mxu0 %v5172
      %v5384 = vpop.f32.mrb[0].mxu0
      %v5385 = vadd.f32 0.0, %v5384
      %v5386 = vpop.f32.mrb[0].mxu0
      %v5387 = vpop.f32.mrb[0].mxu0
      %v5388 = vadd.f32 0.0, %v5387
      %v5389 = vpop.f32.mrb[0].mxu0
      %5390 = vmatprep.mubr.bf16.mxu0 0
      %5391 = vmatmul.mubr.bf16.gmra.mrb[0].mxu0 %v5173
      %v5392 = vpop.f32.mrb[0].mxu0
      %v5393 = vadd.f32 0.0, %v5392
      %v5394 = vpop.f32.mrb[0].mxu0
      %v5395 = vpop.f32.mrb[0].mxu0
      %v5396 = vadd.f32 0.0, %v5395
      %v5397 = vpop.f32.mrb[0].mxu0
      %5398 = vdwg.mxu0
      %v5399 = vadd.f32 %v4837, %v5273
      %v5400 = vadd.f32 %v4840, %v5276
      %v5401 = vadd.f32 %v4845, %v5281
      %v5402 = vadd.f32 %v4848, %v5284
      %v5403 = vadd.f32 %v4853, %v5289
      %v5404 = vadd.f32 %v4856, %v5292
      %v5405 = vadd.f32 %v4861, %v5297
      %v5406 = vadd.f32 %v4864, %v5300
      %v5407 = vadd.f32 %v4869, %v5305
      %v5408 = vadd.f32 %v4872, %v5308
      %v5409 = vadd.f32 %v4877, %v5313
      %v5410 = vadd.f32 %v4880, %v5316
      %v5411 = vadd.f32 %v4885, %v5321
      %v5412 = vadd.f32 %v4888, %v5324
      %v5413 = vadd.f32 %v4893, %v5329
      %v5414 = vadd.f32 %v4896, %v5332
      %v5415 = vadd.f32 %v4901, %v5337
      %v5416 = vadd.f32 %v4904, %v5340
      %v5417 = vadd.f32 %v4909, %v5345
      %v5418 = vadd.f32 %v4912, %v5348
      %v5419 = vadd.f32 %v4917, %v5353
      %v5420 = vadd.f32 %v4920, %v5356
      %v5421 = vadd.f32 %v4925, %v5361
      %v5422 = vadd.f32 %v4928, %v5364
      %v5423 = vadd.f32 %v4933, %v5369
      %v5424 = vadd.f32 %v4936, %v5372
      %v5425 = vadd.f32 %v4941, %v5377
      %v5426 = vadd.f32 %v4944, %v5380
      %v5427 = vadd.f32 %v4949, %v5385
      %v5428 = vadd.f32 %v4952, %v5388
      %v5429 = vadd.f32 %v4957, %v5393
      %v5430 = vadd.f32 %v4960, %v5396
      %v5431 = vld [vmem:[%s3480] sm:$0xf]
      %v5432 = vld [vmem:[%s3480 + $0x4] sm:$0xf]
      %v5433 = vld [vmem:[%s3480 + $0xc] sm:$0xf]
      %v5434 = vld [vmem:[%s3480 + $0x10] sm:$0xf]
      %v5435 = vld [vmem:[%s3480 + $0x18] sm:$0xf]
      %v5436 = vld [vmem:[%s3480 + $0x1c] sm:$0xf]
      %v5437 = vld [vmem:[%s3480 + $0x24] sm:$0xf]
      %v5438 = vld [vmem:[%s3480 + $0x28] sm:$0xf]
      %v5439 = vld [vmem:[%s3480 + $0x30] sm:$0xf]
      %v5440 = vld [vmem:[%s3480 + $0x34] sm:$0xf]
      %v5441 = vld [vmem:[%s3480 + $0x3c] sm:$0xf]
      %v5442 = vld [vmem:[%s3480 + $0x40] sm:$0xf]
      %v5443 = vld [vmem:[%s3480 + $0x48] sm:$0xf]
      %v5444 = vld [vmem:[%s3480 + $0x4c] sm:$0xf]
      %v5445 = vld [vmem:[%s3480 + $0x54] sm:$0xf]
      %v5446 = vld [vmem:[%s3480 + $0x58] sm:$0xf]
      %v5447 = vld [vmem:[%s3480 + $0x60] sm:$0xf]
      %v5448 = vld [vmem:[%s3480 + $0x64] sm:$0xf]
      %v5449 = vld [vmem:[%s3480 + $0x6c] sm:$0xf]
      %v5450 = vld [vmem:[%s3480 + $0x70] sm:$0xf]
      %v5451 = vld [vmem:[%s3480 + $0x78] sm:$0xf]
      %v5452 = vld [vmem:[%s3480 + $0x7c] sm:$0xf]
      %v5453 = vld [vmem:[%s3480 + $0x84] sm:$0xf]
      %v5454 = vld [vmem:[%s3480 + $0x88] sm:$0xf]
      %v5455 = vld [vmem:[%s3480 + $0x90] sm:$0xf]
      %v5456 = vld [vmem:[%s3480 + $0x94] sm:$0xf]
      %v5457 = vld [vmem:[%s3480 + $0x9c] sm:$0xf]
      %v5458 = vld [vmem:[%s3480 + $0xa0] sm:$0xf]
      %v5459 = vld [vmem:[%s3480 + $0xa8] sm:$0xf]
      %v5460 = vld [vmem:[%s3480 + $0xac] sm:$0xf]
      %v5461 = vld [vmem:[%s3480 + $0xb4] sm:$0xf]
      %v5462 = vld [vmem:[%s3480 + $0xb8] sm:$0xf]
      %v5495 = vunpack.c.l.b16 %v5431
      %v5496 = vunpack.c.l.b16 %v5432
      %v5497 = vunpack.c.l.b16 %v5433
      %v5498 = vunpack.c.l.b16 %v5434
      %v5499 = vunpack.c.l.b16 %v5435
      %v5500 = vunpack.c.l.b16 %v5436
      %v5501 = vunpack.c.l.b16 %v5437
      %v5502 = vunpack.c.l.b16 %v5438
      %v5503 = vunpack.c.l.b16 %v5439
      %v5504 = vunpack.c.l.b16 %v5440
      %v5505 = vunpack.c.l.b16 %v5441
      %v5506 = vunpack.c.l.b16 %v5442
      %v5507 = vunpack.c.l.b16 %v5443
      %v5508 = vunpack.c.l.b16 %v5444
      %v5509 = vunpack.c.l.b16 %v5445
      %v5510 = vunpack.c.l.b16 %v5446
      %v5511 = vunpack.c.l.b16 %v5447
      %v5512 = vunpack.c.l.b16 %v5448
      %v5513 = vunpack.c.l.b16 %v5449
      %v5514 = vunpack.c.l.b16 %v5450
      %v5515 = vunpack.c.l.b16 %v5451
      %v5516 = vunpack.c.l.b16 %v5452
      %v5517 = vunpack.c.l.b16 %v5453
      %v5518 = vunpack.c.l.b16 %v5454
      %v5519 = vunpack.c.l.b16 %v5455
      %v5520 = vunpack.c.l.b16 %v5456
      %v5521 = vunpack.c.l.b16 %v5457
      %v5522 = vunpack.c.l.b16 %v5458
      %v5523 = vunpack.c.l.b16 %v5459
      %v5524 = vunpack.c.l.b16 %v5460
      %v5525 = vunpack.c.l.b16 %v5461
      %v5526 = vunpack.c.l.b16 %v5462
      %v5527 = vpack.c.b16 %v5496, %v5495
      %v5528 = vpack.c.b16 %v5498, %v5497
      %v5529 = vpack.c.b16 %v5500, %v5499
      %v5530 = vpack.c.b16 %v5502, %v5501
      %v5531 = vpack.c.b16 %v5504, %v5503
      %v5532 = vpack.c.b16 %v5506, %v5505
      %v5533 = vpack.c.b16 %v5508, %v5507
      %v5534 = vpack.c.b16 %v5510, %v5509
      %v5535 = vpack.c.b16 %v5512, %v5511
      %v5536 = vpack.c.b16 %v5514, %v5513
      %v5537 = vpack.c.b16 %v5516, %v5515
      %v5538 = vpack.c.b16 %v5518, %v5517
      %v5539 = vpack.c.b16 %v5520, %v5519
      %v5540 = vpack.c.b16 %v5522, %v5521
      %v5541 = vpack.c.b16 %v5524, %v5523
      %v5542 = vpack.c.b16 %v5526, %v5525
      %v5575 = vunpack.c.l.b16 %v3854
      %v5576 = vunpack.c.l.b16 %v3855
      %v5577 = vunpack.c.l.b16 %v3856
      %v5578 = vunpack.c.l.b16 %v3857
      %v5579 = vunpack.c.l.b16 %v3858
      %v5580 = vunpack.c.l.b16 %v3859
      %v5581 = vunpack.c.l.b16 %v3860
      %v5582 = vunpack.c.l.b16 %v3861
      %v5583 = vunpack.c.l.b16 %v3862
      %v5584 = vunpack.c.l.b16 %v3863
      %v5585 = vunpack.c.l.b16 %v3864
      %v5586 = vunpack.c.l.b16 %v3865
      %v5587 = vunpack.c.l.b16 %v3866
      %v5588 = vunpack.c.l.b16 %v3867
      %v5589 = vunpack.c.l.b16 %v3868
      %v5590 = vunpack.c.l.b16 %v3869
      %v5591 = vpack.c.b16 %v5576, %v5575
      %v5592 = vpack.c.b16 %v5578, %v5577
      %v5593 = vpack.c.b16 %v5580, %v5579
      %v5594 = vpack.c.b16 %v5582, %v5581
      %v5595 = vpack.c.b16 %v5584, %v5583
      %v5596 = vpack.c.b16 %v5586, %v5585
      %v5597 = vpack.c.b16 %v5588, %v5587
      %v5598 = vpack.c.b16 %v5590, %v5589
      %5607 = vmatprep.subr.bf16.mxu0 0
      %5608 = vmatpush1.bf16.msra.mxu0 %v5591
      %5609 = vmatprep.subr.bf16.mxu0 0
      %5610 = vmatpush1.bf16.msra.mxu0 %v5592
      %5611 = vmatprep.subr.bf16.mxu0 0
      %5612 = vmatpush1.bf16.msra.mxu0 %v5593
      %5613 = vmatprep.subr.bf16.mxu0 0
      %5614 = vmatpush1.bf16.msra.mxu0 %v5594
      %5615 = vmatprep.subr.bf16.mxu0 0
      %5616 = vmatpush1.bf16.msra.mxu0 %v5595
      %5617 = vmatprep.subr.bf16.mxu0 0
      %5618 = vmatpush1.bf16.msra.mxu0 %v5596
      %5619 = vmatprep.subr.bf16.mxu0 0
      %5620 = vmatpush1.bf16.msra.mxu0 %v5597
      %5621 = vmatprep.subr.bf16.mxu0 0
      %5622 = vmatpush1.bf16.msra.mxu0 %v5598
      %5623 = vmatprep.subr.bf16.mxu0 0
      %5624 = vmatpush1.bf16.msra.mxu0 0
      %5625 = vmatprep.subr.bf16.mxu0 0
      %5626 = vmatpush1.bf16.msra.mxu0 0
      %5627 = vmatprep.subr.bf16.mxu0 0
      %5628 = vmatpush1.bf16.msra.mxu0 0
      %5629 = vmatprep.subr.bf16.mxu0 0
      %5630 = vmatpush1.bf16.msra.mxu0 0
      %5631 = vmatprep.subr.bf16.mxu0 0
      %5632 = vmatpush1.bf16.msra.mxu0 0
      %5633 = vmatprep.subr.bf16.mxu0 0
      %5634 = vmatpush1.bf16.msra.mxu0 0
      %5635 = vmatprep.subr.bf16.mxu0 0
      %5636 = vmatpush1.bf16.msra.mxu0 0
      %5637 = vmatprep.subr.bf16.mxu0 0
      %5638 = vmatpush1.bf16.msra.mxu0 0
      %5639 = vmatprep.mubr.bf16.mxu0 0
      %5640 = vmatmul.mubr.bf16.gmra.mrb[0].mxu0 %v5527
      %v5641 = vpop.f32.mrb[0].mxu0
      %v5642 = vadd.f32 0.0, %v5641
      %v5643 = vpop.f32.mrb[0].mxu0
      %v5644 = vpop.f32.mrb[0].mxu0
      %v5645 = vadd.f32 0.0, %v5644
      %v5646 = vpop.f32.mrb[0].mxu0
      %5647 = vmatprep.mubr.bf16.mxu0 0
      %5648 = vmatmul.mubr.bf16.gmra.mrb[0].mxu0 %v5528
      %v5649 = vpop.f32.mrb[0].mxu0
      %v5650 = vadd.f32 0.0, %v5649
      %v5651 = vpop.f32.mrb[0].mxu0
      %v5652 = vpop.f32.mrb[0].mxu0
      %v5653 = vadd.f32 0.0, %v5652
      %v5654 = vpop.f32.mrb[0].mxu0
      %5655 = vmatprep.mubr.bf16.mxu0 0
      %5656 = vmatmul.mubr.bf16.gmra.mrb[0].mxu0 %v5529
      %v5657 = vpop.f32.mrb[0].mxu0
      %v5658 = vadd.f32 0.0, %v5657
      %v5659 = vpop.f32.mrb[0].mxu0
      %v5660 = vpop.f32.mrb[0].mxu0
      %v5661 = vadd.f32 0.0, %v5660
      %v5662 = vpop.f32.mrb[0].mxu0
      %5663 = vmatprep.mubr.bf16.mxu0 0
      %5664 = vmatmul.mubr.bf16.gmra.mrb[0].mxu0 %v5530
      %v5665 = vpop.f32.mrb[0].mxu0
      %v5666 = vadd.f32 0.0, %v5665
      %v5667 = vpop.f32.mrb[0].mxu0
      %v5668 = vpop.f32.mrb[0].mxu0
      %v5669 = vadd.f32 0.0, %v5668
      %v5670 = vpop.f32.mrb[0].mxu0
      %5671 = vmatprep.mubr.bf16.mxu0 0
      %5672 = vmatmul.mubr.bf16.gmra.mrb[0].mxu0 %v5531
      %v5673 = vpop.f32.mrb[0].mxu0
      %v5674 = vadd.f32 0.0, %v5673
      %v5675 = vpop.f32.mrb[0].mxu0
      %v5676 = vpop.f32.mrb[0].mxu0
      %v5677 = vadd.f32 0.0, %v5676
      %v5678 = vpop.f32.mrb[0].mxu0
      %5679 = vmatprep.mubr.bf16.mxu0 0
      %5680 = vmatmul.mubr.bf16.gmra.mrb[0].mxu0 %v5532
      %v5681 = vpop.f32.mrb[0].mxu0
      %v5682 = vadd.f32 0.0, %v5681
      %v5683 = vpop.f32.mrb[0].mxu0
      %v5684 = vpop.f32.mrb[0].mxu0
      %v5685 = vadd.f32 0.0, %v5684
      %v5686 = vpop.f32.mrb[0].mxu0
      %5687 = vmatprep.mubr.bf16.mxu0 0
      %5688 = vmatmul.mubr.bf16.gmra.mrb[0].mxu0 %v5533
      %v5689 = vpop.f32.mrb[0].mxu0
      %v5690 = vadd.f32 0.0, %v5689
      %v5691 = vpop.f32.mrb[0].mxu0
      %v5692 = vpop.f32.mrb[0].mxu0
      %v5693 = vadd.f32 0.0, %v5692
      %v5694 = vpop.f32.mrb[0].mxu0
      %5695 = vmatprep.mubr.bf16.mxu0 0
      %5696 = vmatmul.mubr.bf16.gmra.mrb[0].mxu0 %v5534
      %v5697 = vpop.f32.mrb[0].mxu0
      %v5698 = vadd.f32 0.0, %v5697
      %v5699 = vpop.f32.mrb[0].mxu0
      %v5700 = vpop.f32.mrb[0].mxu0
      %v5701 = vadd.f32 0.0, %v5700
      %v5702 = vpop.f32.mrb[0].mxu0
      %5703 = vmatprep.mubr.bf16.mxu0 0
      %5704 = vmatmul.mubr.bf16.gmra.mrb[0].mxu0 %v5535
      %v5705 = vpop.f32.mrb[0].mxu0
      %v5706 = vadd.f32 0.0, %v5705
      %v5707 = vpop.f32.mrb[0].mxu0
      %v5708 = vpop.f32.mrb[0].mxu0
      %v5709 = vadd.f32 0.0, %v5708
      %v5710 = vpop.f32.mrb[0].mxu0
      %5711 = vmatprep.mubr.bf16.mxu0 0
      %5712 = vmatmul.mubr.bf16.gmra.mrb[0].mxu0 %v5536
      %v5713 = vpop.f32.mrb[0].mxu0
      %v5714 = vadd.f32 0.0, %v5713
      %v5715 = vpop.f32.mrb[0].mxu0
      %v5716 = vpop.f32.mrb[0].mxu0
      %v5717 = vadd.f32 0.0, %v5716
      %v5718 = vpop.f32.mrb[0].mxu0
      %5719 = vmatprep.mubr.bf16.mxu0 0
      %5720 = vmatmul.mubr.bf16.gmra.mrb[0].mxu0 %v5537
      %v5721 = vpop.f32.mrb[0].mxu0
      %v5722 = vadd.f32 0.0, %v5721
      %v5723 = vpop.f32.mrb[0].mxu0
      %v5724 = vpop.f32.mrb[0].mxu0
      %v5725 = vadd.f32 0.0, %v5724
      %v5726 = vpop.f32.mrb[0].mxu0
      %5727 = vmatprep.mubr.bf16.mxu0 0
      %5728 = vmatmul.mubr.bf16.gmra.mrb[0].mxu0 %v5538
      %v5729 = vpop.f32.mrb[0].mxu0
      %v5730 = vadd.f32 0.0, %v5729
      %v5731 = vpop.f32.mrb[0].mxu0
      %v5732 = vpop.f32.mrb[0].mxu0
      %v5733 = vadd.f32 0.0, %v5732
      %v5734 = vpop.f32.mrb[0].mxu0
      %5735 = vmatprep.mubr.bf16.mxu0 0
      %5736 = vmatmul.mubr.bf16.gmra.mrb[0].mxu0 %v5539
      %v5737 = vpop.f32.mrb[0].mxu0
      %v5738 = vadd.f32 0.0, %v5737
      %v5739 = vpop.f32.mrb[0].mxu0
      %v5740 = vpop.f32.mrb[0].mxu0
      %v5741 = vadd.f32 0.0, %v5740
      %v5742 = vpop.f32.mrb[0].mxu0
      %5743 = vmatprep.mubr.bf16.mxu0 0
      %5744 = vmatmul.mubr.bf16.gmra.mrb[0].mxu0 %v5540
      %v5745 = vpop.f32.mrb[0].mxu0
      %v5746 = vadd.f32 0.0, %v5745
      %v5747 = vpop.f32.mrb[0].mxu0
      %v5748 = vpop.f32.mrb[0].mxu0
      %v5749 = vadd.f32 0.0, %v5748
      %v5750 = vpop.f32.mrb[0].mxu0
      %5751 = vmatprep.mubr.bf16.mxu0 0
      %5752 = vmatmul.mubr.bf16.gmra.mrb[0].mxu0 %v5541
      %v5753 = vpop.f32.mrb[0].mxu0
      %v5754 = vadd.f32 0.0, %v5753
      %v5755 = vpop.f32.mrb[0].mxu0
      %v5756 = vpop.f32.mrb[0].mxu0
      %v5757 = vadd.f32 0.0, %v5756
      %v5758 = vpop.f32.mrb[0].mxu0
      %5759 = vmatprep.mubr.bf16.mxu0 0
      %5760 = vmatmul.mubr.bf16.gmra.mrb[0].mxu0 %v5542
      %v5761 = vpop.f32.mrb[0].mxu0
      %v5762 = vadd.f32 0.0, %v5761
      %v5763 = vpop.f32.mrb[0].mxu0
      %v5764 = vpop.f32.mrb[0].mxu0
      %v5765 = vadd.f32 0.0, %v5764
      %v5766 = vpop.f32.mrb[0].mxu0
      %5767 = vdwg.mxu0
      %v5768 = vadd.f32 %v5399, %v5642
      %v5769 = vadd.f32 %v5400, %v5645
      %v5770 = vadd.f32 %v5401, %v5650
      %v5771 = vadd.f32 %v5402, %v5653
      %v5772 = vadd.f32 %v5403, %v5658
      %v5773 = vadd.f32 %v5404, %v5661
      %v5774 = vadd.f32 %v5405, %v5666
      %v5775 = vadd.f32 %v5406, %v5669
      %v5776 = vadd.f32 %v5407, %v5674
      %v5777 = vadd.f32 %v5408, %v5677
      %v5778 = vadd.f32 %v5409, %v5682
      %v5779 = vadd.f32 %v5410, %v5685
      %v5780 = vadd.f32 %v5411, %v5690
      %v5781 = vadd.f32 %v5412, %v5693
      %v5782 = vadd.f32 %v5413, %v5698
      %v5783 = vadd.f32 %v5414, %v5701
      %v5784 = vadd.f32 %v5415, %v5706
      %v5785 = vadd.f32 %v5416, %v5709
      %v5786 = vadd.f32 %v5417, %v5714
      %v5787 = vadd.f32 %v5418, %v5717
      %v5788 = vadd.f32 %v5419, %v5722
      %v5789 = vadd.f32 %v5420, %v5725
      %v5790 = vadd.f32 %v5421, %v5730
      %v5791 = vadd.f32 %v5422, %v5733
      %v5792 = vadd.f32 %v5423, %v5738
      %v5793 = vadd.f32 %v5424, %v5741
      %v5794 = vadd.f32 %v5425, %v5746
      %v5795 = vadd.f32 %v5426, %v5749
      %v5796 = vadd.f32 %v5427, %v5754
      %v5797 = vadd.f32 %v5428, %v5757
      %v5798 = vadd.f32 %v5429, %v5762
      %v5799 = vadd.f32 %v5430, %v5765
      %v5800 = vld [vmem:[%s3480] sm:$0xf]
      %v5801 = vld [vmem:[%s3480 + $0x4] sm:$0xf]
      %v5802 = vld [vmem:[%s3480 + $0x8] sm:$0x1]
      %v5803 = vld [vmem:[%s3480 + $0xc] sm:$0xf]
      %v5804 = vld [vmem:[%s3480 + $0x10] sm:$0xf]
      %v5805 = vld [vmem:[%s3480 + $0x14] sm:$0x1]
      %v5806 = vld [vmem:[%s3480 + $0x18] sm:$0xf]
      %v5807 = vld [vmem:[%s3480 + $0x1c] sm:$0xf]
      %v5808 = vld [vmem:[%s3480 + $0x20] sm:$0x1]
      %v5809 = vld [vmem:[%s3480 + $0x24] sm:$0xf]
      %v5810 = vld [vmem:[%s3480 + $0x28] sm:$0xf]
      %v5811 = vld [vmem:[%s3480 + $0x2c] sm:$0x1]
      %v5812 = vld [vmem:[%s3480 + $0x30] sm:$0xf]
      %v5813 = vld [vmem:[%s3480 + $0x34] sm:$0xf]
      %v5814 = vld [vmem:[%s3480 + $0x38] sm:$0x1]
      %v5815 = vld [vmem:[%s3480 + $0x3c] sm:$0xf]
      %v5816 = vld [vmem:[%s3480 + $0x40] sm:$0xf]
      %v5817 = vld [vmem:[%s3480 + $0x44] sm:$0x1]
      %v5818 = vld [vmem:[%s3480 + $0x48] sm:$0xf]
      %v5819 = vld [vmem:[%s3480 + $0x4c] sm:$0xf]
      %v5820 = vld [vmem:[%s3480 + $0x50] sm:$0x1]
      %v5821 = vld [vmem:[%s3480 + $0x54] sm:$0xf]
      %v5822 = vld [vmem:[%s3480 + $0x58] sm:$0xf]
      %v5823 = vld [vmem:[%s3480 + $0x5c] sm:$0x1]
      %v5824 = vld [vmem:[%s3480 + $0x60] sm:$0xf]
      %v5825 = vld [vmem:[%s3480 + $0x64] sm:$0xf]
      %v5826 = vld [vmem:[%s3480 + $0x68] sm:$0x1]
      %v5827 = vld [vmem:[%s3480 + $0x6c] sm:$0xf]
      %v5828 = vld [vmem:[%s3480 + $0x70] sm:$0xf]
      %v5829 = vld [vmem:[%s3480 + $0x74] sm:$0x1]
      %v5830 = vld [vmem:[%s3480 + $0x78] sm:$0xf]
      %v5831 = vld [vmem:[%s3480 + $0x7c] sm:$0xf]
      %v5832 = vld [vmem:[%s3480 + $0x80] sm:$0x1]
      %v5833 = vld [vmem:[%s3480 + $0x84] sm:$0xf]
      %v5834 = vld [vmem:[%s3480 + $0x88] sm:$0xf]
      %v5835 = vld [vmem:[%s3480 + $0x8c] sm:$0x1]
      %v5836 = vld [vmem:[%s3480 + $0x90] sm:$0xf]
      %v5837 = vld [vmem:[%s3480 + $0x94] sm:$0xf]
      %v5838 = vld [vmem:[%s3480 + $0x98] sm:$0x1]
      %v5839 = vld [vmem:[%s3480 + $0x9c] sm:$0xf]
      %v5840 = vld [vmem:[%s3480 + $0xa0] sm:$0xf]
      %v5841 = vld [vmem:[%s3480 + $0xa4] sm:$0x1]
      %v5842 = vld [vmem:[%s3480 + $0xa8] sm:$0xf]
      %v5843 = vld [vmem:[%s3480 + $0xac] sm:$0xf]
      %v5844 = vld [vmem:[%s3480 + $0xb0] sm:$0x1]
      %v5845 = vld [vmem:[%s3480 + $0xb4] sm:$0xf]
      %v5846 = vld [vmem:[%s3480 + $0xb8] sm:$0xf]
      %v5847 = vld [vmem:[%s3480 + $0xbc] sm:$0x1]
      %v5849 = vshrl.u32 %v5800, 16
      %v5851 = vrot.slane %v5849, 4
      %v5852 = vshll.u32 %v5800, 16
      %v5854 = vrot.slane %v5852, 5
      %v5855 = vor.u32 %v5851, %v5854
      %v5856 = vrot.slane %v5855, 4
      %v5858 = vshll.u32 %v5801, 16
      %v5860 = vrot.slane %v5858, 5
      %v5861 = vsel %vm4000, %v5856, %v5860
      %v5862 = vshrl.u32 %v5801, 16
      %v5864 = vrot.slane %v5862, 4
      %v5865 = vor.u32 %v5864, %v5860
      %v5866 = vrot.slane %v5865, 4
      %v5868 = vshll.u32 %v5802, 16
      %v5870 = vrot.slane %v5868, 5
      %v5871 = vsel %vm4000, %v5866, %v5870
      %v5873 = vshrl.u32 %v5803, 16
      %v5875 = vrot.slane %v5873, 4
      %v5876 = vshll.u32 %v5803, 16
      %v5878 = vrot.slane %v5876, 5
      %v5879 = vor.u32 %v5875, %v5878
      %v5880 = vrot.slane %v5879, 4
      %v5882 = vshll.u32 %v5804, 16
      %v5884 = vrot.slane %v5882, 5
      %v5885 = vsel %vm4000, %v5880, %v5884
      %v5886 = vshrl.u32 %v5804, 16
      %v5888 = vrot.slane %v5886, 4
      %v5889 = vor.u32 %v5888, %v5884
      %v5890 = vrot.slane %v5889, 4
      %v5892 = vshll.u32 %v5805, 16
      %v5894 = vrot.slane %v5892, 5
      %v5895 = vsel %vm4000, %v5890, %v5894
      %v5897 = vshrl.u32 %v5806, 16
      %v5899 = vrot.slane %v5897, 4
      %v5900 = vshll.u32 %v5806, 16
      %v5902 = vrot.slane %v5900, 5
      %v5903 = vor.u32 %v5899, %v5902
      %v5904 = vrot.slane %v5903, 4
      %v5906 = vshll.u32 %v5807, 16
      %v5908 = vrot.slane %v5906, 5
      %v5909 = vsel %vm4000, %v5904, %v5908
      %v5910 = vshrl.u32 %v5807, 16
      %v5912 = vrot.slane %v5910, 4
      %v5913 = vor.u32 %v5912, %v5908
      %v5914 = vrot.slane %v5913, 4
      %v5916 = vshll.u32 %v5808, 16
      %v5918 = vrot.slane %v5916, 5
      %v5919 = vsel %vm4000, %v5914, %v5918
      %v5921 = vshrl.u32 %v5809, 16
      %v5923 = vrot.slane %v5921, 4
      %v5924 = vshll.u32 %v5809, 16
      %v5926 = vrot.slane %v5924, 5
      %v5927 = vor.u32 %v5923, %v5926
      %v5928 = vrot.slane %v5927, 4
      %v5930 = vshll.u32 %v5810, 16
      %v5932 = vrot.slane %v5930, 5
      %v5933 = vsel %vm4000, %v5928, %v5932
      %v5934 = vshrl.u32 %v5810, 16
      %v5936 = vrot.slane %v5934, 4
      %v5937 = vor.u32 %v5936, %v5932
      %v5938 = vrot.slane %v5937, 4
      %v5940 = vshll.u32 %v5811, 16
      %v5942 = vrot.slane %v5940, 5
      %v5943 = vsel %vm4000, %v5938, %v5942
      %v5945 = vshrl.u32 %v5812, 16
      %v5947 = vrot.slane %v5945, 4
      %v5948 = vshll.u32 %v5812, 16
      %v5950 = vrot.slane %v5948, 5
      %v5951 = vor.u32 %v5947, %v5950
      %v5952 = vrot.slane %v5951, 4
      %v5954 = vshll.u32 %v5813, 16
      %v5956 = vrot.slane %v5954, 5
      %v5957 = vsel %vm4000, %v5952, %v5956
      %v5958 = vshrl.u32 %v5813, 16
      %v5960 = vrot.slane %v5958, 4
      %v5961 = vor.u32 %v5960, %v5956
      %v5962 = vrot.slane %v5961, 4
      %v5964 = vshll.u32 %v5814, 16
      %v5966 = vrot.slane %v5964, 5
      %v5967 = vsel %vm4000, %v5962, %v5966
      %v5969 = vshrl.u32 %v5815, 16
      %v5971 = vrot.slane %v5969, 4
      %v5972 = vshll.u32 %v5815, 16
      %v5974 = vrot.slane %v5972, 5
      %v5975 = vor.u32 %v5971, %v5974
      %v5976 = vrot.slane %v5975, 4
      %v5978 = vshll.u32 %v5816, 16
      %v5980 = vrot.slane %v5978, 5
      %v5981 = vsel %vm4000, %v5976, %v5980
      %v5982 = vshrl.u32 %v5816, 16
      %v5984 = vrot.slane %v5982, 4
      %v5985 = vor.u32 %v5984, %v5980
      %v5986 = vrot.slane %v5985, 4
      %v5988 = vshll.u32 %v5817, 16
      %v5990 = vrot.slane %v5988, 5
      %v5991 = vsel %vm4000, %v5986, %v5990
      %v5993 = vshrl.u32 %v5818, 16
      %v5995 = vrot.slane %v5993, 4
      %v5996 = vshll.u32 %v5818, 16
      %v5998 = vrot.slane %v5996, 5
      %v5999 = vor.u32 %v5995, %v5998
      %v6000 = vrot.slane %v5999, 4
      %v6002 = vshll.u32 %v5819, 16
      %v6004 = vrot.slane %v6002, 5
      %v6005 = vsel %vm4000, %v6000, %v6004
      %v6006 = vshrl.u32 %v5819, 16
      %v6008 = vrot.slane %v6006, 4
      %v6009 = vor.u32 %v6008, %v6004
      %v6010 = vrot.slane %v6009, 4
      %v6012 = vshll.u32 %v5820, 16
      %v6014 = vrot.slane %v6012, 5
      %v6015 = vsel %vm4000, %v6010, %v6014
      %v6017 = vshrl.u32 %v5821, 16
      %v6019 = vrot.slane %v6017, 4
      %v6020 = vshll.u32 %v5821, 16
      %v6022 = vrot.slane %v6020, 5
      %v6023 = vor.u32 %v6019, %v6022
      %v6024 = vrot.slane %v6023, 4
      %v6026 = vshll.u32 %v5822, 16
      %v6028 = vrot.slane %v6026, 5
      %v6029 = vsel %vm4000, %v6024, %v6028
      %v6030 = vshrl.u32 %v5822, 16
      %v6032 = vrot.slane %v6030, 4
      %v6033 = vor.u32 %v6032, %v6028
      %v6034 = vrot.slane %v6033, 4
      %v6036 = vshll.u32 %v5823, 16
      %v6038 = vrot.slane %v6036, 5
      %v6039 = vsel %vm4000, %v6034, %v6038
      %v6041 = vshrl.u32 %v5824, 16
      %v6043 = vrot.slane %v6041, 4
      %v6044 = vshll.u32 %v5824, 16
      %v6046 = vrot.slane %v6044, 5
      %v6047 = vor.u32 %v6043, %v6046
      %v6048 = vrot.slane %v6047, 4
      %v6050 = vshll.u32 %v5825, 16
      %v6052 = vrot.slane %v6050, 5
      %v6053 = vsel %vm4000, %v6048, %v6052
      %v6054 = vshrl.u32 %v5825, 16
      %v6056 = vrot.slane %v6054, 4
      %v6057 = vor.u32 %v6056, %v6052
      %v6058 = vrot.slane %v6057, 4
      %v6060 = vshll.u32 %v5826, 16
      %v6062 = vrot.slane %v6060, 5
      %v6063 = vsel %vm4000, %v6058, %v6062
      %v6065 = vshrl.u32 %v5827, 16
      %v6067 = vrot.slane %v6065, 4
      %v6068 = vshll.u32 %v5827, 16
      %v6070 = vrot.slane %v6068, 5
      %v6071 = vor.u32 %v6067, %v6070
      %v6072 = vrot.slane %v6071, 4
      %v6074 = vshll.u32 %v5828, 16
      %v6076 = vrot.slane %v6074, 5
      %v6077 = vsel %vm4000, %v6072, %v6076
      %v6078 = vshrl.u32 %v5828, 16
      %v6080 = vrot.slane %v6078, 4
      %v6081 = vor.u32 %v6080, %v6076
      %v6082 = vrot.slane %v6081, 4
      %v6084 = vshll.u32 %v5829, 16
      %v6086 = vrot.slane %v6084, 5
      %v6087 = vsel %vm4000, %v6082, %v6086
      %v6089 = vshrl.u32 %v5830, 16
      %v6091 = vrot.slane %v6089, 4
      %v6092 = vshll.u32 %v5830, 16
      %v6094 = vrot.slane %v6092, 5
      %v6095 = vor.u32 %v6091, %v6094
      %v6096 = vrot.slane %v6095, 4
      %v6098 = vshll.u32 %v5831, 16
      %v6100 = vrot.slane %v6098, 5
      %v6101 = vsel %vm4000, %v6096, %v6100
      %v6102 = vshrl.u32 %v5831, 16
      %v6104 = vrot.slane %v6102, 4
      %v6105 = vor.u32 %v6104, %v6100
      %v6106 = vrot.slane %v6105, 4
      %v6108 = vshll.u32 %v5832, 16
      %v6110 = vrot.slane %v6108, 5
      %v6111 = vsel %vm4000, %v6106, %v6110
      %v6113 = vshrl.u32 %v5833, 16
      %v6115 = vrot.slane %v6113, 4
      %v6116 = vshll.u32 %v5833, 16
      %v6118 = vrot.slane %v6116, 5
      %v6119 = vor.u32 %v6115, %v6118
      %v6120 = vrot.slane %v6119, 4
      %v6122 = vshll.u32 %v5834, 16
      %v6124 = vrot.slane %v6122, 5
      %v6125 = vsel %vm4000, %v6120, %v6124
      %v6126 = vshrl.u32 %v5834, 16
      %v6128 = vrot.slane %v6126, 4
      %v6129 = vor.u32 %v6128, %v6124
      %v6130 = vrot.slane %v6129, 4
      %v6132 = vshll.u32 %v5835, 16
      %v6134 = vrot.slane %v6132, 5
      %v6135 = vsel %vm4000, %v6130, %v6134
      %v6137 = vshrl.u32 %v5836, 16
      %v6139 = vrot.slane %v6137, 4
      %v6140 = vshll.u32 %v5836, 16
      %v6142 = vrot.slane %v6140, 5
      %v6143 = vor.u32 %v6139, %v6142
      %v6144 = vrot.slane %v6143, 4
      %v6146 = vshll.u32 %v5837, 16
      %v6148 = vrot.slane %v6146, 5
      %v6149 = vsel %vm4000, %v6144, %v6148
      %v6150 = vshrl.u32 %v5837, 16
      %v6152 = vrot.slane %v6150, 4
      %v6153 = vor.u32 %v6152, %v6148
      %v6154 = vrot.slane %v6153, 4
      %v6156 = vshll.u32 %v5838, 16
      %v6158 = vrot.slane %v6156, 5
      %v6159 = vsel %vm4000, %v6154, %v6158
      %v6161 = vshrl.u32 %v5839, 16
      %v6163 = vrot.slane %v6161, 4
      %v6164 = vshll.u32 %v5839, 16
      %v6166 = vrot.slane %v6164, 5
      %v6167 = vor.u32 %v6163, %v6166
      %v6168 = vrot.slane %v6167, 4
      %v6170 = vshll.u32 %v5840, 16
      %v6172 = vrot.slane %v6170, 5
      %v6173 = vsel %vm4000, %v6168, %v6172
      %v6174 = vshrl.u32 %v5840, 16
      %v6176 = vrot.slane %v6174, 4
      %v6177 = vor.u32 %v6176, %v6172
      %v6178 = vrot.slane %v6177, 4
      %v6180 = vshll.u32 %v5841, 16
      %v6182 = vrot.slane %v6180, 5
      %v6183 = vsel %vm4000, %v6178, %v6182
      %v6185 = vshrl.u32 %v5842, 16
      %v6187 = vrot.slane %v6185, 4
      %v6188 = vshll.u32 %v5842, 16
      %v6190 = vrot.slane %v6188, 5
      %v6191 = vor.u32 %v6187, %v6190
      %v6192 = vrot.slane %v6191, 4
      %v6194 = vshll.u32 %v5843, 16
      %v6196 = vrot.slane %v6194, 5
      %v6197 = vsel %vm4000, %v6192, %v6196
      %v6198 = vshrl.u32 %v5843, 16
      %v6200 = vrot.slane %v6198, 4
      %v6201 = vor.u32 %v6200, %v6196
      %v6202 = vrot.slane %v6201, 4
      %v6204 = vshll.u32 %v5844, 16
      %v6206 = vrot.slane %v6204, 5
      %v6207 = vsel %vm4000, %v6202, %v6206
      %v6209 = vshrl.u32 %v5845, 16
      %v6211 = vrot.slane %v6209, 4
      %v6212 = vshll.u32 %v5845, 16
      %v6214 = vrot.slane %v6212, 5
      %v6215 = vor.u32 %v6211, %v6214
      %v6216 = vrot.slane %v6215, 4
      %v6218 = vshll.u32 %v5846, 16
      %v6220 = vrot.slane %v6218, 5
      %v6221 = vsel %vm4000, %v6216, %v6220
      %v6222 = vshrl.u32 %v5846, 16
      %v6224 = vrot.slane %v6222, 4
      %v6225 = vor.u32 %v6224, %v6220
      %v6226 = vrot.slane %v6225, 4
      %v6228 = vshll.u32 %v5847, 16
      %v6230 = vrot.slane %v6228, 5
      %v6231 = vsel %vm4000, %v6226, %v6230
      %v6232 = vunpack.c.l.b16 %v5861
      %v6233 = vunpack.c.l.b16 %v5871
      %v6234 = vunpack.c.l.b16 %v5885
      %v6235 = vunpack.c.l.b16 %v5895
      %v6236 = vunpack.c.l.b16 %v5909
      %v6237 = vunpack.c.l.b16 %v5919
      %v6238 = vunpack.c.l.b16 %v5933
      %v6239 = vunpack.c.l.b16 %v5943
      %v6240 = vunpack.c.l.b16 %v5957
      %v6241 = vunpack.c.l.b16 %v5967
      %v6242 = vunpack.c.l.b16 %v5981
      %v6243 = vunpack.c.l.b16 %v5991
      %v6244 = vunpack.c.l.b16 %v6005
      %v6245 = vunpack.c.l.b16 %v6015
      %v6246 = vunpack.c.l.b16 %v6029
      %v6247 = vunpack.c.l.b16 %v6039
      %v6248 = vunpack.c.l.b16 %v6053
      %v6249 = vunpack.c.l.b16 %v6063
      %v6250 = vunpack.c.l.b16 %v6077
      %v6251 = vunpack.c.l.b16 %v6087
      %v6252 = vunpack.c.l.b16 %v6101
      %v6253 = vunpack.c.l.b16 %v6111
      %v6254 = vunpack.c.l.b16 %v6125
      %v6255 = vunpack.c.l.b16 %v6135
      %v6256 = vunpack.c.l.b16 %v6149
      %v6257 = vunpack.c.l.b16 %v6159
      %v6258 = vunpack.c.l.b16 %v6173
      %v6259 = vunpack.c.l.b16 %v6183
      %v6260 = vunpack.c.l.b16 %v6197
      %v6261 = vunpack.c.l.b16 %v6207
      %v6262 = vunpack.c.l.b16 %v6221
      %v6263 = vunpack.c.l.b16 %v6231
      %v6264 = vpack.c.b16 %v6233, %v6232
      %v6265 = vpack.c.b16 %v6235, %v6234
      %v6266 = vpack.c.b16 %v6237, %v6236
      %v6267 = vpack.c.b16 %v6239, %v6238
      %v6268 = vpack.c.b16 %v6241, %v6240
      %v6269 = vpack.c.b16 %v6243, %v6242
      %v6270 = vpack.c.b16 %v6245, %v6244
      %v6271 = vpack.c.b16 %v6247, %v6246
      %v6272 = vpack.c.b16 %v6249, %v6248
      %v6273 = vpack.c.b16 %v6251, %v6250
      %v6274 = vpack.c.b16 %v6253, %v6252
      %v6275 = vpack.c.b16 %v6255, %v6254
      %v6276 = vpack.c.b16 %v6257, %v6256
      %v6277 = vpack.c.b16 %v6259, %v6258
      %v6278 = vpack.c.b16 %v6261, %v6260
      %v6279 = vpack.c.b16 %v6263, %v6262
      %v6312 = vunpack.c.l.b16 %v3870
      %v6313 = vunpack.c.l.b16 %v3871
      %v6314 = vunpack.c.l.b16 %v3872
      %v6315 = vunpack.c.l.b16 %v3873
      %v6316 = vunpack.c.l.b16 %v3874
      %v6317 = vunpack.c.l.b16 %v3875
      %v6318 = vunpack.c.l.b16 %v3876
      %v6319 = vunpack.c.l.b16 %v3877
      %v6320 = vunpack.c.l.b16 %v3878
      %v6321 = vunpack.c.l.b16 %v3879
      %v6322 = vunpack.c.l.b16 %v3880
      %v6323 = vunpack.c.l.b16 %v3881
      %v6324 = vunpack.c.l.b16 %v3882
      %v6325 = vunpack.c.l.b16 %v3883
      %v6326 = vunpack.c.l.b16 %v3884
      %v6327 = vunpack.c.l.b16 %v3885
      %v6328 = vpack.c.b16 %v6313, %v6312
      %v6329 = vpack.c.b16 %v6315, %v6314
      %v6330 = vpack.c.b16 %v6317, %v6316
      %v6331 = vpack.c.b16 %v6319, %v6318
      %v6332 = vpack.c.b16 %v6321, %v6320
      %v6333 = vpack.c.b16 %v6323, %v6322
      %v6334 = vpack.c.b16 %v6325, %v6324
      %v6335 = vpack.c.b16 %v6327, %v6326
      %6344 = vmatprep.subr.bf16.mxu0 0
      %6345 = vmatpush1.bf16.msra.mxu0 %v6328
      %6346 = vmatprep.subr.bf16.mxu0 0
      %6347 = vmatpush1.bf16.msra.mxu0 %v6329
      %6348 = vmatprep.subr.bf16.mxu0 0
      %6349 = vmatpush1.bf16.msra.mxu0 %v6330
      %6350 = vmatprep.subr.bf16.mxu0 0
      %6351 = vmatpush1.bf16.msra.mxu0 %v6331
      %6352 = vmatprep.subr.bf16.mxu0 0
      %6353 = vmatpush1.bf16.msra.mxu0 %v6332
      %6354 = vmatprep.subr.bf16.mxu0 0
      %6355 = vmatpush1.bf16.msra.mxu0 %v6333
      %6356 = vmatprep.subr.bf16.mxu0 0
      %6357 = vmatpush1.bf16.msra.mxu0 %v6334
      %6358 = vmatprep.subr.bf16.mxu0 0
      %6359 = vmatpush1.bf16.msra.mxu0 %v6335
      %6360 = vmatprep.subr.bf16.mxu0 0
      %6361 = vmatpush1.bf16.msra.mxu0 0
      %6362 = vmatprep.subr.bf16.mxu0 0
      %6363 = vmatpush1.bf16.msra.mxu0 0
      %6364 = vmatprep.subr.bf16.mxu0 0
      %6365 = vmatpush1.bf16.msra.mxu0 0
      %6366 = vmatprep.subr.bf16.mxu0 0
      %6367 = vmatpush1.bf16.msra.mxu0 0
      %6368 = vmatprep.subr.bf16.mxu0 0
      %6369 = vmatpush1.bf16.msra.mxu0 0
      %6370 = vmatprep.subr.bf16.mxu0 0
      %6371 = vmatpush1.bf16.msra.mxu0 0
      %6372 = vmatprep.subr.bf16.mxu0 0
      %6373 = vmatpush1.bf16.msra.mxu0 0
      %6374 = vmatprep.subr.bf16.mxu0 0
      %6375 = vmatpush1.bf16.msra.mxu0 0
      %6376 = vmatprep.mubr.bf16.mxu0 0
      %6377 = vmatmul.mubr.bf16.gmra.mrb[0].mxu0 %v6264
      %v6378 = vpop.f32.mrb[0].mxu0
      %v6379 = vadd.f32 0.0, %v6378
      %v6380 = vpop.f32.mrb[0].mxu0
      %v6381 = vpop.f32.mrb[0].mxu0
      %v6382 = vadd.f32 0.0, %v6381
      %v6383 = vpop.f32.mrb[0].mxu0
      %6384 = vmatprep.mubr.bf16.mxu0 0
      %6385 = vmatmul.mubr.bf16.gmra.mrb[0].mxu0 %v6265
      %v6386 = vpop.f32.mrb[0].mxu0
      %v6387 = vadd.f32 0.0, %v6386
      %v6388 = vpop.f32.mrb[0].mxu0
      %v6389 = vpop.f32.mrb[0].mxu0
      %v6390 = vadd.f32 0.0, %v6389
      %v6391 = vpop.f32.mrb[0].mxu0
      %6392 = vmatprep.mubr.bf16.mxu0 0
      %6393 = vmatmul.mubr.bf16.gmra.mrb[0].mxu0 %v6266
      %v6394 = vpop.f32.mrb[0].mxu0
      %v6395 = vadd.f32 0.0, %v6394
      %v6396 = vpop.f32.mrb[0].mxu0
      %v6397 = vpop.f32.mrb[0].mxu0
      %v6398 = vadd.f32 0.0, %v6397
      %v6399 = vpop.f32.mrb[0].mxu0
      %6400 = vmatprep.mubr.bf16.mxu0 0
      %6401 = vmatmul.mubr.bf16.gmra.mrb[0].mxu0 %v6267
      %v6402 = vpop.f32.mrb[0].mxu0
      %v6403 = vadd.f32 0.0, %v6402
      %v6404 = vpop.f32.mrb[0].mxu0
      %v6405 = vpop.f32.mrb[0].mxu0
      %v6406 = vadd.f32 0.0, %v6405
      %v6407 = vpop.f32.mrb[0].mxu0
      %6408 = vmatprep.mubr.bf16.mxu0 0
      %6409 = vmatmul.mubr.bf16.gmra.mrb[0].mxu0 %v6268
      %v6410 = vpop.f32.mrb[0].mxu0
      %v6411 = vadd.f32 0.0, %v6410
      %v6412 = vpop.f32.mrb[0].mxu0
      %v6413 = vpop.f32.mrb[0].mxu0
      %v6414 = vadd.f32 0.0, %v6413
      %v6415 = vpop.f32.mrb[0].mxu0
      %6416 = vmatprep.mubr.bf16.mxu0 0
      %6417 = vmatmul.mubr.bf16.gmra.mrb[0].mxu0 %v6269
      %v6418 = vpop.f32.mrb[0].mxu0
      %v6419 = vadd.f32 0.0, %v6418
      %v6420 = vpop.f32.mrb[0].mxu0
      %v6421 = vpop.f32.mrb[0].mxu0
      %v6422 = vadd.f32 0.0, %v6421
      %v6423 = vpop.f32.mrb[0].mxu0
      %6424 = vmatprep.mubr.bf16.mxu0 0
      %6425 = vmatmul.mubr.bf16.gmra.mrb[0].mxu0 %v6270
      %v6426 = vpop.f32.mrb[0].mxu0
      %v6427 = vadd.f32 0.0, %v6426
      %v6428 = vpop.f32.mrb[0].mxu0
      %v6429 = vpop.f32.mrb[0].mxu0
      %v6430 = vadd.f32 0.0, %v6429
      %v6431 = vpop.f32.mrb[0].mxu0
      %6432 = vmatprep.mubr.bf16.mxu0 0
      %6433 = vmatmul.mubr.bf16.gmra.mrb[0].mxu0 %v6271
      %v6434 = vpop.f32.mrb[0].mxu0
      %v6435 = vadd.f32 0.0, %v6434
      %v6436 = vpop.f32.mrb[0].mxu0
      %v6437 = vpop.f32.mrb[0].mxu0
      %v6438 = vadd.f32 0.0, %v6437
      %v6439 = vpop.f32.mrb[0].mxu0
      %6440 = vmatprep.mubr.bf16.mxu0 0
      %6441 = vmatmul.mubr.bf16.gmra.mrb[0].mxu0 %v6272
      %v6442 = vpop.f32.mrb[0].mxu0
      %v6443 = vadd.f32 0.0, %v6442
      %v6444 = vpop.f32.mrb[0].mxu0
      %v6445 = vpop.f32.mrb[0].mxu0
      %v6446 = vadd.f32 0.0, %v6445
      %v6447 = vpop.f32.mrb[0].mxu0
      %6448 = vmatprep.mubr.bf16.mxu0 0
      %6449 = vmatmul.mubr.bf16.gmra.mrb[0].mxu0 %v6273
      %v6450 = vpop.f32.mrb[0].mxu0
      %v6451 = vadd.f32 0.0, %v6450
      %v6452 = vpop.f32.mrb[0].mxu0
      %v6453 = vpop.f32.mrb[0].mxu0
      %v6454 = vadd.f32 0.0, %v6453
      %v6455 = vpop.f32.mrb[0].mxu0
      %6456 = vmatprep.mubr.bf16.mxu0 0
      %6457 = vmatmul.mubr.bf16.gmra.mrb[0].mxu0 %v6274
      %v6458 = vpop.f32.mrb[0].mxu0
      %v6459 = vadd.f32 0.0, %v6458
      %v6460 = vpop.f32.mrb[0].mxu0
      %v6461 = vpop.f32.mrb[0].mxu0
      %v6462 = vadd.f32 0.0, %v6461
      %v6463 = vpop.f32.mrb[0].mxu0
      %6464 = vmatprep.mubr.bf16.mxu0 0
      %6465 = vmatmul.mubr.bf16.gmra.mrb[0].mxu0 %v6275
      %v6466 = vpop.f32.mrb[0].mxu0
      %v6467 = vadd.f32 0.0, %v6466
      %v6468 = vpop.f32.mrb[0].mxu0
      %v6469 = vpop.f32.mrb[0].mxu0
      %v6470 = vadd.f32 0.0, %v6469
      %v6471 = vpop.f32.mrb[0].mxu0
      %6472 = vmatprep.mubr.bf16.mxu0 0
      %6473 = vmatmul.mubr.bf16.gmra.mrb[0].mxu0 %v6276
      %v6474 = vpop.f32.mrb[0].mxu0
      %v6475 = vadd.f32 0.0, %v6474
      %v6476 = vpop.f32.mrb[0].mxu0
      %v6477 = vpop.f32.mrb[0].mxu0
      %v6478 = vadd.f32 0.0, %v6477
      %v6479 = vpop.f32.mrb[0].mxu0
      %6480 = vmatprep.mubr.bf16.mxu0 0
      %6481 = vmatmul.mubr.bf16.gmra.mrb[0].mxu0 %v6277
      %v6482 = vpop.f32.mrb[0].mxu0
      %v6483 = vadd.f32 0.0, %v6482
      %v6484 = vpop.f32.mrb[0].mxu0
      %v6485 = vpop.f32.mrb[0].mxu0
      %v6486 = vadd.f32 0.0, %v6485
      %v6487 = vpop.f32.mrb[0].mxu0
      %6488 = vmatprep.mubr.bf16.mxu0 0
      %6489 = vmatmul.mubr.bf16.gmra.mrb[0].mxu0 %v6278
      %v6490 = vpop.f32.mrb[0].mxu0
      %v6491 = vadd.f32 0.0, %v6490
      %v6492 = vpop.f32.mrb[0].mxu0
      %v6493 = vpop.f32.mrb[0].mxu0
      %v6494 = vadd.f32 0.0, %v6493
      %v6495 = vpop.f32.mrb[0].mxu0
      %6496 = vmatprep.mubr.bf16.mxu0 0
      %6497 = vmatmul.mubr.bf16.gmra.mrb[0].mxu0 %v6279
      %v6498 = vpop.f32.mrb[0].mxu0
      %v6499 = vadd.f32 0.0, %v6498
      %v6500 = vpop.f32.mrb[0].mxu0
      %v6501 = vpop.f32.mrb[0].mxu0
      %v6502 = vadd.f32 0.0, %v6501
      %v6503 = vpop.f32.mrb[0].mxu0
      %6504 = vdwg.mxu0
      %v6505 = vadd.f32 %v5768, %v6379
      %v6506 = vadd.f32 %v5769, %v6382
      %v6507 = vadd.f32 %v5770, %v6387
      %v6508 = vadd.f32 %v5771, %v6390
      %v6509 = vadd.f32 %v5772, %v6395
      %v6510 = vadd.f32 %v5773, %v6398
      %v6511 = vadd.f32 %v5774, %v6403
      %v6512 = vadd.f32 %v5775, %v6406
      %v6513 = vadd.f32 %v5776, %v6411
      %v6514 = vadd.f32 %v5777, %v6414
      %v6515 = vadd.f32 %v5778, %v6419
      %v6516 = vadd.f32 %v5779, %v6422
      %v6517 = vadd.f32 %v5780, %v6427
      %v6518 = vadd.f32 %v5781, %v6430
      %v6519 = vadd.f32 %v5782, %v6435
      %v6520 = vadd.f32 %v5783, %v6438
      %v6521 = vadd.f32 %v5784, %v6443
      %v6522 = vadd.f32 %v5785, %v6446
      %v6523 = vadd.f32 %v5786, %v6451
      %v6524 = vadd.f32 %v5787, %v6454
      %v6525 = vadd.f32 %v5788, %v6459
      %v6526 = vadd.f32 %v5789, %v6462
      %v6527 = vadd.f32 %v5790, %v6467
      %v6528 = vadd.f32 %v5791, %v6470
      %v6529 = vadd.f32 %v5792, %v6475
      %v6530 = vadd.f32 %v5793, %v6478
      %v6531 = vadd.f32 %v5794, %v6483
      %v6532 = vadd.f32 %v5795, %v6486
      %v6533 = vadd.f32 %v5796, %v6491
      %v6534 = vadd.f32 %v5797, %v6494
      %v6535 = vadd.f32 %v5798, %v6499
      %v6536 = vadd.f32 %v5799, %v6502
      %v6537 = vld [vmem:[%s3480] sm:$0xe]
      %v6538 = vld [vmem:[%s3480 + $0xc] sm:$0xe]
      %v6539 = vld [vmem:[%s3480 + $0x18] sm:$0xe]
      %v6540 = vld [vmem:[%s3480 + $0x24] sm:$0xe]
      %v6541 = vld [vmem:[%s3480 + $0x30] sm:$0xe]
      %v6542 = vld [vmem:[%s3480 + $0x3c] sm:$0xe]
      %v6543 = vld [vmem:[%s3480 + $0x48] sm:$0xe]
      %v6544 = vld [vmem:[%s3480 + $0x54] sm:$0xe]
      %v6545 = vld [vmem:[%s3480 + $0x60] sm:$0xe]
      %v6546 = vld [vmem:[%s3480 + $0x6c] sm:$0xe]
      %v6547 = vld [vmem:[%s3480 + $0x78] sm:$0xe]
      %v6548 = vld [vmem:[%s3480 + $0x84] sm:$0xe]
      %v6549 = vld [vmem:[%s3480 + $0x90] sm:$0xe]
      %v6550 = vld [vmem:[%s3480 + $0x9c] sm:$0xe]
      %v6551 = vld [vmem:[%s3480 + $0xa8] sm:$0xe]
      %v6552 = vld [vmem:[%s3480 + $0xb4] sm:$0xe]
      %v6601 = vrot.slane %v6537, 5
      %v6602 = vrot.slane %v6601, 4
      %v6603 = vrot.slane %v5801, 5
      %v6604 = vsel %vm5013, %v6602, %v6603
      %v6605 = vrot.slane %v6603, 4
      %v6606 = vrot.slane %v5802, 5
      %v6607 = vsel %vm5013, %v6605, %v6606
      %v6608 = vrot.slane %v6538, 5
      %v6609 = vrot.slane %v6608, 4
      %v6610 = vrot.slane %v5804, 5
      %v6611 = vsel %vm5013, %v6609, %v6610
      %v6612 = vrot.slane %v6610, 4
      %v6613 = vrot.slane %v5805, 5
      %v6614 = vsel %vm5013, %v6612, %v6613
      %v6615 = vrot.slane %v6539, 5
      %v6616 = vrot.slane %v6615, 4
      %v6617 = vrot.slane %v5807, 5
      %v6618 = vsel %vm5013, %v6616, %v6617
      %v6619 = vrot.slane %v6617, 4
      %v6620 = vrot.slane %v5808, 5
      %v6621 = vsel %vm5013, %v6619, %v6620
      %v6622 = vrot.slane %v6540, 5
      %v6623 = vrot.slane %v6622, 4
      %v6624 = vrot.slane %v5810, 5
      %v6625 = vsel %vm5013, %v6623, %v6624
      %v6626 = vrot.slane %v6624, 4
      %v6627 = vrot.slane %v5811, 5
      %v6628 = vsel %vm5013, %v6626, %v6627
      %v6629 = vrot.slane %v6541, 5
      %v6630 = vrot.slane %v6629, 4
      %v6631 = vrot.slane %v5813, 5
      %v6632 = vsel %vm5013, %v6630, %v6631
      %v6633 = vrot.slane %v6631, 4
      %v6634 = vrot.slane %v5814, 5
      %v6635 = vsel %vm5013, %v6633, %v6634
      %v6636 = vrot.slane %v6542, 5
      %v6637 = vrot.slane %v6636, 4
      %v6638 = vrot.slane %v5816, 5
      %v6639 = vsel %vm5013, %v6637, %v6638
      %v6640 = vrot.slane %v6638, 4
      %v6641 = vrot.slane %v5817, 5
      %v6642 = vsel %vm5013, %v6640, %v6641
      %v6643 = vrot.slane %v6543, 5
      %v6644 = vrot.slane %v6643, 4
      %v6645 = vrot.slane %v5819, 5
      %v6646 = vsel %vm5013, %v6644, %v6645
      %v6647 = vrot.slane %v6645, 4
      %v6648 = vrot.slane %v5820, 5
      %v6649 = vsel %vm5013, %v6647, %v6648
      %v6650 = vrot.slane %v6544, 5
      %v6651 = vrot.slane %v6650, 4
      %v6652 = vrot.slane %v5822, 5
      %v6653 = vsel %vm5013, %v6651, %v6652
      %v6654 = vrot.slane %v6652, 4
      %v6655 = vrot.slane %v5823, 5
      %v6656 = vsel %vm5013, %v6654, %v6655
      %v6657 = vrot.slane %v6545, 5
      %v6658 = vrot.slane %v6657, 4
      %v6659 = vrot.slane %v5825, 5
      %v6660 = vsel %vm5013, %v6658, %v6659
      %v6661 = vrot.slane %v6659, 4
      %v6662 = vrot.slane %v5826, 5
      %v6663 = vsel %vm5013, %v6661, %v6662
      %v6664 = vrot.slane %v6546, 5
      %v6665 = vrot.slane %v6664, 4
      %v6666 = vrot.slane %v5828, 5
      %v6667 = vsel %vm5013, %v6665, %v6666
      %v6668 = vrot.slane %v6666, 4
      %v6669 = vrot.slane %v5829, 5
      %v6670 = vsel %vm5013, %v6668, %v6669
      %v6671 = vrot.slane %v6547, 5
      %v6672 = vrot.slane %v6671, 4
      %v6673 = vrot.slane %v5831, 5
      %v6674 = vsel %vm5013, %v6672, %v6673
      %v6675 = vrot.slane %v6673, 4
      %v6676 = vrot.slane %v5832, 5
      %v6677 = vsel %vm5013, %v6675, %v6676
      %v6678 = vrot.slane %v6548, 5
      %v6679 = vrot.slane %v6678, 4
      %v6680 = vrot.slane %v5834, 5
      %v6681 = vsel %vm5013, %v6679, %v6680
      %v6682 = vrot.slane %v6680, 4
      %v6683 = vrot.slane %v5835, 5
      %v6684 = vsel %vm5013, %v6682, %v6683
      %v6685 = vrot.slane %v6549, 5
      %v6686 = vrot.slane %v6685, 4
      %v6687 = vrot.slane %v5837, 5
      %v6688 = vsel %vm5013, %v6686, %v6687
      %v6689 = vrot.slane %v6687, 4
      %v6690 = vrot.slane %v5838, 5
      %v6691 = vsel %vm5013, %v6689, %v6690
      %v6692 = vrot.slane %v6550, 5
      %v6693 = vrot.slane %v6692, 4
      %v6694 = vrot.slane %v5840, 5
      %v6695 = vsel %vm5013, %v6693, %v6694
      %v6696 = vrot.slane %v6694, 4
      %v6697 = vrot.slane %v5841, 5
      %v6698 = vsel %vm5013, %v6696, %v6697
      %v6699 = vrot.slane %v6551, 5
      %v6700 = vrot.slane %v6699, 4
      %v6701 = vrot.slane %v5843, 5
      %v6702 = vsel %vm5013, %v6700, %v6701
      %v6703 = vrot.slane %v6701, 4
      %v6704 = vrot.slane %v5844, 5
      %v6705 = vsel %vm5013, %v6703, %v6704
      %v6706 = vrot.slane %v6552, 5
      %v6707 = vrot.slane %v6706, 4
      %v6708 = vrot.slane %v5846, 5
      %v6709 = vsel %vm5013, %v6707, %v6708
      %v6710 = vrot.slane %v6708, 4
      %v6711 = vrot.slane %v5847, 5
      %v6712 = vsel %vm5013, %v6710, %v6711
      %v6713 = vunpack.c.l.b16 %v6604
      %v6714 = vunpack.c.l.b16 %v6607
      %v6715 = vunpack.c.l.b16 %v6611
      %v6716 = vunpack.c.l.b16 %v6614
      %v6717 = vunpack.c.l.b16 %v6618
      %v6718 = vunpack.c.l.b16 %v6621
      %v6719 = vunpack.c.l.b16 %v6625
      %v6720 = vunpack.c.l.b16 %v6628
      %v6721 = vunpack.c.l.b16 %v6632
      %v6722 = vunpack.c.l.b16 %v6635
      %v6723 = vunpack.c.l.b16 %v6639
      %v6724 = vunpack.c.l.b16 %v6642
      %v6725 = vunpack.c.l.b16 %v6646
      %v6726 = vunpack.c.l.b16 %v6649
      %v6727 = vunpack.c.l.b16 %v6653
      %v6728 = vunpack.c.l.b16 %v6656
      %v6729 = vunpack.c.l.b16 %v6660
      %v6730 = vunpack.c.l.b16 %v6663
      %v6731 = vunpack.c.l.b16 %v6667
      %v6732 = vunpack.c.l.b16 %v6670
      %v6733 = vunpack.c.l.b16 %v6674
      %v6734 = vunpack.c.l.b16 %v6677
      %v6735 = vunpack.c.l.b16 %v6681
      %v6736 = vunpack.c.l.b16 %v6684
      %v6737 = vunpack.c.l.b16 %v6688
      %v6738 = vunpack.c.l.b16 %v6691
      %v6739 = vunpack.c.l.b16 %v6695
      %v6740 = vunpack.c.l.b16 %v6698
      %v6741 = vunpack.c.l.b16 %v6702
      %v6742 = vunpack.c.l.b16 %v6705
      %v6743 = vunpack.c.l.b16 %v6709
      %v6744 = vunpack.c.l.b16 %v6712
      %v6745 = vpack.c.b16 %v6714, %v6713
      %v6746 = vpack.c.b16 %v6716, %v6715
      %v6747 = vpack.c.b16 %v6718, %v6717
      %v6748 = vpack.c.b16 %v6720, %v6719
      %v6749 = vpack.c.b16 %v6722, %v6721
      %v6750 = vpack.c.b16 %v6724, %v6723
      %v6751 = vpack.c.b16 %v6726, %v6725
      %v6752 = vpack.c.b16 %v6728, %v6727
      %v6753 = vpack.c.b16 %v6730, %v6729
      %v6754 = vpack.c.b16 %v6732, %v6731
      %v6755 = vpack.c.b16 %v6734, %v6733
      %v6756 = vpack.c.b16 %v6736, %v6735
      %v6757 = vpack.c.b16 %v6738, %v6737
      %v6758 = vpack.c.b16 %v6740, %v6739
      %v6759 = vpack.c.b16 %v6742, %v6741
      %v6760 = vpack.c.b16 %v6744, %v6743
      %v6793 = vunpack.c.l.b16 %v3886
      %v6794 = vunpack.c.l.b16 %v3887
      %v6795 = vunpack.c.l.b16 %v3888
      %v6796 = vunpack.c.l.b16 %v3889
      %v6797 = vunpack.c.l.b16 %v3890
      %v6798 = vunpack.c.l.b16 %v3891
      %v6799 = vunpack.c.l.b16 %v3892
      %v6800 = vunpack.c.l.b16 %v3893
      %v6801 = vunpack.c.l.b16 %v3894
      %v6802 = vunpack.c.l.b16 %v3895
      %v6803 = vunpack.c.l.b16 %v3896
      %v6804 = vunpack.c.l.b16 %v3897
      %v6805 = vunpack.c.l.b16 %v3898
      %v6806 = vunpack.c.l.b16 %v3899
      %v6807 = vunpack.c.l.b16 %v3900
      %v6808 = vunpack.c.l.b16 %v3901
      %v6809 = vpack.c.b16 %v6794, %v6793
      %v6810 = vpack.c.b16 %v6796, %v6795
      %v6811 = vpack.c.b16 %v6798, %v6797
      %v6812 = vpack.c.b16 %v6800, %v6799
      %v6813 = vpack.c.b16 %v6802, %v6801
      %v6814 = vpack.c.b16 %v6804, %v6803
      %v6815 = vpack.c.b16 %v6806, %v6805
      %v6816 = vpack.c.b16 %v6808, %v6807
      %6825 = vmatprep.subr.bf16.mxu0 0
      %6826 = vmatpush1.bf16.msra.mxu0 %v6809
      %6827 = vmatprep.subr.bf16.mxu0 0
      %6828 = vmatpush1.bf16.msra.mxu0 %v6810
      %6829 = vmatprep.subr.bf16.mxu0 0
      %6830 = vmatpush1.bf16.msra.mxu0 %v6811
      %6831 = vmatprep.subr.bf16.mxu0 0
      %6832 = vmatpush1.bf16.msra.mxu0 %v6812
      %6833 = vmatprep.subr.bf16.mxu0 0
      %6834 = vmatpush1.bf16.msra.mxu0 %v6813
      %6835 = vmatprep.subr.bf16.mxu0 0
      %6836 = vmatpush1.bf16.msra.mxu0 %v6814
      %6837 = vmatprep.subr.bf16.mxu0 0
      %6838 = vmatpush1.bf16.msra.mxu0 %v6815
      %6839 = vmatprep.subr.bf16.mxu0 0
      %6840 = vmatpush1.bf16.msra.mxu0 %v6816
      %6841 = vmatprep.subr.bf16.mxu0 0
      %6842 = vmatpush1.bf16.msra.mxu0 0
      %6843 = vmatprep.subr.bf16.mxu0 0
      %6844 = vmatpush1.bf16.msra.mxu0 0
      %6845 = vmatprep.subr.bf16.mxu0 0
      %6846 = vmatpush1.bf16.msra.mxu0 0
      %6847 = vmatprep.subr.bf16.mxu0 0
      %6848 = vmatpush1.bf16.msra.mxu0 0
      %6849 = vmatprep.subr.bf16.mxu0 0
      %6850 = vmatpush1.bf16.msra.mxu0 0
      %6851 = vmatprep.subr.bf16.mxu0 0
      %6852 = vmatpush1.bf16.msra.mxu0 0
      %6853 = vmatprep.subr.bf16.mxu0 0
      %6854 = vmatpush1.bf16.msra.mxu0 0
      %6855 = vmatprep.subr.bf16.mxu0 0
      %6856 = vmatpush1.bf16.msra.mxu0 0
      %6857 = vmatprep.mubr.bf16.mxu0 0
      %6858 = vmatmul.mubr.bf16.gmra.mrb[0].mxu0 %v6745
      %v6859 = vpop.f32.mrb[0].mxu0
      %v6860 = vadd.f32 0.0, %v6859
      %v6861 = vpop.f32.mrb[0].mxu0
      %v6862 = vpop.f32.mrb[0].mxu0
      %v6863 = vadd.f32 0.0, %v6862
      %v6864 = vpop.f32.mrb[0].mxu0
      %6865 = vmatprep.mubr.bf16.mxu0 0
      %6866 = vmatmul.mubr.bf16.gmra.mrb[0].mxu0 %v6746
      %v6867 = vpop.f32.mrb[0].mxu0
      %v6868 = vadd.f32 0.0, %v6867
      %v6869 = vpop.f32.mrb[0].mxu0
      %v6870 = vpop.f32.mrb[0].mxu0
      %v6871 = vadd.f32 0.0, %v6870
      %v6872 = vpop.f32.mrb[0].mxu0
      %6873 = vmatprep.mubr.bf16.mxu0 0
      %6874 = vmatmul.mubr.bf16.gmra.mrb[0].mxu0 %v6747
      %v6875 = vpop.f32.mrb[0].mxu0
      %v6876 = vadd.f32 0.0, %v6875
      %v6877 = vpop.f32.mrb[0].mxu0
      %v6878 = vpop.f32.mrb[0].mxu0
      %v6879 = vadd.f32 0.0, %v6878
      %v6880 = vpop.f32.mrb[0].mxu0
      %6881 = vmatprep.mubr.bf16.mxu0 0
      %6882 = vmatmul.mubr.bf16.gmra.mrb[0].mxu0 %v6748
      %v6883 = vpop.f32.mrb[0].mxu0
      %v6884 = vadd.f32 0.0, %v6883
      %v6885 = vpop.f32.mrb[0].mxu0
      %v6886 = vpop.f32.mrb[0].mxu0
      %v6887 = vadd.f32 0.0, %v6886
      %v6888 = vpop.f32.mrb[0].mxu0
      %6889 = vmatprep.mubr.bf16.mxu0 0
      %6890 = vmatmul.mubr.bf16.gmra.mrb[0].mxu0 %v6749
      %v6891 = vpop.f32.mrb[0].mxu0
      %v6892 = vadd.f32 0.0, %v6891
      %v6893 = vpop.f32.mrb[0].mxu0
      %v6894 = vpop.f32.mrb[0].mxu0
      %v6895 = vadd.f32 0.0, %v6894
      %v6896 = vpop.f32.mrb[0].mxu0
      %6897 = vmatprep.mubr.bf16.mxu0 0
      %6898 = vmatmul.mubr.bf16.gmra.mrb[0].mxu0 %v6750
      %v6899 = vpop.f32.mrb[0].mxu0
      %v6900 = vadd.f32 0.0, %v6899
      %v6901 = vpop.f32.mrb[0].mxu0
      %v6902 = vpop.f32.mrb[0].mxu0
      %v6903 = vadd.f32 0.0, %v6902
      %v6904 = vpop.f32.mrb[0].mxu0
      %6905 = vmatprep.mubr.bf16.mxu0 0
      %6906 = vmatmul.mubr.bf16.gmra.mrb[0].mxu0 %v6751
      %v6907 = vpop.f32.mrb[0].mxu0
      %v6908 = vadd.f32 0.0, %v6907
      %v6909 = vpop.f32.mrb[0].mxu0
      %v6910 = vpop.f32.mrb[0].mxu0
      %v6911 = vadd.f32 0.0, %v6910
      %v6912 = vpop.f32.mrb[0].mxu0
      %6913 = vmatprep.mubr.bf16.mxu0 0
      %6914 = vmatmul.mubr.bf16.gmra.mrb[0].mxu0 %v6752
      %v6915 = vpop.f32.mrb[0].mxu0
      %v6916 = vadd.f32 0.0, %v6915
      %v6917 = vpop.f32.mrb[0].mxu0
      %v6918 = vpop.f32.mrb[0].mxu0
      %v6919 = vadd.f32 0.0, %v6918
      %v6920 = vpop.f32.mrb[0].mxu0
      %6921 = vmatprep.mubr.bf16.mxu0 0
      %6922 = vmatmul.mubr.bf16.gmra.mrb[0].mxu0 %v6753
      %v6923 = vpop.f32.mrb[0].mxu0
      %v6924 = vadd.f32 0.0, %v6923
      %v6925 = vpop.f32.mrb[0].mxu0
      %v6926 = vpop.f32.mrb[0].mxu0
      %v6927 = vadd.f32 0.0, %v6926
      %v6928 = vpop.f32.mrb[0].mxu0
      %6929 = vmatprep.mubr.bf16.mxu0 0
      %6930 = vmatmul.mubr.bf16.gmra.mrb[0].mxu0 %v6754
      %v6931 = vpop.f32.mrb[0].mxu0
      %v6932 = vadd.f32 0.0, %v6931
      %v6933 = vpop.f32.mrb[0].mxu0
      %v6934 = vpop.f32.mrb[0].mxu0
      %v6935 = vadd.f32 0.0, %v6934
      %v6936 = vpop.f32.mrb[0].mxu0
      %6937 = vmatprep.mubr.bf16.mxu0 0
      %6938 = vmatmul.mubr.bf16.gmra.mrb[0].mxu0 %v6755
      %v6939 = vpop.f32.mrb[0].mxu0
      %v6940 = vadd.f32 0.0, %v6939
      %v6941 = vpop.f32.mrb[0].mxu0
      %v6942 = vpop.f32.mrb[0].mxu0
      %v6943 = vadd.f32 0.0, %v6942
      %v6944 = vpop.f32.mrb[0].mxu0
      %6945 = vmatprep.mubr.bf16.mxu0 0
      %6946 = vmatmul.mubr.bf16.gmra.mrb[0].mxu0 %v6756
      %v6947 = vpop.f32.mrb[0].mxu0
      %v6948 = vadd.f32 0.0, %v6947
      %v6949 = vpop.f32.mrb[0].mxu0
      %v6950 = vpop.f32.mrb[0].mxu0
      %v6951 = vadd.f32 0.0, %v6950
      %v6952 = vpop.f32.mrb[0].mxu0
      %6953 = vmatprep.mubr.bf16.mxu0 0
      %6954 = vmatmul.mubr.bf16.gmra.mrb[0].mxu0 %v6757
      %v6955 = vpop.f32.mrb[0].mxu0
      %v6956 = vadd.f32 0.0, %v6955
      %v6957 = vpop.f32.mrb[0].mxu0
      %v6958 = vpop.f32.mrb[0].mxu0
      %v6959 = vadd.f32 0.0, %v6958
      %v6960 = vpop.f32.mrb[0].mxu0
      %6961 = vmatprep.mubr.bf16.mxu0 0
      %6962 = vmatmul.mubr.bf16.gmra.mrb[0].mxu0 %v6758
      %v6963 = vpop.f32.mrb[0].mxu0
      %v6964 = vadd.f32 0.0, %v6963
      %v6965 = vpop.f32.mrb[0].mxu0
      %v6966 = vpop.f32.mrb[0].mxu0
      %v6967 = vadd.f32 0.0, %v6966
      %v6968 = vpop.f32.mrb[0].mxu0
      %6969 = vmatprep.mubr.bf16.mxu0 0
      %6970 = vmatmul.mubr.bf16.gmra.mrb[0].mxu0 %v6759
      %v6971 = vpop.f32.mrb[0].mxu0
      %v6972 = vadd.f32 0.0, %v6971
      %v6973 = vpop.f32.mrb[0].mxu0
      %v6974 = vpop.f32.mrb[0].mxu0
      %v6975 = vadd.f32 0.0, %v6974
      %v6976 = vpop.f32.mrb[0].mxu0
      %6977 = vmatprep.mubr.bf16.mxu0 0
      %6978 = vmatmul.mubr.bf16.gmra.mrb[0].mxu0 %v6760
      %v6979 = vpop.f32.mrb[0].mxu0
      %v6980 = vadd.f32 0.0, %v6979
      %v6981 = vpop.f32.mrb[0].mxu0
      %v6982 = vpop.f32.mrb[0].mxu0
      %v6983 = vadd.f32 0.0, %v6982
      %v6984 = vpop.f32.mrb[0].mxu0
      %6985 = vdwg.mxu0
      %v6986 = vadd.f32 %v6505, %v6860
      %v6987 = vadd.f32 %v6506, %v6863
      %v6988 = vadd.f32 %v6507, %v6868
      %v6989 = vadd.f32 %v6508, %v6871
      %v6990 = vadd.f32 %v6509, %v6876
      %v6991 = vadd.f32 %v6510, %v6879
      %v6992 = vadd.f32 %v6511, %v6884
      %v6993 = vadd.f32 %v6512, %v6887
      %v6994 = vadd.f32 %v6513, %v6892
      %v6995 = vadd.f32 %v6514, %v6895
      %v6996 = vadd.f32 %v6515, %v6900
      %v6997 = vadd.f32 %v6516, %v6903
      %v6998 = vadd.f32 %v6517, %v6908
      %v6999 = vadd.f32 %v6518, %v6911
      %v7000 = vadd.f32 %v6519, %v6916
      %v7001 = vadd.f32 %v6520, %v6919
      %v7002 = vadd.f32 %v6521, %v6924
      %v7003 = vadd.f32 %v6522, %v6927
      %v7004 = vadd.f32 %v6523, %v6932
      %v7005 = vadd.f32 %v6524, %v6935
      %v7006 = vadd.f32 %v6525, %v6940
      %v7007 = vadd.f32 %v6526, %v6943
      %v7008 = vadd.f32 %v6527, %v6948
      %v7009 = vadd.f32 %v6528, %v6951
      %v7010 = vadd.f32 %v6529, %v6956
      %v7011 = vadd.f32 %v6530, %v6959
      %v7012 = vadd.f32 %v6531, %v6964
      %v7013 = vadd.f32 %v6532, %v6967
      %v7014 = vadd.f32 %v6533, %v6972
      %v7015 = vadd.f32 %v6534, %v6975
      %v7016 = vadd.f32 %v6535, %v6980
      %v7017 = vadd.f32 %v6536, %v6983
      %v7018 = vld [vmem:[%s3791] sm:$0xf]
      %v7019 = vld [vmem:[%s3791 + $0x4] sm:$0xf]
      %v7020 = vld [vmem:[%s3791 + $0xc] sm:$0xf]
      %v7021 = vld [vmem:[%s3791 + $0x10] sm:$0xf]
      %v7022 = vld [vmem:[%s3791 + $0x18] sm:$0xf]
      %v7023 = vld [vmem:[%s3791 + $0x1c] sm:$0xf]
      %v7024 = vld [vmem:[%s3791 + $0x24] sm:$0xf]
      %v7025 = vld [vmem:[%s3791 + $0x28] sm:$0xf]
      %v7026 = vld [vmem:[%s3791 + $0x30] sm:$0xf]
      %v7027 = vld [vmem:[%s3791 + $0x34] sm:$0xf]
      %v7028 = vld [vmem:[%s3791 + $0x3c] sm:$0xf]
      %v7029 = vld [vmem:[%s3791 + $0x40] sm:$0xf]
      %v7030 = vld [vmem:[%s3791 + $0x48] sm:$0xf]
      %v7031 = vld [vmem:[%s3791 + $0x4c] sm:$0xf]
      %v7032 = vld [vmem:[%s3791 + $0x54] sm:$0xf]
      %v7033 = vld [vmem:[%s3791 + $0x58] sm:$0xf]
      %v7034 = vld [vmem:[%s3791 + $0x60] sm:$0xf]
      %v7035 = vld [vmem:[%s3791 + $0x64] sm:$0xf]
      %v7036 = vld [vmem:[%s3791 + $0x6c] sm:$0xf]
      %v7037 = vld [vmem:[%s3791 + $0x70] sm:$0xf]
      %v7038 = vld [vmem:[%s3791 + $0x78] sm:$0xf]
      %v7039 = vld [vmem:[%s3791 + $0x7c] sm:$0xf]
      %v7040 = vld [vmem:[%s3791 + $0x84] sm:$0xf]
      %v7041 = vld [vmem:[%s3791 + $0x88] sm:$0xf]
      %v7042 = vld [vmem:[%s3791 + $0x90] sm:$0xf]
      %v7043 = vld [vmem:[%s3791 + $0x94] sm:$0xf]
      %v7044 = vld [vmem:[%s3791 + $0x9c] sm:$0xf]
      %v7045 = vld [vmem:[%s3791 + $0xa0] sm:$0xf]
      %v7046 = vld [vmem:[%s3791 + $0xa8] sm:$0xf]
      %v7047 = vld [vmem:[%s3791 + $0xac] sm:$0xf]
      %v7048 = vld [vmem:[%s3791 + $0xb4] sm:$0xf]
      %v7049 = vld [vmem:[%s3791 + $0xb8] sm:$0xf]
      %v7082 = vunpack.c.l.b16 %v7018
      %v7083 = vunpack.c.l.b16 %v7019
      %v7084 = vunpack.c.l.b16 %v7020
      %v7085 = vunpack.c.l.b16 %v7021
      %v7086 = vunpack.c.l.b16 %v7022
      %v7087 = vunpack.c.l.b16 %v7023
      %v7088 = vunpack.c.l.b16 %v7024
      %v7089 = vunpack.c.l.b16 %v7025
      %v7090 = vunpack.c.l.b16 %v7026
      %v7091 = vunpack.c.l.b16 %v7027
      %v7092 = vunpack.c.l.b16 %v7028
      %v7093 = vunpack.c.l.b16 %v7029
      %v7094 = vunpack.c.l.b16 %v7030
      %v7095 = vunpack.c.l.b16 %v7031
      %v7096 = vunpack.c.l.b16 %v7032
      %v7097 = vunpack.c.l.b16 %v7033
      %v7098 = vunpack.c.l.b16 %v7034
      %v7099 = vunpack.c.l.b16 %v7035
      %v7100 = vunpack.c.l.b16 %v7036
      %v7101 = vunpack.c.l.b16 %v7037
      %v7102 = vunpack.c.l.b16 %v7038
      %v7103 = vunpack.c.l.b16 %v7039
      %v7104 = vunpack.c.l.b16 %v7040
      %v7105 = vunpack.c.l.b16 %v7041
      %v7106 = vunpack.c.l.b16 %v7042
      %v7107 = vunpack.c.l.b16 %v7043
      %v7108 = vunpack.c.l.b16 %v7044
      %v7109 = vunpack.c.l.b16 %v7045
      %v7110 = vunpack.c.l.b16 %v7046
      %v7111 = vunpack.c.l.b16 %v7047
      %v7112 = vunpack.c.l.b16 %v7048
      %v7113 = vunpack.c.l.b16 %v7049
      %v7114 = vpack.c.b16 %v7083, %v7082
      %v7115 = vpack.c.b16 %v7085, %v7084
      %v7116 = vpack.c.b16 %v7087, %v7086
      %v7117 = vpack.c.b16 %v7089, %v7088
      %v7118 = vpack.c.b16 %v7091, %v7090
      %v7119 = vpack.c.b16 %v7093, %v7092
      %v7120 = vpack.c.b16 %v7095, %v7094
      %v7121 = vpack.c.b16 %v7097, %v7096
      %v7122 = vpack.c.b16 %v7099, %v7098
      %v7123 = vpack.c.b16 %v7101, %v7100
      %v7124 = vpack.c.b16 %v7103, %v7102
      %v7125 = vpack.c.b16 %v7105, %v7104
      %v7126 = vpack.c.b16 %v7107, %v7106
      %v7127 = vpack.c.b16 %v7109, %v7108
      %v7128 = vpack.c.b16 %v7111, %v7110
      %v7129 = vpack.c.b16 %v7113, %v7112
      %v7162 = vunpack.c.l.b16 %v3902
      %v7163 = vunpack.c.l.b16 %v3903
      %v7164 = vunpack.c.l.b16 %v3904
      %v7165 = vunpack.c.l.b16 %v3905
      %v7166 = vunpack.c.l.b16 %v3906
      %v7167 = vunpack.c.l.b16 %v3907
      %v7168 = vunpack.c.l.b16 %v3908
      %v7169 = vunpack.c.l.b16 %v3909
      %v7170 = vunpack.c.l.b16 %v3910
      %v7171 = vunpack.c.l.b16 %v3911
      %v7172 = vunpack.c.l.b16 %v3912
      %v7173 = vunpack.c.l.b16 %v3913
      %v7174 = vunpack.c.l.b16 %v3914
      %v7175 = vunpack.c.l.b16 %v3915
      %v7176 = vunpack.c.l.b16 %v3916
      %v7177 = vunpack.c.l.b16 %v3917
      %v7178 = vpack.c.b16 %v7163, %v7162
      %v7179 = vpack.c.b16 %v7165, %v7164
      %v7180 = vpack.c.b16 %v7167, %v7166
      %v7181 = vpack.c.b16 %v7169, %v7168
      %v7182 = vpack.c.b16 %v7171, %v7170
      %v7183 = vpack.c.b16 %v7173, %v7172
      %v7184 = vpack.c.b16 %v7175, %v7174
      %v7185 = vpack.c.b16 %v7177, %v7176
      %7194 = vmatprep.subr.bf16.mxu0 0
      %7195 = vmatpush1.bf16.msra.mxu0 %v7178
      %7196 = vmatprep.subr.bf16.mxu0 0
      %7197 = vmatpush1.bf16.msra.mxu0 %v7179
      %7198 = vmatprep.subr.bf16.mxu0 0
      %7199 = vmatpush1.bf16.msra.mxu0 %v7180
      %7200 = vmatprep.subr.bf16.mxu0 0
      %7201 = vmatpush1.bf16.msra.mxu0 %v7181
      %7202 = vmatprep.subr.bf16.mxu0 0
      %7203 = vmatpush1.bf16.msra.mxu0 %v7182
      %7204 = vmatprep.subr.bf16.mxu0 0
      %7205 = vmatpush1.bf16.msra.mxu0 %v7183
      %7206 = vmatprep.subr.bf16.mxu0 0
      %7207 = vmatpush1.bf16.msra.mxu0 %v7184
      %7208 = vmatprep.subr.bf16.mxu0 0
      %7209 = vmatpush1.bf16.msra.mxu0 %v7185
      %7210 = vmatprep.subr.bf16.mxu0 0
      %7211 = vmatpush1.bf16.msra.mxu0 0
      %7212 = vmatprep.subr.bf16.mxu0 0
      %7213 = vmatpush1.bf16.msra.mxu0 0
      %7214 = vmatprep.subr.bf16.mxu0 0
      %7215 = vmatpush1.bf16.msra.mxu0 0
      %7216 = vmatprep.subr.bf16.mxu0 0
      %7217 = vmatpush1.bf16.msra.mxu0 0
      %7218 = vmatprep.subr.bf16.mxu0 0
      %7219 = vmatpush1.bf16.msra.mxu0 0
      %7220 = vmatprep.subr.bf16.mxu0 0
      %7221 = vmatpush1.bf16.msra.mxu0 0
      %7222 = vmatprep.subr.bf16.mxu0 0
      %7223 = vmatpush1.bf16.msra.mxu0 0
      %7224 = vmatprep.subr.bf16.mxu0 0
      %7225 = vmatpush1.bf16.msra.mxu0 0
      %7226 = vmatprep.mubr.bf16.mxu0 0
      %7227 = vmatmul.mubr.bf16.gmra.mrb[0].mxu0 %v7114
      %v7228 = vpop.f32.mrb[0].mxu0
      %v7229 = vadd.f32 0.0, %v7228
      %v7230 = vpop.f32.mrb[0].mxu0
      %v7231 = vpop.f32.mrb[0].mxu0
      %v7232 = vadd.f32 0.0, %v7231
      %v7233 = vpop.f32.mrb[0].mxu0
      %7234 = vmatprep.mubr.bf16.mxu0 0
      %7235 = vmatmul.mubr.bf16.gmra.mrb[0].mxu0 %v7115
      %v7236 = vpop.f32.mrb[0].mxu0
      %v7237 = vadd.f32 0.0, %v7236
      %v7238 = vpop.f32.mrb[0].mxu0
      %v7239 = vpop.f32.mrb[0].mxu0
      %v7240 = vadd.f32 0.0, %v7239
      %v7241 = vpop.f32.mrb[0].mxu0
      %7242 = vmatprep.mubr.bf16.mxu0 0
      %7243 = vmatmul.mubr.bf16.gmra.mrb[0].mxu0 %v7116
      %v7244 = vpop.f32.mrb[0].mxu0
      %v7245 = vadd.f32 0.0, %v7244
      %v7246 = vpop.f32.mrb[0].mxu0
      %v7247 = vpop.f32.mrb[0].mxu0
      %v7248 = vadd.f32 0.0, %v7247
      %v7249 = vpop.f32.mrb[0].mxu0
      %7250 = vmatprep.mubr.bf16.mxu0 0
      %7251 = vmatmul.mubr.bf16.gmra.mrb[0].mxu0 %v7117
      %v7252 = vpop.f32.mrb[0].mxu0
      %v7253 = vadd.f32 0.0, %v7252
      %v7254 = vpop.f32.mrb[0].mxu0
      %v7255 = vpop.f32.mrb[0].mxu0
      %v7256 = vadd.f32 0.0, %v7255
      %v7257 = vpop.f32.mrb[0].mxu0
      %7258 = vmatprep.mubr.bf16.mxu0 0
      %7259 = vmatmul.mubr.bf16.gmra.mrb[0].mxu0 %v7118
      %v7260 = vpop.f32.mrb[0].mxu0
      %v7261 = vadd.f32 0.0, %v7260
      %v7262 = vpop.f32.mrb[0].mxu0
      %v7263 = vpop.f32.mrb[0].mxu0
      %v7264 = vadd.f32 0.0, %v7263
      %v7265 = vpop.f32.mrb[0].mxu0
      %7266 = vmatprep.mubr.bf16.mxu0 0
      %7267 = vmatmul.mubr.bf16.gmra.mrb[0].mxu0 %v7119
      %v7268 = vpop.f32.mrb[0].mxu0
      %v7269 = vadd.f32 0.0, %v7268
      %v7270 = vpop.f32.mrb[0].mxu0
      %v7271 = vpop.f32.mrb[0].mxu0
      %v7272 = vadd.f32 0.0, %v7271
      %v7273 = vpop.f32.mrb[0].mxu0
      %7274 = vmatprep.mubr.bf16.mxu0 0
      %7275 = vmatmul.mubr.bf16.gmra.mrb[0].mxu0 %v7120
      %v7276 = vpop.f32.mrb[0].mxu0
      %v7277 = vadd.f32 0.0, %v7276
      %v7278 = vpop.f32.mrb[0].mxu0
      %v7279 = vpop.f32.mrb[0].mxu0
      %v7280 = vadd.f32 0.0, %v7279
      %v7281 = vpop.f32.mrb[0].mxu0
      %7282 = vmatprep.mubr.bf16.mxu0 0
      %7283 = vmatmul.mubr.bf16.gmra.mrb[0].mxu0 %v7121
      %v7284 = vpop.f32.mrb[0].mxu0
      %v7285 = vadd.f32 0.0, %v7284
      %v7286 = vpop.f32.mrb[0].mxu0
      %v7287 = vpop.f32.mrb[0].mxu0
      %v7288 = vadd.f32 0.0, %v7287
      %v7289 = vpop.f32.mrb[0].mxu0
      %7290 = vmatprep.mubr.bf16.mxu0 0
      %7291 = vmatmul.mubr.bf16.gmra.mrb[0].mxu0 %v7122
      %v7292 = vpop.f32.mrb[0].mxu0
      %v7293 = vadd.f32 0.0, %v7292
      %v7294 = vpop.f32.mrb[0].mxu0
      %v7295 = vpop.f32.mrb[0].mxu0
      %v7296 = vadd.f32 0.0, %v7295
      %v7297 = vpop.f32.mrb[0].mxu0
      %7298 = vmatprep.mubr.bf16.mxu0 0
      %7299 = vmatmul.mubr.bf16.gmra.mrb[0].mxu0 %v7123
      %v7300 = vpop.f32.mrb[0].mxu0
      %v7301 = vadd.f32 0.0, %v7300
      %v7302 = vpop.f32.mrb[0].mxu0
      %v7303 = vpop.f32.mrb[0].mxu0
      %v7304 = vadd.f32 0.0, %v7303
      %v7305 = vpop.f32.mrb[0].mxu0
      %7306 = vmatprep.mubr.bf16.mxu0 0
      %7307 = vmatmul.mubr.bf16.gmra.mrb[0].mxu0 %v7124
      %v7308 = vpop.f32.mrb[0].mxu0
      %v7309 = vadd.f32 0.0, %v7308
      %v7310 = vpop.f32.mrb[0].mxu0
      %v7311 = vpop.f32.mrb[0].mxu0
      %v7312 = vadd.f32 0.0, %v7311
      %v7313 = vpop.f32.mrb[0].mxu0
      %7314 = vmatprep.mubr.bf16.mxu0 0
      %7315 = vmatmul.mubr.bf16.gmra.mrb[0].mxu0 %v7125
      %v7316 = vpop.f32.mrb[0].mxu0
      %v7317 = vadd.f32 0.0, %v7316
      %v7318 = vpop.f32.mrb[0].mxu0
      %v7319 = vpop.f32.mrb[0].mxu0
      %v7320 = vadd.f32 0.0, %v7319
      %v7321 = vpop.f32.mrb[0].mxu0
      %7322 = vmatprep.mubr.bf16.mxu0 0
      %7323 = vmatmul.mubr.bf16.gmra.mrb[0].mxu0 %v7126
      %v7324 = vpop.f32.mrb[0].mxu0
      %v7325 = vadd.f32 0.0, %v7324
      %v7326 = vpop.f32.mrb[0].mxu0
      %v7327 = vpop.f32.mrb[0].mxu0
      %v7328 = vadd.f32 0.0, %v7327
      %v7329 = vpop.f32.mrb[0].mxu0
      %7330 = vmatprep.mubr.bf16.mxu0 0
      %7331 = vmatmul.mubr.bf16.gmra.mrb[0].mxu0 %v7127
      %v7332 = vpop.f32.mrb[0].mxu0
      %v7333 = vadd.f32 0.0, %v7332
      %v7334 = vpop.f32.mrb[0].mxu0
      %v7335 = vpop.f32.mrb[0].mxu0
      %v7336 = vadd.f32 0.0, %v7335
      %v7337 = vpop.f32.mrb[0].mxu0
      %7338 = vmatprep.mubr.bf16.mxu0 0
      %7339 = vmatmul.mubr.bf16.gmra.mrb[0].mxu0 %v7128
      %v7340 = vpop.f32.mrb[0].mxu0
      %v7341 = vadd.f32 0.0, %v7340
      %v7342 = vpop.f32.mrb[0].mxu0
      %v7343 = vpop.f32.mrb[0].mxu0
      %v7344 = vadd.f32 0.0, %v7343
      %v7345 = vpop.f32.mrb[0].mxu0
      %7346 = vmatprep.mubr.bf16.mxu0 0
      %7347 = vmatmul.mubr.bf16.gmra.mrb[0].mxu0 %v7129
      %v7348 = vpop.f32.mrb[0].mxu0
      %v7349 = vadd.f32 0.0, %v7348
      %v7350 = vpop.f32.mrb[0].mxu0
      %v7351 = vpop.f32.mrb[0].mxu0
      %v7352 = vadd.f32 0.0, %v7351
      %v7353 = vpop.f32.mrb[0].mxu0
      %7354 = vdwg.mxu0
      %v7355 = vadd.f32 %v6986, %v7229
      %v7356 = vadd.f32 %v6987, %v7232
      %v7357 = vadd.f32 %v6988, %v7237
      %v7358 = vadd.f32 %v6989, %v7240
      %v7359 = vadd.f32 %v6990, %v7245
      %v7360 = vadd.f32 %v6991, %v7248
      %v7361 = vadd.f32 %v6992, %v7253
      %v7362 = vadd.f32 %v6993, %v7256
      %v7363 = vadd.f32 %v6994, %v7261
      %v7364 = vadd.f32 %v6995, %v7264
      %v7365 = vadd.f32 %v6996, %v7269
      %v7366 = vadd.f32 %v6997, %v7272
      %v7367 = vadd.f32 %v6998, %v7277
      %v7368 = vadd.f32 %v6999, %v7280
      %v7369 = vadd.f32 %v7000, %v7285
      %v7370 = vadd.f32 %v7001, %v7288
      %v7371 = vadd.f32 %v7002, %v7293
      %v7372 = vadd.f32 %v7003, %v7296
      %v7373 = vadd.f32 %v7004, %v7301
      %v7374 = vadd.f32 %v7005, %v7304
      %v7375 = vadd.f32 %v7006, %v7309
      %v7376 = vadd.f32 %v7007, %v7312
      %v7377 = vadd.f32 %v7008, %v7317
      %v7378 = vadd.f32 %v7009, %v7320
      %v7379 = vadd.f32 %v7010, %v7325
      %v7380 = vadd.f32 %v7011, %v7328
      %v7381 = vadd.f32 %v7012, %v7333
      %v7382 = vadd.f32 %v7013, %v7336
      %v7383 = vadd.f32 %v7014, %v7341
      %v7384 = vadd.f32 %v7015, %v7344
      %v7385 = vadd.f32 %v7016, %v7349
      %v7386 = vadd.f32 %v7017, %v7352
      %v7387 = vld [vmem:[%s3791] sm:$0xf]
      %v7388 = vld [vmem:[%s3791 + $0x4] sm:$0xf]
      %v7389 = vld [vmem:[%s3791 + $0x8] sm:$0x1]
      %v7390 = vld [vmem:[%s3791 + $0xc] sm:$0xf]
      %v7391 = vld [vmem:[%s3791 + $0x10] sm:$0xf]
      %v7392 = vld [vmem:[%s3791 + $0x14] sm:$0x1]
      %v7393 = vld [vmem:[%s3791 + $0x18] sm:$0xf]
      %v7394 = vld [vmem:[%s3791 + $0x1c] sm:$0xf]
      %v7395 = vld [vmem:[%s3791 + $0x20] sm:$0x1]
      %v7396 = vld [vmem:[%s3791 + $0x24] sm:$0xf]
      %v7397 = vld [vmem:[%s3791 + $0x28] sm:$0xf]
      %v7398 = vld [vmem:[%s3791 + $0x2c] sm:$0x1]
      %v7399 = vld [vmem:[%s3791 + $0x30] sm:$0xf]
      %v7400 = vld [vmem:[%s3791 + $0x34] sm:$0xf]
      %v7401 = vld [vmem:[%s3791 + $0x38] sm:$0x1]
      %v7402 = vld [vmem:[%s3791 + $0x3c] sm:$0xf]
      %v7403 = vld [vmem:[%s3791 + $0x40] sm:$0xf]
      %v7404 = vld [vmem:[%s3791 + $0x44] sm:$0x1]
      %v7405 = vld [vmem:[%s3791 + $0x48] sm:$0xf]
      %v7406 = vld [vmem:[%s3791 + $0x4c] sm:$0xf]
      %v7407 = vld [vmem:[%s3791 + $0x50] sm:$0x1]
      %v7408 = vld [vmem:[%s3791 + $0x54] sm:$0xf]
      %v7409 = vld [vmem:[%s3791 + $0x58] sm:$0xf]
      %v7410 = vld [vmem:[%s3791 + $0x5c] sm:$0x1]
      %v7411 = vld [vmem:[%s3791 + $0x60] sm:$0xf]
      %v7412 = vld [vmem:[%s3791 + $0x64] sm:$0xf]
      %v7413 = vld [vmem:[%s3791 + $0x68] sm:$0x1]
      %v7414 = vld [vmem:[%s3791 + $0x6c] sm:$0xf]
      %v7415 = vld [vmem:[%s3791 + $0x70] sm:$0xf]
      %v7416 = vld [vmem:[%s3791 + $0x74] sm:$0x1]
      %v7417 = vld [vmem:[%s3791 + $0x78] sm:$0xf]
      %v7418 = vld [vmem:[%s3791 + $0x7c] sm:$0xf]
      %v7419 = vld [vmem:[%s3791 + $0x80] sm:$0x1]
      %v7420 = vld [vmem:[%s3791 + $0x84] sm:$0xf]
      %v7421 = vld [vmem:[%s3791 + $0x88] sm:$0xf]
      %v7422 = vld [vmem:[%s3791 + $0x8c] sm:$0x1]
      %v7423 = vld [vmem:[%s3791 + $0x90] sm:$0xf]
      %v7424 = vld [vmem:[%s3791 + $0x94] sm:$0xf]
      %v7425 = vld [vmem:[%s3791 + $0x98] sm:$0x1]
      %v7426 = vld [vmem:[%s3791 + $0x9c] sm:$0xf]
      %v7427 = vld [vmem:[%s3791 + $0xa0] sm:$0xf]
      %v7428 = vld [vmem:[%s3791 + $0xa4] sm:$0x1]
      %v7429 = vld [vmem:[%s3791 + $0xa8] sm:$0xf]
      %v7430 = vld [vmem:[%s3791 + $0xac] sm:$0xf]
      %v7431 = vld [vmem:[%s3791 + $0xb0] sm:$0x1]
      %v7432 = vld [vmem:[%s3791 + $0xb4] sm:$0xf]
      %v7433 = vld [vmem:[%s3791 + $0xb8] sm:$0xf]
      %v7434 = vld [vmem:[%s3791 + $0xbc] sm:$0x1]
      %v7436 = vshrl.u32 %v7387, 16
      %v7438 = vrot.slane %v7436, 4
      %v7439 = vshll.u32 %v7387, 16
      %v7441 = vrot.slane %v7439, 5
      %v7442 = vor.u32 %v7438, %v7441
      %v7443 = vrot.slane %v7442, 4
      %v7445 = vshll.u32 %v7388, 16
      %v7447 = vrot.slane %v7445, 5
      %v7448 = vsel %vm4000, %v7443, %v7447
      %v7449 = vshrl.u32 %v7388, 16
      %v7451 = vrot.slane %v7449, 4
      %v7452 = vor.u32 %v7451, %v7447
      %v7453 = vrot.slane %v7452, 4
      %v7455 = vshll.u32 %v7389, 16
      %v7457 = vrot.slane %v7455, 5
      %v7458 = vsel %vm4000, %v7453, %v7457
      %v7460 = vshrl.u32 %v7390, 16
      %v7462 = vrot.slane %v7460, 4
      %v7463 = vshll.u32 %v7390, 16
      %v7465 = vrot.slane %v7463, 5
      %v7466 = vor.u32 %v7462, %v7465
      %v7467 = vrot.slane %v7466, 4
      %v7469 = vshll.u32 %v7391, 16
      %v7471 = vrot.slane %v7469, 5
      %v7472 = vsel %vm4000, %v7467, %v7471
      %v7473 = vshrl.u32 %v7391, 16
      %v7475 = vrot.slane %v7473, 4
      %v7476 = vor.u32 %v7475, %v7471
      %v7477 = vrot.slane %v7476, 4
      %v7479 = vshll.u32 %v7392, 16
      %v7481 = vrot.slane %v7479, 5
      %v7482 = vsel %vm4000, %v7477, %v7481
      %v7484 = vshrl.u32 %v7393, 16
      %v7486 = vrot.slane %v7484, 4
      %v7487 = vshll.u32 %v7393, 16
      %v7489 = vrot.slane %v7487, 5
      %v7490 = vor.u32 %v7486, %v7489
      %v7491 = vrot.slane %v7490, 4
      %v7493 = vshll.u32 %v7394, 16
      %v7495 = vrot.slane %v7493, 5
      %v7496 = vsel %vm4000, %v7491, %v7495
      %v7497 = vshrl.u32 %v7394, 16
      %v7499 = vrot.slane %v7497, 4
      %v7500 = vor.u32 %v7499, %v7495
      %v7501 = vrot.slane %v7500, 4
      %v7503 = vshll.u32 %v7395, 16
      %v7505 = vrot.slane %v7503, 5
      %v7506 = vsel %vm4000, %v7501, %v7505
      %v7508 = vshrl.u32 %v7396, 16
      %v7510 = vrot.slane %v7508, 4
      %v7511 = vshll.u32 %v7396, 16
      %v7513 = vrot.slane %v7511, 5
      %v7514 = vor.u32 %v7510, %v7513
      %v7515 = vrot.slane %v7514, 4
      %v7517 = vshll.u32 %v7397, 16
      %v7519 = vrot.slane %v7517, 5
      %v7520 = vsel %vm4000, %v7515, %v7519
      %v7521 = vshrl.u32 %v7397, 16
      %v7523 = vrot.slane %v7521, 4
      %v7524 = vor.u32 %v7523, %v7519
      %v7525 = vrot.slane %v7524, 4
      %v7527 = vshll.u32 %v7398, 16
      %v7529 = vrot.slane %v7527, 5
      %v7530 = vsel %vm4000, %v7525, %v7529
      %v7532 = vshrl.u32 %v7399, 16
      %v7534 = vrot.slane %v7532, 4
      %v7535 = vshll.u32 %v7399, 16
      %v7537 = vrot.slane %v7535, 5
      %v7538 = vor.u32 %v7534, %v7537
      %v7539 = vrot.slane %v7538, 4
      %v7541 = vshll.u32 %v7400, 16
      %v7543 = vrot.slane %v7541, 5
      %v7544 = vsel %vm4000, %v7539, %v7543
      %v7545 = vshrl.u32 %v7400, 16
      %v7547 = vrot.slane %v7545, 4
      %v7548 = vor.u32 %v7547, %v7543
      %v7549 = vrot.slane %v7548, 4
      %v7551 = vshll.u32 %v7401, 16
      %v7553 = vrot.slane %v7551, 5
      %v7554 = vsel %vm4000, %v7549, %v7553
      %v7556 = vshrl.u32 %v7402, 16
      %v7558 = vrot.slane %v7556, 4
      %v7559 = vshll.u32 %v7402, 16
      %v7561 = vrot.slane %v7559, 5
      %v7562 = vor.u32 %v7558, %v7561
      %v7563 = vrot.slane %v7562, 4
      %v7565 = vshll.u32 %v7403, 16
      %v7567 = vrot.slane %v7565, 5
      %v7568 = vsel %vm4000, %v7563, %v7567
      %v7569 = vshrl.u32 %v7403, 16
      %v7571 = vrot.slane %v7569, 4
      %v7572 = vor.u32 %v7571, %v7567
      %v7573 = vrot.slane %v7572, 4
      %v7575 = vshll.u32 %v7404, 16
      %v7577 = vrot.slane %v7575, 5
      %v7578 = vsel %vm4000, %v7573, %v7577
      %v7580 = vshrl.u32 %v7405, 16
      %v7582 = vrot.slane %v7580, 4
      %v7583 = vshll.u32 %v7405, 16
      %v7585 = vrot.slane %v7583, 5
      %v7586 = vor.u32 %v7582, %v7585
      %v7587 = vrot.slane %v7586, 4
      %v7589 = vshll.u32 %v7406, 16
      %v7591 = vrot.slane %v7589, 5
      %v7592 = vsel %vm4000, %v7587, %v7591
      %v7593 = vshrl.u32 %v7406, 16
      %v7595 = vrot.slane %v7593, 4
      %v7596 = vor.u32 %v7595, %v7591
      %v7597 = vrot.slane %v7596, 4
      %v7599 = vshll.u32 %v7407, 16
      %v7601 = vrot.slane %v7599, 5
      %v7602 = vsel %vm4000, %v7597, %v7601
      %v7604 = vshrl.u32 %v7408, 16
      %v7606 = vrot.slane %v7604, 4
      %v7607 = vshll.u32 %v7408, 16
      %v7609 = vrot.slane %v7607, 5
      %v7610 = vor.u32 %v7606, %v7609
      %v7611 = vrot.slane %v7610, 4
      %v7613 = vshll.u32 %v7409, 16
      %v7615 = vrot.slane %v7613, 5
      %v7616 = vsel %vm4000, %v7611, %v7615
      %v7617 = vshrl.u32 %v7409, 16
      %v7619 = vrot.slane %v7617, 4
      %v7620 = vor.u32 %v7619, %v7615
      %v7621 = vrot.slane %v7620, 4
      %v7623 = vshll.u32 %v7410, 16
      %v7625 = vrot.slane %v7623, 5
      %v7626 = vsel %vm4000, %v7621, %v7625
      %v7628 = vshrl.u32 %v7411, 16
      %v7630 = vrot.slane %v7628, 4
      %v7631 = vshll.u32 %v7411, 16
      %v7633 = vrot.slane %v7631, 5
      %v7634 = vor.u32 %v7630, %v7633
      %v7635 = vrot.slane %v7634, 4
      %v7637 = vshll.u32 %v7412, 16
      %v7639 = vrot.slane %v7637, 5
      %v7640 = vsel %vm4000, %v7635, %v7639
      %v7641 = vshrl.u32 %v7412, 16
      %v7643 = vrot.slane %v7641, 4
      %v7644 = vor.u32 %v7643, %v7639
      %v7645 = vrot.slane %v7644, 4
      %v7647 = vshll.u32 %v7413, 16
      %v7649 = vrot.slane %v7647, 5
      %v7650 = vsel %vm4000, %v7645, %v7649
      %v7652 = vshrl.u32 %v7414, 16
      %v7654 = vrot.slane %v7652, 4
      %v7655 = vshll.u32 %v7414, 16
      %v7657 = vrot.slane %v7655, 5
      %v7658 = vor.u32 %v7654, %v7657
      %v7659 = vrot.slane %v7658, 4
      %v7661 = vshll.u32 %v7415, 16
      %v7663 = vrot.slane %v7661, 5
      %v7664 = vsel %vm4000, %v7659, %v7663
      %v7665 = vshrl.u32 %v7415, 16
      %v7667 = vrot.slane %v7665, 4
      %v7668 = vor.u32 %v7667, %v7663
      %v7669 = vrot.slane %v7668, 4
      %v7671 = vshll.u32 %v7416, 16
      %v7673 = vrot.slane %v7671, 5
      %v7674 = vsel %vm4000, %v7669, %v7673
      %v7676 = vshrl.u32 %v7417, 16
      %v7678 = vrot.slane %v7676, 4
      %v7679 = vshll.u32 %v7417, 16
      %v7681 = vrot.slane %v7679, 5
      %v7682 = vor.u32 %v7678, %v7681
      %v7683 = vrot.slane %v7682, 4
      %v7685 = vshll.u32 %v7418, 16
      %v7687 = vrot.slane %v7685, 5
      %v7688 = vsel %vm4000, %v7683, %v7687
      %v7689 = vshrl.u32 %v7418, 16
      %v7691 = vrot.slane %v7689, 4
      %v7692 = vor.u32 %v7691, %v7687
      %v7693 = vrot.slane %v7692, 4
      %v7695 = vshll.u32 %v7419, 16
      %v7697 = vrot.slane %v7695, 5
      %v7698 = vsel %vm4000, %v7693, %v7697
      %v7700 = vshrl.u32 %v7420, 16
      %v7702 = vrot.slane %v7700, 4
      %v7703 = vshll.u32 %v7420, 16
      %v7705 = vrot.slane %v7703, 5
      %v7706 = vor.u32 %v7702, %v7705
      %v7707 = vrot.slane %v7706, 4
      %v7709 = vshll.u32 %v7421, 16
      %v7711 = vrot.slane %v7709, 5
      %v7712 = vsel %vm4000, %v7707, %v7711
      %v7713 = vshrl.u32 %v7421, 16
      %v7715 = vrot.slane %v7713, 4
      %v7716 = vor.u32 %v7715, %v7711
      %v7717 = vrot.slane %v7716, 4
      %v7719 = vshll.u32 %v7422, 16
      %v7721 = vrot.slane %v7719, 5
      %v7722 = vsel %vm4000, %v7717, %v7721
      %v7724 = vshrl.u32 %v7423, 16
      %v7726 = vrot.slane %v7724, 4
      %v7727 = vshll.u32 %v7423, 16
      %v7729 = vrot.slane %v7727, 5
      %v7730 = vor.u32 %v7726, %v7729
      %v7731 = vrot.slane %v7730, 4
      %v7733 = vshll.u32 %v7424, 16
      %v7735 = vrot.slane %v7733, 5
      %v7736 = vsel %vm4000, %v7731, %v7735
      %v7737 = vshrl.u32 %v7424, 16
      %v7739 = vrot.slane %v7737, 4
      %v7740 = vor.u32 %v7739, %v7735
      %v7741 = vrot.slane %v7740, 4
      %v7743 = vshll.u32 %v7425, 16
      %v7745 = vrot.slane %v7743, 5
      %v7746 = vsel %vm4000, %v7741, %v7745
      %v7748 = vshrl.u32 %v7426, 16
      %v7750 = vrot.slane %v7748, 4
      %v7751 = vshll.u32 %v7426, 16
      %v7753 = vrot.slane %v7751, 5
      %v7754 = vor.u32 %v7750, %v7753
      %v7755 = vrot.slane %v7754, 4
      %v7757 = vshll.u32 %v7427, 16
      %v7759 = vrot.slane %v7757, 5
      %v7760 = vsel %vm4000, %v7755, %v7759
      %v7761 = vshrl.u32 %v7427, 16
      %v7763 = vrot.slane %v7761, 4
      %v7764 = vor.u32 %v7763, %v7759
      %v7765 = vrot.slane %v7764, 4
      %v7767 = vshll.u32 %v7428, 16
      %v7769 = vrot.slane %v7767, 5
      %v7770 = vsel %vm4000, %v7765, %v7769
      %v7772 = vshrl.u32 %v7429, 16
      %v7774 = vrot.slane %v7772, 4
      %v7775 = vshll.u32 %v7429, 16
      %v7777 = vrot.slane %v7775, 5
      %v7778 = vor.u32 %v7774, %v7777
      %v7779 = vrot.slane %v7778, 4
      %v7781 = vshll.u32 %v7430, 16
      %v7783 = vrot.slane %v7781, 5
      %v7784 = vsel %vm4000, %v7779, %v7783
      %v7785 = vshrl.u32 %v7430, 16
      %v7787 = vrot.slane %v7785, 4
      %v7788 = vor.u32 %v7787, %v7783
      %v7789 = vrot.slane %v7788, 4
      %v7791 = vshll.u32 %v7431, 16
      %v7793 = vrot.slane %v7791, 5
      %v7794 = vsel %vm4000, %v7789, %v7793
      %v7796 = vshrl.u32 %v7432, 16
      %v7798 = vrot.slane %v7796, 4
      %v7799 = vshll.u32 %v7432, 16
      %v7801 = vrot.slane %v7799, 5
      %v7802 = vor.u32 %v7798, %v7801
      %v7803 = vrot.slane %v7802, 4
      %v7805 = vshll.u32 %v7433, 16
      %v7807 = vrot.slane %v7805, 5
      %v7808 = vsel %vm4000, %v7803, %v7807
      %v7809 = vshrl.u32 %v7433, 16
      %v7811 = vrot.slane %v7809, 4
      %v7812 = vor.u32 %v7811, %v7807
      %v7813 = vrot.slane %v7812, 4
      %v7815 = vshll.u32 %v7434, 16
      %v7817 = vrot.slane %v7815, 5
      %v7818 = vsel %vm4000, %v7813, %v7817
      %v7819 = vunpack.c.l.b16 %v7448
      %v7820 = vunpack.c.l.b16 %v7458
      %v7821 = vunpack.c.l.b16 %v7472
      %v7822 = vunpack.c.l.b16 %v7482
      %v7823 = vunpack.c.l.b16 %v7496
      %v7824 = vunpack.c.l.b16 %v7506
      %v7825 = vunpack.c.l.b16 %v7520
      %v7826 = vunpack.c.l.b16 %v7530
      %v7827 = vunpack.c.l.b16 %v7544
      %v7828 = vunpack.c.l.b16 %v7554
      %v7829 = vunpack.c.l.b16 %v7568
      %v7830 = vunpack.c.l.b16 %v7578
      %v7831 = vunpack.c.l.b16 %v7592
      %v7832 = vunpack.c.l.b16 %v7602
      %v7833 = vunpack.c.l.b16 %v7616
      %v7834 = vunpack.c.l.b16 %v7626
      %v7835 = vunpack.c.l.b16 %v7640
      %v7836 = vunpack.c.l.b16 %v7650
      %v7837 = vunpack.c.l.b16 %v7664
      %v7838 = vunpack.c.l.b16 %v7674
      %v7839 = vunpack.c.l.b16 %v7688
      %v7840 = vunpack.c.l.b16 %v7698
      %v7841 = vunpack.c.l.b16 %v7712
      %v7842 = vunpack.c.l.b16 %v7722
      %v7843 = vunpack.c.l.b16 %v7736
      %v7844 = vunpack.c.l.b16 %v7746
      %v7845 = vunpack.c.l.b16 %v7760
      %v7846 = vunpack.c.l.b16 %v7770
      %v7847 = vunpack.c.l.b16 %v7784
      %v7848 = vunpack.c.l.b16 %v7794
      %v7849 = vunpack.c.l.b16 %v7808
      %v7850 = vunpack.c.l.b16 %v7818
      %v7851 = vpack.c.b16 %v7820, %v7819
      %v7852 = vpack.c.b16 %v7822, %v7821
      %v7853 = vpack.c.b16 %v7824, %v7823
      %v7854 = vpack.c.b16 %v7826, %v7825
      %v7855 = vpack.c.b16 %v7828, %v7827
      %v7856 = vpack.c.b16 %v7830, %v7829
      %v7857 = vpack.c.b16 %v7832, %v7831
      %v7858 = vpack.c.b16 %v7834, %v7833
      %v7859 = vpack.c.b16 %v7836, %v7835
      %v7860 = vpack.c.b16 %v7838, %v7837
      %v7861 = vpack.c.b16 %v7840, %v7839
      %v7862 = vpack.c.b16 %v7842, %v7841
      %v7863 = vpack.c.b16 %v7844, %v7843
      %v7864 = vpack.c.b16 %v7846, %v7845
      %v7865 = vpack.c.b16 %v7848, %v7847
      %v7866 = vpack.c.b16 %v7850, %v7849
      %v7899 = vunpack.c.l.b16 %v3918
      %v7900 = vunpack.c.l.b16 %v3919
      %v7901 = vunpack.c.l.b16 %v3920
      %v7902 = vunpack.c.l.b16 %v3921
      %v7903 = vunpack.c.l.b16 %v3922
      %v7904 = vunpack.c.l.b16 %v3923
      %v7905 = vunpack.c.l.b16 %v3924
      %v7906 = vunpack.c.l.b16 %v3925
      %v7907 = vunpack.c.l.b16 %v3926
      %v7908 = vunpack.c.l.b16 %v3927
      %v7909 = vunpack.c.l.b16 %v3928
      %v7910 = vunpack.c.l.b16 %v3929
      %v7911 = vunpack.c.l.b16 %v3930
      %v7912 = vunpack.c.l.b16 %v3931
      %v7913 = vunpack.c.l.b16 %v3932
      %v7914 = vunpack.c.l.b16 %v3933
      %v7915 = vpack.c.b16 %v7900, %v7899
      %v7916 = vpack.c.b16 %v7902, %v7901
      %v7917 = vpack.c.b16 %v7904, %v7903
      %v7918 = vpack.c.b16 %v7906, %v7905
      %v7919 = vpack.c.b16 %v7908, %v7907
      %v7920 = vpack.c.b16 %v7910, %v7909
      %v7921 = vpack.c.b16 %v7912, %v7911
      %v7922 = vpack.c.b16 %v7914, %v7913
      %7931 = vmatprep.subr.bf16.mxu0 0
      %7932 = vmatpush1.bf16.msra.mxu0 %v7915
      %7933 = vmatprep.subr.bf16.mxu0 0
      %7934 = vmatpush1.bf16.msra.mxu0 %v7916
      %7935 = vmatprep.subr.bf16.mxu0 0
      %7936 = vmatpush1.bf16.msra.mxu0 %v7917
      %7937 = vmatprep.subr.bf16.mxu0 0
      %7938 = vmatpush1.bf16.msra.mxu0 %v7918
      %7939 = vmatprep.subr.bf16.mxu0 0
      %7940 = vmatpush1.bf16.msra.mxu0 %v7919
      %7941 = vmatprep.subr.bf16.mxu0 0
      %7942 = vmatpush1.bf16.msra.mxu0 %v7920
      %7943 = vmatprep.subr.bf16.mxu0 0
      %7944 = vmatpush1.bf16.msra.mxu0 %v7921
      %7945 = vmatprep.subr.bf16.mxu0 0
      %7946 = vmatpush1.bf16.msra.mxu0 %v7922
      %7947 = vmatprep.subr.bf16.mxu0 0
      %7948 = vmatpush1.bf16.msra.mxu0 0
      %7949 = vmatprep.subr.bf16.mxu0 0
      %7950 = vmatpush1.bf16.msra.mxu0 0
      %7951 = vmatprep.subr.bf16.mxu0 0
      %7952 = vmatpush1.bf16.msra.mxu0 0
      %7953 = vmatprep.subr.bf16.mxu0 0
      %7954 = vmatpush1.bf16.msra.mxu0 0
      %7955 = vmatprep.subr.bf16.mxu0 0
      %7956 = vmatpush1.bf16.msra.mxu0 0
      %7957 = vmatprep.subr.bf16.mxu0 0
      %7958 = vmatpush1.bf16.msra.mxu0 0
      %7959 = vmatprep.subr.bf16.mxu0 0
      %7960 = vmatpush1.bf16.msra.mxu0 0
      %7961 = vmatprep.subr.bf16.mxu0 0
      %7962 = vmatpush1.bf16.msra.mxu0 0
      %7963 = vmatprep.mubr.bf16.mxu0 0
      %7964 = vmatmul.mubr.bf16.gmra.mrb[0].mxu0 %v7851
      %v7965 = vpop.f32.mrb[0].mxu0
      %v7966 = vadd.f32 0.0, %v7965
      %v7967 = vpop.f32.mrb[0].mxu0
      %v7968 = vpop.f32.mrb[0].mxu0
      %v7969 = vadd.f32 0.0, %v7968
      %v7970 = vpop.f32.mrb[0].mxu0
      %7971 = vmatprep.mubr.bf16.mxu0 0
      %7972 = vmatmul.mubr.bf16.gmra.mrb[0].mxu0 %v7852
      %v7973 = vpop.f32.mrb[0].mxu0
      %v7974 = vadd.f32 0.0, %v7973
      %v7975 = vpop.f32.mrb[0].mxu0
      %v7976 = vpop.f32.mrb[0].mxu0
      %v7977 = vadd.f32 0.0, %v7976
      %v7978 = vpop.f32.mrb[0].mxu0
      %7979 = vmatprep.mubr.bf16.mxu0 0
      %7980 = vmatmul.mubr.bf16.gmra.mrb[0].mxu0 %v7853
      %v7981 = vpop.f32.mrb[0].mxu0
      %v7982 = vadd.f32 0.0, %v7981
      %v7983 = vpop.f32.mrb[0].mxu0
      %v7984 = vpop.f32.mrb[0].mxu0
      %v7985 = vadd.f32 0.0, %v7984
      %v7986 = vpop.f32.mrb[0].mxu0
      %7987 = vmatprep.mubr.bf16.mxu0 0
      %7988 = vmatmul.mubr.bf16.gmra.mrb[0].mxu0 %v7854
      %v7989 = vpop.f32.mrb[0].mxu0
      %v7990 = vadd.f32 0.0, %v7989
      %v7991 = vpop.f32.mrb[0].mxu0
      %v7992 = vpop.f32.mrb[0].mxu0
      %v7993 = vadd.f32 0.0, %v7992
      %v7994 = vpop.f32.mrb[0].mxu0
      %7995 = vmatprep.mubr.bf16.mxu0 0
      %7996 = vmatmul.mubr.bf16.gmra.mrb[0].mxu0 %v7855
      %v7997 = vpop.f32.mrb[0].mxu0
      %v7998 = vadd.f32 0.0, %v7997
      %v7999 = vpop.f32.mrb[0].mxu0
      %v8000 = vpop.f32.mrb[0].mxu0
      %v8001 = vadd.f32 0.0, %v8000
      %v8002 = vpop.f32.mrb[0].mxu0
      %8003 = vmatprep.mubr.bf16.mxu0 0
      %8004 = vmatmul.mubr.bf16.gmra.mrb[0].mxu0 %v7856
      %v8005 = vpop.f32.mrb[0].mxu0
      %v8006 = vadd.f32 0.0, %v8005
      %v8007 = vpop.f32.mrb[0].mxu0
      %v8008 = vpop.f32.mrb[0].mxu0
      %v8009 = vadd.f32 0.0, %v8008
      %v8010 = vpop.f32.mrb[0].mxu0
      %8011 = vmatprep.mubr.bf16.mxu0 0
      %8012 = vmatmul.mubr.bf16.gmra.mrb[0].mxu0 %v7857
      %v8013 = vpop.f32.mrb[0].mxu0
      %v8014 = vadd.f32 0.0, %v8013
      %v8015 = vpop.f32.mrb[0].mxu0
      %v8016 = vpop.f32.mrb[0].mxu0
      %v8017 = vadd.f32 0.0, %v8016
      %v8018 = vpop.f32.mrb[0].mxu0
      %8019 = vmatprep.mubr.bf16.mxu0 0
      %8020 = vmatmul.mubr.bf16.gmra.mrb[0].mxu0 %v7858
      %v8021 = vpop.f32.mrb[0].mxu0
      %v8022 = vadd.f32 0.0, %v8021
      %v8023 = vpop.f32.mrb[0].mxu0
      %v8024 = vpop.f32.mrb[0].mxu0
      %v8025 = vadd.f32 0.0, %v8024
      %v8026 = vpop.f32.mrb[0].mxu0
      %8027 = vmatprep.mubr.bf16.mxu0 0
      %8028 = vmatmul.mubr.bf16.gmra.mrb[0].mxu0 %v7859
      %v8029 = vpop.f32.mrb[0].mxu0
      %v8030 = vadd.f32 0.0, %v8029
      %v8031 = vpop.f32.mrb[0].mxu0
      %v8032 = vpop.f32.mrb[0].mxu0
      %v8033 = vadd.f32 0.0, %v8032
      %v8034 = vpop.f32.mrb[0].mxu0
      %8035 = vmatprep.mubr.bf16.mxu0 0
      %8036 = vmatmul.mubr.bf16.gmra.mrb[0].mxu0 %v7860
      %v8037 = vpop.f32.mrb[0].mxu0
      %v8038 = vadd.f32 0.0, %v8037
      %v8039 = vpop.f32.mrb[0].mxu0
      %v8040 = vpop.f32.mrb[0].mxu0
      %v8041 = vadd.f32 0.0, %v8040
      %v8042 = vpop.f32.mrb[0].mxu0
      %8043 = vmatprep.mubr.bf16.mxu0 0
      %8044 = vmatmul.mubr.bf16.gmra.mrb[0].mxu0 %v7861
      %v8045 = vpop.f32.mrb[0].mxu0
      %v8046 = vadd.f32 0.0, %v8045
      %v8047 = vpop.f32.mrb[0].mxu0
      %v8048 = vpop.f32.mrb[0].mxu0
      %v8049 = vadd.f32 0.0, %v8048
      %v8050 = vpop.f32.mrb[0].mxu0
      %8051 = vmatprep.mubr.bf16.mxu0 0
      %8052 = vmatmul.mubr.bf16.gmra.mrb[0].mxu0 %v7862
      %v8053 = vpop.f32.mrb[0].mxu0
      %v8054 = vadd.f32 0.0, %v8053
      %v8055 = vpop.f32.mrb[0].mxu0
      %v8056 = vpop.f32.mrb[0].mxu0
      %v8057 = vadd.f32 0.0, %v8056
      %v8058 = vpop.f32.mrb[0].mxu0
      %8059 = vmatprep.mubr.bf16.mxu0 0
      %8060 = vmatmul.mubr.bf16.gmra.mrb[0].mxu0 %v7863
      %v8061 = vpop.f32.mrb[0].mxu0
      %v8062 = vadd.f32 0.0, %v8061
      %v8063 = vpop.f32.mrb[0].mxu0
      %v8064 = vpop.f32.mrb[0].mxu0
      %v8065 = vadd.f32 0.0, %v8064
      %v8066 = vpop.f32.mrb[0].mxu0
      %8067 = vmatprep.mubr.bf16.mxu0 0
      %8068 = vmatmul.mubr.bf16.gmra.mrb[0].mxu0 %v7864
      %v8069 = vpop.f32.mrb[0].mxu0
      %v8070 = vadd.f32 0.0, %v8069
      %v8071 = vpop.f32.mrb[0].mxu0
      %v8072 = vpop.f32.mrb[0].mxu0
      %v8073 = vadd.f32 0.0, %v8072
      %v8074 = vpop.f32.mrb[0].mxu0
      %8075 = vmatprep.mubr.bf16.mxu0 0
      %8076 = vmatmul.mubr.bf16.gmra.mrb[0].mxu0 %v7865
      %v8077 = vpop.f32.mrb[0].mxu0
      %v8078 = vadd.f32 0.0, %v8077
      %v8079 = vpop.f32.mrb[0].mxu0
      %v8080 = vpop.f32.mrb[0].mxu0
      %v8081 = vadd.f32 0.0, %v8080
      %v8082 = vpop.f32.mrb[0].mxu0
      %8083 = vmatprep.mubr.bf16.mxu0 0
      %8084 = vmatmul.mubr.bf16.gmra.mrb[0].mxu0 %v7866
      %v8085 = vpop.f32.mrb[0].mxu0
      %v8086 = vadd.f32 0.0, %v8085
      %v8087 = vpop.f32.mrb[0].mxu0
      %v8088 = vpop.f32.mrb[0].mxu0
      %v8089 = vadd.f32 0.0, %v8088
      %v8090 = vpop.f32.mrb[0].mxu0
      %8091 = vdwg.mxu0
      %v8092 = vadd.f32 %v7355, %v7966
      %v8093 = vadd.f32 %v7356, %v7969
      %v8094 = vadd.f32 %v7357, %v7974
      %v8095 = vadd.f32 %v7358, %v7977
      %v8096 = vadd.f32 %v7359, %v7982
      %v8097 = vadd.f32 %v7360, %v7985
      %v8098 = vadd.f32 %v7361, %v7990
      %v8099 = vadd.f32 %v7362, %v7993
      %v8100 = vadd.f32 %v7363, %v7998
      %v8101 = vadd.f32 %v7364, %v8001
      %v8102 = vadd.f32 %v7365, %v8006
      %v8103 = vadd.f32 %v7366, %v8009
      %v8104 = vadd.f32 %v7367, %v8014
      %v8105 = vadd.f32 %v7368, %v8017
      %v8106 = vadd.f32 %v7369, %v8022
      %v8107 = vadd.f32 %v7370, %v8025
      %v8108 = vadd.f32 %v7371, %v8030
      %v8109 = vadd.f32 %v7372, %v8033
      %v8110 = vadd.f32 %v7373, %v8038
      %v8111 = vadd.f32 %v7374, %v8041
      %v8112 = vadd.f32 %v7375, %v8046
      %v8113 = vadd.f32 %v7376, %v8049
      %v8114 = vadd.f32 %v7377, %v8054
      %v8115 = vadd.f32 %v7378, %v8057
      %v8116 = vadd.f32 %v7379, %v8062
      %v8117 = vadd.f32 %v7380, %v8065
      %v8118 = vadd.f32 %v7381, %v8070
      %v8119 = vadd.f32 %v7382, %v8073
      %v8120 = vadd.f32 %v7383, %v8078
      %v8121 = vadd.f32 %v7384, %v8081
      %v8122 = vadd.f32 %v7385, %v8086
      %v8123 = vadd.f32 %v7386, %v8089
      %v8124 = vld [vmem:[%s3791] sm:$0xe]
      %v8125 = vld [vmem:[%s3791 + $0xc] sm:$0xe]
      %v8126 = vld [vmem:[%s3791 + $0x18] sm:$0xe]
      %v8127 = vld [vmem:[%s3791 + $0x24] sm:$0xe]
      %v8128 = vld [vmem:[%s3791 + $0x30] sm:$0xe]
      %v8129 = vld [vmem:[%s3791 + $0x3c] sm:$0xe]
      %v8130 = vld [vmem:[%s3791 + $0x48] sm:$0xe]
      %v8131 = vld [vmem:[%s3791 + $0x54] sm:$0xe]
      %v8132 = vld [vmem:[%s3791 + $0x60] sm:$0xe]
      %v8133 = vld [vmem:[%s3791 + $0x6c] sm:$0xe]
      %v8134 = vld [vmem:[%s3791 + $0x78] sm:$0xe]
      %v8135 = vld [vmem:[%s3791 + $0x84] sm:$0xe]
      %v8136 = vld [vmem:[%s3791 + $0x90] sm:$0xe]
      %v8137 = vld [vmem:[%s3791 + $0x9c] sm:$0xe]
      %v8138 = vld [vmem:[%s3791 + $0xa8] sm:$0xe]
      %v8139 = vld [vmem:[%s3791 + $0xb4] sm:$0xe]
      %v8188 = vrot.slane %v8124, 5
      %v8189 = vrot.slane %v8188, 4
      %v8190 = vrot.slane %v7388, 5
      %v8191 = vsel %vm5013, %v8189, %v8190
      %v8192 = vrot.slane %v8190, 4
      %v8193 = vrot.slane %v7389, 5
      %v8194 = vsel %vm5013, %v8192, %v8193
      %v8195 = vrot.slane %v8125, 5
      %v8196 = vrot.slane %v8195, 4
      %v8197 = vrot.slane %v7391, 5
      %v8198 = vsel %vm5013, %v8196, %v8197
      %v8199 = vrot.slane %v8197, 4
      %v8200 = vrot.slane %v7392, 5
      %v8201 = vsel %vm5013, %v8199, %v8200
      %v8202 = vrot.slane %v8126, 5
      %v8203 = vrot.slane %v8202, 4
      %v8204 = vrot.slane %v7394, 5
      %v8205 = vsel %vm5013, %v8203, %v8204
      %v8206 = vrot.slane %v8204, 4
      %v8207 = vrot.slane %v7395, 5
      %v8208 = vsel %vm5013, %v8206, %v8207
      %v8209 = vrot.slane %v8127, 5
      %v8210 = vrot.slane %v8209, 4
      %v8211 = vrot.slane %v7397, 5
      %v8212 = vsel %vm5013, %v8210, %v8211
      %v8213 = vrot.slane %v8211, 4
      %v8214 = vrot.slane %v7398, 5
      %v8215 = vsel %vm5013, %v8213, %v8214
      %v8216 = vrot.slane %v8128, 5
      %v8217 = vrot.slane %v8216, 4
      %v8218 = vrot.slane %v7400, 5
      %v8219 = vsel %vm5013, %v8217, %v8218
      %v8220 = vrot.slane %v8218, 4
      %v8221 = vrot.slane %v7401, 5
      %v8222 = vsel %vm5013, %v8220, %v8221
      %v8223 = vrot.slane %v8129, 5
      %v8224 = vrot.slane %v8223, 4
      %v8225 = vrot.slane %v7403, 5
      %v8226 = vsel %vm5013, %v8224, %v8225
      %v8227 = vrot.slane %v8225, 4
      %v8228 = vrot.slane %v7404, 5
      %v8229 = vsel %vm5013, %v8227, %v8228
      %v8230 = vrot.slane %v8130, 5
      %v8231 = vrot.slane %v8230, 4
      %v8232 = vrot.slane %v7406, 5
      %v8233 = vsel %vm5013, %v8231, %v8232
      %v8234 = vrot.slane %v8232, 4
      %v8235 = vrot.slane %v7407, 5
      %v8236 = vsel %vm5013, %v8234, %v8235
      %v8237 = vrot.slane %v8131, 5
      %v8238 = vrot.slane %v8237, 4
      %v8239 = vrot.slane %v7409, 5
      %v8240 = vsel %vm5013, %v8238, %v8239
      %v8241 = vrot.slane %v8239, 4
      %v8242 = vrot.slane %v7410, 5
      %v8243 = vsel %vm5013, %v8241, %v8242
      %v8244 = vrot.slane %v8132, 5
      %v8245 = vrot.slane %v8244, 4
      %v8246 = vrot.slane %v7412, 5
      %v8247 = vsel %vm5013, %v8245, %v8246
      %v8248 = vrot.slane %v8246, 4
      %v8249 = vrot.slane %v7413, 5
      %v8250 = vsel %vm5013, %v8248, %v8249
      %v8251 = vrot.slane %v8133, 5
      %v8252 = vrot.slane %v8251, 4
      %v8253 = vrot.slane %v7415, 5
      %v8254 = vsel %vm5013, %v8252, %v8253
      %v8255 = vrot.slane %v8253, 4
      %v8256 = vrot.slane %v7416, 5
      %v8257 = vsel %vm5013, %v8255, %v8256
      %v8258 = vrot.slane %v8134, 5
      %v8259 = vrot.slane %v8258, 4
      %v8260 = vrot.slane %v7418, 5
      %v8261 = vsel %vm5013, %v8259, %v8260
      %v8262 = vrot.slane %v8260, 4
      %v8263 = vrot.slane %v7419, 5
      %v8264 = vsel %vm5013, %v8262, %v8263
      %v8265 = vrot.slane %v8135, 5
      %v8266 = vrot.slane %v8265, 4
      %v8267 = vrot.slane %v7421, 5
      %v8268 = vsel %vm5013, %v8266, %v8267
      %v8269 = vrot.slane %v8267, 4
      %v8270 = vrot.slane %v7422, 5
      %v8271 = vsel %vm5013, %v8269, %v8270
      %v8272 = vrot.slane %v8136, 5
      %v8273 = vrot.slane %v8272, 4
      %v8274 = vrot.slane %v7424, 5
      %v8275 = vsel %vm5013, %v8273, %v8274
      %v8276 = vrot.slane %v8274, 4
      %v8277 = vrot.slane %v7425, 5
      %v8278 = vsel %vm5013, %v8276, %v8277
      %v8279 = vrot.slane %v8137, 5
      %v8280 = vrot.slane %v8279, 4
      %v8281 = vrot.slane %v7427, 5
      %v8282 = vsel %vm5013, %v8280, %v8281
      %v8283 = vrot.slane %v8281, 4
      %v8284 = vrot.slane %v7428, 5
      %v8285 = vsel %vm5013, %v8283, %v8284
      %v8286 = vrot.slane %v8138, 5
      %v8287 = vrot.slane %v8286, 4
      %v8288 = vrot.slane %v7430, 5
      %v8289 = vsel %vm5013, %v8287, %v8288
      %v8290 = vrot.slane %v8288, 4
      %v8291 = vrot.slane %v7431, 5
      %v8292 = vsel %vm5013, %v8290, %v8291
      %v8293 = vrot.slane %v8139, 5
      %v8294 = vrot.slane %v8293, 4
      %v8295 = vrot.slane %v7433, 5
      %v8296 = vsel %vm5013, %v8294, %v8295
      %v8297 = vrot.slane %v8295, 4
      %v8298 = vrot.slane %v7434, 5
      %v8299 = vsel %vm5013, %v8297, %v8298
      %v8300 = vunpack.c.l.b16 %v8191
      %v8301 = vunpack.c.l.b16 %v8194
      %v8302 = vunpack.c.l.b16 %v8198
      %v8303 = vunpack.c.l.b16 %v8201
      %v8304 = vunpack.c.l.b16 %v8205
      %v8305 = vunpack.c.l.b16 %v8208
      %v8306 = vunpack.c.l.b16 %v8212
      %v8307 = vunpack.c.l.b16 %v8215
      %v8308 = vunpack.c.l.b16 %v8219
      %v8309 = vunpack.c.l.b16 %v8222
      %v8310 = vunpack.c.l.b16 %v8226
      %v8311 = vunpack.c.l.b16 %v8229
      %v8312 = vunpack.c.l.b16 %v8233
      %v8313 = vunpack.c.l.b16 %v8236
      %v8314 = vunpack.c.l.b16 %v8240
      %v8315 = vunpack.c.l.b16 %v8243
      %v8316 = vunpack.c.l.b16 %v8247
      %v8317 = vunpack.c.l.b16 %v8250
      %v8318 = vunpack.c.l.b16 %v8254
      %v8319 = vunpack.c.l.b16 %v8257
      %v8320 = vunpack.c.l.b16 %v8261
      %v8321 = vunpack.c.l.b16 %v8264
      %v8322 = vunpack.c.l.b16 %v8268
      %v8323 = vunpack.c.l.b16 %v8271
      %v8324 = vunpack.c.l.b16 %v8275
      %v8325 = vunpack.c.l.b16 %v8278
      %v8326 = vunpack.c.l.b16 %v8282
      %v8327 = vunpack.c.l.b16 %v8285
      %v8328 = vunpack.c.l.b16 %v8289
      %v8329 = vunpack.c.l.b16 %v8292
      %v8330 = vunpack.c.l.b16 %v8296
      %v8331 = vunpack.c.l.b16 %v8299
      %v8332 = vpack.c.b16 %v8301, %v8300
      %v8333 = vpack.c.b16 %v8303, %v8302
      %v8334 = vpack.c.b16 %v8305, %v8304
      %v8335 = vpack.c.b16 %v8307, %v8306
      %v8336 = vpack.c.b16 %v8309, %v8308
      %v8337 = vpack.c.b16 %v8311, %v8310
      %v8338 = vpack.c.b16 %v8313, %v8312
      %v8339 = vpack.c.b16 %v8315, %v8314
      %v8340 = vpack.c.b16 %v8317, %v8316
      %v8341 = vpack.c.b16 %v8319, %v8318
      %v8342 = vpack.c.b16 %v8321, %v8320
      %v8343 = vpack.c.b16 %v8323, %v8322
      %v8344 = vpack.c.b16 %v8325, %v8324
      %v8345 = vpack.c.b16 %v8327, %v8326
      %v8346 = vpack.c.b16 %v8329, %v8328
      %v8347 = vpack.c.b16 %v8331, %v8330
      %v8380 = vunpack.c.l.b16 %v3934
      %v8381 = vunpack.c.l.b16 %v3935
      %v8382 = vunpack.c.l.b16 %v3936
      %v8383 = vunpack.c.l.b16 %v3937
      %v8384 = vunpack.c.l.b16 %v3938
      %v8385 = vunpack.c.l.b16 %v3939
      %v8386 = vunpack.c.l.b16 %v3940
      %v8387 = vunpack.c.l.b16 %v3941
      %v8388 = vunpack.c.l.b16 %v3942
      %v8389 = vunpack.c.l.b16 %v3943
      %v8390 = vunpack.c.l.b16 %v3944
      %v8391 = vunpack.c.l.b16 %v3945
      %v8392 = vunpack.c.l.b16 %v3946
      %v8393 = vunpack.c.l.b16 %v3947
      %v8394 = vunpack.c.l.b16 %v3948
      %v8395 = vunpack.c.l.b16 %v3949
      %v8396 = vpack.c.b16 %v8381, %v8380
      %v8397 = vpack.c.b16 %v8383, %v8382
      %v8398 = vpack.c.b16 %v8385, %v8384
      %v8399 = vpack.c.b16 %v8387, %v8386
      %v8400 = vpack.c.b16 %v8389, %v8388
      %v8401 = vpack.c.b16 %v8391, %v8390
      %v8402 = vpack.c.b16 %v8393, %v8392
      %v8403 = vpack.c.b16 %v8395, %v8394
      %8412 = vmatprep.subr.bf16.mxu0 0
      %8413 = vmatpush1.bf16.msra.mxu0 %v8396
      %8414 = vmatprep.subr.bf16.mxu0 0
      %8415 = vmatpush1.bf16.msra.mxu0 %v8397
      %8416 = vmatprep.subr.bf16.mxu0 0
      %8417 = vmatpush1.bf16.msra.mxu0 %v8398
      %8418 = vmatprep.subr.bf16.mxu0 0
      %8419 = vmatpush1.bf16.msra.mxu0 %v8399
      %8420 = vmatprep.subr.bf16.mxu0 0
      %8421 = vmatpush1.bf16.msra.mxu0 %v8400
      %8422 = vmatprep.subr.bf16.mxu0 0
      %8423 = vmatpush1.bf16.msra.mxu0 %v8401
      %8424 = vmatprep.subr.bf16.mxu0 0
      %8425 = vmatpush1.bf16.msra.mxu0 %v8402
      %8426 = vmatprep.subr.bf16.mxu0 0
      %8427 = vmatpush1.bf16.msra.mxu0 %v8403
      %8428 = vmatprep.subr.bf16.mxu0 0
      %8429 = vmatpush1.bf16.msra.mxu0 0
      %8430 = vmatprep.subr.bf16.mxu0 0
      %8431 = vmatpush1.bf16.msra.mxu0 0
      %8432 = vmatprep.subr.bf16.mxu0 0
      %8433 = vmatpush1.bf16.msra.mxu0 0
      %8434 = vmatprep.subr.bf16.mxu0 0
      %8435 = vmatpush1.bf16.msra.mxu0 0
      %8436 = vmatprep.subr.bf16.mxu0 0
      %8437 = vmatpush1.bf16.msra.mxu0 0
      %8438 = vmatprep.subr.bf16.mxu0 0
      %8439 = vmatpush1.bf16.msra.mxu0 0
      %8440 = vmatprep.subr.bf16.mxu0 0
      %8441 = vmatpush1.bf16.msra.mxu0 0
      %8442 = vmatprep.subr.bf16.mxu0 0
      %8443 = vmatpush1.bf16.msra.mxu0 0
      %8444 = vmatprep.mubr.bf16.mxu0 0
      %8445 = vmatmul.mubr.bf16.gmra.mrb[0].mxu0 %v8332
      %v8446 = vpop.f32.mrb[0].mxu0
      %v8447 = vadd.f32 0.0, %v8446
      %v8448 = vpop.f32.mrb[0].mxu0
      %v8449 = vpop.f32.mrb[0].mxu0
      %v8450 = vadd.f32 0.0, %v8449
      %v8451 = vpop.f32.mrb[0].mxu0
      %8452 = vmatprep.mubr.bf16.mxu0 0
      %8453 = vmatmul.mubr.bf16.gmra.mrb[0].mxu0 %v8333
      %v8454 = vpop.f32.mrb[0].mxu0
      %v8455 = vadd.f32 0.0, %v8454
      %v8456 = vpop.f32.mrb[0].mxu0
      %v8457 = vpop.f32.mrb[0].mxu0
      %v8458 = vadd.f32 0.0, %v8457
      %v8459 = vpop.f32.mrb[0].mxu0
      %8460 = vmatprep.mubr.bf16.mxu0 0
      %8461 = vmatmul.mubr.bf16.gmra.mrb[0].mxu0 %v8334
      %v8462 = vpop.f32.mrb[0].mxu0
      %v8463 = vadd.f32 0.0, %v8462
      %v8464 = vpop.f32.mrb[0].mxu0
      %v8465 = vpop.f32.mrb[0].mxu0
      %v8466 = vadd.f32 0.0, %v8465
      %v8467 = vpop.f32.mrb[0].mxu0
      %8468 = vmatprep.mubr.bf16.mxu0 0
      %8469 = vmatmul.mubr.bf16.gmra.mrb[0].mxu0 %v8335
      %v8470 = vpop.f32.mrb[0].mxu0
      %v8471 = vadd.f32 0.0, %v8470
      %v8472 = vpop.f32.mrb[0].mxu0
      %v8473 = vpop.f32.mrb[0].mxu0
      %v8474 = vadd.f32 0.0, %v8473
      %v8475 = vpop.f32.mrb[0].mxu0
      %8476 = vmatprep.mubr.bf16.mxu0 0
      %8477 = vmatmul.mubr.bf16.gmra.mrb[0].mxu0 %v8336
      %v8478 = vpop.f32.mrb[0].mxu0
      %v8479 = vadd.f32 0.0, %v8478
      %v8480 = vpop.f32.mrb[0].mxu0
      %v8481 = vpop.f32.mrb[0].mxu0
      %v8482 = vadd.f32 0.0, %v8481
      %v8483 = vpop.f32.mrb[0].mxu0
      %8484 = vmatprep.mubr.bf16.mxu0 0
      %8485 = vmatmul.mubr.bf16.gmra.mrb[0].mxu0 %v8337
      %v8486 = vpop.f32.mrb[0].mxu0
      %v8487 = vadd.f32 0.0, %v8486
      %v8488 = vpop.f32.mrb[0].mxu0
      %v8489 = vpop.f32.mrb[0].mxu0
      %v8490 = vadd.f32 0.0, %v8489
      %v8491 = vpop.f32.mrb[0].mxu0
      %8492 = vmatprep.mubr.bf16.mxu0 0
      %8493 = vmatmul.mubr.bf16.gmra.mrb[0].mxu0 %v8338
      %v8494 = vpop.f32.mrb[0].mxu0
      %v8495 = vadd.f32 0.0, %v8494
      %v8496 = vpop.f32.mrb[0].mxu0
      %v8497 = vpop.f32.mrb[0].mxu0
      %v8498 = vadd.f32 0.0, %v8497
      %v8499 = vpop.f32.mrb[0].mxu0
      %8500 = vmatprep.mubr.bf16.mxu0 0
      %8501 = vmatmul.mubr.bf16.gmra.mrb[0].mxu0 %v8339
      %v8502 = vpop.f32.mrb[0].mxu0
      %v8503 = vadd.f32 0.0, %v8502
      %v8504 = vpop.f32.mrb[0].mxu0
      %v8505 = vpop.f32.mrb[0].mxu0
      %v8506 = vadd.f32 0.0, %v8505
      %v8507 = vpop.f32.mrb[0].mxu0
      %8508 = vmatprep.mubr.bf16.mxu0 0
      %8509 = vmatmul.mubr.bf16.gmra.mrb[0].mxu0 %v8340
      %v8510 = vpop.f32.mrb[0].mxu0
      %v8511 = vadd.f32 0.0, %v8510
      %v8512 = vpop.f32.mrb[0].mxu0
      %v8513 = vpop.f32.mrb[0].mxu0
      %v8514 = vadd.f32 0.0, %v8513
      %v8515 = vpop.f32.mrb[0].mxu0
      %8516 = vmatprep.mubr.bf16.mxu0 0
      %8517 = vmatmul.mubr.bf16.gmra.mrb[0].mxu0 %v8341
      %v8518 = vpop.f32.mrb[0].mxu0
      %v8519 = vadd.f32 0.0, %v8518
      %v8520 = vpop.f32.mrb[0].mxu0
      %v8521 = vpop.f32.mrb[0].mxu0
      %v8522 = vadd.f32 0.0, %v8521
      %v8523 = vpop.f32.mrb[0].mxu0
      %8524 = vmatprep.mubr.bf16.mxu0 0
      %8525 = vmatmul.mubr.bf16.gmra.mrb[0].mxu0 %v8342
      %v8526 = vpop.f32.mrb[0].mxu0
      %v8527 = vadd.f32 0.0, %v8526
      %v8528 = vpop.f32.mrb[0].mxu0
      %v8529 = vpop.f32.mrb[0].mxu0
      %v8530 = vadd.f32 0.0, %v8529
      %v8531 = vpop.f32.mrb[0].mxu0
      %8532 = vmatprep.mubr.bf16.mxu0 0
      %8533 = vmatmul.mubr.bf16.gmra.mrb[0].mxu0 %v8343
      %v8534 = vpop.f32.mrb[0].mxu0
      %v8535 = vadd.f32 0.0, %v8534
      %v8536 = vpop.f32.mrb[0].mxu0
      %v8537 = vpop.f32.mrb[0].mxu0
      %v8538 = vadd.f32 0.0, %v8537
      %v8539 = vpop.f32.mrb[0].mxu0
      %8540 = vmatprep.mubr.bf16.mxu0 0
      %8541 = vmatmul.mubr.bf16.gmra.mrb[0].mxu0 %v8344
      %v8542 = vpop.f32.mrb[0].mxu0
      %v8543 = vadd.f32 0.0, %v8542
      %v8544 = vpop.f32.mrb[0].mxu0
      %v8545 = vpop.f32.mrb[0].mxu0
      %v8546 = vadd.f32 0.0, %v8545
      %v8547 = vpop.f32.mrb[0].mxu0
      %8548 = vmatprep.mubr.bf16.mxu0 0
      %8549 = vmatmul.mubr.bf16.gmra.mrb[0].mxu0 %v8345
      %v8550 = vpop.f32.mrb[0].mxu0
      %v8551 = vadd.f32 0.0, %v8550
      %v8552 = vpop.f32.mrb[0].mxu0
      %v8553 = vpop.f32.mrb[0].mxu0
      %v8554 = vadd.f32 0.0, %v8553
      %v8555 = vpop.f32.mrb[0].mxu0
      %8556 = vmatprep.mubr.bf16.mxu0 0
      %8557 = vmatmul.mubr.bf16.gmra.mrb[0].mxu0 %v8346
      %v8558 = vpop.f32.mrb[0].mxu0
      %v8559 = vadd.f32 0.0, %v8558
      %v8560 = vpop.f32.mrb[0].mxu0
      %v8561 = vpop.f32.mrb[0].mxu0
      %v8562 = vadd.f32 0.0, %v8561
      %v8563 = vpop.f32.mrb[0].mxu0
      %8564 = vmatprep.mubr.bf16.mxu0 0
      %8565 = vmatmul.mubr.bf16.gmra.mrb[0].mxu0 %v8347
      %v8566 = vpop.f32.mrb[0].mxu0
      %v8567 = vadd.f32 0.0, %v8566
      %v8568 = vpop.f32.mrb[0].mxu0
      %v8569 = vpop.f32.mrb[0].mxu0
      %v8570 = vadd.f32 0.0, %v8569
      %v8571 = vpop.f32.mrb[0].mxu0
      %8572 = vdwg.mxu0
      %v8573 = vadd.f32 %v8092, %v8447
      %v8574 = vadd.f32 %v8093, %v8450
      %v8575 = vadd.f32 %v8094, %v8455
      %v8576 = vadd.f32 %v8095, %v8458
      %v8577 = vadd.f32 %v8096, %v8463
      %v8578 = vadd.f32 %v8097, %v8466
      %v8579 = vadd.f32 %v8098, %v8471
      %v8580 = vadd.f32 %v8099, %v8474
      %v8581 = vadd.f32 %v8100, %v8479
      %v8582 = vadd.f32 %v8101, %v8482
      %v8583 = vadd.f32 %v8102, %v8487
      %v8584 = vadd.f32 %v8103, %v8490
      %v8585 = vadd.f32 %v8104, %v8495
      %v8586 = vadd.f32 %v8105, %v8498
      %v8587 = vadd.f32 %v8106, %v8503
      %v8588 = vadd.f32 %v8107, %v8506
      %v8589 = vadd.f32 %v8108, %v8511
      %v8590 = vadd.f32 %v8109, %v8514
      %v8591 = vadd.f32 %v8110, %v8519
      %v8592 = vadd.f32 %v8111, %v8522
      %v8593 = vadd.f32 %v8112, %v8527
      %v8594 = vadd.f32 %v8113, %v8530
      %v8595 = vadd.f32 %v8114, %v8535
      %v8596 = vadd.f32 %v8115, %v8538
      %v8597 = vadd.f32 %v8116, %v8543
      %v8598 = vadd.f32 %v8117, %v8546
      %v8599 = vadd.f32 %v8118, %v8551
      %v8600 = vadd.f32 %v8119, %v8554
      %v8601 = vadd.f32 %v8120, %v8559
      %v8602 = vadd.f32 %v8121, %v8562
      %v8603 = vadd.f32 %v8122, %v8567
      %v8604 = vadd.f32 %v8123, %v8570
      %v8605 = vadd.f32 %v8573, %v8574
      %v8606 = vadd.f32 %v8605, %v8575
      %v8607 = vadd.f32 %v8606, %v8576
      %v8608 = vadd.f32 %v8607, %v8577
      %v8609 = vadd.f32 %v8608, %v8578
      %v8610 = vadd.f32 %v8609, %v8579
      %v8611 = vadd.f32 %v8610, %v8580
      %v8612 = vadd.f32 %v8611, %v8581
      %v8613 = vadd.f32 %v8612, %v8582
      %v8614 = vadd.f32 %v8613, %v8583
      %v8615 = vadd.f32 %v8614, %v8584
      %v8616 = vadd.f32 %v8615, %v8585
      %v8617 = vadd.f32 %v8616, %v8586
      %v8618 = vadd.f32 %v8617, %v8587
      %v8619 = vadd.f32 %v8618, %v8588
      %v8620 = vadd.f32 %v8619, %v8589
      %v8621 = vadd.f32 %v8620, %v8590
      %v8622 = vadd.f32 %v8621, %v8591
      %v8623 = vadd.f32 %v8622, %v8592
      %v8624 = vadd.f32 %v8623, %v8593
      %v8625 = vadd.f32 %v8624, %v8594
      %v8626 = vadd.f32 %v8625, %v8595
      %v8627 = vadd.f32 %v8626, %v8596
      %v8628 = vadd.f32 %v8627, %v8597
      %v8629 = vadd.f32 %v8628, %v8598
      %v8630 = vadd.f32 %v8629, %v8599
      %v8631 = vadd.f32 %v8630, %v8600
      %v8632 = vadd.f32 %v8631, %v8601
      %v8633 = vadd.f32 %v8632, %v8602
      %v8634 = vadd.f32 %v8633, %v8603
      %v8635 = vadd.f32 %v8634, %v8604
      %v8636 = vrot.slane %v8635, 4
      %v8637 = vadd.f32 %v8635, %v8636
      %v8638 = vrot.slane %v8637, 2
      %v8639 = vadd.f32 %v8637, %v8638
      %v8640 = vrot.slane %v8639, 1
      %v8641 = vadd.f32 %v8639, %v8640
      %v8642 = vmul.f32 %v8641, 0.00390625
      %v8643 = vsub.f32 %v8573, %v8642
      %v8644 = vsub.f32 %v8574, %v8642
      %v8645 = vsub.f32 %v8575, %v8642
      %v8646 = vsub.f32 %v8576, %v8642
      %v8647 = vsub.f32 %v8577, %v8642
      %v8648 = vsub.f32 %v8578, %v8642
      %v8649 = vsub.f32 %v8579, %v8642
      %v8650 = vsub.f32 %v8580, %v8642
      %v8651 = vsub.f32 %v8581, %v8642
      %v8652 = vsub.f32 %v8582, %v8642
      %v8653 = vsub.f32 %v8583, %v8642
      %v8654 = vsub.f32 %v8584, %v8642
      %v8655 = vsub.f32 %v8585, %v8642
      %v8656 = vsub.f32 %v8586, %v8642
      %v8657 = vsub.f32 %v8587, %v8642
      %v8658 = vsub.f32 %v8588, %v8642
      %v8659 = vsub.f32 %v8589, %v8642
      %v8660 = vsub.f32 %v8590, %v8642
      %v8661 = vsub.f32 %v8591, %v8642
      %v8662 = vsub.f32 %v8592, %v8642
      %v8663 = vsub.f32 %v8593, %v8642
      %v8664 = vsub.f32 %v8594, %v8642
      %v8665 = vsub.f32 %v8595, %v8642
      %v8666 = vsub.f32 %v8596, %v8642
      %v8667 = vsub.f32 %v8597, %v8642
      %v8668 = vsub.f32 %v8598, %v8642
      %v8669 = vsub.f32 %v8599, %v8642
      %v8670 = vsub.f32 %v8600, %v8642
      %v8671 = vsub.f32 %v8601, %v8642
      %v8672 = vsub.f32 %v8602, %v8642
      %v8673 = vsub.f32 %v8603, %v8642
      %v8674 = vsub.f32 %v8604, %v8642
      %v8675 = vmul.f32 %v8643, %v8643
      %v8676 = vmul.f32 %v8644, %v8644
      %v8677 = vmul.f32 %v8645, %v8645
      %v8678 = vmul.f32 %v8646, %v8646
      %v8679 = vmul.f32 %v8647, %v8647
      %v8680 = vmul.f32 %v8648, %v8648
      %v8681 = vmul.f32 %v8649, %v8649
      %v8682 = vmul.f32 %v8650, %v8650
      %v8683 = vmul.f32 %v8651, %v8651
      %v8684 = vmul.f32 %v8652, %v8652
      %v8685 = vmul.f32 %v8653, %v8653
      %v8686 = vmul.f32 %v8654, %v8654
      %v8687 = vmul.f32 %v8655, %v8655
      %v8688 = vmul.f32 %v8656, %v8656
      %v8689 = vmul.f32 %v8657, %v8657
      %v8690 = vmul.f32 %v8658, %v8658
      %v8691 = vmul.f32 %v8659, %v8659
      %v8692 = vmul.f32 %v8660, %v8660
      %v8693 = vmul.f32 %v8661, %v8661
      %v8694 = vmul.f32 %v8662, %v8662
      %v8695 = vmul.f32 %v8663, %v8663
      %v8696 = vmul.f32 %v8664, %v8664
      %v8697 = vmul.f32 %v8665, %v8665
      %v8698 = vmul.f32 %v8666, %v8666
      %v8699 = vmul.f32 %v8667, %v8667
      %v8700 = vmul.f32 %v8668, %v8668
      %v8701 = vmul.f32 %v8669, %v8669
      %v8702 = vmul.f32 %v8670, %v8670
      %v8703 = vmul.f32 %v8671, %v8671
      %v8704 = vmul.f32 %v8672, %v8672
      %v8705 = vmul.f32 %v8673, %v8673
      %v8706 = vmul.f32 %v8674, %v8674
      %v8707 = vadd.f32 %v8675, %v8676
      %v8708 = vadd.f32 %v8707, %v8677
      %v8709 = vadd.f32 %v8708, %v8678
      %v8710 = vadd.f32 %v8709, %v8679
      %v8711 = vadd.f32 %v8710, %v8680
      %v8712 = vadd.f32 %v8711, %v8681
      %v8713 = vadd.f32 %v8712, %v8682
      %v8714 = vadd.f32 %v8713, %v8683
      %v8715 = vadd.f32 %v8714, %v8684
      %v8716 = vadd.f32 %v8715, %v8685
      %v8717 = vadd.f32 %v8716, %v8686
      %v8718 = vadd.f32 %v8717, %v8687
      %v8719 = vadd.f32 %v8718, %v8688
      %v8720 = vadd.f32 %v8719, %v8689
      %v8721 = vadd.f32 %v8720, %v8690
      %v8722 = vadd.f32 %v8721, %v8691
      %v8723 = vadd.f32 %v8722, %v8692
      %v8724 = vadd.f32 %v8723, %v8693
      %v8725 = vadd.f32 %v8724, %v8694
      %v8726 = vadd.f32 %v8725, %v8695
      %v8727 = vadd.f32 %v8726, %v8696
      %v8728 = vadd.f32 %v8727, %v8697
      %v8729 = vadd.f32 %v8728, %v8698
      %v8730 = vadd.f32 %v8729, %v8699
      %v8731 = vadd.f32 %v8730, %v8700
      %v8732 = vadd.f32 %v8731, %v8701
      %v8733 = vadd.f32 %v8732, %v8702
      %v8734 = vadd.f32 %v8733, %v8703
      %v8735 = vadd.f32 %v8734, %v8704
      %v8736 = vadd.f32 %v8735, %v8705
      %v8737 = vadd.f32 %v8736, %v8706
      %v8738 = vrot.slane %v8737, 4
      %v8739 = vadd.f32 %v8737, %v8738
      %v8740 = vrot.slane %v8739, 2
      %v8741 = vadd.f32 %v8739, %v8740
      %v8742 = vrot.slane %v8741, 1
      %v8743 = vadd.f32 %v8741, %v8742
      %v8744 = vmul.f32 %v8743, 0.00390625
      %v8745 = vadd.f32 %v8744, 1e-05
      %v8746 = vrsqrt.pop %v8745
      %v8747 = vmul.f32 %v8643, %v8746
      %v8748 = vmul.f32 %v8644, %v8746
      %v8749 = vmul.f32 %v8645, %v8746
      %v8750 = vmul.f32 %v8646, %v8746
      %v8751 = vmul.f32 %v8647, %v8746
      %v8752 = vmul.f32 %v8648, %v8746
      %v8753 = vmul.f32 %v8649, %v8746
      %v8754 = vmul.f32 %v8650, %v8746
      %v8755 = vmul.f32 %v8651, %v8746
      %v8756 = vmul.f32 %v8652, %v8746
      %v8757 = vmul.f32 %v8653, %v8746
      %v8758 = vmul.f32 %v8654, %v8746
      %v8759 = vmul.f32 %v8655, %v8746
      %v8760 = vmul.f32 %v8656, %v8746
      %v8761 = vmul.f32 %v8657, %v8746
      %v8762 = vmul.f32 %v8658, %v8746
      %v8763 = vmul.f32 %v8659, %v8746
      %v8764 = vmul.f32 %v8660, %v8746
      %v8765 = vmul.f32 %v8661, %v8746
      %v8766 = vmul.f32 %v8662, %v8746
      %v8767 = vmul.f32 %v8663, %v8746
      %v8768 = vmul.f32 %v8664, %v8746
      %v8769 = vmul.f32 %v8665, %v8746
      %v8770 = vmul.f32 %v8666, %v8746
      %v8771 = vmul.f32 %v8667, %v8746
      %v8772 = vmul.f32 %v8668, %v8746
      %v8773 = vmul.f32 %v8669, %v8746
      %v8774 = vmul.f32 %v8670, %v8746
      %v8775 = vmul.f32 %v8671, %v8746
      %v8776 = vmul.f32 %v8672, %v8746
      %v8777 = vmul.f32 %v8673, %v8746
      %v8778 = vmul.f32 %v8674, %v8746
      %v8779 = vld [vmem:[%s1119 + $0x1] sm:$0xff]
      %v8780 = vld [vmem:[%s1119 + $0x9] sm:$0xff]
      %v8781 = vld [vmem:[%s1119 + $0x19] sm:$0xff]
      %v8782 = vld [vmem:[%s1119 + $0x21] sm:$0xff]
      %v8783 = vld [vmem:[%s1119 + $0x31] sm:$0xff]
      %v8784 = vld [vmem:[%s1119 + $0x39] sm:$0xff]
      %v8785 = vld [vmem:[%s1119 + $0x49] sm:$0xff]
      %v8786 = vld [vmem:[%s1119 + $0x51] sm:$0xff]
      %v8787 = vld [vmem:[%s1119 + $0x61] sm:$0xff]
      %v8788 = vld [vmem:[%s1119 + $0x69] sm:$0xff]
      %v8789 = vld [vmem:[%s1119 + $0x79] sm:$0xff]
      %v8790 = vld [vmem:[%s1119 + $0x81] sm:$0xff]
      %v8791 = vld [vmem:[%s1119 + $0x91] sm:$0xff]
      %v8792 = vld [vmem:[%s1119 + $0x99] sm:$0xff]
      %v8793 = vld [vmem:[%s1119 + $0xa9] sm:$0xff]
      %v8794 = vld [vmem:[%s1119 + $0xb1] sm:$0xff]
      %v8795 = vld [vmem:[%s1119 + $0xc1] sm:$0xff]
      %v8796 = vld [vmem:[%s1119 + $0xc9] sm:$0xff]
      %v8797 = vld [vmem:[%s1119 + $0xd9] sm:$0xff]
      %v8798 = vld [vmem:[%s1119 + $0xe1] sm:$0xff]
      %v8799 = vld [vmem:[%s1119 + $0xf1] sm:$0xff]
      %v8800 = vld [vmem:[%s1119 + $0xf9] sm:$0xff]
      %v8801 = vld [vmem:[%s1119 + $0x109] sm:$0xff]
      %v8802 = vld [vmem:[%s1119 + $0x111] sm:$0xff]
      %v8803 = vld [vmem:[%s1119 + $0x121] sm:$0xff]
      %v8804 = vld [vmem:[%s1119 + $0x129] sm:$0xff]
      %v8805 = vld [vmem:[%s1119 + $0x139] sm:$0xff]
      %v8806 = vld [vmem:[%s1119 + $0x141] sm:$0xff]
      %v8807 = vld [vmem:[%s1119 + $0x151] sm:$0xff]
      %v8808 = vld [vmem:[%s1119 + $0x159] sm:$0xff]
      %v8809 = vld [vmem:[%s1119 + $0x169] sm:$0xff]
      %v8810 = vld [vmem:[%s1119 + $0x171] sm:$0xff]
      %v8811 = vadd.f32 %v8779, %v8747
      %v8812 = vadd.f32 %v8780, %v8748
      %v8813 = vadd.f32 %v8781, %v8749
      %v8814 = vadd.f32 %v8782, %v8750
      %v8815 = vadd.f32 %v8783, %v8751
      %v8816 = vadd.f32 %v8784, %v8752
      %v8817 = vadd.f32 %v8785, %v8753
      %v8818 = vadd.f32 %v8786, %v8754
      %v8819 = vadd.f32 %v8787, %v8755
      %v8820 = vadd.f32 %v8788, %v8756
      %v8821 = vadd.f32 %v8789, %v8757
      %v8822 = vadd.f32 %v8790, %v8758
      %v8823 = vadd.f32 %v8791, %v8759
      %v8824 = vadd.f32 %v8792, %v8760
      %v8825 = vadd.f32 %v8793, %v8761
      %v8826 = vadd.f32 %v8794, %v8762
      %v8827 = vadd.f32 %v8795, %v8763
      %v8828 = vadd.f32 %v8796, %v8764
      %v8829 = vadd.f32 %v8797, %v8765
      %v8830 = vadd.f32 %v8798, %v8766
      %v8831 = vadd.f32 %v8799, %v8767
      %v8832 = vadd.f32 %v8800, %v8768
      %v8833 = vadd.f32 %v8801, %v8769
      %v8834 = vadd.f32 %v8802, %v8770
      %v8835 = vadd.f32 %v8803, %v8771
      %v8836 = vadd.f32 %v8804, %v8772
      %v8837 = vadd.f32 %v8805, %v8773
      %v8838 = vadd.f32 %v8806, %v8774
      %v8839 = vadd.f32 %v8807, %v8775
      %v8840 = vadd.f32 %v8808, %v8776
      %v8841 = vadd.f32 %v8809, %v8777
      %v8842 = vadd.f32 %v8810, %v8778
      %8843 = vst [vmem:[%s170] sm:$0xff] %v8811
      %8844 = vst [vmem:[%s170 + $0x8] sm:$0xff] %v8812
      %8845 = vst [vmem:[%s170 + $0x10] sm:$0xff] %v8813
      %8846 = vst [vmem:[%s170 + $0x18] sm:$0xff] %v8814
      %8847 = vst [vmem:[%s170 + $0x20] sm:$0xff] %v8815
      %8848 = vst [vmem:[%s170 + $0x28] sm:$0xff] %v8816
      %8849 = vst [vmem:[%s170 + $0x30] sm:$0xff] %v8817
      %8850 = vst [vmem:[%s170 + $0x38] sm:$0xff] %v8818
      %8851 = vst [vmem:[%s170 + $0x40] sm:$0xff] %v8819
      %8852 = vst [vmem:[%s170 + $0x48] sm:$0xff] %v8820
      %8853 = vst [vmem:[%s170 + $0x50] sm:$0xff] %v8821
      %8854 = vst [vmem:[%s170 + $0x58] sm:$0xff] %v8822
      %8855 = vst [vmem:[%s170 + $0x60] sm:$0xff] %v8823
      %8856 = vst [vmem:[%s170 + $0x68] sm:$0xff] %v8824
      %8857 = vst [vmem:[%s170 + $0x70] sm:$0xff] %v8825
      %8858 = vst [vmem:[%s170 + $0x78] sm:$0xff] %v8826
      %8859 = vst [vmem:[%s170 + $0x80] sm:$0xff] %v8827
      %8860 = vst [vmem:[%s170 + $0x88] sm:$0xff] %v8828
      %8861 = vst [vmem:[%s170 + $0x90] sm:$0xff] %v8829
      %8862 = vst [vmem:[%s170 + $0x98] sm:$0xff] %v8830
      %8863 = vst [vmem:[%s170 + $0xa0] sm:$0xff] %v8831
      %8864 = vst [vmem:[%s170 + $0xa8] sm:$0xff] %v8832
      %8865 = vst [vmem:[%s170 + $0xb0] sm:$0xff] %v8833
      %8866 = vst [vmem:[%s170 + $0xb8] sm:$0xff] %v8834
      %8867 = vst [vmem:[%s170 + $0xc0] sm:$0xff] %v8835
      %8868 = vst [vmem:[%s170 + $0xc8] sm:$0xff] %v8836
      %8869 = vst [vmem:[%s170 + $0xd0] sm:$0xff] %v8837
      %8870 = vst [vmem:[%s170 + $0xd8] sm:$0xff] %v8838
      %8871 = vst [vmem:[%s170 + $0xe0] sm:$0xff] %v8839
      %8872 = vst [vmem:[%s170 + $0xe8] sm:$0xff] %v8840
      %8873 = vst [vmem:[%s170 + $0xf0] sm:$0xff] %v8841
      %8874 = vst [vmem:[%s170 + $0xf8] sm:$0xff] %v8842
      %p8875 = scmp.lt.s32.totalorder %s14, 1
      %s8876 = scalar_select %p8875, %s14, 1
      %s8877 = smul.addr %s8876, 32
      %s8878 = smul.addr %s8877, 8
      %s8879 = scalar_lea.vmem %s3, %s8878
      // Predicated region
      $region33: #{residual_block_nhwc.1} parent=31 // pred_check
        %p8880 = pneg %p100
      $region34: #{residual_block_nhwc.1} parent=31 // pred_check_branch
        %8882 = sbr.rel (%p8880) target = $region36
      $region35: #{residual_block_nhwc.1} parent=31 // pred_region
        _
      $region36: #{residual_block_nhwc.1} parent=31 // pred_fallthru
        _
    $region32: #{residual_block_nhwc.1} parent=5 // pred_fallthru
      _
    %p8883 = scmp.le.s32.totalorder 2, %s9
    // Predicated region
    $region37: #{residual_block_nhwc.1} parent=5 // pred_check
      %p8884 = pneg %p8883
    $region38: #{residual_block_nhwc.1} parent=5 // pred_check_branch
      %8886 = sbr.rel (%p8884) target = $region40
    $region39: #{residual_block_nhwc.1} parent=5 // pred_region
      %s8887 = ssub.s32 %s9, 2
      // Predicated region
      $region41: #{residual_block_nhwc.1} parent=39 // pred_check
        %p8888 = pneg %p106
      $region42: #{residual_block_nhwc.1} parent=39 // pred_check_branch
        %8890 = sbr.rel (%p8888) target = $region44
      $region43: #{residual_block_nhwc.1} parent=39 // pred_region
        %p8891 = scmp.lt.s32.totalorder %s15, 1
        %s8892 = scalar_select %p8891, %s15, 1
        %s8893 = smul.addr %s8892, 32
        %s8894 = smul.addr %s8893, 8
        %s8895 = scalar_lea.vmem %s3, %s8894
      $region44: #{residual_block_nhwc.1} parent=39 // pred_fallthru
        _
    $region40: #{residual_block_nhwc.1} parent=5 // pred_fallthru
      _
  $region6: #{residual_block_nhwc.1} parent=0 // loop_footer
    %s13 = sadd.s32 1, %s9
  $region7: #{residual_block_nhwc.1} parent=0 // loop_footer_branch
    %8 = sbr.rel target = $region3
  $region8: #{residual_block_nhwc.1} parent=0 // loop_exit
    _

</llo_original>
